<compile_context>
chip_gen: v7x
topology: tpu7x:2x2x1
jax: 0.10.0
libtpu: 0.0.40
codegen_flags: <defaults>
</compile_context>

<pallas_src>
import jax
import jax.numpy as jnp
from jax.experimental import pallas as pl
from jax.experimental.pallas import tpu as pltpu

# hungry_geese board constants and module hyper-params (small, synthetic).
N_ROWS, N_COLS = 7, 11
IN_CHANNELS = 32
OUT_CHANNELS = 32          # must equal IN_CHANNELS for the `mlp(x) + x` residual
HEADS = 4
DIM = IN_CHANNELS // HEADS  # per-head dim (proj_factor=1)
S = N_ROWS * N_COLS
BATCH = 2

# TODO(synk): normalize=True (nn.LayerNorm([C, N_ROWS, N_COLS])) branch not
# implemented; the module default normalize=False uses nn.Identity, which is
# what this kernel reproduces.


def _split_heads(m):
    """[S, C] -> [HEADS, S, DIM] (head-major) via static lane slices + stack."""
    return jnp.stack([m[:, h * DIM:(h + 1) * DIM] for h in range(HEADS)], axis=0)


def _attn_block_kernel(x_ref, wqkv_ref, rel_ref, w12_ref, b12_ref, o_ref):
    C = IN_CHANNELS
    OC = OUT_CHANNELS
    x = x_ref[0]                                     # [S, C]

    # Fused q/k/v projection; the DIM**-0.5 attention scale is folded into the
    # wq columns in the wrapper, so q is already scaled.
    qkv = jnp.dot(x, wqkv_ref[...], preferred_element_type=jnp.float32)  # [S, 3C]
    q = _split_heads(qkv[:, :C])                     # [H, S, D]
    k = _split_heads(qkv[:, C:2 * C])                # [H, S, D]
    v = _split_heads(qkv[:, 2 * C:])                 # [H, S, D]

    # Content logits for all heads in one batched matmul: [H, S, S].
    logits = jnp.einsum('hsd,htd->hst', q, k,
                        preferred_element_type=jnp.float32)

    # Torus relative-position bias for all heads in one pass:
    #   bias[h, s, t] = sum_d q[h, s, d] * rel[s, d, t]
    # (keys along lanes, D along sublanes -> dense broadcast-mul + sublane sum)
    rel = rel_ref[...]                               # [S, D, S]
    bias = jnp.sum(q[:, :, :, None] * rel[None, :, :, :], axis=2)   # [H, S, S]
    logits = logits + bias

    # Softmax over keys (== softmax over flattened h*w in the reference),
    # single pass over all heads; the divide goes to the EUP.
    m = jnp.max(logits, axis=-1, keepdims=True)
    e = jnp.exp(logits - m)
    denom = jnp.sum(e, axis=-1, keepdims=True)
    w = e * pl.reciprocal(denom, approx=True)

    # Attention output for all heads in one batched matmul, then fold heads
    # (channel ordering = head * DIM + d, matching the reference).
    ctx = jnp.einsum('hst,htd->hsd', w, v,
                     preferred_element_type=jnp.float32)             # [H, S, D]
    attn = jnp.concatenate([ctx[h] for h in range(HEADS)], axis=-1)  # [S, C]

    x1 = attn + x                                    # first residual

    # MLP = 1x1 conv -> ReLU -> 1x1 conv (per-position linear layers).
    # w1|w2 packed as [C, 2*OC], b1;b2 packed as [2, OC].
    w12 = w12_ref[...]
    b12 = b12_ref[...]
    h1 = jnp.maximum(
        jnp.dot(x1, w12[:, :OC], preferred_element_type=jnp.float32) + b12[0:1, :],
        0.0)
    mlp = jnp.dot(h1, w12[:, OC:], preferred_element_type=jnp.float32) + b12[1:2, :]

    o_ref[0] = mlp + x1                              # second residual


def basic_attention_block(x_nchw, params):
    B, C, H, W = x_nchw.shape
    s = H * W
    x = jnp.transpose(x_nchw, (0, 2, 3, 1)).reshape(B, s, C)

    # Fused projection weight with the attention scale folded into wq
    # (reference applies q * DIM**-0.5 before BOTH content and relative logits,
    # so scaling the wq columns is exactly equivalent).
    scale = jnp.float32(DIM ** (-0.5))
    wqkv = jnp.concatenate(
        [params['wq'] * scale, params['wk'], params['wv']], axis=1)  # [C, 3C]

    # Pre-gather torus relative-position embeddings (data-independent glue):
    # rel[s, d, t] = rel_emb_h[(h(t)-h(s)-1) % H, d] + rel_emb_w[(w(t)-w(s)-1) % W, d]
    pos = jnp.arange(s)
    h_s = pos // W
    w_s = pos % W
    idx_h = (h_s[None, :] - h_s[:, None] - 1) % H        # [S, S]
    idx_w = (w_s[None, :] - w_s[:, None] - 1) % W        # [S, S]
    rel = params['rel_emb_h'][idx_h] + params['rel_emb_w'][idx_w]   # [S, S, DIM]
    rel_t = jnp.transpose(rel, (0, 2, 1))                # [S, DIM, S]

    # Pack MLP operands: fewer pipelined input streams.
    w12 = jnp.concatenate([params['w1'], params['w2']], axis=1)     # [C, 2*OC]
    b12 = jnp.concatenate([params['b1'], params['b2']], axis=0)     # [2, OC]

    # Advisory cost estimate for the XLA scheduler.
    flops_per_b = (2 * s * C * 3 * C                  # qkv projection
                   + 3 * 2 * HEADS * s * s * DIM      # logits + rel bias + attn@v
                   + 2 * 2 * s * C * OUT_CHANNELS)    # MLP (two 1x1 convs)
    bytes_accessed = 4 * (2 * B * s * C               # x in + out
                          + C * 3 * C                 # wqkv
                          + s * DIM * s               # rel
                          + C * 2 * OUT_CHANNELS      # w12
                          + 2 * OUT_CHANNELS)         # b12
    cost = pl.CostEstimate(flops=B * flops_per_b,
                           transcendentals=B * HEADS * s * s,
                           bytes_accessed=bytes_accessed)

    out = pl.pallas_call(
        _attn_block_kernel,
        out_shape=jax.ShapeDtypeStruct((B, s, C), jnp.float32),
        grid=(B,),
        in_specs=[
            pl.BlockSpec((1, s, C), lambda b: (b, 0, 0)),            # x
            pl.BlockSpec((C, 3 * C), lambda b: (0, 0)),              # wqkv (fused)
            pl.BlockSpec((s, DIM, s), lambda b: (0, 0, 0)),          # rel (grid-constant)
            pl.BlockSpec((C, 2 * OUT_CHANNELS), lambda b: (0, 0)),   # w1|w2
            pl.BlockSpec((2, OUT_CHANNELS), lambda b: (0, 0)),       # b1;b2
        ],
        out_specs=pl.BlockSpec((1, s, C), lambda b: (b, 0, 0)),
        compiler_params=pltpu.CompilerParams(
            dimension_semantics=("parallel",)),
        cost_estimate=cost,
    )(x, wqkv, rel_t, w12, b12)

    return jnp.transpose(out.reshape(B, H, W, C), (0, 3, 1, 2))


# ---------- pure-JAX reference (literal translation of the PyTorch module) ----------
def _rel_to_abs(t):
    bs, hh, L, _ = t.shape
    t = jnp.concatenate([t, jnp.zeros((bs, hh, L, 1), t.dtype)], axis=3)
    flat = t.reshape(bs, hh, -1)
    flat = jnp.concatenate([flat, jnp.zeros((bs, hh, L - 1), t.dtype)], axis=2)
    final = flat.reshape(bs, hh, L + 1, 2 * L - 1)
    return final[:, :, :L, L - 1:]


def _rel_logits_1d(qq, rel_k, perm):
    bs, n, hx, wy, d = qq.shape
    rl = jnp.einsum('bhxyd,md->bhxym', qq, rel_k)
    rl = rl.reshape(-1, n * hx, wy, 2 * wy - 1)
    rl = _rel_to_abs(rl)
    rl = rl.reshape(-1, n, hx, wy, wy)
    rl = jnp.expand_dims(rl, axis=3)
    rl = jnp.tile(rl, (1, 1, 1, hx, 1, 1))
    return jnp.transpose(rl, perm)


def _ref_forward(x, params):
    B, C, H, W = x.shape
    xp = jnp.transpose(x, (0, 2, 3, 1))                     # b h w c
    wq3 = params['wq'].reshape(C, HEADS, DIM)
    wk3 = params['wk'].reshape(C, HEADS, DIM)
    wv3 = params['wv'].reshape(C, HEADS, DIM)
    q = jnp.einsum('bhwc,cnp->bnhwp', xp, wq3)
    k = jnp.einsum('bhwc,cnp->bnhwp', xp, wk3)
    v = jnp.einsum('bhwc,cnp->bnhwp', xp, wv3)
    q = q * DIM ** (-0.5)
    logits = jnp.einsum('bnhwd,bnpqd->bnhwpq', q, k)
    rel_w = _rel_logits_1d(
        q, jnp.concatenate([params['rel_emb_w'], params['rel_emb_w'][:-1]], 0),
        (0, 1, 2, 4, 3, 5))
    rel_h = _rel_logits_1d(
        jnp.transpose(q, (0, 1, 3, 2, 4)),
        jnp.concatenate([params['rel_emb_h'], params['rel_emb_h'][:-1]], 0),
        (0, 1, 4, 2, 5, 3))
    logits = logits + rel_h + rel_w
    weights = jax.nn.softmax(logits.reshape(B, HEADS, H, W, H * W), axis=-1)
    weights = weights.reshape(B, HEADS, H, W, H, W)
    attn = jnp.einsum('bnhwpq,bnpqd->bhwnd', weights, v).reshape(B, H, W, HEADS * DIM)
    o = jnp.transpose(attn, (0, 3, 1, 2))                   # b c h w
    x1 = o + x
    x1l = jnp.transpose(x1, (0, 2, 3, 1))
    h1 = jnp.maximum(x1l @ params['w1'] + params['b1'][0], 0.0)
    mlp = h1 @ params['w2'] + params['b2'][0]
    return jnp.transpose(mlp, (0, 3, 1, 2)) + x1


if __name__ == "__main__":
    key = jax.random.PRNGKey(0)
    ks = jax.random.split(key, 10)
    C = IN_CHANNELS
    params = {
        # GroupPointWise weights: [C, heads, C//heads], std=0.01 -> reshaped [C, C]
        'wq': (0.01 * jax.random.normal(ks[0], (C, HEADS, DIM), jnp.float32)).reshape(C, C),
        'wk': (0.01 * jax.random.normal(ks[1], (C, HEADS, DIM), jnp.float32)).reshape(C, C),
        'wv': (0.01 * jax.random.normal(ks[2], (C, HEADS, DIM), jnp.float32)).reshape(C, C),
        # relative embeddings, std = dim**-0.5
        'rel_emb_w': DIM ** (-0.5) * jax.random.normal(ks[3], (N_COLS, DIM), jnp.float32),
        'rel_emb_h': DIM ** (-0.5) * jax.random.normal(ks[4], (N_ROWS, DIM), jnp.float32),
        # MLP: two 1x1 convs (stored as [in, out] matrices) + biases [1, out]
        'w1': 0.05 * jax.random.normal(ks[5], (C, OUT_CHANNELS), jnp.float32),
        'b1': 0.01 * jax.random.normal(ks[6], (1, OUT_CHANNELS), jnp.float32),
        'w2': 0.05 * jax.random.normal(ks[7], (OUT_CHANNELS, OUT_CHANNELS), jnp.float32),
        'b2': 0.01 * jax.random.normal(ks[8], (1, OUT_CHANNELS), jnp.float32),
    }
    x = jax.random.normal(ks[9], (BATCH, C, N_ROWS, N_COLS), jnp.float32)  # NCHW

    out = jax.block_until_ready(basic_attention_block(x, params))
    ref = jax.block_until_ready(_ref_forward(x, params))

    assert out.shape == (BATCH, OUT_CHANNELS, N_ROWS, N_COLS), out.shape
    max_err = float(jnp.max(jnp.abs(out - ref)))
    assert jnp.allclose(out, ref, atol=2e-3, rtol=2e-3), max_err
    print("KERNEL_OK")
</pallas_src>

<mosaic_0001>
module attributes {stable_mosaic.version = 11 : i64} {
  func.func @_attn_block_kernel(%arg0: i32, %arg1: memref<1x77x32xf32, #tpu.memory_space<vmem>>, %arg2: memref<32x96xf32, #tpu.memory_space<vmem>>, %arg3: memref<77x8x77xf32, #tpu.memory_space<vmem>>, %arg4: memref<32x64xf32, #tpu.memory_space<vmem>>, %arg5: memref<2x32xf32, #tpu.memory_space<vmem>>, %arg6: memref<1x77x32xf32, #tpu.memory_space<vmem>>) attributes {dimension_semantics = [#tpu.dimension_semantics<parallel>], iteration_bounds = array<i64: 2>, scalar_prefetch = 0 : i64, scratch_operands = 0 : i64, tpu.core_type = #tpu.core_type<tc>, window_params = [{transform_indices = @transform_0, window_bounds = array<i64: 1, 77, 32>}, {pipeline_mode = #tpu.pipeline_mode<synchronous>, transform_indices = @transform_1, window_bounds = array<i64: 32, 96>}, {pipeline_mode = #tpu.pipeline_mode<synchronous>, transform_indices = @transform_2, window_bounds = array<i64: 77, 8, 77>}, {pipeline_mode = #tpu.pipeline_mode<synchronous>, transform_indices = @transform_3, window_bounds = array<i64: 32, 64>}, {pipeline_mode = #tpu.pipeline_mode<synchronous>, transform_indices = @transform_4, window_bounds = array<i64: 2, 32>}, {transform_indices = @transform_5, window_bounds = array<i64: 1, 77, 32>}]} {
    %c0 = arith.constant 0 : index
    %c0_0 = arith.constant 0 : index
    %c0_1 = arith.constant 0 : index
    %0 = vector.load %arg1[%c0, %c0_0, %c0_1] : memref<1x77x32xf32, #tpu.memory_space<vmem>>, vector<1x77x32xf32>
    %1 = vector.shape_cast %0 : vector<1x77x32xf32> to vector<77x32xf32>
    %c0_2 = arith.constant 0 : index
    %c0_3 = arith.constant 0 : index
    %2 = vector.load %arg2[%c0_2, %c0_3] : memref<32x96xf32, #tpu.memory_space<vmem>>, vector<32x96xf32>
    %cst = arith.constant dense<0.000000e+00> : vector<77x96xf32>
    %3 = tpu.matmul %1, %2, %cst {dimension_numbers = #tpu.dot_dimension_numbers<[1], [0], [0], [1], [0, 0, 1, 1], [], []>} : vector<77x32xf32>, vector<32x96xf32>, vector<77x96xf32> -> vector<77x96xf32>
    %4 = vector.extract_strided_slice %3 {offsets = [0, 0], sizes = [77, 32], strides = [1, 1]} : vector<77x96xf32> to vector<77x32xf32>
    %5 = vector.extract_strided_slice %4 {offsets = [0, 0], sizes = [77, 8], strides = [1, 1]} : vector<77x32xf32> to vector<77x8xf32>
    %6 = vector.extract_strided_slice %4 {offsets = [0, 8], sizes = [77, 8], strides = [1, 1]} : vector<77x32xf32> to vector<77x8xf32>
    %7 = vector.extract_strided_slice %4 {offsets = [0, 16], sizes = [77, 8], strides = [1, 1]} : vector<77x32xf32> to vector<77x8xf32>
    %8 = vector.extract_strided_slice %4 {offsets = [0, 24], sizes = [77, 8], strides = [1, 1]} : vector<77x32xf32> to vector<77x8xf32>
    %9 = vector.shape_cast %5 : vector<77x8xf32> to vector<1x77x8xf32>
    %10 = vector.shape_cast %6 : vector<77x8xf32> to vector<1x77x8xf32>
    %11 = vector.shape_cast %7 : vector<77x8xf32> to vector<1x77x8xf32>
    %12 = vector.shape_cast %8 : vector<77x8xf32> to vector<1x77x8xf32>
    %13 = tpu.concatenate %9, %10, %11, %12 in 0 : vector<1x77x8xf32>, vector<1x77x8xf32>, vector<1x77x8xf32>, vector<1x77x8xf32> -> vector<4x77x8xf32>
    %14 = vector.extract_strided_slice %3 {offsets = [0, 32], sizes = [77, 32], strides = [1, 1]} : vector<77x96xf32> to vector<77x32xf32>
    %15 = vector.extract_strided_slice %14 {offsets = [0, 0], sizes = [77, 8], strides = [1, 1]} : vector<77x32xf32> to vector<77x8xf32>
    %16 = vector.extract_strided_slice %14 {offsets = [0, 8], sizes = [77, 8], strides = [1, 1]} : vector<77x32xf32> to vector<77x8xf32>
    %17 = vector.extract_strided_slice %14 {offsets = [0, 16], sizes = [77, 8], strides = [1, 1]} : vector<77x32xf32> to vector<77x8xf32>
    %18 = vector.extract_strided_slice %14 {offsets = [0, 24], sizes = [77, 8], strides = [1, 1]} : vector<77x32xf32> to vector<77x8xf32>
    %19 = vector.shape_cast %15 : vector<77x8xf32> to vector<1x77x8xf32>
    %20 = vector.shape_cast %16 : vector<77x8xf32> to vector<1x77x8xf32>
    %21 = vector.shape_cast %17 : vector<77x8xf32> to vector<1x77x8xf32>
    %22 = vector.shape_cast %18 : vector<77x8xf32> to vector<1x77x8xf32>
    %23 = tpu.concatenate %19, %20, %21, %22 in 0 : vector<1x77x8xf32>, vector<1x77x8xf32>, vector<1x77x8xf32>, vector<1x77x8xf32> -> vector<4x77x8xf32>
    %24 = vector.extract_strided_slice %3 {offsets = [0, 64], sizes = [77, 32], strides = [1, 1]} : vector<77x96xf32> to vector<77x32xf32>
    %25 = vector.extract_strided_slice %24 {offsets = [0, 0], sizes = [77, 8], strides = [1, 1]} : vector<77x32xf32> to vector<77x8xf32>
    %26 = vector.extract_strided_slice %24 {offsets = [0, 8], sizes = [77, 8], strides = [1, 1]} : vector<77x32xf32> to vector<77x8xf32>
    %27 = vector.extract_strided_slice %24 {offsets = [0, 16], sizes = [77, 8], strides = [1, 1]} : vector<77x32xf32> to vector<77x8xf32>
    %28 = vector.extract_strided_slice %24 {offsets = [0, 24], sizes = [77, 8], strides = [1, 1]} : vector<77x32xf32> to vector<77x8xf32>
    %29 = vector.shape_cast %25 : vector<77x8xf32> to vector<1x77x8xf32>
    %30 = vector.shape_cast %26 : vector<77x8xf32> to vector<1x77x8xf32>
    %31 = vector.shape_cast %27 : vector<77x8xf32> to vector<1x77x8xf32>
    %32 = vector.shape_cast %28 : vector<77x8xf32> to vector<1x77x8xf32>
    %33 = tpu.concatenate %29, %30, %31, %32 in 0 : vector<1x77x8xf32>, vector<1x77x8xf32>, vector<1x77x8xf32>, vector<1x77x8xf32> -> vector<4x77x8xf32>
    "tpu.trace_start"() <{level = 10 : i32, message = "hsd,htd->hst"}> : () -> ()
    %cst_4 = arith.constant dense<0.000000e+00> : vector<4x77x77xf32>
    %34 = tpu.matmul %13, %23, %cst_4 {dimension_numbers = #tpu.dot_dimension_numbers<[2], [2], [1], [1], [0, 0, 0, 1, 1, 1], [0], [0]>} : vector<4x77x8xf32>, vector<4x77x8xf32>, vector<4x77x77xf32> -> vector<4x77x77xf32>
    "tpu.trace_stop"() : () -> ()
    %c0_5 = arith.constant 0 : index
    %c0_6 = arith.constant 0 : index
    %c0_7 = arith.constant 0 : index
    %35 = vector.load %arg3[%c0_5, %c0_6, %c0_7] : memref<77x8x77xf32, #tpu.memory_space<vmem>>, vector<77x8x77xf32>
    %36 = vector.shape_cast %13 : vector<4x77x8xf32> to vector<4x77x8x1xf32>
    %37 = vector.shape_cast %35 : vector<77x8x77xf32> to vector<1x77x8x77xf32>
    %38 = vector.broadcast %36 : vector<4x77x8x1xf32> to vector<4x77x8x77xf32>
    %39 = vector.broadcast %37 : vector<1x77x8x77xf32> to vector<4x77x8x77xf32>
    %40 = arith.mulf %38, %39 : vector<4x77x8x77xf32>
    %cst_8 = arith.constant dense<0.000000e+00> : vector<4x77x77xf32>
    %41 = vector.multi_reduction <add>, %40, %cst_8 [2] : vector<4x77x8x77xf32> to vector<4x77x77xf32>
    %42 = arith.addf %34, %41 : vector<4x77x77xf32>
    %cst_9 = arith.constant dense<0xFF800000> : vector<4x77xf32>
    %43 = vector.multi_reduction <maximumf>, %42, %cst_9 [2] : vector<4x77x77xf32> to vector<4x77xf32>
    %44 = vector.shape_cast %43 : vector<4x77xf32> to vector<4x77x1xf32>
    %45 = vector.broadcast %44 : vector<4x77x1xf32> to vector<4x77x77xf32>
    %46 = arith.subf %42, %45 : vector<4x77x77xf32>
    %47 = math.exp %46 : vector<4x77x77xf32>
    %cst_10 = arith.constant dense<0.000000e+00> : vector<4x77xf32>
    %48 = vector.multi_reduction <add>, %47, %cst_10 [2] : vector<4x77x77xf32> to vector<4x77xf32>
    %49 = vector.shape_cast %48 : vector<4x77xf32> to vector<4x77x1xf32>
    %50 = tpu.reciprocal %49 {approx = true} : vector<4x77x1xf32> -> vector<4x77x1xf32>
    %51 = vector.broadcast %50 : vector<4x77x1xf32> to vector<4x77x77xf32>
    %52 = arith.mulf %47, %51 : vector<4x77x77xf32>
    "tpu.trace_start"() <{level = 10 : i32, message = "hst,htd->hsd"}> : () -> ()
    %cst_11 = arith.constant dense<0.000000e+00> : vector<4x77x8xf32>
    %53 = tpu.matmul %52, %33, %cst_11 {dimension_numbers = #tpu.dot_dimension_numbers<[2], [1], [1], [2], [0, 0, 0, 1, 1, 2], [0], [0]>} : vector<4x77x77xf32>, vector<4x77x8xf32>, vector<4x77x8xf32> -> vector<4x77x8xf32>
    "tpu.trace_stop"() : () -> ()
    %54 = vector.extract_strided_slice %53 {offsets = [0, 0, 0], sizes = [1, 77, 8], strides = [1, 1, 1]} : vector<4x77x8xf32> to vector<1x77x8xf32>
    %55 = vector.shape_cast %54 : vector<1x77x8xf32> to vector<77x8xf32>
    %56 = vector.extract_strided_slice %53 {offsets = [1, 0, 0], sizes = [1, 77, 8], strides = [1, 1, 1]} : vector<4x77x8xf32> to vector<1x77x8xf32>
    %57 = vector.shape_cast %56 : vector<1x77x8xf32> to vector<77x8xf32>
    %58 = vector.extract_strided_slice %53 {offsets = [2, 0, 0], sizes = [1, 77, 8], strides = [1, 1, 1]} : vector<4x77x8xf32> to vector<1x77x8xf32>
    %59 = vector.shape_cast %58 : vector<1x77x8xf32> to vector<77x8xf32>
    %60 = vector.extract_strided_slice %53 {offsets = [3, 0, 0], sizes = [1, 77, 8], strides = [1, 1, 1]} : vector<4x77x8xf32> to vector<1x77x8xf32>
    %61 = vector.shape_cast %60 : vector<1x77x8xf32> to vector<77x8xf32>
    %62 = tpu.concatenate %55, %57, %59, %61 in 1 : vector<77x8xf32>, vector<77x8xf32>, vector<77x8xf32>, vector<77x8xf32> -> vector<77x32xf32>
    %63 = arith.addf %62, %1 : vector<77x32xf32>
    %c0_12 = arith.constant 0 : index
    %c0_13 = arith.constant 0 : index
    %64 = vector.load %arg4[%c0_12, %c0_13] : memref<32x64xf32, #tpu.memory_space<vmem>>, vector<32x64xf32>
    %c0_14 = arith.constant 0 : index
    %c0_15 = arith.constant 0 : index
    %65 = vector.load %arg5[%c0_14, %c0_15] : memref<2x32xf32, #tpu.memory_space<vmem>>, vector<2x32xf32>
    %66 = vector.extract_strided_slice %64 {offsets = [0, 0], sizes = [32, 32], strides = [1, 1]} : vector<32x64xf32> to vector<32x32xf32>
    %cst_16 = arith.constant dense<0.000000e+00> : vector<77x32xf32>
    %67 = tpu.matmul %63, %66, %cst_16 {dimension_numbers = #tpu.dot_dimension_numbers<[1], [0], [0], [1], [0, 0, 1, 1], [], []>} : vector<77x32xf32>, vector<32x32xf32>, vector<77x32xf32> -> vector<77x32xf32>
    %68 = vector.extract_strided_slice %65 {offsets = [0, 0], sizes = [1, 32], strides = [1, 1]} : vector<2x32xf32> to vector<1x32xf32>
    %69 = vector.broadcast %68 : vector<1x32xf32> to vector<77x32xf32>
    %70 = arith.addf %67, %69 : vector<77x32xf32>
    %cst_17 = arith.constant 0.000000e+00 : f32
    %71 = vector.broadcast %cst_17 : f32 to vector<77x32xf32>
    %72 = arith.maximumf %70, %71 : vector<77x32xf32>
    %73 = vector.extract_strided_slice %64 {offsets = [0, 32], sizes = [32, 32], strides = [1, 1]} : vector<32x64xf32> to vector<32x32xf32>
    %cst_18 = arith.constant dense<0.000000e+00> : vector<77x32xf32>
    %74 = tpu.matmul %72, %73, %cst_18 {dimension_numbers = #tpu.dot_dimension_numbers<[1], [0], [0], [1], [0, 0, 1, 1], [], []>} : vector<77x32xf32>, vector<32x32xf32>, vector<77x32xf32> -> vector<77x32xf32>
    %75 = vector.extract_strided_slice %65 {offsets = [1, 0], sizes = [1, 32], strides = [1, 1]} : vector<2x32xf32> to vector<1x32xf32>
    %76 = vector.broadcast %75 : vector<1x32xf32> to vector<77x32xf32>
    %77 = arith.addf %74, %76 : vector<77x32xf32>
    %78 = arith.addf %77, %63 : vector<77x32xf32>
    %c0_19 = arith.constant 0 : index
    %c0_20 = arith.constant 0 : index
    %c0_21 = arith.constant 0 : index
    %79 = vector.load %arg6[%c0_19, %c0_20, %c0_21] : memref<1x77x32xf32, #tpu.memory_space<vmem>>, vector<1x77x32xf32>
    %80 = vector.shape_cast %79 : vector<1x77x32xf32> to vector<77x32xf32>
    %81 = vector.shape_cast %78 : vector<77x32xf32> to vector<1x77x32xf32>
    tpu.vector_store %arg6[%c0_19, %c0_20, %c0_21], %81 {strides = array<i32>} : memref<1x77x32xf32, #tpu.memory_space<vmem>>, vector<1x77x32xf32>,
    return
  }
  func.func @transform_0(%arg0: i32) -> (i32, i32, i32) {
    %c0_i32 = arith.constant 0 : i32
    %c0_i32_0 = arith.constant 0 : i32
    %c0_i32_1 = arith.constant 0 : i32
    return %arg0, %c0_i32, %c0_i32_0 : i32, i32, i32
  }
  func.func @transform_1(%arg0: i32) -> (i32, i32) {
    %c0_i32 = arith.constant 0 : i32
    %c0_i32_0 = arith.constant 0 : i32
    %c0_i32_1 = arith.constant 0 : i32
    return %c0_i32, %c0_i32_0 : i32, i32
  }
  func.func @transform_2(%arg0: i32) -> (i32, i32, i32) {
    %c0_i32 = arith.constant 0 : i32
    %c0_i32_0 = arith.constant 0 : i32
    %c0_i32_1 = arith.constant 0 : i32
    %c0_i32_2 = arith.constant 0 : i32
    return %c0_i32, %c0_i32_0, %c0_i32_1 : i32, i32, i32
  }
  func.func @transform_3(%arg0: i32) -> (i32, i32) {
    %c0_i32 = arith.constant 0 : i32
    %c0_i32_0 = arith.constant 0 : i32
    %c0_i32_1 = arith.constant 0 : i32
    return %c0_i32, %c0_i32_0 : i32, i32
  }
  func.func @transform_4(%arg0: i32) -> (i32, i32) {
    %c0_i32 = arith.constant 0 : i32
    %c0_i32_0 = arith.constant 0 : i32
    %c0_i32_1 = arith.constant 0 : i32
    return %c0_i32, %c0_i32_0 : i32, i32
  }
  func.func @transform_5(%arg0: i32) -> (i32, i32, i32) {
    %c0_i32 = arith.constant 0 : i32
    %c0_i32_0 = arith.constant 0 : i32
    %c0_i32_1 = arith.constant 0 : i32
    return %arg0, %c0_i32, %c0_i32_0 : i32, i32, i32
  }
}

</mosaic_0001>

<llo_original>
// kernel: tpu_custom_call.1
$region0: #{tpu_custom_call.1}
  #allocation0 [shape = 'u32[]', space=smem, size = 0x4, offset = 0x4, fixed_abs, tag = 'smem constant byte address 0x4 - core index']
  #allocation1 [shape = 'u32[144,128]{1,0:T(1,128)}', space=vmem, size = 0x12000, scoped, tag = 'internal scratch']
  %s0 = inlined_call_operand.vmem [shape: f32[2,77,32], index: 0, kind: input, shape index: {}]
  %s1 = inlined_call_operand.vmem [shape: f32[32,96], index: 1, kind: input, shape index: {}]
  %s2 = inlined_call_operand.hbm [shape: f32[77,8,77], index: 2, kind: input, shape index: {}]
  %s3 = inlined_call_operand.vmem [shape: f32[32,64], index: 3, kind: input, shape index: {}]
  %s4 = inlined_call_operand.vmem [shape: f32[2,32], index: 4, kind: input, shape index: {}]
  %s5 = inlined_call_operand.vmem [shape: f32[2,77,32], index: 5, kind: output, shape index: {}]
  %s6 = sld [smem:[#allocation0]]
  $region57: #{tpu_custom_call.1} parent=0
    _
  %s8 = ssub.s32 1, %s6
  %s9 = scalar_select 0, %s8, %s6
  $region1: #{tpu_custom_call.1} parent=0
    #allocation2 [shape = 'u8[315392]{0}', space=vmem, size = 0x4d000, scoped, tag = 'input window, operand 2, single buffered']
    #allocation3 [shape = 's32[2]{0}', space=sflag, size = 0x8, scoped, tag = 'scoped memory for tpu_custom_call.1']
    %10 = vsyncpa [#allocation3], 0
    loop: start=0, step=1, limit=4
    $region2: #{tpu_custom_call.1} parent=1 // loop_pre_header
      _
    $region3: #{tpu_custom_call.1} parent=1 // loop_header
      %s12 = sphi 0, %s16
      %p13 = scmp.ge.s32.totalorder %s12, 4
      %s22 = sphi 0, %s24
      %s25 = sphi 0, %s22
      %s26 = sphi 0, %s25
      %s42 = sphi 0, %s26
      %s46 = sphi 0, %s46
      %s48 = sphi 0, %s46
      %s49 = sphi 0, %s48
      %s63 = sphi 0, %s49
      %s67 = sphi 0, %s67
      %s69 = sphi 0, %s67
      %s70 = sphi 0, %s69
      %s84 = sphi 0, %s70
      %s88 = sphi 0, %s88
      %s90 = sphi 0, %s88
      %s91 = sphi 0, %s90
      %s105 = sphi 0, %s91
      %s109 = sphi 0, %s109
      %s111 = sphi 0, %s109
      %s112 = sphi 0, %s111
      %s126 = sphi 0, %s112
      %s132 = sphi 0, %s134
      %s135 = sphi 0, %s132
      %s136 = sphi 0, %s135
      %s152 = sphi 0, %s136
    $region4: #{tpu_custom_call.1} parent=1 // loop_header_branch
      %15 = sbr.rel (%p13) target = $region8
    $region5: #{tpu_custom_call.1} parent=1 // loop_body
      %s17 = ssub.s32 %s12, 1
      %s18 = ssub.s32 %s12, 2
      %s19 = sadd.s32 %s12, 1
      %s20 = ssub.s32 %s12, %s19
      %p21 = scmp.eq.s32.totalorder %s20, 0
      %s23 = sadd.s32 %s22, 1
      %s24 = scalar_select %p21, %s22, %s23
      %p27 = pneg %p21
      %p28 = scmp.eq.s32.totalorder %s12, 1
      %p29 = por %p27, %p28
      %p30 = scmp.ne.s32.totalorder %s22, %s25
      %p31 = scmp.eq.s32.totalorder %s12, 0
      %p32 = por %p30, %p31
      %p33 = scmp.ne.s32.totalorder %s22, %s25
      %p34 = scmp.eq.s32.totalorder %s17, 1
      %p35 = por %p33, %p34
      %p36 = scmp.ne.s32.totalorder %s25, %s26
      %p37 = scmp.eq.s32.totalorder %s17, 0
      %p38 = por %p36, %p37
      %p39 = scmp.ne.s32.totalorder %s25, %s26
      %p40 = scmp.eq.s32.totalorder %s18, 1
      %p41 = por %p39, %p40
      %p43 = scmp.ne.s32.totalorder %s26, %s42
      %p44 = scmp.eq.s32.totalorder %s18, 0
      %p45 = por %p43, %p44
      %s47 = sadd.s32 %s46, 1
      %p50 = scmp.eq.s32.totalorder %s12, 1
      %p51 = scmp.ne.s32.totalorder %s46, %s48
      %p52 = scmp.eq.s32.totalorder %s12, 0
      %p53 = por %p51, %p52
      %p54 = scmp.ne.s32.totalorder %s46, %s48
      %p55 = scmp.eq.s32.totalorder %s17, 1
      %p56 = por %p54, %p55
      %p57 = scmp.ne.s32.totalorder %s48, %s49
      %p58 = scmp.eq.s32.totalorder %s17, 0
      %p59 = por %p57, %p58
      %p60 = scmp.ne.s32.totalorder %s48, %s49
      %p61 = scmp.eq.s32.totalorder %s18, 1
      %p62 = por %p60, %p61
      %p64 = scmp.ne.s32.totalorder %s49, %s63
      %p65 = scmp.eq.s32.totalorder %s18, 0
      %p66 = por %p64, %p65
      %s68 = sadd.s32 %s67, 1
      %p71 = scmp.eq.s32.totalorder %s12, 1
      %p72 = scmp.ne.s32.totalorder %s67, %s69
      %p73 = scmp.eq.s32.totalorder %s12, 0
      %p74 = por %p72, %p73
      %p75 = scmp.ne.s32.totalorder %s67, %s69
      %p76 = scmp.eq.s32.totalorder %s17, 1
      %p77 = por %p75, %p76
      %p78 = scmp.ne.s32.totalorder %s69, %s70
      %p79 = scmp.eq.s32.totalorder %s17, 0
      %p80 = por %p78, %p79
      %p81 = scmp.ne.s32.totalorder %s69, %s70
      %p82 = scmp.eq.s32.totalorder %s18, 1
      %p83 = por %p81, %p82
      %p85 = scmp.ne.s32.totalorder %s70, %s84
      %p86 = scmp.eq.s32.totalorder %s18, 0
      %p87 = por %p85, %p86
      %s89 = sadd.s32 %s88, 1
      %p92 = scmp.eq.s32.totalorder %s12, 1
      %p93 = scmp.ne.s32.totalorder %s88, %s90
      %p94 = scmp.eq.s32.totalorder %s12, 0
      %p95 = por %p93, %p94
      %p96 = scmp.ne.s32.totalorder %s88, %s90
      %p97 = scmp.eq.s32.totalorder %s17, 1
      %p98 = por %p96, %p97
      %p99 = scmp.ne.s32.totalorder %s90, %s91
      %p100 = scmp.eq.s32.totalorder %s17, 0
      %p101 = por %p99, %p100
      %p102 = scmp.ne.s32.totalorder %s90, %s91
      %p103 = scmp.eq.s32.totalorder %s18, 1
      %p104 = por %p102, %p103
      %p106 = scmp.ne.s32.totalorder %s91, %s105
      %p107 = scmp.eq.s32.totalorder %s18, 0
      %p108 = por %p106, %p107
      %s110 = sadd.s32 %s109, 1
      %p113 = scmp.eq.s32.totalorder %s12, 1
      %p114 = scmp.ne.s32.totalorder %s109, %s111
      %p115 = scmp.eq.s32.totalorder %s12, 0
      %p116 = por %p114, %p115
      %p117 = scmp.ne.s32.totalorder %s109, %s111
      %p118 = scmp.eq.s32.totalorder %s17, 1
      %p119 = por %p117, %p118
      %p120 = scmp.ne.s32.totalorder %s111, %s112
      %p121 = scmp.eq.s32.totalorder %s17, 0
      %p122 = por %p120, %p121
      %p123 = scmp.ne.s32.totalorder %s111, %s112
      %p124 = scmp.eq.s32.totalorder %s18, 1
      %p125 = por %p123, %p124
      %p127 = scmp.ne.s32.totalorder %s112, %s126
      %p128 = scmp.eq.s32.totalorder %s18, 0
      %p129 = por %p127, %p128
      %s130 = ssub.s32 %s12, %s19
      %p131 = scmp.eq.s32.totalorder %s130, 0
      %s133 = sadd.s32 %s132, 1
      %s134 = scalar_select %p131, %s132, %s133
      %p137 = pneg %p131
      %p138 = scmp.eq.s32.totalorder %s12, 1
      %p139 = por %p137, %p138
      %p140 = scmp.ne.s32.totalorder %s132, %s135
      %p141 = scmp.eq.s32.totalorder %s12, 0
      %p142 = por %p140, %p141
      %p143 = scmp.ne.s32.totalorder %s132, %s135
      %p144 = scmp.eq.s32.totalorder %s17, 1
      %p145 = por %p143, %p144
      %p146 = scmp.ne.s32.totalorder %s135, %s136
      %p147 = scmp.eq.s32.totalorder %s17, 0
      %p148 = por %p146, %p147
      %p149 = scmp.ne.s32.totalorder %s135, %s136
      %p150 = scmp.eq.s32.totalorder %s18, 1
      %p151 = por %p149, %p150
      %p153 = scmp.ne.s32.totalorder %s136, %s152
      %p154 = scmp.eq.s32.totalorder %s18, 0
      %p155 = por %p153, %p154
      %p156 = scmp.le.s32.totalorder 1, %s12
      %p157 = scmp.lt.s32.totalorder %s12, 3
      %p158 = pnand %p156, %p157
      %p159 = pneg %p158
      // Predicated region
      $region9: #{tpu_custom_call.1} parent=5 // pred_check
        _
      $region10: #{tpu_custom_call.1} parent=5 // pred_check_branch
        %161 = sbr.rel (%p158) target = $region12
      $region11: #{tpu_custom_call.1} parent=5 // pred_region
        %s162 = ssub.s32 %s12, 1
        // Predicated region
        $region13: #{tpu_custom_call.1} parent=11 // pred_check
          %p163 = pneg %p59
        $region14: #{tpu_custom_call.1} parent=11 // pred_check_branch
          %165 = sbr.rel (%p163) target = $region16
        $region15: #{tpu_custom_call.1} parent=11 // pred_region
          _
        $region16: #{tpu_custom_call.1} parent=11 // pred_fallthru
          _
        // Predicated region
        $region17: #{tpu_custom_call.1} parent=11 // pred_check
          %p166 = pneg %p80
        $region18: #{tpu_custom_call.1} parent=11 // pred_check_branch
          %168 = sbr.rel (%p166) target = $region20
        $region19: #{tpu_custom_call.1} parent=11 // pred_region
          %s170 = ssub.s32 9856, 9856
          %171 = vsyncadd [#allocation3], %s170
          %s172 = sshll.u32 [#allocation2], 4
          %s173 = int_to_ptr.vmem [resolvable:$true] %s172
          %178 = dma.hbm_to_vmem [thread:$0]  %s2, 9856, %s173, [#allocation3], 128, 128, 8
        $region20: #{tpu_custom_call.1} parent=11 // pred_fallthru
          _
        // Predicated region
        $region21: #{tpu_custom_call.1} parent=11 // pred_check
          %p179 = pneg %p101
        $region22: #{tpu_custom_call.1} parent=11 // pred_check_branch
          %181 = sbr.rel (%p179) target = $region24
        $region23: #{tpu_custom_call.1} parent=11 // pred_region
          _
        $region24: #{tpu_custom_call.1} parent=11 // pred_fallthru
          _
        // Predicated region
        $region25: #{tpu_custom_call.1} parent=11 // pred_check
          %p182 = pneg %p122
        $region26: #{tpu_custom_call.1} parent=11 // pred_check_branch
          %184 = sbr.rel (%p182) target = $region28
        $region27: #{tpu_custom_call.1} parent=11 // pred_region
          _
        $region28: #{tpu_custom_call.1} parent=11 // pred_fallthru
          _
      $region12: #{tpu_custom_call.1} parent=5 // pred_fallthru
        _
      %p185 = scmp.lt.s32.totalorder %s12, 2
      // Predicated region
      $region29: #{tpu_custom_call.1} parent=5 // pred_check
        %p186 = pneg %p185
      $region30: #{tpu_custom_call.1} parent=5 // pred_check_branch
        %188 = sbr.rel (%p186) target = $region32
      $region31: #{tpu_custom_call.1} parent=5 // pred_region
        // Predicated region
        $region33: #{tpu_custom_call.1} parent=31 // pred_check
          %p189 = pneg %p32
        $region34: #{tpu_custom_call.1} parent=31 // pred_check_branch
          %191 = sbr.rel (%p189) target = $region36
        $region35: #{tpu_custom_call.1} parent=31 // pred_region
          %p192 = scmp.lt.s32.totalorder %s12, 1
          %s193 = scalar_select %p192, %s12, 1
          %s194 = smul.addr %s193, 10
          %s195 = smul.addr %s194, 8
          %s196 = scalar_lea.vmem %s0, %s195
        $region36: #{tpu_custom_call.1} parent=31 // pred_fallthru
          _
      $region32: #{tpu_custom_call.1} parent=5 // pred_fallthru
        _
      %p197 = scmp.le.s32.totalorder 1, %s12
      %p198 = scmp.lt.s32.totalorder %s12, 3
      %p199 = pnand %p197, %p198
      %p200 = pneg %p199
      // Predicated region
      $region37: #{tpu_custom_call.1} parent=5 // pred_check
        _
      $region38: #{tpu_custom_call.1} parent=5 // pred_check_branch
        %202 = sbr.rel (%p199) target = $region40
      $region39: #{tpu_custom_call.1} parent=5 // pred_region
        %s203 = ssub.s32 %s12, 1
        // Predicated region
        $region41: #{tpu_custom_call.1} parent=39 // pred_check
          %p204 = pneg %p80
        $region42: #{tpu_custom_call.1} parent=39 // pred_check_branch
          %206 = sbr.rel (%p204) target = $region44
        $region43: #{tpu_custom_call.1} parent=39 // pred_region
          %207 = dma.done [#allocation3], 9856
        $region44: #{tpu_custom_call.1} parent=39 // pred_fallthru
          _
        %p208 = scmp.lt.s32.totalorder %s17, 1
        %s209 = scalar_select %p208, %s17, 1
        %s210 = smul.addr %s209, 10
        %s211 = smul.addr %s210, 8
        %s212 = scalar_lea.vmem %s0, %s211
        %p213 = pneg %p38
        %p214 = pneg %p35
        %p215 = pneg %p59
        %p216 = pneg %p56
        %p217 = pneg %p80
        %p218 = pneg %p77
        %p219 = pneg %p101
        %p220 = pneg %p98
        %p221 = pneg %p122
        %p222 = pneg %p119
        %p223 = pneg %p148
        %p224 = pneg %p145
        %p225 = scmp.lt.s32.totalorder %s17, 1
        %s226 = scalar_select %p225, %s17, 1
        %s227 = smul.addr %s226, 10
        %s228 = smul.addr %s227, 8
        %s229 = scalar_lea.vmem %s5, %s228
        %p230 = scmp.lt.s32.totalorder %s17, 1
        %s231 = scalar_select %p230, %s17, 1
        %s232 = smul.addr %s231, 10
        %s233 = smul.addr %s232, 8
        %s234 = scalar_lea.vmem %s0, %s233
        %p235 = scmp.lt.s32.totalorder %s17, 1
        %s236 = scalar_select %p235, %s17, 1
        %s237 = smul.addr %s236, 10
        %s238 = smul.addr %s237, 8
        %s239 = scalar_lea.vmem %s5, %s238
        %v240 = vld [vmem:[%s234] sm:$0xff]
        %v241 = vld [vmem:[%s234 + $0x8] sm:$0xff]
        %v242 = vld [vmem:[%s234 + $0x10] sm:$0xff]
        %v243 = vld [vmem:[%s234 + $0x18] sm:$0xff]
        %v244 = vld [vmem:[%s234 + $0x20] sm:$0xff]
        %v245 = vld [vmem:[%s234 + $0x28] sm:$0xff]
        %v246 = vld [vmem:[%s234 + $0x30] sm:$0xff]
        %v247 = vld [vmem:[%s234 + $0x38] sm:$0xff]
        %v248 = vld [vmem:[%s234 + $0x40] sm:$0xff]
        %v249 = vld [vmem:[%s234 + $0x48] sm:$0x1f]
        %v250 = vld [vmem:[%s1] sm:$0xff]
        %v251 = vld [vmem:[%s1 + $0x8] sm:$0xff]
        %v252 = vld [vmem:[%s1 + $0x10] sm:$0xff]
        %v253 = vld [vmem:[%s1 + $0x18] sm:$0xff]
        %vm254 = vcmask 261120
        %v256 = vsel %vm254, %v240, 0
        %v259 = vsel %vm254, %v241, 0
        %v262 = vsel %vm254, %v242, 0
        %v265 = vsel %vm254, %v243, 0
        %v268 = vsel %vm254, %v244, 0
        %v271 = vsel %vm254, %v245, 0
        %v274 = vsel %vm254, %v246, 0
        %v277 = vsel %vm254, %v247, 0
        %v280 = vsel %vm254, %v248, 0
        %v283 = vsel %vm254, %v249, 0
        %285 = vmatprep.subr.mxu0 0.0
        %286 = vmatpush1.msra.mxu0 %v250
        %287 = vmatprep.subr.mxu0 0.0
        %288 = vmatpush1.msra.mxu0 %v251
        %289 = vmatprep.subr.mxu0 0.0
        %290 = vmatpush1.msra.mxu0 %v252
        %291 = vmatprep.subr.mxu0 0.0
        %292 = vmatpush1.msra.mxu0 %v253
        %293 = vmatprep.subr.mxu0 0.0
        %294 = vmatpush1.msra.mxu0 0.0
        %295 = vmatprep.subr.mxu0 0.0
        %296 = vmatpush1.msra.mxu0 0.0
        %297 = vmatprep.subr.mxu0 0.0
        %298 = vmatpush1.msra.mxu0 0.0
        %299 = vmatprep.subr.mxu0 0.0
        %300 = vmatpush1.msra.mxu0 0.0
        %301 = vmatprep.subr.mxu0 0.0
        %302 = vmatpush1.msra.mxu0 0.0
        %303 = vmatprep.subr.mxu0 0.0
        %304 = vmatpush1.msra.mxu0 0.0
        %305 = vmatprep.subr.mxu0 0.0
        %306 = vmatpush1.msra.mxu0 0.0
        %307 = vmatprep.subr.mxu0 0.0
        %308 = vmatpush1.msra.mxu0 0.0
        %309 = vmatprep.subr.mxu0 0.0
        %310 = vmatpush1.msra.mxu0 0.0
        %311 = vmatprep.subr.mxu0 0.0
        %312 = vmatpush1.msra.mxu0 0.0
        %313 = vmatprep.subr.mxu0 0.0
        %314 = vmatpush1.msra.mxu0 0.0
        %315 = vmatprep.subr.mxu0 0.0
        %316 = vmatpush1.msra.mxu0 0.0
        %317 = vmatprep.subr.mxu0 0.0
        %318 = vmatpush1.msra.mxu0 0.0
        %319 = vmatprep.subr.mxu0 0.0
        %320 = vmatpush1.msra.mxu0 0.0
        %321 = vmatprep.subr.mxu0 0.0
        %322 = vmatpush1.msra.mxu0 0.0
        %323 = vmatprep.subr.mxu0 0.0
        %324 = vmatpush1.msra.mxu0 0.0
        %325 = vmatprep.subr.mxu0 0.0
        %326 = vmatpush1.msra.mxu0 0.0
        %327 = vmatprep.subr.mxu0 0.0
        %328 = vmatpush1.msra.mxu0 0.0
        %329 = vmatprep.subr.mxu0 0.0
        %330 = vmatpush1.msra.mxu0 0.0
        %331 = vmatprep.subr.mxu0 0.0
        %332 = vmatpush1.msra.mxu0 0.0
        %333 = vmatprep.subr.mxu0 0.0
        %334 = vmatpush1.msra.mxu0 0.0
        %335 = vmatprep.subr.mxu0 0.0
        %336 = vmatpush1.msra.mxu0 0.0
        %337 = vmatprep.subr.mxu0 0.0
        %338 = vmatpush1.msra.mxu0 0.0
        %339 = vmatprep.subr.mxu0 0.0
        %340 = vmatpush1.msra.mxu0 0.0
        %341 = vmatprep.subr.mxu0 0.0
        %342 = vmatpush1.msra.mxu0 0.0
        %343 = vmatprep.subr.mxu0 0.0
        %344 = vmatpush1.msra.mxu0 0.0
        %345 = vmatprep.subr.mxu0 0.0
        %346 = vmatpush1.msra.mxu0 0.0
        %347 = vmatprep.subr.mxu0 0.0
        %348 = vmatpush1.msra.mxu0 0.0
        %349 = vmatprep.mubr.f32.mxu0 0.0
        %350 = vmatmul.mubr.f32.gmra.mrb[0].mxu0 %v256
        %v351 = vpop.f32.mrb[0].mxu0
        %v352 = vadd.f32 0.0, %v351
        %v353 = vpop.f32.mrb[0].mxu0
        %354 = vmatprep.mubr.f32.mxu0 0.0
        %355 = vmatmul.mubr.f32.gmra.mrb[0].mxu0 %v259
        %v356 = vpop.f32.mrb[0].mxu0
        %v357 = vadd.f32 0.0, %v356
        %v358 = vpop.f32.mrb[0].mxu0
        %359 = vmatprep.mubr.f32.mxu0 0.0
        %360 = vmatmul.mubr.f32.gmra.mrb[0].mxu0 %v262
        %v361 = vpop.f32.mrb[0].mxu0
        %v362 = vadd.f32 0.0, %v361
        %v363 = vpop.f32.mrb[0].mxu0
        %364 = vmatprep.mubr.f32.mxu0 0.0
        %365 = vmatmul.mubr.f32.gmra.mrb[0].mxu0 %v265
        %v366 = vpop.f32.mrb[0].mxu0
        %v367 = vadd.f32 0.0, %v366
        %v368 = vpop.f32.mrb[0].mxu0
        %369 = vmatprep.mubr.f32.mxu0 0.0
        %370 = vmatmul.mubr.f32.gmra.mrb[0].mxu0 %v268
        %v371 = vpop.f32.mrb[0].mxu0
        %v372 = vadd.f32 0.0, %v371
        %v373 = vpop.f32.mrb[0].mxu0
        %374 = vmatprep.mubr.f32.mxu0 0.0
        %375 = vmatmul.mubr.f32.gmra.mrb[0].mxu0 %v271
        %v376 = vpop.f32.mrb[0].mxu0
        %v377 = vadd.f32 0.0, %v376
        %v378 = vpop.f32.mrb[0].mxu0
        %379 = vmatprep.mubr.f32.mxu0 0.0
        %380 = vmatmul.mubr.f32.gmra.mrb[0].mxu0 %v274
        %v381 = vpop.f32.mrb[0].mxu0
        %v382 = vadd.f32 0.0, %v381
        %v383 = vpop.f32.mrb[0].mxu0
        %384 = vmatprep.mubr.f32.mxu0 0.0
        %385 = vmatmul.mubr.f32.gmra.mrb[0].mxu0 %v277
        %v386 = vpop.f32.mrb[0].mxu0
        %v387 = vadd.f32 0.0, %v386
        %v388 = vpop.f32.mrb[0].mxu0
        %389 = vmatprep.mubr.f32.mxu0 0.0
        %390 = vmatmul.mubr.f32.gmra.mrb[0].mxu0 %v280
        %v391 = vpop.f32.mrb[0].mxu0
        %v392 = vadd.f32 0.0, %v391
        %v393 = vpop.f32.mrb[0].mxu0
        %394 = vmatprep.mubr.f32.mxu0 0.0
        %395 = vmatmul.mubr.f32.gmra.mrb[0].mxu0 %v283
        %v396 = vpop.f32.mrb[0].mxu0
        %v397 = vadd.f32 0.0, %v396
        %v398 = vpop.f32.mrb[0].mxu0
        %399 = vdwg.mxu0
        %410 = vrot.lane.b32.xlu0 %v352, 120
        %v411 = vpop.permute.xlu0 %410
        %412 = vrot.lane.b32.xlu0 %v357, 120
        %v413 = vpop.permute.xlu0 %412
        %414 = vrot.lane.b32.xlu0 %v362, 120
        %v415 = vpop.permute.xlu0 %414
        %416 = vrot.lane.b32.xlu0 %v367, 120
        %v417 = vpop.permute.xlu0 %416
        %418 = vrot.lane.b32.xlu0 %v372, 120
        %v419 = vpop.permute.xlu0 %418
        %420 = vrot.lane.b32.xlu0 %v377, 120
        %v421 = vpop.permute.xlu0 %420
        %422 = vrot.lane.b32.xlu0 %v382, 120
        %v423 = vpop.permute.xlu0 %422
        %424 = vrot.lane.b32.xlu0 %v387, 120
        %v425 = vpop.permute.xlu0 %424
        %426 = vrot.lane.b32.xlu0 %v392, 120
        %v427 = vpop.permute.xlu0 %426
        %428 = vrot.lane.b32.xlu0 %v397, 120
        %v429 = vpop.permute.xlu0 %428
        %440 = vrot.lane.b32.xlu0 %v352, 112
        %v441 = vpop.permute.xlu0 %440
        %442 = vrot.lane.b32.xlu0 %v357, 112
        %v443 = vpop.permute.xlu0 %442
        %444 = vrot.lane.b32.xlu0 %v362, 112
        %v445 = vpop.permute.xlu0 %444
        %446 = vrot.lane.b32.xlu0 %v367, 112
        %v447 = vpop.permute.xlu0 %446
        %448 = vrot.lane.b32.xlu0 %v372, 112
        %v449 = vpop.permute.xlu0 %448
        %450 = vrot.lane.b32.xlu0 %v377, 112
        %v451 = vpop.permute.xlu0 %450
        %452 = vrot.lane.b32.xlu0 %v382, 112
        %v453 = vpop.permute.xlu0 %452
        %454 = vrot.lane.b32.xlu0 %v387, 112
        %v455 = vpop.permute.xlu0 %454
        %456 = vrot.lane.b32.xlu0 %v392, 112
        %v457 = vpop.permute.xlu0 %456
        %458 = vrot.lane.b32.xlu0 %v397, 112
        %v459 = vpop.permute.xlu0 %458
        %470 = vrot.lane.b32.xlu0 %v352, 104
        %v471 = vpop.permute.xlu0 %470
        %472 = vrot.lane.b32.xlu0 %v357, 104
        %v473 = vpop.permute.xlu0 %472
        %474 = vrot.lane.b32.xlu0 %v362, 104
        %v475 = vpop.permute.xlu0 %474
        %476 = vrot.lane.b32.xlu0 %v367, 104
        %v477 = vpop.permute.xlu0 %476
        %478 = vrot.lane.b32.xlu0 %v372, 104
        %v479 = vpop.permute.xlu0 %478
        %480 = vrot.lane.b32.xlu0 %v377, 104
        %v481 = vpop.permute.xlu0 %480
        %482 = vrot.lane.b32.xlu0 %v382, 104
        %v483 = vpop.permute.xlu0 %482
        %484 = vrot.lane.b32.xlu0 %v387, 104
        %v485 = vpop.permute.xlu0 %484
        %486 = vrot.lane.b32.xlu0 %v392, 104
        %v487 = vpop.permute.xlu0 %486
        %488 = vrot.lane.b32.xlu0 %v397, 104
        %v489 = vpop.permute.xlu0 %488
        %v500 = vld [vmem:[#allocation2] sm:$0xff]
        %v501 = vld [vmem:[#allocation2 + $0x8] sm:$0xff]
        %v502 = vld [vmem:[#allocation2 + $0x10] sm:$0xff]
        %v503 = vld [vmem:[#allocation2 + $0x18] sm:$0xff]
        %v504 = vld [vmem:[#allocation2 + $0x20] sm:$0xff]
        %v505 = vld [vmem:[#allocation2 + $0x28] sm:$0xff]
        %v506 = vld [vmem:[#allocation2 + $0x30] sm:$0xff]
        %v507 = vld [vmem:[#allocation2 + $0x38] sm:$0xff]
        %v508 = vld [vmem:[#allocation2 + $0x40] sm:$0xff]
        %v509 = vld [vmem:[#allocation2 + $0x48] sm:$0xff]
        %v510 = vld [vmem:[#allocation2 + $0x50] sm:$0xff]
        %v511 = vld [vmem:[#allocation2 + $0x58] sm:$0xff]
        %v512 = vld [vmem:[#allocation2 + $0x60] sm:$0xff]
        %v513 = vld [vmem:[#allocation2 + $0x68] sm:$0xff]
        %v514 = vld [vmem:[#allocation2 + $0x70] sm:$0xff]
        %v515 = vld [vmem:[#allocation2 + $0x78] sm:$0xff]
        %v516 = vld [vmem:[#allocation2 + $0x80] sm:$0xff]
        %v517 = vld [vmem:[#allocation2 + $0x88] sm:$0xff]
        %v518 = vld [vmem:[#allocation2 + $0x90] sm:$0xff]
        %v519 = vld [vmem:[#allocation2 + $0x98] sm:$0xff]
        %v520 = vld [vmem:[#allocation2 + $0xa0] sm:$0xff]
        %v521 = vld [vmem:[#allocation2 + $0xa8] sm:$0xff]
        %v522 = vld [vmem:[#allocation2 + $0xb0] sm:$0xff]
        %v523 = vld [vmem:[#allocation2 + $0xb8] sm:$0xff]
        %v524 = vld [vmem:[#allocation2 + $0xc0] sm:$0xff]
        %v525 = vld [vmem:[#allocation2 + $0xc8] sm:$0xff]
        %v526 = vld [vmem:[#allocation2 + $0xd0] sm:$0xff]
        %v527 = vld [vmem:[#allocation2 + $0xd8] sm:$0xff]
        %v528 = vld [vmem:[#allocation2 + $0xe0] sm:$0xff]
        %v529 = vld [vmem:[#allocation2 + $0xe8] sm:$0xff]
        %v530 = vld [vmem:[#allocation2 + $0xf0] sm:$0xff]
        %v531 = vld [vmem:[#allocation2 + $0xf8] sm:$0xff]
        %v532 = vld [vmem:[#allocation2 + $0x100] sm:$0xff]
        %v533 = vld [vmem:[#allocation2 + $0x108] sm:$0xff]
        %v534 = vld [vmem:[#allocation2 + $0x110] sm:$0xff]
        %v535 = vld [vmem:[#allocation2 + $0x118] sm:$0xff]
        %v536 = vld [vmem:[#allocation2 + $0x120] sm:$0xff]
        %v537 = vld [vmem:[#allocation2 + $0x128] sm:$0xff]
        %v538 = vld [vmem:[#allocation2 + $0x130] sm:$0xff]
        %v539 = vld [vmem:[#allocation2 + $0x138] sm:$0xff]
        %v540 = vld [vmem:[#allocation2 + $0x140] sm:$0xff]
        %v541 = vld [vmem:[#allocation2 + $0x148] sm:$0xff]
        %v542 = vld [vmem:[#allocation2 + $0x150] sm:$0xff]
        %v543 = vld [vmem:[#allocation2 + $0x158] sm:$0xff]
        %v544 = vld [vmem:[#allocation2 + $0x160] sm:$0xff]
        %v545 = vld [vmem:[#allocation2 + $0x168] sm:$0xff]
        %v546 = vld [vmem:[#allocation2 + $0x170] sm:$0xff]
        %v547 = vld [vmem:[#allocation2 + $0x178] sm:$0xff]
        %v548 = vld [vmem:[#allocation2 + $0x180] sm:$0xff]
        %v549 = vld [vmem:[#allocation2 + $0x188] sm:$0xff]
        %v550 = vld [vmem:[#allocation2 + $0x190] sm:$0xff]
        %v551 = vld [vmem:[#allocation2 + $0x198] sm:$0xff]
        %v552 = vld [vmem:[#allocation2 + $0x1a0] sm:$0xff]
        %v553 = vld [vmem:[#allocation2 + $0x1a8] sm:$0xff]
        %v554 = vld [vmem:[#allocation2 + $0x1b0] sm:$0xff]
        %v555 = vld [vmem:[#allocation2 + $0x1b8] sm:$0xff]
        %v556 = vld [vmem:[#allocation2 + $0x1c0] sm:$0xff]
        %v557 = vld [vmem:[#allocation2 + $0x1c8] sm:$0xff]
        %v558 = vld [vmem:[#allocation2 + $0x1d0] sm:$0xff]
        %v559 = vld [vmem:[#allocation2 + $0x1d8] sm:$0xff]
        %v560 = vld [vmem:[#allocation2 + $0x1e0] sm:$0xff]
        %v561 = vld [vmem:[#allocation2 + $0x1e8] sm:$0xff]
        %v562 = vld [vmem:[#allocation2 + $0x1f0] sm:$0xff]
        %v563 = vld [vmem:[#allocation2 + $0x1f8] sm:$0xff]
        %v564 = vld [vmem:[#allocation2 + $0x200] sm:$0xff]
        %v565 = vld [vmem:[#allocation2 + $0x208] sm:$0xff]
        %v566 = vld [vmem:[#allocation2 + $0x210] sm:$0xff]
        %v567 = vld [vmem:[#allocation2 + $0x218] sm:$0xff]
        %v568 = vld [vmem:[#allocation2 + $0x220] sm:$0xff]
        %v569 = vld [vmem:[#allocation2 + $0x228] sm:$0xff]
        %v570 = vld [vmem:[#allocation2 + $0x230] sm:$0xff]
        %v571 = vld [vmem:[#allocation2 + $0x238] sm:$0xff]
        %v572 = vld [vmem:[#allocation2 + $0x240] sm:$0xff]
        %v573 = vld [vmem:[#allocation2 + $0x248] sm:$0xff]
        %v574 = vld [vmem:[#allocation2 + $0x250] sm:$0xff]
        %v575 = vld [vmem:[#allocation2 + $0x258] sm:$0xff]
        %v576 = vld [vmem:[#allocation2 + $0x260] sm:$0xff]
        %v577 = vlaneseq
        %v578 = vshrl.u32 %v577, 7
        %v579 = vsub.s32 0, %v578
        %v580 = vrot.slane %v352, %v579
        %582 = vbcast.lane.b32.xlu0 %v580, 256
        %v583 = vpop.permute.xlu0 %582
        %v584 = vlaneseq
        %v585 = vshrl.u32 %v584, 7
        %v586 = vsub.s32 1, %v585
        %v587 = vrot.slane %v352, %v586
        %589 = vbcast.lane.b32.xlu0 %v587, 256
        %v590 = vpop.permute.xlu0 %589
        %v591 = vlaneseq
        %v592 = vshrl.u32 %v591, 7
        %v593 = vsub.s32 2, %v592
        %v594 = vrot.slane %v352, %v593
        %596 = vbcast.lane.b32.xlu0 %v594, 256
        %v597 = vpop.permute.xlu0 %596
        %v598 = vlaneseq
        %v599 = vshrl.u32 %v598, 7
        %v600 = vsub.s32 3, %v599
        %v601 = vrot.slane %v352, %v600
        %603 = vbcast.lane.b32.xlu0 %v601, 256
        %v604 = vpop.permute.xlu0 %603
        %v605 = vlaneseq
        %v606 = vshrl.u32 %v605, 7
        %v607 = vsub.s32 4, %v606
        %v608 = vrot.slane %v352, %v607
        %610 = vbcast.lane.b32.xlu0 %v608, 256
        %v611 = vpop.permute.xlu0 %610
        %v612 = vlaneseq
        %v613 = vshrl.u32 %v612, 7
        %v614 = vsub.s32 5, %v613
        %v615 = vrot.slane %v352, %v614
        %617 = vbcast.lane.b32.xlu0 %v615, 256
        %v618 = vpop.permute.xlu0 %617
        %v619 = vlaneseq
        %v620 = vshrl.u32 %v619, 7
        %v621 = vsub.s32 6, %v620
        %v622 = vrot.slane %v352, %v621
        %624 = vbcast.lane.b32.xlu0 %v622, 256
        %v625 = vpop.permute.xlu0 %624
        %v626 = vlaneseq
        %v627 = vshrl.u32 %v626, 7
        %v628 = vsub.s32 7, %v627
        %v629 = vrot.slane %v352, %v628
        %631 = vbcast.lane.b32.xlu0 %v629, 256
        %v632 = vpop.permute.xlu0 %631
        %v633 = vlaneseq
        %v634 = vshrl.u32 %v633, 7
        %v635 = vsub.s32 0, %v634
        %v636 = vrot.slane %v357, %v635
        %638 = vbcast.lane.b32.xlu0 %v636, 256
        %v639 = vpop.permute.xlu0 %638
        %v640 = vlaneseq
        %v641 = vshrl.u32 %v640, 7
        %v642 = vsub.s32 1, %v641
        %v643 = vrot.slane %v357, %v642
        %645 = vbcast.lane.b32.xlu0 %v643, 256
        %v646 = vpop.permute.xlu0 %645
        %v647 = vlaneseq
        %v648 = vshrl.u32 %v647, 7
        %v649 = vsub.s32 2, %v648
        %v650 = vrot.slane %v357, %v649
        %652 = vbcast.lane.b32.xlu0 %v650, 256
        %v653 = vpop.permute.xlu0 %652
        %v654 = vlaneseq
        %v655 = vshrl.u32 %v654, 7
        %v656 = vsub.s32 3, %v655
        %v657 = vrot.slane %v357, %v656
        %659 = vbcast.lane.b32.xlu0 %v657, 256
        %v660 = vpop.permute.xlu0 %659
        %v661 = vlaneseq
        %v662 = vshrl.u32 %v661, 7
        %v663 = vsub.s32 4, %v662
        %v664 = vrot.slane %v357, %v663
        %666 = vbcast.lane.b32.xlu0 %v664, 256
        %v667 = vpop.permute.xlu0 %666
        %v668 = vlaneseq
        %v669 = vshrl.u32 %v668, 7
        %v670 = vsub.s32 5, %v669
        %v671 = vrot.slane %v357, %v670
        %673 = vbcast.lane.b32.xlu0 %v671, 256
        %v674 = vpop.permute.xlu0 %673
        %v675 = vlaneseq
        %v676 = vshrl.u32 %v675, 7
        %v677 = vsub.s32 6, %v676
        %v678 = vrot.slane %v357, %v677
        %680 = vbcast.lane.b32.xlu0 %v678, 256
        %v681 = vpop.permute.xlu0 %680
        %v682 = vlaneseq
        %v683 = vshrl.u32 %v682, 7
        %v684 = vsub.s32 7, %v683
        %v685 = vrot.slane %v357, %v684
        %687 = vbcast.lane.b32.xlu0 %v685, 256
        %v688 = vpop.permute.xlu0 %687
        %v689 = vlaneseq
        %v690 = vshrl.u32 %v689, 7
        %v691 = vsub.s32 0, %v690
        %v692 = vrot.slane %v362, %v691
        %694 = vbcast.lane.b32.xlu0 %v692, 256
        %v695 = vpop.permute.xlu0 %694
        %v696 = vlaneseq
        %v697 = vshrl.u32 %v696, 7
        %v698 = vsub.s32 1, %v697
        %v699 = vrot.slane %v362, %v698
        %701 = vbcast.lane.b32.xlu0 %v699, 256
        %v702 = vpop.permute.xlu0 %701
        %v703 = vlaneseq
        %v704 = vshrl.u32 %v703, 7
        %v705 = vsub.s32 2, %v704
        %v706 = vrot.slane %v362, %v705
        %708 = vbcast.lane.b32.xlu0 %v706, 256
        %v709 = vpop.permute.xlu0 %708
        %v710 = vlaneseq
        %v711 = vshrl.u32 %v710, 7
        %v712 = vsub.s32 3, %v711
        %v713 = vrot.slane %v362, %v712
        %715 = vbcast.lane.b32.xlu0 %v713, 256
        %v716 = vpop.permute.xlu0 %715
        %v717 = vlaneseq
        %v718 = vshrl.u32 %v717, 7
        %v719 = vsub.s32 4, %v718
        %v720 = vrot.slane %v362, %v719
        %722 = vbcast.lane.b32.xlu0 %v720, 256
        %v723 = vpop.permute.xlu0 %722
        %v724 = vlaneseq
        %v725 = vshrl.u32 %v724, 7
        %v726 = vsub.s32 5, %v725
        %v727 = vrot.slane %v362, %v726
        %729 = vbcast.lane.b32.xlu0 %v727, 256
        %v730 = vpop.permute.xlu0 %729
        %v731 = vlaneseq
        %v732 = vshrl.u32 %v731, 7
        %v733 = vsub.s32 6, %v732
        %v734 = vrot.slane %v362, %v733
        %736 = vbcast.lane.b32.xlu0 %v734, 256
        %v737 = vpop.permute.xlu0 %736
        %v738 = vlaneseq
        %v739 = vshrl.u32 %v738, 7
        %v740 = vsub.s32 7, %v739
        %v741 = vrot.slane %v362, %v740
        %743 = vbcast.lane.b32.xlu0 %v741, 256
        %v744 = vpop.permute.xlu0 %743
        %v745 = vlaneseq
        %v746 = vshrl.u32 %v745, 7
        %v747 = vsub.s32 0, %v746
        %v748 = vrot.slane %v367, %v747
        %750 = vbcast.lane.b32.xlu0 %v748, 256
        %v751 = vpop.permute.xlu0 %750
        %v752 = vlaneseq
        %v753 = vshrl.u32 %v752, 7
        %v754 = vsub.s32 1, %v753
        %v755 = vrot.slane %v367, %v754
        %757 = vbcast.lane.b32.xlu0 %v755, 256
        %v758 = vpop.permute.xlu0 %757
        %v759 = vlaneseq
        %v760 = vshrl.u32 %v759, 7
        %v761 = vsub.s32 2, %v760
        %v762 = vrot.slane %v367, %v761
        %764 = vbcast.lane.b32.xlu0 %v762, 256
        %v765 = vpop.permute.xlu0 %764
        %v766 = vlaneseq
        %v767 = vshrl.u32 %v766, 7
        %v768 = vsub.s32 3, %v767
        %v769 = vrot.slane %v367, %v768
        %771 = vbcast.lane.b32.xlu0 %v769, 256
        %v772 = vpop.permute.xlu0 %771
        %v773 = vlaneseq
        %v774 = vshrl.u32 %v773, 7
        %v775 = vsub.s32 4, %v774
        %v776 = vrot.slane %v367, %v775
        %778 = vbcast.lane.b32.xlu0 %v776, 256
        %v779 = vpop.permute.xlu0 %778
        %v780 = vlaneseq
        %v781 = vshrl.u32 %v780, 7
        %v782 = vsub.s32 5, %v781
        %v783 = vrot.slane %v367, %v782
        %785 = vbcast.lane.b32.xlu0 %v783, 256
        %v786 = vpop.permute.xlu0 %785
        %v787 = vlaneseq
        %v788 = vshrl.u32 %v787, 7
        %v789 = vsub.s32 6, %v788
        %v790 = vrot.slane %v367, %v789
        %792 = vbcast.lane.b32.xlu0 %v790, 256
        %v793 = vpop.permute.xlu0 %792
        %v794 = vlaneseq
        %v795 = vshrl.u32 %v794, 7
        %v796 = vsub.s32 7, %v795
        %v797 = vrot.slane %v367, %v796
        %799 = vbcast.lane.b32.xlu0 %v797, 256
        %v800 = vpop.permute.xlu0 %799
        %v801 = vlaneseq
        %v802 = vshrl.u32 %v801, 7
        %v803 = vsub.s32 0, %v802
        %v804 = vrot.slane %v372, %v803
        %806 = vbcast.lane.b32.xlu0 %v804, 256
        %v807 = vpop.permute.xlu0 %806
        %v808 = vlaneseq
        %v809 = vshrl.u32 %v808, 7
        %v810 = vsub.s32 1, %v809
        %v811 = vrot.slane %v372, %v810
        %813 = vbcast.lane.b32.xlu0 %v811, 256
        %v814 = vpop.permute.xlu0 %813
        %v815 = vlaneseq
        %v816 = vshrl.u32 %v815, 7
        %v817 = vsub.s32 2, %v816
        %v818 = vrot.slane %v372, %v817
        %820 = vbcast.lane.b32.xlu0 %v818, 256
        %v821 = vpop.permute.xlu0 %820
        %v822 = vlaneseq
        %v823 = vshrl.u32 %v822, 7
        %v824 = vsub.s32 3, %v823
        %v825 = vrot.slane %v372, %v824
        %827 = vbcast.lane.b32.xlu0 %v825, 256
        %v828 = vpop.permute.xlu0 %827
        %v829 = vlaneseq
        %v830 = vshrl.u32 %v829, 7
        %v831 = vsub.s32 4, %v830
        %v832 = vrot.slane %v372, %v831
        %834 = vbcast.lane.b32.xlu0 %v832, 256
        %v835 = vpop.permute.xlu0 %834
        %v836 = vlaneseq
        %v837 = vshrl.u32 %v836, 7
        %v838 = vsub.s32 5, %v837
        %v839 = vrot.slane %v372, %v838
        %841 = vbcast.lane.b32.xlu0 %v839, 256
        %v842 = vpop.permute.xlu0 %841
        %v843 = vlaneseq
        %v844 = vshrl.u32 %v843, 7
        %v845 = vsub.s32 6, %v844
        %v846 = vrot.slane %v372, %v845
        %848 = vbcast.lane.b32.xlu0 %v846, 256
        %v849 = vpop.permute.xlu0 %848
        %v850 = vlaneseq
        %v851 = vshrl.u32 %v850, 7
        %v852 = vsub.s32 7, %v851
        %v853 = vrot.slane %v372, %v852
        %855 = vbcast.lane.b32.xlu0 %v853, 256
        %v856 = vpop.permute.xlu0 %855
        %v857 = vlaneseq
        %v858 = vshrl.u32 %v857, 7
        %v859 = vsub.s32 0, %v858
        %v860 = vrot.slane %v377, %v859
        %862 = vbcast.lane.b32.xlu0 %v860, 256
        %v863 = vpop.permute.xlu0 %862
        %v864 = vlaneseq
        %v865 = vshrl.u32 %v864, 7
        %v866 = vsub.s32 1, %v865
        %v867 = vrot.slane %v377, %v866
        %869 = vbcast.lane.b32.xlu0 %v867, 256
        %v870 = vpop.permute.xlu0 %869
        %v871 = vlaneseq
        %v872 = vshrl.u32 %v871, 7
        %v873 = vsub.s32 2, %v872
        %v874 = vrot.slane %v377, %v873
        %876 = vbcast.lane.b32.xlu0 %v874, 256
        %v877 = vpop.permute.xlu0 %876
        %v878 = vlaneseq
        %v879 = vshrl.u32 %v878, 7
        %v880 = vsub.s32 3, %v879
        %v881 = vrot.slane %v377, %v880
        %883 = vbcast.lane.b32.xlu0 %v881, 256
        %v884 = vpop.permute.xlu0 %883
        %v885 = vlaneseq
        %v886 = vshrl.u32 %v885, 7
        %v887 = vsub.s32 4, %v886
        %v888 = vrot.slane %v377, %v887
        %890 = vbcast.lane.b32.xlu0 %v888, 256
        %v891 = vpop.permute.xlu0 %890
        %v892 = vlaneseq
        %v893 = vshrl.u32 %v892, 7
        %v894 = vsub.s32 5, %v893
        %v895 = vrot.slane %v377, %v894
        %897 = vbcast.lane.b32.xlu0 %v895, 256
        %v898 = vpop.permute.xlu0 %897
        %v899 = vlaneseq
        %v900 = vshrl.u32 %v899, 7
        %v901 = vsub.s32 6, %v900
        %v902 = vrot.slane %v377, %v901
        %904 = vbcast.lane.b32.xlu0 %v902, 256
        %v905 = vpop.permute.xlu0 %904
        %v906 = vlaneseq
        %v907 = vshrl.u32 %v906, 7
        %v908 = vsub.s32 7, %v907
        %v909 = vrot.slane %v377, %v908
        %911 = vbcast.lane.b32.xlu0 %v909, 256
        %v912 = vpop.permute.xlu0 %911
        %v913 = vlaneseq
        %v914 = vshrl.u32 %v913, 7
        %v915 = vsub.s32 0, %v914
        %v916 = vrot.slane %v382, %v915
        %918 = vbcast.lane.b32.xlu0 %v916, 256
        %v919 = vpop.permute.xlu0 %918
        %v920 = vlaneseq
        %v921 = vshrl.u32 %v920, 7
        %v922 = vsub.s32 1, %v921
        %v923 = vrot.slane %v382, %v922
        %925 = vbcast.lane.b32.xlu0 %v923, 256
        %v926 = vpop.permute.xlu0 %925
        %v927 = vlaneseq
        %v928 = vshrl.u32 %v927, 7
        %v929 = vsub.s32 2, %v928
        %v930 = vrot.slane %v382, %v929
        %932 = vbcast.lane.b32.xlu0 %v930, 256
        %v933 = vpop.permute.xlu0 %932
        %v934 = vlaneseq
        %v935 = vshrl.u32 %v934, 7
        %v936 = vsub.s32 3, %v935
        %v937 = vrot.slane %v382, %v936
        %939 = vbcast.lane.b32.xlu0 %v937, 256
        %v940 = vpop.permute.xlu0 %939
        %v941 = vlaneseq
        %v942 = vshrl.u32 %v941, 7
        %v943 = vsub.s32 4, %v942
        %v944 = vrot.slane %v382, %v943
        %946 = vbcast.lane.b32.xlu0 %v944, 256
        %v947 = vpop.permute.xlu0 %946
        %v948 = vlaneseq
        %v949 = vshrl.u32 %v948, 7
        %v950 = vsub.s32 5, %v949
        %v951 = vrot.slane %v382, %v950
        %953 = vbcast.lane.b32.xlu0 %v951, 256
        %v954 = vpop.permute.xlu0 %953
        %v955 = vlaneseq
        %v956 = vshrl.u32 %v955, 7
        %v957 = vsub.s32 6, %v956
        %v958 = vrot.slane %v382, %v957
        %960 = vbcast.lane.b32.xlu0 %v958, 256
        %v961 = vpop.permute.xlu0 %960
        %v962 = vlaneseq
        %v963 = vshrl.u32 %v962, 7
        %v964 = vsub.s32 7, %v963
        %v965 = vrot.slane %v382, %v964
        %967 = vbcast.lane.b32.xlu0 %v965, 256
        %v968 = vpop.permute.xlu0 %967
        %v969 = vlaneseq
        %v970 = vshrl.u32 %v969, 7
        %v971 = vsub.s32 0, %v970
        %v972 = vrot.slane %v387, %v971
        %974 = vbcast.lane.b32.xlu0 %v972, 256
        %v975 = vpop.permute.xlu0 %974
        %v976 = vlaneseq
        %v977 = vshrl.u32 %v976, 7
        %v978 = vsub.s32 1, %v977
        %v979 = vrot.slane %v387, %v978
        %981 = vbcast.lane.b32.xlu0 %v979, 256
        %v982 = vpop.permute.xlu0 %981
        %v983 = vlaneseq
        %v984 = vshrl.u32 %v983, 7
        %v985 = vsub.s32 2, %v984
        %v986 = vrot.slane %v387, %v985
        %988 = vbcast.lane.b32.xlu0 %v986, 256
        %v989 = vpop.permute.xlu0 %988
        %v990 = vlaneseq
        %v991 = vshrl.u32 %v990, 7
        %v992 = vsub.s32 3, %v991
        %v993 = vrot.slane %v387, %v992
        %995 = vbcast.lane.b32.xlu0 %v993, 256
        %v996 = vpop.permute.xlu0 %995
        %v997 = vlaneseq
        %v998 = vshrl.u32 %v997, 7
        %v999 = vsub.s32 4, %v998
        %v1000 = vrot.slane %v387, %v999
        %1002 = vbcast.lane.b32.xlu0 %v1000, 256
        %v1003 = vpop.permute.xlu0 %1002
        %v1004 = vlaneseq
        %v1005 = vshrl.u32 %v1004, 7
        %v1006 = vsub.s32 5, %v1005
        %v1007 = vrot.slane %v387, %v1006
        %1009 = vbcast.lane.b32.xlu0 %v1007, 256
        %v1010 = vpop.permute.xlu0 %1009
        %v1011 = vlaneseq
        %v1012 = vshrl.u32 %v1011, 7
        %v1013 = vsub.s32 6, %v1012
        %v1014 = vrot.slane %v387, %v1013
        %1016 = vbcast.lane.b32.xlu0 %v1014, 256
        %v1017 = vpop.permute.xlu0 %1016
        %v1018 = vlaneseq
        %v1019 = vshrl.u32 %v1018, 7
        %v1020 = vsub.s32 7, %v1019
        %v1021 = vrot.slane %v387, %v1020
        %1023 = vbcast.lane.b32.xlu0 %v1021, 256
        %v1024 = vpop.permute.xlu0 %1023
        %v1025 = vlaneseq
        %v1026 = vshrl.u32 %v1025, 7
        %v1027 = vsub.s32 0, %v1026
        %v1028 = vrot.slane %v392, %v1027
        %1030 = vbcast.lane.b32.xlu0 %v1028, 256
        %v1031 = vpop.permute.xlu0 %1030
        %v1032 = vlaneseq
        %v1033 = vshrl.u32 %v1032, 7
        %v1034 = vsub.s32 1, %v1033
        %v1035 = vrot.slane %v392, %v1034
        %1037 = vbcast.lane.b32.xlu0 %v1035, 256
        %v1038 = vpop.permute.xlu0 %1037
        %v1039 = vlaneseq
        %v1040 = vshrl.u32 %v1039, 7
        %v1041 = vsub.s32 2, %v1040
        %v1042 = vrot.slane %v392, %v1041
        %1044 = vbcast.lane.b32.xlu0 %v1042, 256
        %v1045 = vpop.permute.xlu0 %1044
        %v1046 = vlaneseq
        %v1047 = vshrl.u32 %v1046, 7
        %v1048 = vsub.s32 3, %v1047
        %v1049 = vrot.slane %v392, %v1048
        %1051 = vbcast.lane.b32.xlu0 %v1049, 256
        %v1052 = vpop.permute.xlu0 %1051
        %v1053 = vlaneseq
        %v1054 = vshrl.u32 %v1053, 7
        %v1055 = vsub.s32 4, %v1054
        %v1056 = vrot.slane %v392, %v1055
        %1058 = vbcast.lane.b32.xlu0 %v1056, 256
        %v1059 = vpop.permute.xlu0 %1058
        %v1060 = vlaneseq
        %v1061 = vshrl.u32 %v1060, 7
        %v1062 = vsub.s32 5, %v1061
        %v1063 = vrot.slane %v392, %v1062
        %1065 = vbcast.lane.b32.xlu0 %v1063, 256
        %v1066 = vpop.permute.xlu0 %1065
        %v1067 = vlaneseq
        %v1068 = vshrl.u32 %v1067, 7
        %v1069 = vsub.s32 6, %v1068
        %v1070 = vrot.slane %v392, %v1069
        %1072 = vbcast.lane.b32.xlu0 %v1070, 256
        %v1073 = vpop.permute.xlu0 %1072
        %v1074 = vlaneseq
        %v1075 = vshrl.u32 %v1074, 7
        %v1076 = vsub.s32 7, %v1075
        %v1077 = vrot.slane %v392, %v1076
        %1079 = vbcast.lane.b32.xlu0 %v1077, 256
        %v1080 = vpop.permute.xlu0 %1079
        %v1081 = vlaneseq
        %v1082 = vshrl.u32 %v1081, 7
        %v1083 = vsub.s32 0, %v1082
        %v1084 = vrot.slane %v397, %v1083
        %1086 = vbcast.lane.b32.xlu0 %v1084, 256
        %v1087 = vpop.permute.xlu0 %1086
        %v1088 = vlaneseq
        %v1089 = vshrl.u32 %v1088, 7
        %v1090 = vsub.s32 1, %v1089
        %v1091 = vrot.slane %v397, %v1090
        %1093 = vbcast.lane.b32.xlu0 %v1091, 256
        %v1094 = vpop.permute.xlu0 %1093
        %v1095 = vlaneseq
        %v1096 = vshrl.u32 %v1095, 7
        %v1097 = vsub.s32 2, %v1096
        %v1098 = vrot.slane %v397, %v1097
        %1100 = vbcast.lane.b32.xlu0 %v1098, 256
        %v1101 = vpop.permute.xlu0 %1100
        %v1102 = vlaneseq
        %v1103 = vshrl.u32 %v1102, 7
        %v1104 = vsub.s32 3, %v1103
        %v1105 = vrot.slane %v397, %v1104
        %1107 = vbcast.lane.b32.xlu0 %v1105, 256
        %v1108 = vpop.permute.xlu0 %1107
        %v1109 = vlaneseq
        %v1110 = vshrl.u32 %v1109, 7
        %v1111 = vsub.s32 4, %v1110
        %v1112 = vrot.slane %v397, %v1111
        %1114 = vbcast.lane.b32.xlu0 %v1112, 256
        %v1115 = vpop.permute.xlu0 %1114
        %v1116 = vlaneseq
        %v1117 = vshrl.u32 %v1116, 7
        %v1118 = vsub.s32 0, %v1117
        %v1119 = vrot.slane %v411, %v1118
        %1121 = vbcast.lane.b32.xlu0 %v1119, 256
        %v1122 = vpop.permute.xlu0 %1121
        %v1123 = vlaneseq
        %v1124 = vshrl.u32 %v1123, 7
        %v1125 = vsub.s32 1, %v1124
        %v1126 = vrot.slane %v411, %v1125
        %1128 = vbcast.lane.b32.xlu0 %v1126, 256
        %v1129 = vpop.permute.xlu0 %1128
        %v1130 = vlaneseq
        %v1131 = vshrl.u32 %v1130, 7
        %v1132 = vsub.s32 2, %v1131
        %v1133 = vrot.slane %v411, %v1132
        %1135 = vbcast.lane.b32.xlu0 %v1133, 256
        %v1136 = vpop.permute.xlu0 %1135
        %v1137 = vlaneseq
        %v1138 = vshrl.u32 %v1137, 7
        %v1139 = vsub.s32 3, %v1138
        %v1140 = vrot.slane %v411, %v1139
        %1142 = vbcast.lane.b32.xlu0 %v1140, 256
        %v1143 = vpop.permute.xlu0 %1142
        %v1144 = vlaneseq
        %v1145 = vshrl.u32 %v1144, 7
        %v1146 = vsub.s32 4, %v1145
        %v1147 = vrot.slane %v411, %v1146
        %1149 = vbcast.lane.b32.xlu0 %v1147, 256
        %v1150 = vpop.permute.xlu0 %1149
        %v1151 = vlaneseq
        %v1152 = vshrl.u32 %v1151, 7
        %v1153 = vsub.s32 5, %v1152
        %v1154 = vrot.slane %v411, %v1153
        %1156 = vbcast.lane.b32.xlu0 %v1154, 256
        %v1157 = vpop.permute.xlu0 %1156
        %v1158 = vlaneseq
        %v1159 = vshrl.u32 %v1158, 7
        %v1160 = vsub.s32 6, %v1159
        %v1161 = vrot.slane %v411, %v1160
        %1163 = vbcast.lane.b32.xlu0 %v1161, 256
        %v1164 = vpop.permute.xlu0 %1163
        %v1165 = vlaneseq
        %v1166 = vshrl.u32 %v1165, 7
        %v1167 = vsub.s32 7, %v1166
        %v1168 = vrot.slane %v411, %v1167
        %1170 = vbcast.lane.b32.xlu0 %v1168, 256
        %v1171 = vpop.permute.xlu0 %1170
        %v1172 = vlaneseq
        %v1173 = vshrl.u32 %v1172, 7
        %v1174 = vsub.s32 0, %v1173
        %v1175 = vrot.slane %v413, %v1174
        %1177 = vbcast.lane.b32.xlu0 %v1175, 256
        %v1178 = vpop.permute.xlu0 %1177
        %v1179 = vlaneseq
        %v1180 = vshrl.u32 %v1179, 7
        %v1181 = vsub.s32 1, %v1180
        %v1182 = vrot.slane %v413, %v1181
        %1184 = vbcast.lane.b32.xlu0 %v1182, 256
        %v1185 = vpop.permute.xlu0 %1184
        %v1186 = vlaneseq
        %v1187 = vshrl.u32 %v1186, 7
        %v1188 = vsub.s32 2, %v1187
        %v1189 = vrot.slane %v413, %v1188
        %1191 = vbcast.lane.b32.xlu0 %v1189, 256
        %v1192 = vpop.permute.xlu0 %1191
        %v1193 = vlaneseq
        %v1194 = vshrl.u32 %v1193, 7
        %v1195 = vsub.s32 3, %v1194
        %v1196 = vrot.slane %v413, %v1195
        %1198 = vbcast.lane.b32.xlu0 %v1196, 256
        %v1199 = vpop.permute.xlu0 %1198
        %v1200 = vlaneseq
        %v1201 = vshrl.u32 %v1200, 7
        %v1202 = vsub.s32 4, %v1201
        %v1203 = vrot.slane %v413, %v1202
        %1205 = vbcast.lane.b32.xlu0 %v1203, 256
        %v1206 = vpop.permute.xlu0 %1205
        %v1207 = vlaneseq
        %v1208 = vshrl.u32 %v1207, 7
        %v1209 = vsub.s32 5, %v1208
        %v1210 = vrot.slane %v413, %v1209
        %1212 = vbcast.lane.b32.xlu0 %v1210, 256
        %v1213 = vpop.permute.xlu0 %1212
        %v1214 = vlaneseq
        %v1215 = vshrl.u32 %v1214, 7
        %v1216 = vsub.s32 6, %v1215
        %v1217 = vrot.slane %v413, %v1216
        %1219 = vbcast.lane.b32.xlu0 %v1217, 256
        %v1220 = vpop.permute.xlu0 %1219
        %v1221 = vlaneseq
        %v1222 = vshrl.u32 %v1221, 7
        %v1223 = vsub.s32 7, %v1222
        %v1224 = vrot.slane %v413, %v1223
        %1226 = vbcast.lane.b32.xlu0 %v1224, 256
        %v1227 = vpop.permute.xlu0 %1226
        %v1228 = vlaneseq
        %v1229 = vshrl.u32 %v1228, 7
        %v1230 = vsub.s32 0, %v1229
        %v1231 = vrot.slane %v415, %v1230
        %1233 = vbcast.lane.b32.xlu0 %v1231, 256
        %v1234 = vpop.permute.xlu0 %1233
        %v1235 = vlaneseq
        %v1236 = vshrl.u32 %v1235, 7
        %v1237 = vsub.s32 1, %v1236
        %v1238 = vrot.slane %v415, %v1237
        %1240 = vbcast.lane.b32.xlu0 %v1238, 256
        %v1241 = vpop.permute.xlu0 %1240
        %v1242 = vlaneseq
        %v1243 = vshrl.u32 %v1242, 7
        %v1244 = vsub.s32 2, %v1243
        %v1245 = vrot.slane %v415, %v1244
        %1247 = vbcast.lane.b32.xlu0 %v1245, 256
        %v1248 = vpop.permute.xlu0 %1247
        %v1249 = vlaneseq
        %v1250 = vshrl.u32 %v1249, 7
        %v1251 = vsub.s32 3, %v1250
        %v1252 = vrot.slane %v415, %v1251
        %1254 = vbcast.lane.b32.xlu0 %v1252, 256
        %v1255 = vpop.permute.xlu0 %1254
        %v1256 = vlaneseq
        %v1257 = vshrl.u32 %v1256, 7
        %v1258 = vsub.s32 4, %v1257
        %v1259 = vrot.slane %v415, %v1258
        %1261 = vbcast.lane.b32.xlu0 %v1259, 256
        %v1262 = vpop.permute.xlu0 %1261
        %v1263 = vlaneseq
        %v1264 = vshrl.u32 %v1263, 7
        %v1265 = vsub.s32 5, %v1264
        %v1266 = vrot.slane %v415, %v1265
        %1268 = vbcast.lane.b32.xlu0 %v1266, 256
        %v1269 = vpop.permute.xlu0 %1268
        %v1270 = vlaneseq
        %v1271 = vshrl.u32 %v1270, 7
        %v1272 = vsub.s32 6, %v1271
        %v1273 = vrot.slane %v415, %v1272
        %1275 = vbcast.lane.b32.xlu0 %v1273, 256
        %v1276 = vpop.permute.xlu0 %1275
        %v1277 = vlaneseq
        %v1278 = vshrl.u32 %v1277, 7
        %v1279 = vsub.s32 7, %v1278
        %v1280 = vrot.slane %v415, %v1279
        %1282 = vbcast.lane.b32.xlu0 %v1280, 256
        %v1283 = vpop.permute.xlu0 %1282
        %v1284 = vlaneseq
        %v1285 = vshrl.u32 %v1284, 7
        %v1286 = vsub.s32 0, %v1285
        %v1287 = vrot.slane %v417, %v1286
        %1289 = vbcast.lane.b32.xlu0 %v1287, 256
        %v1290 = vpop.permute.xlu0 %1289
        %v1291 = vlaneseq
        %v1292 = vshrl.u32 %v1291, 7
        %v1293 = vsub.s32 1, %v1292
        %v1294 = vrot.slane %v417, %v1293
        %1296 = vbcast.lane.b32.xlu0 %v1294, 256
        %v1297 = vpop.permute.xlu0 %1296
        %v1298 = vlaneseq
        %v1299 = vshrl.u32 %v1298, 7
        %v1300 = vsub.s32 2, %v1299
        %v1301 = vrot.slane %v417, %v1300
        %1303 = vbcast.lane.b32.xlu0 %v1301, 256
        %v1304 = vpop.permute.xlu0 %1303
        %v1305 = vlaneseq
        %v1306 = vshrl.u32 %v1305, 7
        %v1307 = vsub.s32 3, %v1306
        %v1308 = vrot.slane %v417, %v1307
        %1310 = vbcast.lane.b32.xlu0 %v1308, 256
        %v1311 = vpop.permute.xlu0 %1310
        %v1312 = vlaneseq
        %v1313 = vshrl.u32 %v1312, 7
        %v1314 = vsub.s32 4, %v1313
        %v1315 = vrot.slane %v417, %v1314
        %1317 = vbcast.lane.b32.xlu0 %v1315, 256
        %v1318 = vpop.permute.xlu0 %1317
        %v1319 = vlaneseq
        %v1320 = vshrl.u32 %v1319, 7
        %v1321 = vsub.s32 5, %v1320
        %v1322 = vrot.slane %v417, %v1321
        %1324 = vbcast.lane.b32.xlu0 %v1322, 256
        %v1325 = vpop.permute.xlu0 %1324
        %v1326 = vlaneseq
        %v1327 = vshrl.u32 %v1326, 7
        %v1328 = vsub.s32 6, %v1327
        %v1329 = vrot.slane %v417, %v1328
        %1331 = vbcast.lane.b32.xlu0 %v1329, 256
        %v1332 = vpop.permute.xlu0 %1331
        %v1333 = vlaneseq
        %v1334 = vshrl.u32 %v1333, 7
        %v1335 = vsub.s32 7, %v1334
        %v1336 = vrot.slane %v417, %v1335
        %1338 = vbcast.lane.b32.xlu0 %v1336, 256
        %v1339 = vpop.permute.xlu0 %1338
        %v1340 = vlaneseq
        %v1341 = vshrl.u32 %v1340, 7
        %v1342 = vsub.s32 0, %v1341
        %v1343 = vrot.slane %v419, %v1342
        %1345 = vbcast.lane.b32.xlu0 %v1343, 256
        %v1346 = vpop.permute.xlu0 %1345
        %v1347 = vlaneseq
        %v1348 = vshrl.u32 %v1347, 7
        %v1349 = vsub.s32 1, %v1348
        %v1350 = vrot.slane %v419, %v1349
        %1352 = vbcast.lane.b32.xlu0 %v1350, 256
        %v1353 = vpop.permute.xlu0 %1352
        %v1354 = vlaneseq
        %v1355 = vshrl.u32 %v1354, 7
        %v1356 = vsub.s32 2, %v1355
        %v1357 = vrot.slane %v419, %v1356
        %1359 = vbcast.lane.b32.xlu0 %v1357, 256
        %v1360 = vpop.permute.xlu0 %1359
        %v1361 = vlaneseq
        %v1362 = vshrl.u32 %v1361, 7
        %v1363 = vsub.s32 3, %v1362
        %v1364 = vrot.slane %v419, %v1363
        %1366 = vbcast.lane.b32.xlu0 %v1364, 256
        %v1367 = vpop.permute.xlu0 %1366
        %v1368 = vlaneseq
        %v1369 = vshrl.u32 %v1368, 7
        %v1370 = vsub.s32 4, %v1369
        %v1371 = vrot.slane %v419, %v1370
        %1373 = vbcast.lane.b32.xlu0 %v1371, 256
        %v1374 = vpop.permute.xlu0 %1373
        %v1375 = vlaneseq
        %v1376 = vshrl.u32 %v1375, 7
        %v1377 = vsub.s32 5, %v1376
        %v1378 = vrot.slane %v419, %v1377
        %1380 = vbcast.lane.b32.xlu0 %v1378, 256
        %v1381 = vpop.permute.xlu0 %1380
        %v1382 = vlaneseq
        %v1383 = vshrl.u32 %v1382, 7
        %v1384 = vsub.s32 6, %v1383
        %v1385 = vrot.slane %v419, %v1384
        %1387 = vbcast.lane.b32.xlu0 %v1385, 256
        %v1388 = vpop.permute.xlu0 %1387
        %v1389 = vlaneseq
        %v1390 = vshrl.u32 %v1389, 7
        %v1391 = vsub.s32 7, %v1390
        %v1392 = vrot.slane %v419, %v1391
        %1394 = vbcast.lane.b32.xlu0 %v1392, 256
        %v1395 = vpop.permute.xlu0 %1394
        %v1396 = vlaneseq
        %v1397 = vshrl.u32 %v1396, 7
        %v1398 = vsub.s32 0, %v1397
        %v1399 = vrot.slane %v421, %v1398
        %1401 = vbcast.lane.b32.xlu0 %v1399, 256
        %v1402 = vpop.permute.xlu0 %1401
        %v1403 = vlaneseq
        %v1404 = vshrl.u32 %v1403, 7
        %v1405 = vsub.s32 1, %v1404
        %v1406 = vrot.slane %v421, %v1405
        %1408 = vbcast.lane.b32.xlu0 %v1406, 256
        %v1409 = vpop.permute.xlu0 %1408
        %v1410 = vlaneseq
        %v1411 = vshrl.u32 %v1410, 7
        %v1412 = vsub.s32 2, %v1411
        %v1413 = vrot.slane %v421, %v1412
        %1415 = vbcast.lane.b32.xlu0 %v1413, 256
        %v1416 = vpop.permute.xlu0 %1415
        %v1417 = vlaneseq
        %v1418 = vshrl.u32 %v1417, 7
        %v1419 = vsub.s32 3, %v1418
        %v1420 = vrot.slane %v421, %v1419
        %1422 = vbcast.lane.b32.xlu0 %v1420, 256
        %v1423 = vpop.permute.xlu0 %1422
        %v1424 = vlaneseq
        %v1425 = vshrl.u32 %v1424, 7
        %v1426 = vsub.s32 4, %v1425
        %v1427 = vrot.slane %v421, %v1426
        %1429 = vbcast.lane.b32.xlu0 %v1427, 256
        %v1430 = vpop.permute.xlu0 %1429
        %v1431 = vlaneseq
        %v1432 = vshrl.u32 %v1431, 7
        %v1433 = vsub.s32 5, %v1432
        %v1434 = vrot.slane %v421, %v1433
        %1436 = vbcast.lane.b32.xlu0 %v1434, 256
        %v1437 = vpop.permute.xlu0 %1436
        %v1438 = vlaneseq
        %v1439 = vshrl.u32 %v1438, 7
        %v1440 = vsub.s32 6, %v1439
        %v1441 = vrot.slane %v421, %v1440
        %1443 = vbcast.lane.b32.xlu0 %v1441, 256
        %v1444 = vpop.permute.xlu0 %1443
        %v1445 = vlaneseq
        %v1446 = vshrl.u32 %v1445, 7
        %v1447 = vsub.s32 7, %v1446
        %v1448 = vrot.slane %v421, %v1447
        %1450 = vbcast.lane.b32.xlu0 %v1448, 256
        %v1451 = vpop.permute.xlu0 %1450
        %v1452 = vlaneseq
        %v1453 = vshrl.u32 %v1452, 7
        %v1454 = vsub.s32 0, %v1453
        %v1455 = vrot.slane %v423, %v1454
        %1457 = vbcast.lane.b32.xlu0 %v1455, 256
        %v1458 = vpop.permute.xlu0 %1457
        %v1459 = vlaneseq
        %v1460 = vshrl.u32 %v1459, 7
        %v1461 = vsub.s32 1, %v1460
        %v1462 = vrot.slane %v423, %v1461
        %1464 = vbcast.lane.b32.xlu0 %v1462, 256
        %v1465 = vpop.permute.xlu0 %1464
        %v1466 = vlaneseq
        %v1467 = vshrl.u32 %v1466, 7
        %v1468 = vsub.s32 2, %v1467
        %v1469 = vrot.slane %v423, %v1468
        %1471 = vbcast.lane.b32.xlu0 %v1469, 256
        %v1472 = vpop.permute.xlu0 %1471
        %v1473 = vlaneseq
        %v1474 = vshrl.u32 %v1473, 7
        %v1475 = vsub.s32 3, %v1474
        %v1476 = vrot.slane %v423, %v1475
        %1478 = vbcast.lane.b32.xlu0 %v1476, 256
        %v1479 = vpop.permute.xlu0 %1478
        %v1480 = vlaneseq
        %v1481 = vshrl.u32 %v1480, 7
        %v1482 = vsub.s32 4, %v1481
        %v1483 = vrot.slane %v423, %v1482
        %1485 = vbcast.lane.b32.xlu0 %v1483, 256
        %v1486 = vpop.permute.xlu0 %1485
        %v1487 = vlaneseq
        %v1488 = vshrl.u32 %v1487, 7
        %v1489 = vsub.s32 5, %v1488
        %v1490 = vrot.slane %v423, %v1489
        %1492 = vbcast.lane.b32.xlu0 %v1490, 256
        %v1493 = vpop.permute.xlu0 %1492
        %v1494 = vlaneseq
        %v1495 = vshrl.u32 %v1494, 7
        %v1496 = vsub.s32 6, %v1495
        %v1497 = vrot.slane %v423, %v1496
        %1499 = vbcast.lane.b32.xlu0 %v1497, 256
        %v1500 = vpop.permute.xlu0 %1499
        %v1501 = vlaneseq
        %v1502 = vshrl.u32 %v1501, 7
        %v1503 = vsub.s32 7, %v1502
        %v1504 = vrot.slane %v423, %v1503
        %1506 = vbcast.lane.b32.xlu0 %v1504, 256
        %v1507 = vpop.permute.xlu0 %1506
        %v1508 = vlaneseq
        %v1509 = vshrl.u32 %v1508, 7
        %v1510 = vsub.s32 0, %v1509
        %v1511 = vrot.slane %v425, %v1510
        %1513 = vbcast.lane.b32.xlu0 %v1511, 256
        %v1514 = vpop.permute.xlu0 %1513
        %v1515 = vlaneseq
        %v1516 = vshrl.u32 %v1515, 7
        %v1517 = vsub.s32 1, %v1516
        %v1518 = vrot.slane %v425, %v1517
        %1520 = vbcast.lane.b32.xlu0 %v1518, 256
        %v1521 = vpop.permute.xlu0 %1520
        %v1522 = vlaneseq
        %v1523 = vshrl.u32 %v1522, 7
        %v1524 = vsub.s32 2, %v1523
        %v1525 = vrot.slane %v425, %v1524
        %1527 = vbcast.lane.b32.xlu0 %v1525, 256
        %v1528 = vpop.permute.xlu0 %1527
        %v1529 = vlaneseq
        %v1530 = vshrl.u32 %v1529, 7
        %v1531 = vsub.s32 3, %v1530
        %v1532 = vrot.slane %v425, %v1531
        %1534 = vbcast.lane.b32.xlu0 %v1532, 256
        %v1535 = vpop.permute.xlu0 %1534
        %v1536 = vlaneseq
        %v1537 = vshrl.u32 %v1536, 7
        %v1538 = vsub.s32 4, %v1537
        %v1539 = vrot.slane %v425, %v1538
        %1541 = vbcast.lane.b32.xlu0 %v1539, 256
        %v1542 = vpop.permute.xlu0 %1541
        %v1543 = vlaneseq
        %v1544 = vshrl.u32 %v1543, 7
        %v1545 = vsub.s32 5, %v1544
        %v1546 = vrot.slane %v425, %v1545
        %1548 = vbcast.lane.b32.xlu0 %v1546, 256
        %v1549 = vpop.permute.xlu0 %1548
        %v1550 = vlaneseq
        %v1551 = vshrl.u32 %v1550, 7
        %v1552 = vsub.s32 6, %v1551
        %v1553 = vrot.slane %v425, %v1552
        %1555 = vbcast.lane.b32.xlu0 %v1553, 256
        %v1556 = vpop.permute.xlu0 %1555
        %v1557 = vlaneseq
        %v1558 = vshrl.u32 %v1557, 7
        %v1559 = vsub.s32 7, %v1558
        %v1560 = vrot.slane %v425, %v1559
        %1562 = vbcast.lane.b32.xlu0 %v1560, 256
        %v1563 = vpop.permute.xlu0 %1562
        %v1564 = vlaneseq
        %v1565 = vshrl.u32 %v1564, 7
        %v1566 = vsub.s32 0, %v1565
        %v1567 = vrot.slane %v427, %v1566
        %1569 = vbcast.lane.b32.xlu0 %v1567, 256
        %v1570 = vpop.permute.xlu0 %1569
        %v1571 = vlaneseq
        %v1572 = vshrl.u32 %v1571, 7
        %v1573 = vsub.s32 1, %v1572
        %v1574 = vrot.slane %v427, %v1573
        %1576 = vbcast.lane.b32.xlu0 %v1574, 256
        %v1577 = vpop.permute.xlu0 %1576
        %v1578 = vlaneseq
        %v1579 = vshrl.u32 %v1578, 7
        %v1580 = vsub.s32 2, %v1579
        %v1581 = vrot.slane %v427, %v1580
        %1583 = vbcast.lane.b32.xlu0 %v1581, 256
        %v1584 = vpop.permute.xlu0 %1583
        %v1585 = vlaneseq
        %v1586 = vshrl.u32 %v1585, 7
        %v1587 = vsub.s32 3, %v1586
        %v1588 = vrot.slane %v427, %v1587
        %1590 = vbcast.lane.b32.xlu0 %v1588, 256
        %v1591 = vpop.permute.xlu0 %1590
        %v1592 = vlaneseq
        %v1593 = vshrl.u32 %v1592, 7
        %v1594 = vsub.s32 4, %v1593
        %v1595 = vrot.slane %v427, %v1594
        %1597 = vbcast.lane.b32.xlu0 %v1595, 256
        %v1598 = vpop.permute.xlu0 %1597
        %v1599 = vlaneseq
        %v1600 = vshrl.u32 %v1599, 7
        %v1601 = vsub.s32 5, %v1600
        %v1602 = vrot.slane %v427, %v1601
        %1604 = vbcast.lane.b32.xlu0 %v1602, 256
        %v1605 = vpop.permute.xlu0 %1604
        %v1606 = vlaneseq
        %v1607 = vshrl.u32 %v1606, 7
        %v1608 = vsub.s32 6, %v1607
        %v1609 = vrot.slane %v427, %v1608
        %1611 = vbcast.lane.b32.xlu0 %v1609, 256
        %v1612 = vpop.permute.xlu0 %1611
        %v1613 = vlaneseq
        %v1614 = vshrl.u32 %v1613, 7
        %v1615 = vsub.s32 7, %v1614
        %v1616 = vrot.slane %v427, %v1615
        %1618 = vbcast.lane.b32.xlu0 %v1616, 256
        %v1619 = vpop.permute.xlu0 %1618
        %v1620 = vlaneseq
        %v1621 = vshrl.u32 %v1620, 7
        %v1622 = vsub.s32 0, %v1621
        %v1623 = vrot.slane %v429, %v1622
        %1625 = vbcast.lane.b32.xlu0 %v1623, 256
        %v1626 = vpop.permute.xlu0 %1625
        %v1627 = vlaneseq
        %v1628 = vshrl.u32 %v1627, 7
        %v1629 = vsub.s32 1, %v1628
        %v1630 = vrot.slane %v429, %v1629
        %1632 = vbcast.lane.b32.xlu0 %v1630, 256
        %v1633 = vpop.permute.xlu0 %1632
        %v1634 = vlaneseq
        %v1635 = vshrl.u32 %v1634, 7
        %v1636 = vsub.s32 2, %v1635
        %v1637 = vrot.slane %v429, %v1636
        %1639 = vbcast.lane.b32.xlu0 %v1637, 256
        %v1640 = vpop.permute.xlu0 %1639
        %v1641 = vlaneseq
        %v1642 = vshrl.u32 %v1641, 7
        %v1643 = vsub.s32 3, %v1642
        %v1644 = vrot.slane %v429, %v1643
        %1646 = vbcast.lane.b32.xlu0 %v1644, 256
        %v1647 = vpop.permute.xlu0 %1646
        %v1648 = vlaneseq
        %v1649 = vshrl.u32 %v1648, 7
        %v1650 = vsub.s32 4, %v1649
        %v1651 = vrot.slane %v429, %v1650
        %1653 = vbcast.lane.b32.xlu0 %v1651, 256
        %v1654 = vpop.permute.xlu0 %1653
        %v1655 = vlaneseq
        %v1656 = vshrl.u32 %v1655, 7
        %v1657 = vsub.s32 0, %v1656
        %v1658 = vrot.slane %v441, %v1657
        %1660 = vbcast.lane.b32.xlu0 %v1658, 256
        %v1661 = vpop.permute.xlu0 %1660
        %v1662 = vlaneseq
        %v1663 = vshrl.u32 %v1662, 7
        %v1664 = vsub.s32 1, %v1663
        %v1665 = vrot.slane %v441, %v1664
        %1667 = vbcast.lane.b32.xlu0 %v1665, 256
        %v1668 = vpop.permute.xlu0 %1667
        %v1669 = vlaneseq
        %v1670 = vshrl.u32 %v1669, 7
        %v1671 = vsub.s32 2, %v1670
        %v1672 = vrot.slane %v441, %v1671
        %1674 = vbcast.lane.b32.xlu0 %v1672, 256
        %v1675 = vpop.permute.xlu0 %1674
        %v1676 = vlaneseq
        %v1677 = vshrl.u32 %v1676, 7
        %v1678 = vsub.s32 3, %v1677
        %v1679 = vrot.slane %v441, %v1678
        %1681 = vbcast.lane.b32.xlu0 %v1679, 256
        %v1682 = vpop.permute.xlu0 %1681
        %v1683 = vlaneseq
        %v1684 = vshrl.u32 %v1683, 7
        %v1685 = vsub.s32 4, %v1684
        %v1686 = vrot.slane %v441, %v1685
        %1688 = vbcast.lane.b32.xlu0 %v1686, 256
        %v1689 = vpop.permute.xlu0 %1688
        %v1690 = vlaneseq
        %v1691 = vshrl.u32 %v1690, 7
        %v1692 = vsub.s32 5, %v1691
        %v1693 = vrot.slane %v441, %v1692
        %1695 = vbcast.lane.b32.xlu0 %v1693, 256
        %v1696 = vpop.permute.xlu0 %1695
        %v1697 = vlaneseq
        %v1698 = vshrl.u32 %v1697, 7
        %v1699 = vsub.s32 6, %v1698
        %v1700 = vrot.slane %v441, %v1699
        %1702 = vbcast.lane.b32.xlu0 %v1700, 256
        %v1703 = vpop.permute.xlu0 %1702
        %v1704 = vlaneseq
        %v1705 = vshrl.u32 %v1704, 7
        %v1706 = vsub.s32 7, %v1705
        %v1707 = vrot.slane %v441, %v1706
        %1709 = vbcast.lane.b32.xlu0 %v1707, 256
        %v1710 = vpop.permute.xlu0 %1709
        %v1711 = vlaneseq
        %v1712 = vshrl.u32 %v1711, 7
        %v1713 = vsub.s32 0, %v1712
        %v1714 = vrot.slane %v443, %v1713
        %1716 = vbcast.lane.b32.xlu0 %v1714, 256
        %v1717 = vpop.permute.xlu0 %1716
        %v1718 = vlaneseq
        %v1719 = vshrl.u32 %v1718, 7
        %v1720 = vsub.s32 1, %v1719
        %v1721 = vrot.slane %v443, %v1720
        %1723 = vbcast.lane.b32.xlu0 %v1721, 256
        %v1724 = vpop.permute.xlu0 %1723
        %v1725 = vlaneseq
        %v1726 = vshrl.u32 %v1725, 7
        %v1727 = vsub.s32 2, %v1726
        %v1728 = vrot.slane %v443, %v1727
        %1730 = vbcast.lane.b32.xlu0 %v1728, 256
        %v1731 = vpop.permute.xlu0 %1730
        %v1732 = vlaneseq
        %v1733 = vshrl.u32 %v1732, 7
        %v1734 = vsub.s32 3, %v1733
        %v1735 = vrot.slane %v443, %v1734
        %1737 = vbcast.lane.b32.xlu0 %v1735, 256
        %v1738 = vpop.permute.xlu0 %1737
        %v1739 = vlaneseq
        %v1740 = vshrl.u32 %v1739, 7
        %v1741 = vsub.s32 4, %v1740
        %v1742 = vrot.slane %v443, %v1741
        %1744 = vbcast.lane.b32.xlu0 %v1742, 256
        %v1745 = vpop.permute.xlu0 %1744
        %v1746 = vlaneseq
        %v1747 = vshrl.u32 %v1746, 7
        %v1748 = vsub.s32 5, %v1747
        %v1749 = vrot.slane %v443, %v1748
        %1751 = vbcast.lane.b32.xlu0 %v1749, 256
        %v1752 = vpop.permute.xlu0 %1751
        %v1753 = vlaneseq
        %v1754 = vshrl.u32 %v1753, 7
        %v1755 = vsub.s32 6, %v1754
        %v1756 = vrot.slane %v443, %v1755
        %1758 = vbcast.lane.b32.xlu0 %v1756, 256
        %v1759 = vpop.permute.xlu0 %1758
        %v1760 = vlaneseq
        %v1761 = vshrl.u32 %v1760, 7
        %v1762 = vsub.s32 7, %v1761
        %v1763 = vrot.slane %v443, %v1762
        %1765 = vbcast.lane.b32.xlu0 %v1763, 256
        %v1766 = vpop.permute.xlu0 %1765
        %v1767 = vlaneseq
        %v1768 = vshrl.u32 %v1767, 7
        %v1769 = vsub.s32 0, %v1768
        %v1770 = vrot.slane %v445, %v1769
        %1772 = vbcast.lane.b32.xlu0 %v1770, 256
        %v1773 = vpop.permute.xlu0 %1772
        %v1774 = vlaneseq
        %v1775 = vshrl.u32 %v1774, 7
        %v1776 = vsub.s32 1, %v1775
        %v1777 = vrot.slane %v445, %v1776
        %1779 = vbcast.lane.b32.xlu0 %v1777, 256
        %v1780 = vpop.permute.xlu0 %1779
        %v1781 = vlaneseq
        %v1782 = vshrl.u32 %v1781, 7
        %v1783 = vsub.s32 2, %v1782
        %v1784 = vrot.slane %v445, %v1783
        %1786 = vbcast.lane.b32.xlu0 %v1784, 256
        %v1787 = vpop.permute.xlu0 %1786
        %v1788 = vlaneseq
        %v1789 = vshrl.u32 %v1788, 7
        %v1790 = vsub.s32 3, %v1789
        %v1791 = vrot.slane %v445, %v1790
        %1793 = vbcast.lane.b32.xlu0 %v1791, 256
        %v1794 = vpop.permute.xlu0 %1793
        %v1795 = vlaneseq
        %v1796 = vshrl.u32 %v1795, 7
        %v1797 = vsub.s32 4, %v1796
        %v1798 = vrot.slane %v445, %v1797
        %1800 = vbcast.lane.b32.xlu0 %v1798, 256
        %v1801 = vpop.permute.xlu0 %1800
        %v1802 = vlaneseq
        %v1803 = vshrl.u32 %v1802, 7
        %v1804 = vsub.s32 5, %v1803
        %v1805 = vrot.slane %v445, %v1804
        %1807 = vbcast.lane.b32.xlu0 %v1805, 256
        %v1808 = vpop.permute.xlu0 %1807
        %v1809 = vlaneseq
        %v1810 = vshrl.u32 %v1809, 7
        %v1811 = vsub.s32 6, %v1810
        %v1812 = vrot.slane %v445, %v1811
        %1814 = vbcast.lane.b32.xlu0 %v1812, 256
        %v1815 = vpop.permute.xlu0 %1814
        %v1816 = vlaneseq
        %v1817 = vshrl.u32 %v1816, 7
        %v1818 = vsub.s32 7, %v1817
        %v1819 = vrot.slane %v445, %v1818
        %1821 = vbcast.lane.b32.xlu0 %v1819, 256
        %v1822 = vpop.permute.xlu0 %1821
        %v1823 = vlaneseq
        %v1824 = vshrl.u32 %v1823, 7
        %v1825 = vsub.s32 0, %v1824
        %v1826 = vrot.slane %v447, %v1825
        %1828 = vbcast.lane.b32.xlu0 %v1826, 256
        %v1829 = vpop.permute.xlu0 %1828
        %v1830 = vlaneseq
        %v1831 = vshrl.u32 %v1830, 7
        %v1832 = vsub.s32 1, %v1831
        %v1833 = vrot.slane %v447, %v1832
        %1835 = vbcast.lane.b32.xlu0 %v1833, 256
        %v1836 = vpop.permute.xlu0 %1835
        %v1837 = vlaneseq
        %v1838 = vshrl.u32 %v1837, 7
        %v1839 = vsub.s32 2, %v1838
        %v1840 = vrot.slane %v447, %v1839
        %1842 = vbcast.lane.b32.xlu0 %v1840, 256
        %v1843 = vpop.permute.xlu0 %1842
        %v1844 = vlaneseq
        %v1845 = vshrl.u32 %v1844, 7
        %v1846 = vsub.s32 3, %v1845
        %v1847 = vrot.slane %v447, %v1846
        %1849 = vbcast.lane.b32.xlu0 %v1847, 256
        %v1850 = vpop.permute.xlu0 %1849
        %v1851 = vlaneseq
        %v1852 = vshrl.u32 %v1851, 7
        %v1853 = vsub.s32 4, %v1852
        %v1854 = vrot.slane %v447, %v1853
        %1856 = vbcast.lane.b32.xlu0 %v1854, 256
        %v1857 = vpop.permute.xlu0 %1856
        %v1858 = vlaneseq
        %v1859 = vshrl.u32 %v1858, 7
        %v1860 = vsub.s32 5, %v1859
        %v1861 = vrot.slane %v447, %v1860
        %1863 = vbcast.lane.b32.xlu0 %v1861, 256
        %v1864 = vpop.permute.xlu0 %1863
        %v1865 = vlaneseq
        %v1866 = vshrl.u32 %v1865, 7
        %v1867 = vsub.s32 6, %v1866
        %v1868 = vrot.slane %v447, %v1867
        %1870 = vbcast.lane.b32.xlu0 %v1868, 256
        %v1871 = vpop.permute.xlu0 %1870
        %v1872 = vlaneseq
        %v1873 = vshrl.u32 %v1872, 7
        %v1874 = vsub.s32 7, %v1873
        %v1875 = vrot.slane %v447, %v1874
        %1877 = vbcast.lane.b32.xlu0 %v1875, 256
        %v1878 = vpop.permute.xlu0 %1877
        %v1879 = vlaneseq
        %v1880 = vshrl.u32 %v1879, 7
        %v1881 = vsub.s32 0, %v1880
        %v1882 = vrot.slane %v449, %v1881
        %1884 = vbcast.lane.b32.xlu0 %v1882, 256
        %v1885 = vpop.permute.xlu0 %1884
        %v1886 = vlaneseq
        %v1887 = vshrl.u32 %v1886, 7
        %v1888 = vsub.s32 1, %v1887
        %v1889 = vrot.slane %v449, %v1888
        %1891 = vbcast.lane.b32.xlu0 %v1889, 256
        %v1892 = vpop.permute.xlu0 %1891
        %v1893 = vlaneseq
        %v1894 = vshrl.u32 %v1893, 7
        %v1895 = vsub.s32 2, %v1894
        %v1896 = vrot.slane %v449, %v1895
        %1898 = vbcast.lane.b32.xlu0 %v1896, 256
        %v1899 = vpop.permute.xlu0 %1898
        %v1900 = vlaneseq
        %v1901 = vshrl.u32 %v1900, 7
        %v1902 = vsub.s32 3, %v1901
        %v1903 = vrot.slane %v449, %v1902
        %1905 = vbcast.lane.b32.xlu0 %v1903, 256
        %v1906 = vpop.permute.xlu0 %1905
        %v1907 = vlaneseq
        %v1908 = vshrl.u32 %v1907, 7
        %v1909 = vsub.s32 4, %v1908
        %v1910 = vrot.slane %v449, %v1909
        %1912 = vbcast.lane.b32.xlu0 %v1910, 256
        %v1913 = vpop.permute.xlu0 %1912
        %v1914 = vlaneseq
        %v1915 = vshrl.u32 %v1914, 7
        %v1916 = vsub.s32 5, %v1915
        %v1917 = vrot.slane %v449, %v1916
        %1919 = vbcast.lane.b32.xlu0 %v1917, 256
        %v1920 = vpop.permute.xlu0 %1919
        %v1921 = vlaneseq
        %v1922 = vshrl.u32 %v1921, 7
        %v1923 = vsub.s32 6, %v1922
        %v1924 = vrot.slane %v449, %v1923
        %1926 = vbcast.lane.b32.xlu0 %v1924, 256
        %v1927 = vpop.permute.xlu0 %1926
        %v1928 = vlaneseq
        %v1929 = vshrl.u32 %v1928, 7
        %v1930 = vsub.s32 7, %v1929
        %v1931 = vrot.slane %v449, %v1930
        %1933 = vbcast.lane.b32.xlu0 %v1931, 256
        %v1934 = vpop.permute.xlu0 %1933
        %v1935 = vlaneseq
        %v1936 = vshrl.u32 %v1935, 7
        %v1937 = vsub.s32 0, %v1936
        %v1938 = vrot.slane %v451, %v1937
        %1940 = vbcast.lane.b32.xlu0 %v1938, 256
        %v1941 = vpop.permute.xlu0 %1940
        %v1942 = vlaneseq
        %v1943 = vshrl.u32 %v1942, 7
        %v1944 = vsub.s32 1, %v1943
        %v1945 = vrot.slane %v451, %v1944
        %1947 = vbcast.lane.b32.xlu0 %v1945, 256
        %v1948 = vpop.permute.xlu0 %1947
        %v1949 = vlaneseq
        %v1950 = vshrl.u32 %v1949, 7
        %v1951 = vsub.s32 2, %v1950
        %v1952 = vrot.slane %v451, %v1951
        %1954 = vbcast.lane.b32.xlu0 %v1952, 256
        %v1955 = vpop.permute.xlu0 %1954
        %v1956 = vlaneseq
        %v1957 = vshrl.u32 %v1956, 7
        %v1958 = vsub.s32 3, %v1957
        %v1959 = vrot.slane %v451, %v1958
        %1961 = vbcast.lane.b32.xlu0 %v1959, 256
        %v1962 = vpop.permute.xlu0 %1961
        %v1963 = vlaneseq
        %v1964 = vshrl.u32 %v1963, 7
        %v1965 = vsub.s32 4, %v1964
        %v1966 = vrot.slane %v451, %v1965
        %1968 = vbcast.lane.b32.xlu0 %v1966, 256
        %v1969 = vpop.permute.xlu0 %1968
        %v1970 = vlaneseq
        %v1971 = vshrl.u32 %v1970, 7
        %v1972 = vsub.s32 5, %v1971
        %v1973 = vrot.slane %v451, %v1972
        %1975 = vbcast.lane.b32.xlu0 %v1973, 256
        %v1976 = vpop.permute.xlu0 %1975
        %v1977 = vlaneseq
        %v1978 = vshrl.u32 %v1977, 7
        %v1979 = vsub.s32 6, %v1978
        %v1980 = vrot.slane %v451, %v1979
        %1982 = vbcast.lane.b32.xlu0 %v1980, 256
        %v1983 = vpop.permute.xlu0 %1982
        %v1984 = vlaneseq
        %v1985 = vshrl.u32 %v1984, 7
        %v1986 = vsub.s32 7, %v1985
        %v1987 = vrot.slane %v451, %v1986
        %1989 = vbcast.lane.b32.xlu0 %v1987, 256
        %v1990 = vpop.permute.xlu0 %1989
        %v1991 = vlaneseq
        %v1992 = vshrl.u32 %v1991, 7
        %v1993 = vsub.s32 0, %v1992
        %v1994 = vrot.slane %v453, %v1993
        %1996 = vbcast.lane.b32.xlu0 %v1994, 256
        %v1997 = vpop.permute.xlu0 %1996
        %v1998 = vlaneseq
        %v1999 = vshrl.u32 %v1998, 7
        %v2000 = vsub.s32 1, %v1999
        %v2001 = vrot.slane %v453, %v2000
        %2003 = vbcast.lane.b32.xlu0 %v2001, 256
        %v2004 = vpop.permute.xlu0 %2003
        %v2005 = vlaneseq
        %v2006 = vshrl.u32 %v2005, 7
        %v2007 = vsub.s32 2, %v2006
        %v2008 = vrot.slane %v453, %v2007
        %2010 = vbcast.lane.b32.xlu0 %v2008, 256
        %v2011 = vpop.permute.xlu0 %2010
        %v2012 = vlaneseq
        %v2013 = vshrl.u32 %v2012, 7
        %v2014 = vsub.s32 3, %v2013
        %v2015 = vrot.slane %v453, %v2014
        %2017 = vbcast.lane.b32.xlu0 %v2015, 256
        %v2018 = vpop.permute.xlu0 %2017
        %v2019 = vlaneseq
        %v2020 = vshrl.u32 %v2019, 7
        %v2021 = vsub.s32 4, %v2020
        %v2022 = vrot.slane %v453, %v2021
        %2024 = vbcast.lane.b32.xlu0 %v2022, 256
        %v2025 = vpop.permute.xlu0 %2024
        %v2026 = vlaneseq
        %v2027 = vshrl.u32 %v2026, 7
        %v2028 = vsub.s32 5, %v2027
        %v2029 = vrot.slane %v453, %v2028
        %2031 = vbcast.lane.b32.xlu0 %v2029, 256
        %v2032 = vpop.permute.xlu0 %2031
        %v2033 = vlaneseq
        %v2034 = vshrl.u32 %v2033, 7
        %v2035 = vsub.s32 6, %v2034
        %v2036 = vrot.slane %v453, %v2035
        %2038 = vbcast.lane.b32.xlu0 %v2036, 256
        %v2039 = vpop.permute.xlu0 %2038
        %v2040 = vlaneseq
        %v2041 = vshrl.u32 %v2040, 7
        %v2042 = vsub.s32 7, %v2041
        %v2043 = vrot.slane %v453, %v2042
        %2045 = vbcast.lane.b32.xlu0 %v2043, 256
        %v2046 = vpop.permute.xlu0 %2045
        %v2047 = vlaneseq
        %v2048 = vshrl.u32 %v2047, 7
        %v2049 = vsub.s32 0, %v2048
        %v2050 = vrot.slane %v455, %v2049
        %2052 = vbcast.lane.b32.xlu0 %v2050, 256
        %v2053 = vpop.permute.xlu0 %2052
        %v2054 = vlaneseq
        %v2055 = vshrl.u32 %v2054, 7
        %v2056 = vsub.s32 1, %v2055
        %v2057 = vrot.slane %v455, %v2056
        %2059 = vbcast.lane.b32.xlu0 %v2057, 256
        %v2060 = vpop.permute.xlu0 %2059
        %v2061 = vlaneseq
        %v2062 = vshrl.u32 %v2061, 7
        %v2063 = vsub.s32 2, %v2062
        %v2064 = vrot.slane %v455, %v2063
        %2066 = vbcast.lane.b32.xlu0 %v2064, 256
        %v2067 = vpop.permute.xlu0 %2066
        %v2068 = vlaneseq
        %v2069 = vshrl.u32 %v2068, 7
        %v2070 = vsub.s32 3, %v2069
        %v2071 = vrot.slane %v455, %v2070
        %2073 = vbcast.lane.b32.xlu0 %v2071, 256
        %v2074 = vpop.permute.xlu0 %2073
        %v2075 = vlaneseq
        %v2076 = vshrl.u32 %v2075, 7
        %v2077 = vsub.s32 4, %v2076
        %v2078 = vrot.slane %v455, %v2077
        %2080 = vbcast.lane.b32.xlu0 %v2078, 256
        %v2081 = vpop.permute.xlu0 %2080
        %v2082 = vlaneseq
        %v2083 = vshrl.u32 %v2082, 7
        %v2084 = vsub.s32 5, %v2083
        %v2085 = vrot.slane %v455, %v2084
        %2087 = vbcast.lane.b32.xlu0 %v2085, 256
        %v2088 = vpop.permute.xlu0 %2087
        %v2089 = vlaneseq
        %v2090 = vshrl.u32 %v2089, 7
        %v2091 = vsub.s32 6, %v2090
        %v2092 = vrot.slane %v455, %v2091
        %2094 = vbcast.lane.b32.xlu0 %v2092, 256
        %v2095 = vpop.permute.xlu0 %2094
        %v2096 = vlaneseq
        %v2097 = vshrl.u32 %v2096, 7
        %v2098 = vsub.s32 7, %v2097
        %v2099 = vrot.slane %v455, %v2098
        %2101 = vbcast.lane.b32.xlu0 %v2099, 256
        %v2102 = vpop.permute.xlu0 %2101
        %v2103 = vlaneseq
        %v2104 = vshrl.u32 %v2103, 7
        %v2105 = vsub.s32 0, %v2104
        %v2106 = vrot.slane %v457, %v2105
        %2108 = vbcast.lane.b32.xlu0 %v2106, 256
        %v2109 = vpop.permute.xlu0 %2108
        %v2110 = vlaneseq
        %v2111 = vshrl.u32 %v2110, 7
        %v2112 = vsub.s32 1, %v2111
        %v2113 = vrot.slane %v457, %v2112
        %2115 = vbcast.lane.b32.xlu0 %v2113, 256
        %v2116 = vpop.permute.xlu0 %2115
        %v2117 = vlaneseq
        %v2118 = vshrl.u32 %v2117, 7
        %v2119 = vsub.s32 2, %v2118
        %v2120 = vrot.slane %v457, %v2119
        %2122 = vbcast.lane.b32.xlu0 %v2120, 256
        %v2123 = vpop.permute.xlu0 %2122
        %v2124 = vlaneseq
        %v2125 = vshrl.u32 %v2124, 7
        %v2126 = vsub.s32 3, %v2125
        %v2127 = vrot.slane %v457, %v2126
        %2129 = vbcast.lane.b32.xlu0 %v2127, 256
        %v2130 = vpop.permute.xlu0 %2129
        %v2131 = vlaneseq
        %v2132 = vshrl.u32 %v2131, 7
        %v2133 = vsub.s32 4, %v2132
        %v2134 = vrot.slane %v457, %v2133
        %2136 = vbcast.lane.b32.xlu0 %v2134, 256
        %v2137 = vpop.permute.xlu0 %2136
        %v2138 = vlaneseq
        %v2139 = vshrl.u32 %v2138, 7
        %v2140 = vsub.s32 5, %v2139
        %v2141 = vrot.slane %v457, %v2140
        %2143 = vbcast.lane.b32.xlu0 %v2141, 256
        %v2144 = vpop.permute.xlu0 %2143
        %v2145 = vlaneseq
        %v2146 = vshrl.u32 %v2145, 7
        %v2147 = vsub.s32 6, %v2146
        %v2148 = vrot.slane %v457, %v2147
        %2150 = vbcast.lane.b32.xlu0 %v2148, 256
        %v2151 = vpop.permute.xlu0 %2150
        %v2152 = vlaneseq
        %v2153 = vshrl.u32 %v2152, 7
        %v2154 = vsub.s32 7, %v2153
        %v2155 = vrot.slane %v457, %v2154
        %2157 = vbcast.lane.b32.xlu0 %v2155, 256
        %v2158 = vpop.permute.xlu0 %2157
        %v2159 = vlaneseq
        %v2160 = vshrl.u32 %v2159, 7
        %v2161 = vsub.s32 0, %v2160
        %v2162 = vrot.slane %v459, %v2161
        %2164 = vbcast.lane.b32.xlu0 %v2162, 256
        %v2165 = vpop.permute.xlu0 %2164
        %v2166 = vlaneseq
        %v2167 = vshrl.u32 %v2166, 7
        %v2168 = vsub.s32 1, %v2167
        %v2169 = vrot.slane %v459, %v2168
        %2171 = vbcast.lane.b32.xlu0 %v2169, 256
        %v2172 = vpop.permute.xlu0 %2171
        %v2173 = vlaneseq
        %v2174 = vshrl.u32 %v2173, 7
        %v2175 = vsub.s32 2, %v2174
        %v2176 = vrot.slane %v459, %v2175
        %2178 = vbcast.lane.b32.xlu0 %v2176, 256
        %v2179 = vpop.permute.xlu0 %2178
        %v2180 = vlaneseq
        %v2181 = vshrl.u32 %v2180, 7
        %v2182 = vsub.s32 3, %v2181
        %v2183 = vrot.slane %v459, %v2182
        %2185 = vbcast.lane.b32.xlu0 %v2183, 256
        %v2186 = vpop.permute.xlu0 %2185
        %v2187 = vlaneseq
        %v2188 = vshrl.u32 %v2187, 7
        %v2189 = vsub.s32 4, %v2188
        %v2190 = vrot.slane %v459, %v2189
        %2192 = vbcast.lane.b32.xlu0 %v2190, 256
        %v2193 = vpop.permute.xlu0 %2192
        %v2194 = vlaneseq
        %v2195 = vshrl.u32 %v2194, 7
        %v2196 = vsub.s32 0, %v2195
        %v2197 = vrot.slane %v471, %v2196
        %2199 = vbcast.lane.b32.xlu0 %v2197, 256
        %v2200 = vpop.permute.xlu0 %2199
        %v2201 = vlaneseq
        %v2202 = vshrl.u32 %v2201, 7
        %v2203 = vsub.s32 1, %v2202
        %v2204 = vrot.slane %v471, %v2203
        %2206 = vbcast.lane.b32.xlu0 %v2204, 256
        %v2207 = vpop.permute.xlu0 %2206
        %v2208 = vlaneseq
        %v2209 = vshrl.u32 %v2208, 7
        %v2210 = vsub.s32 2, %v2209
        %v2211 = vrot.slane %v471, %v2210
        %2213 = vbcast.lane.b32.xlu0 %v2211, 256
        %v2214 = vpop.permute.xlu0 %2213
        %v2215 = vlaneseq
        %v2216 = vshrl.u32 %v2215, 7
        %v2217 = vsub.s32 3, %v2216
        %v2218 = vrot.slane %v471, %v2217
        %2220 = vbcast.lane.b32.xlu0 %v2218, 256
        %v2221 = vpop.permute.xlu0 %2220
        %v2222 = vlaneseq
        %v2223 = vshrl.u32 %v2222, 7
        %v2224 = vsub.s32 4, %v2223
        %v2225 = vrot.slane %v471, %v2224
        %2227 = vbcast.lane.b32.xlu0 %v2225, 256
        %v2228 = vpop.permute.xlu0 %2227
        %v2229 = vlaneseq
        %v2230 = vshrl.u32 %v2229, 7
        %v2231 = vsub.s32 5, %v2230
        %v2232 = vrot.slane %v471, %v2231
        %2234 = vbcast.lane.b32.xlu0 %v2232, 256
        %v2235 = vpop.permute.xlu0 %2234
        %v2236 = vlaneseq
        %v2237 = vshrl.u32 %v2236, 7
        %v2238 = vsub.s32 6, %v2237
        %v2239 = vrot.slane %v471, %v2238
        %2241 = vbcast.lane.b32.xlu0 %v2239, 256
        %v2242 = vpop.permute.xlu0 %2241
        %v2243 = vlaneseq
        %v2244 = vshrl.u32 %v2243, 7
        %v2245 = vsub.s32 7, %v2244
        %v2246 = vrot.slane %v471, %v2245
        %2248 = vbcast.lane.b32.xlu0 %v2246, 256
        %v2249 = vpop.permute.xlu0 %2248
        %v2250 = vlaneseq
        %v2251 = vshrl.u32 %v2250, 7
        %v2252 = vsub.s32 0, %v2251
        %v2253 = vrot.slane %v473, %v2252
        %2255 = vbcast.lane.b32.xlu0 %v2253, 256
        %v2256 = vpop.permute.xlu0 %2255
        %v2257 = vlaneseq
        %v2258 = vshrl.u32 %v2257, 7
        %v2259 = vsub.s32 1, %v2258
        %v2260 = vrot.slane %v473, %v2259
        %2262 = vbcast.lane.b32.xlu0 %v2260, 256
        %v2263 = vpop.permute.xlu0 %2262
        %v2264 = vlaneseq
        %v2265 = vshrl.u32 %v2264, 7
        %v2266 = vsub.s32 2, %v2265
        %v2267 = vrot.slane %v473, %v2266
        %2269 = vbcast.lane.b32.xlu0 %v2267, 256
        %v2270 = vpop.permute.xlu0 %2269
        %v2271 = vlaneseq
        %v2272 = vshrl.u32 %v2271, 7
        %v2273 = vsub.s32 3, %v2272
        %v2274 = vrot.slane %v473, %v2273
        %2276 = vbcast.lane.b32.xlu0 %v2274, 256
        %v2277 = vpop.permute.xlu0 %2276
        %v2278 = vlaneseq
        %v2279 = vshrl.u32 %v2278, 7
        %v2280 = vsub.s32 4, %v2279
        %v2281 = vrot.slane %v473, %v2280
        %2283 = vbcast.lane.b32.xlu0 %v2281, 256
        %v2284 = vpop.permute.xlu0 %2283
        %v2285 = vlaneseq
        %v2286 = vshrl.u32 %v2285, 7
        %v2287 = vsub.s32 5, %v2286
        %v2288 = vrot.slane %v473, %v2287
        %2290 = vbcast.lane.b32.xlu0 %v2288, 256
        %v2291 = vpop.permute.xlu0 %2290
        %v2292 = vlaneseq
        %v2293 = vshrl.u32 %v2292, 7
        %v2294 = vsub.s32 6, %v2293
        %v2295 = vrot.slane %v473, %v2294
        %2297 = vbcast.lane.b32.xlu0 %v2295, 256
        %v2298 = vpop.permute.xlu0 %2297
        %v2299 = vlaneseq
        %v2300 = vshrl.u32 %v2299, 7
        %v2301 = vsub.s32 7, %v2300
        %v2302 = vrot.slane %v473, %v2301
        %2304 = vbcast.lane.b32.xlu0 %v2302, 256
        %v2305 = vpop.permute.xlu0 %2304
        %v2306 = vlaneseq
        %v2307 = vshrl.u32 %v2306, 7
        %v2308 = vsub.s32 0, %v2307
        %v2309 = vrot.slane %v475, %v2308
        %2311 = vbcast.lane.b32.xlu0 %v2309, 256
        %v2312 = vpop.permute.xlu0 %2311
        %v2313 = vlaneseq
        %v2314 = vshrl.u32 %v2313, 7
        %v2315 = vsub.s32 1, %v2314
        %v2316 = vrot.slane %v475, %v2315
        %2318 = vbcast.lane.b32.xlu0 %v2316, 256
        %v2319 = vpop.permute.xlu0 %2318
        %v2320 = vlaneseq
        %v2321 = vshrl.u32 %v2320, 7
        %v2322 = vsub.s32 2, %v2321
        %v2323 = vrot.slane %v475, %v2322
        %2325 = vbcast.lane.b32.xlu0 %v2323, 256
        %v2326 = vpop.permute.xlu0 %2325
        %v2327 = vlaneseq
        %v2328 = vshrl.u32 %v2327, 7
        %v2329 = vsub.s32 3, %v2328
        %v2330 = vrot.slane %v475, %v2329
        %2332 = vbcast.lane.b32.xlu0 %v2330, 256
        %v2333 = vpop.permute.xlu0 %2332
        %v2334 = vlaneseq
        %v2335 = vshrl.u32 %v2334, 7
        %v2336 = vsub.s32 4, %v2335
        %v2337 = vrot.slane %v475, %v2336
        %2339 = vbcast.lane.b32.xlu0 %v2337, 256
        %v2340 = vpop.permute.xlu0 %2339
        %v2341 = vlaneseq
        %v2342 = vshrl.u32 %v2341, 7
        %v2343 = vsub.s32 5, %v2342
        %v2344 = vrot.slane %v475, %v2343
        %2346 = vbcast.lane.b32.xlu0 %v2344, 256
        %v2347 = vpop.permute.xlu0 %2346
        %v2348 = vlaneseq
        %v2349 = vshrl.u32 %v2348, 7
        %v2350 = vsub.s32 6, %v2349
        %v2351 = vrot.slane %v475, %v2350
        %2353 = vbcast.lane.b32.xlu0 %v2351, 256
        %v2354 = vpop.permute.xlu0 %2353
        %v2355 = vlaneseq
        %v2356 = vshrl.u32 %v2355, 7
        %v2357 = vsub.s32 7, %v2356
        %v2358 = vrot.slane %v475, %v2357
        %2360 = vbcast.lane.b32.xlu0 %v2358, 256
        %v2361 = vpop.permute.xlu0 %2360
        %v2362 = vlaneseq
        %v2363 = vshrl.u32 %v2362, 7
        %v2364 = vsub.s32 0, %v2363
        %v2365 = vrot.slane %v477, %v2364
        %2367 = vbcast.lane.b32.xlu0 %v2365, 256
        %v2368 = vpop.permute.xlu0 %2367
        %v2369 = vlaneseq
        %v2370 = vshrl.u32 %v2369, 7
        %v2371 = vsub.s32 1, %v2370
        %v2372 = vrot.slane %v477, %v2371
        %2374 = vbcast.lane.b32.xlu0 %v2372, 256
        %v2375 = vpop.permute.xlu0 %2374
        %v2376 = vlaneseq
        %v2377 = vshrl.u32 %v2376, 7
        %v2378 = vsub.s32 2, %v2377
        %v2379 = vrot.slane %v477, %v2378
        %2381 = vbcast.lane.b32.xlu0 %v2379, 256
        %v2382 = vpop.permute.xlu0 %2381
        %v2383 = vlaneseq
        %v2384 = vshrl.u32 %v2383, 7
        %v2385 = vsub.s32 3, %v2384
        %v2386 = vrot.slane %v477, %v2385
        %2388 = vbcast.lane.b32.xlu0 %v2386, 256
        %v2389 = vpop.permute.xlu0 %2388
        %v2390 = vlaneseq
        %v2391 = vshrl.u32 %v2390, 7
        %v2392 = vsub.s32 4, %v2391
        %v2393 = vrot.slane %v477, %v2392
        %2395 = vbcast.lane.b32.xlu0 %v2393, 256
        %v2396 = vpop.permute.xlu0 %2395
        %v2397 = vlaneseq
        %v2398 = vshrl.u32 %v2397, 7
        %v2399 = vsub.s32 5, %v2398
        %v2400 = vrot.slane %v477, %v2399
        %2402 = vbcast.lane.b32.xlu0 %v2400, 256
        %v2403 = vpop.permute.xlu0 %2402
        %v2404 = vlaneseq
        %v2405 = vshrl.u32 %v2404, 7
        %v2406 = vsub.s32 6, %v2405
        %v2407 = vrot.slane %v477, %v2406
        %2409 = vbcast.lane.b32.xlu0 %v2407, 256
        %v2410 = vpop.permute.xlu0 %2409
        %v2411 = vlaneseq
        %v2412 = vshrl.u32 %v2411, 7
        %v2413 = vsub.s32 7, %v2412
        %v2414 = vrot.slane %v477, %v2413
        %2416 = vbcast.lane.b32.xlu0 %v2414, 256
        %v2417 = vpop.permute.xlu0 %2416
        %v2418 = vlaneseq
        %v2419 = vshrl.u32 %v2418, 7
        %v2420 = vsub.s32 0, %v2419
        %v2421 = vrot.slane %v479, %v2420
        %2423 = vbcast.lane.b32.xlu0 %v2421, 256
        %v2424 = vpop.permute.xlu0 %2423
        %v2425 = vlaneseq
        %v2426 = vshrl.u32 %v2425, 7
        %v2427 = vsub.s32 1, %v2426
        %v2428 = vrot.slane %v479, %v2427
        %2430 = vbcast.lane.b32.xlu0 %v2428, 256
        %v2431 = vpop.permute.xlu0 %2430
        %v2432 = vlaneseq
        %v2433 = vshrl.u32 %v2432, 7
        %v2434 = vsub.s32 2, %v2433
        %v2435 = vrot.slane %v479, %v2434
        %2437 = vbcast.lane.b32.xlu0 %v2435, 256
        %v2438 = vpop.permute.xlu0 %2437
        %v2439 = vlaneseq
        %v2440 = vshrl.u32 %v2439, 7
        %v2441 = vsub.s32 3, %v2440
        %v2442 = vrot.slane %v479, %v2441
        %2444 = vbcast.lane.b32.xlu0 %v2442, 256
        %v2445 = vpop.permute.xlu0 %2444
        %v2446 = vlaneseq
        %v2447 = vshrl.u32 %v2446, 7
        %v2448 = vsub.s32 4, %v2447
        %v2449 = vrot.slane %v479, %v2448
        %2451 = vbcast.lane.b32.xlu0 %v2449, 256
        %v2452 = vpop.permute.xlu0 %2451
        %v2453 = vlaneseq
        %v2454 = vshrl.u32 %v2453, 7
        %v2455 = vsub.s32 5, %v2454
        %v2456 = vrot.slane %v479, %v2455
        %2458 = vbcast.lane.b32.xlu0 %v2456, 256
        %v2459 = vpop.permute.xlu0 %2458
        %v2460 = vlaneseq
        %v2461 = vshrl.u32 %v2460, 7
        %v2462 = vsub.s32 6, %v2461
        %v2463 = vrot.slane %v479, %v2462
        %2465 = vbcast.lane.b32.xlu0 %v2463, 256
        %v2466 = vpop.permute.xlu0 %2465
        %v2467 = vlaneseq
        %v2468 = vshrl.u32 %v2467, 7
        %v2469 = vsub.s32 7, %v2468
        %v2470 = vrot.slane %v479, %v2469
        %2472 = vbcast.lane.b32.xlu0 %v2470, 256
        %v2473 = vpop.permute.xlu0 %2472
        %v2474 = vlaneseq
        %v2475 = vshrl.u32 %v2474, 7
        %v2476 = vsub.s32 0, %v2475
        %v2477 = vrot.slane %v481, %v2476
        %2479 = vbcast.lane.b32.xlu0 %v2477, 256
        %v2480 = vpop.permute.xlu0 %2479
        %v2481 = vlaneseq
        %v2482 = vshrl.u32 %v2481, 7
        %v2483 = vsub.s32 1, %v2482
        %v2484 = vrot.slane %v481, %v2483
        %2486 = vbcast.lane.b32.xlu0 %v2484, 256
        %v2487 = vpop.permute.xlu0 %2486
        %v2488 = vlaneseq
        %v2489 = vshrl.u32 %v2488, 7
        %v2490 = vsub.s32 2, %v2489
        %v2491 = vrot.slane %v481, %v2490
        %2493 = vbcast.lane.b32.xlu0 %v2491, 256
        %v2494 = vpop.permute.xlu0 %2493
        %v2495 = vlaneseq
        %v2496 = vshrl.u32 %v2495, 7
        %v2497 = vsub.s32 3, %v2496
        %v2498 = vrot.slane %v481, %v2497
        %2500 = vbcast.lane.b32.xlu0 %v2498, 256
        %v2501 = vpop.permute.xlu0 %2500
        %v2502 = vlaneseq
        %v2503 = vshrl.u32 %v2502, 7
        %v2504 = vsub.s32 4, %v2503
        %v2505 = vrot.slane %v481, %v2504
        %2507 = vbcast.lane.b32.xlu0 %v2505, 256
        %v2508 = vpop.permute.xlu0 %2507
        %v2509 = vlaneseq
        %v2510 = vshrl.u32 %v2509, 7
        %v2511 = vsub.s32 5, %v2510
        %v2512 = vrot.slane %v481, %v2511
        %2514 = vbcast.lane.b32.xlu0 %v2512, 256
        %v2515 = vpop.permute.xlu0 %2514
        %v2516 = vlaneseq
        %v2517 = vshrl.u32 %v2516, 7
        %v2518 = vsub.s32 6, %v2517
        %v2519 = vrot.slane %v481, %v2518
        %2521 = vbcast.lane.b32.xlu0 %v2519, 256
        %v2522 = vpop.permute.xlu0 %2521
        %v2523 = vlaneseq
        %v2524 = vshrl.u32 %v2523, 7
        %v2525 = vsub.s32 7, %v2524
        %v2526 = vrot.slane %v481, %v2525
        %2528 = vbcast.lane.b32.xlu0 %v2526, 256
        %v2529 = vpop.permute.xlu0 %2528
        %v2530 = vlaneseq
        %v2531 = vshrl.u32 %v2530, 7
        %v2532 = vsub.s32 0, %v2531
        %v2533 = vrot.slane %v483, %v2532
        %2535 = vbcast.lane.b32.xlu0 %v2533, 256
        %v2536 = vpop.permute.xlu0 %2535
        %v2537 = vlaneseq
        %v2538 = vshrl.u32 %v2537, 7
        %v2539 = vsub.s32 1, %v2538
        %v2540 = vrot.slane %v483, %v2539
        %2542 = vbcast.lane.b32.xlu0 %v2540, 256
        %v2543 = vpop.permute.xlu0 %2542
        %v2544 = vlaneseq
        %v2545 = vshrl.u32 %v2544, 7
        %v2546 = vsub.s32 2, %v2545
        %v2547 = vrot.slane %v483, %v2546
        %2549 = vbcast.lane.b32.xlu0 %v2547, 256
        %v2550 = vpop.permute.xlu0 %2549
        %v2551 = vlaneseq
        %v2552 = vshrl.u32 %v2551, 7
        %v2553 = vsub.s32 3, %v2552
        %v2554 = vrot.slane %v483, %v2553
        %2556 = vbcast.lane.b32.xlu0 %v2554, 256
        %v2557 = vpop.permute.xlu0 %2556
        %v2558 = vlaneseq
        %v2559 = vshrl.u32 %v2558, 7
        %v2560 = vsub.s32 4, %v2559
        %v2561 = vrot.slane %v483, %v2560
        %2563 = vbcast.lane.b32.xlu0 %v2561, 256
        %v2564 = vpop.permute.xlu0 %2563
        %v2565 = vlaneseq
        %v2566 = vshrl.u32 %v2565, 7
        %v2567 = vsub.s32 5, %v2566
        %v2568 = vrot.slane %v483, %v2567
        %2570 = vbcast.lane.b32.xlu0 %v2568, 256
        %v2571 = vpop.permute.xlu0 %2570
        %v2572 = vlaneseq
        %v2573 = vshrl.u32 %v2572, 7
        %v2574 = vsub.s32 6, %v2573
        %v2575 = vrot.slane %v483, %v2574
        %2577 = vbcast.lane.b32.xlu0 %v2575, 256
        %v2578 = vpop.permute.xlu0 %2577
        %v2579 = vlaneseq
        %v2580 = vshrl.u32 %v2579, 7
        %v2581 = vsub.s32 7, %v2580
        %v2582 = vrot.slane %v483, %v2581
        %2584 = vbcast.lane.b32.xlu0 %v2582, 256
        %v2585 = vpop.permute.xlu0 %2584
        %v2586 = vlaneseq
        %v2587 = vshrl.u32 %v2586, 7
        %v2588 = vsub.s32 0, %v2587
        %v2589 = vrot.slane %v485, %v2588
        %2591 = vbcast.lane.b32.xlu0 %v2589, 256
        %v2592 = vpop.permute.xlu0 %2591
        %v2593 = vlaneseq
        %v2594 = vshrl.u32 %v2593, 7
        %v2595 = vsub.s32 1, %v2594
        %v2596 = vrot.slane %v485, %v2595
        %2598 = vbcast.lane.b32.xlu0 %v2596, 256
        %v2599 = vpop.permute.xlu0 %2598
        %v2600 = vlaneseq
        %v2601 = vshrl.u32 %v2600, 7
        %v2602 = vsub.s32 2, %v2601
        %v2603 = vrot.slane %v485, %v2602
        %2605 = vbcast.lane.b32.xlu0 %v2603, 256
        %v2606 = vpop.permute.xlu0 %2605
        %v2607 = vlaneseq
        %v2608 = vshrl.u32 %v2607, 7
        %v2609 = vsub.s32 3, %v2608
        %v2610 = vrot.slane %v485, %v2609
        %2612 = vbcast.lane.b32.xlu0 %v2610, 256
        %v2613 = vpop.permute.xlu0 %2612
        %v2614 = vlaneseq
        %v2615 = vshrl.u32 %v2614, 7
        %v2616 = vsub.s32 4, %v2615
        %v2617 = vrot.slane %v485, %v2616
        %2619 = vbcast.lane.b32.xlu0 %v2617, 256
        %v2620 = vpop.permute.xlu0 %2619
        %v2621 = vlaneseq
        %v2622 = vshrl.u32 %v2621, 7
        %v2623 = vsub.s32 5, %v2622
        %v2624 = vrot.slane %v485, %v2623
        %2626 = vbcast.lane.b32.xlu0 %v2624, 256
        %v2627 = vpop.permute.xlu0 %2626
        %v2628 = vlaneseq
        %v2629 = vshrl.u32 %v2628, 7
        %v2630 = vsub.s32 6, %v2629
        %v2631 = vrot.slane %v485, %v2630
        %2633 = vbcast.lane.b32.xlu0 %v2631, 256
        %v2634 = vpop.permute.xlu0 %2633
        %v2635 = vlaneseq
        %v2636 = vshrl.u32 %v2635, 7
        %v2637 = vsub.s32 7, %v2636
        %v2638 = vrot.slane %v485, %v2637
        %2640 = vbcast.lane.b32.xlu0 %v2638, 256
        %v2641 = vpop.permute.xlu0 %2640
        %v2642 = vlaneseq
        %v2643 = vshrl.u32 %v2642, 7
        %v2644 = vsub.s32 0, %v2643
        %v2645 = vrot.slane %v487, %v2644
        %2647 = vbcast.lane.b32.xlu0 %v2645, 256
        %v2648 = vpop.permute.xlu0 %2647
        %v2649 = vlaneseq
        %v2650 = vshrl.u32 %v2649, 7
        %v2651 = vsub.s32 1, %v2650
        %v2652 = vrot.slane %v487, %v2651
        %2654 = vbcast.lane.b32.xlu0 %v2652, 256
        %v2655 = vpop.permute.xlu0 %2654
        %v2656 = vlaneseq
        %v2657 = vshrl.u32 %v2656, 7
        %v2658 = vsub.s32 2, %v2657
        %v2659 = vrot.slane %v487, %v2658
        %2661 = vbcast.lane.b32.xlu0 %v2659, 256
        %v2662 = vpop.permute.xlu0 %2661
        %v2663 = vlaneseq
        %v2664 = vshrl.u32 %v2663, 7
        %v2665 = vsub.s32 3, %v2664
        %v2666 = vrot.slane %v487, %v2665
        %2668 = vbcast.lane.b32.xlu0 %v2666, 256
        %v2669 = vpop.permute.xlu0 %2668
        %v2670 = vlaneseq
        %v2671 = vshrl.u32 %v2670, 7
        %v2672 = vsub.s32 4, %v2671
        %v2673 = vrot.slane %v487, %v2672
        %2675 = vbcast.lane.b32.xlu0 %v2673, 256
        %v2676 = vpop.permute.xlu0 %2675
        %v2677 = vlaneseq
        %v2678 = vshrl.u32 %v2677, 7
        %v2679 = vsub.s32 5, %v2678
        %v2680 = vrot.slane %v487, %v2679
        %2682 = vbcast.lane.b32.xlu0 %v2680, 256
        %v2683 = vpop.permute.xlu0 %2682
        %v2684 = vlaneseq
        %v2685 = vshrl.u32 %v2684, 7
        %v2686 = vsub.s32 6, %v2685
        %v2687 = vrot.slane %v487, %v2686
        %2689 = vbcast.lane.b32.xlu0 %v2687, 256
        %v2690 = vpop.permute.xlu0 %2689
        %v2691 = vlaneseq
        %v2692 = vshrl.u32 %v2691, 7
        %v2693 = vsub.s32 7, %v2692
        %v2694 = vrot.slane %v487, %v2693
        %2696 = vbcast.lane.b32.xlu0 %v2694, 256
        %v2697 = vpop.permute.xlu0 %2696
        %v2698 = vlaneseq
        %v2699 = vshrl.u32 %v2698, 7
        %v2700 = vsub.s32 0, %v2699
        %v2701 = vrot.slane %v489, %v2700
        %2703 = vbcast.lane.b32.xlu0 %v2701, 256
        %v2704 = vpop.permute.xlu0 %2703
        %v2705 = vlaneseq
        %v2706 = vshrl.u32 %v2705, 7
        %v2707 = vsub.s32 1, %v2706
        %v2708 = vrot.slane %v489, %v2707
        %2710 = vbcast.lane.b32.xlu0 %v2708, 256
        %v2711 = vpop.permute.xlu0 %2710
        %v2712 = vlaneseq
        %v2713 = vshrl.u32 %v2712, 7
        %v2714 = vsub.s32 2, %v2713
        %v2715 = vrot.slane %v489, %v2714
        %2717 = vbcast.lane.b32.xlu0 %v2715, 256
        %v2718 = vpop.permute.xlu0 %2717
        %v2719 = vlaneseq
        %v2720 = vshrl.u32 %v2719, 7
        %v2721 = vsub.s32 3, %v2720
        %v2722 = vrot.slane %v489, %v2721
        %2724 = vbcast.lane.b32.xlu0 %v2722, 256
        %v2725 = vpop.permute.xlu0 %2724
        %v2726 = vlaneseq
        %v2727 = vshrl.u32 %v2726, 7
        %v2728 = vsub.s32 4, %v2727
        %v2729 = vrot.slane %v489, %v2728
        %2731 = vbcast.lane.b32.xlu0 %v2729, 256
        %v2732 = vpop.permute.xlu0 %2731
        %v2733 = vmul.f32 %v583, %v500
        %v2734 = vmul.f32 %v590, %v501
        %v2735 = vmul.f32 %v597, %v502
        %v2736 = vmul.f32 %v604, %v503
        %v2737 = vmul.f32 %v611, %v504
        %v2738 = vmul.f32 %v618, %v505
        %v2739 = vmul.f32 %v625, %v506
        %v2740 = vmul.f32 %v632, %v507
        %v2741 = vmul.f32 %v639, %v508
        %v2742 = vmul.f32 %v646, %v509
        %v2743 = vmul.f32 %v653, %v510
        %v2744 = vmul.f32 %v660, %v511
        %v2745 = vmul.f32 %v667, %v512
        %v2746 = vmul.f32 %v674, %v513
        %v2747 = vmul.f32 %v681, %v514
        %v2748 = vmul.f32 %v688, %v515
        %v2749 = vmul.f32 %v695, %v516
        %v2750 = vmul.f32 %v702, %v517
        %v2751 = vmul.f32 %v709, %v518
        %v2752 = vmul.f32 %v716, %v519
        %v2753 = vmul.f32 %v723, %v520
        %v2754 = vmul.f32 %v730, %v521
        %v2755 = vmul.f32 %v737, %v522
        %v2756 = vmul.f32 %v744, %v523
        %v2757 = vmul.f32 %v751, %v524
        %v2758 = vmul.f32 %v758, %v525
        %v2759 = vmul.f32 %v765, %v526
        %v2760 = vmul.f32 %v772, %v527
        %v2761 = vmul.f32 %v779, %v528
        %v2762 = vmul.f32 %v786, %v529
        %v2763 = vmul.f32 %v793, %v530
        %v2764 = vmul.f32 %v800, %v531
        %v2765 = vmul.f32 %v807, %v532
        %v2766 = vmul.f32 %v814, %v533
        %v2767 = vmul.f32 %v821, %v534
        %v2768 = vmul.f32 %v828, %v535
        %v2769 = vmul.f32 %v835, %v536
        %v2770 = vmul.f32 %v842, %v537
        %v2771 = vmul.f32 %v849, %v538
        %v2772 = vmul.f32 %v856, %v539
        %v2773 = vmul.f32 %v863, %v540
        %v2774 = vmul.f32 %v870, %v541
        %v2775 = vmul.f32 %v877, %v542
        %v2776 = vmul.f32 %v884, %v543
        %v2777 = vmul.f32 %v891, %v544
        %v2778 = vmul.f32 %v898, %v545
        %v2779 = vmul.f32 %v905, %v546
        %v2780 = vmul.f32 %v912, %v547
        %v2781 = vmul.f32 %v919, %v548
        %v2782 = vmul.f32 %v926, %v549
        %v2783 = vmul.f32 %v933, %v550
        %v2784 = vmul.f32 %v940, %v551
        %v2785 = vmul.f32 %v947, %v552
        %v2786 = vmul.f32 %v954, %v553
        %v2787 = vmul.f32 %v961, %v554
        %v2788 = vmul.f32 %v968, %v555
        %v2789 = vmul.f32 %v975, %v556
        %v2790 = vmul.f32 %v982, %v557
        %v2791 = vmul.f32 %v989, %v558
        %v2792 = vmul.f32 %v996, %v559
        %v2793 = vmul.f32 %v1003, %v560
        %v2794 = vmul.f32 %v1010, %v561
        %v2795 = vmul.f32 %v1017, %v562
        %v2796 = vmul.f32 %v1024, %v563
        %v2797 = vmul.f32 %v1031, %v564
        %v2798 = vmul.f32 %v1038, %v565
        %v2799 = vmul.f32 %v1045, %v566
        %v2800 = vmul.f32 %v1052, %v567
        %v2801 = vmul.f32 %v1059, %v568
        %v2802 = vmul.f32 %v1066, %v569
        %v2803 = vmul.f32 %v1073, %v570
        %v2804 = vmul.f32 %v1080, %v571
        %v2805 = vmul.f32 %v1087, %v572
        %v2806 = vmul.f32 %v1094, %v573
        %v2807 = vmul.f32 %v1101, %v574
        %v2808 = vmul.f32 %v1108, %v575
        %v2809 = vmul.f32 %v1115, %v576
        %v2810 = vmul.f32 %v1122, %v500
        %v2811 = vmul.f32 %v1129, %v501
        %v2812 = vmul.f32 %v1136, %v502
        %v2813 = vmul.f32 %v1143, %v503
        %v2814 = vmul.f32 %v1150, %v504
        %v2815 = vmul.f32 %v1157, %v505
        %v2816 = vmul.f32 %v1164, %v506
        %v2817 = vmul.f32 %v1171, %v507
        %v2818 = vmul.f32 %v1178, %v508
        %v2819 = vmul.f32 %v1185, %v509
        %v2820 = vmul.f32 %v1192, %v510
        %v2821 = vmul.f32 %v1199, %v511
        %v2822 = vmul.f32 %v1206, %v512
        %v2823 = vmul.f32 %v1213, %v513
        %v2824 = vmul.f32 %v1220, %v514
        %v2825 = vmul.f32 %v1227, %v515
        %v2826 = vmul.f32 %v1234, %v516
        %v2827 = vmul.f32 %v1241, %v517
        %v2828 = vmul.f32 %v1248, %v518
        %v2829 = vmul.f32 %v1255, %v519
        %v2830 = vmul.f32 %v1262, %v520
        %v2831 = vmul.f32 %v1269, %v521
        %v2832 = vmul.f32 %v1276, %v522
        %v2833 = vmul.f32 %v1283, %v523
        %v2834 = vmul.f32 %v1290, %v524
        %v2835 = vmul.f32 %v1297, %v525
        %v2836 = vmul.f32 %v1304, %v526
        %v2837 = vmul.f32 %v1311, %v527
        %v2838 = vmul.f32 %v1318, %v528
        %v2839 = vmul.f32 %v1325, %v529
        %v2840 = vmul.f32 %v1332, %v530
        %v2841 = vmul.f32 %v1339, %v531
        %v2842 = vmul.f32 %v1346, %v532
        %v2843 = vmul.f32 %v1353, %v533
        %v2844 = vmul.f32 %v1360, %v534
        %v2845 = vmul.f32 %v1367, %v535
        %v2846 = vmul.f32 %v1374, %v536
        %v2847 = vmul.f32 %v1381, %v537
        %v2848 = vmul.f32 %v1388, %v538
        %v2849 = vmul.f32 %v1395, %v539
        %v2850 = vmul.f32 %v1402, %v540
        %v2851 = vmul.f32 %v1409, %v541
        %v2852 = vmul.f32 %v1416, %v542
        %v2853 = vmul.f32 %v1423, %v543
        %v2854 = vmul.f32 %v1430, %v544
        %v2855 = vmul.f32 %v1437, %v545
        %v2856 = vmul.f32 %v1444, %v546
        %v2857 = vmul.f32 %v1451, %v547
        %v2858 = vmul.f32 %v1458, %v548
        %v2859 = vmul.f32 %v1465, %v549
        %v2860 = vmul.f32 %v1472, %v550
        %v2861 = vmul.f32 %v1479, %v551
        %v2862 = vmul.f32 %v1486, %v552
        %v2863 = vmul.f32 %v1493, %v553
        %v2864 = vmul.f32 %v1500, %v554
        %v2865 = vmul.f32 %v1507, %v555
        %v2866 = vmul.f32 %v1514, %v556
        %v2867 = vmul.f32 %v1521, %v557
        %v2868 = vmul.f32 %v1528, %v558
        %v2869 = vmul.f32 %v1535, %v559
        %v2870 = vmul.f32 %v1542, %v560
        %v2871 = vmul.f32 %v1549, %v561
        %v2872 = vmul.f32 %v1556, %v562
        %v2873 = vmul.f32 %v1563, %v563
        %v2874 = vmul.f32 %v1570, %v564
        %v2875 = vmul.f32 %v1577, %v565
        %v2876 = vmul.f32 %v1584, %v566
        %v2877 = vmul.f32 %v1591, %v567
        %v2878 = vmul.f32 %v1598, %v568
        %v2879 = vmul.f32 %v1605, %v569
        %v2880 = vmul.f32 %v1612, %v570
        %v2881 = vmul.f32 %v1619, %v571
        %v2882 = vmul.f32 %v1626, %v572
        %v2883 = vmul.f32 %v1633, %v573
        %v2884 = vmul.f32 %v1640, %v574
        %v2885 = vmul.f32 %v1647, %v575
        %v2886 = vmul.f32 %v1654, %v576
        %v2887 = vmul.f32 %v1661, %v500
        %v2888 = vmul.f32 %v1668, %v501
        %v2889 = vmul.f32 %v1675, %v502
        %v2890 = vmul.f32 %v1682, %v503
        %v2891 = vmul.f32 %v1689, %v504
        %v2892 = vmul.f32 %v1696, %v505
        %v2893 = vmul.f32 %v1703, %v506
        %v2894 = vmul.f32 %v1710, %v507
        %v2895 = vmul.f32 %v1717, %v508
        %v2896 = vmul.f32 %v1724, %v509
        %v2897 = vmul.f32 %v1731, %v510
        %v2898 = vmul.f32 %v1738, %v511
        %v2899 = vmul.f32 %v1745, %v512
        %v2900 = vmul.f32 %v1752, %v513
        %v2901 = vmul.f32 %v1759, %v514
        %v2902 = vmul.f32 %v1766, %v515
        %v2903 = vmul.f32 %v1773, %v516
        %v2904 = vmul.f32 %v1780, %v517
        %v2905 = vmul.f32 %v1787, %v518
        %v2906 = vmul.f32 %v1794, %v519
        %v2907 = vmul.f32 %v1801, %v520
        %v2908 = vmul.f32 %v1808, %v521
        %v2909 = vmul.f32 %v1815, %v522
        %v2910 = vmul.f32 %v1822, %v523
        %v2911 = vmul.f32 %v1829, %v524
        %v2912 = vmul.f32 %v1836, %v525
        %v2913 = vmul.f32 %v1843, %v526
        %v2914 = vmul.f32 %v1850, %v527
        %v2915 = vmul.f32 %v1857, %v528
        %v2916 = vmul.f32 %v1864, %v529
        %v2917 = vmul.f32 %v1871, %v530
        %v2918 = vmul.f32 %v1878, %v531
        %v2919 = vmul.f32 %v1885, %v532
        %v2920 = vmul.f32 %v1892, %v533
        %v2921 = vmul.f32 %v1899, %v534
        %v2922 = vmul.f32 %v1906, %v535
        %v2923 = vmul.f32 %v1913, %v536
        %v2924 = vmul.f32 %v1920, %v537
        %v2925 = vmul.f32 %v1927, %v538
        %v2926 = vmul.f32 %v1934, %v539
        %v2927 = vmul.f32 %v1941, %v540
        %v2928 = vmul.f32 %v1948, %v541
        %v2929 = vmul.f32 %v1955, %v542
        %v2930 = vmul.f32 %v1962, %v543
        %v2931 = vmul.f32 %v1969, %v544
        %v2932 = vmul.f32 %v1976, %v545
        %v2933 = vmul.f32 %v1983, %v546
        %v2934 = vmul.f32 %v1990, %v547
        %v2935 = vmul.f32 %v1997, %v548
        %v2936 = vmul.f32 %v2004, %v549
        %v2937 = vmul.f32 %v2011, %v550
        %v2938 = vmul.f32 %v2018, %v551
        %v2939 = vmul.f32 %v2025, %v552
        %v2940 = vmul.f32 %v2032, %v553
        %v2941 = vmul.f32 %v2039, %v554
        %v2942 = vmul.f32 %v2046, %v555
        %v2943 = vmul.f32 %v2053, %v556
        %v2944 = vmul.f32 %v2060, %v557
        %v2945 = vmul.f32 %v2067, %v558
        %v2946 = vmul.f32 %v2074, %v559
        %v2947 = vmul.f32 %v2081, %v560
        %v2948 = vmul.f32 %v2088, %v561
        %v2949 = vmul.f32 %v2095, %v562
        %v2950 = vmul.f32 %v2102, %v563
        %v2951 = vmul.f32 %v2109, %v564
        %v2952 = vmul.f32 %v2116, %v565
        %v2953 = vmul.f32 %v2123, %v566
        %v2954 = vmul.f32 %v2130, %v567
        %v2955 = vmul.f32 %v2137, %v568
        %v2956 = vmul.f32 %v2144, %v569
        %v2957 = vmul.f32 %v2151, %v570
        %v2958 = vmul.f32 %v2158, %v571
        %v2959 = vmul.f32 %v2165, %v572
        %v2960 = vmul.f32 %v2172, %v573
        %v2961 = vmul.f32 %v2179, %v574
        %v2962 = vmul.f32 %v2186, %v575
        %v2963 = vmul.f32 %v2193, %v576
        %v2964 = vmul.f32 %v2200, %v500
        %v2965 = vmul.f32 %v2207, %v501
        %v2966 = vmul.f32 %v2214, %v502
        %v2967 = vmul.f32 %v2221, %v503
        %v2968 = vmul.f32 %v2228, %v504
        %v2969 = vmul.f32 %v2235, %v505
        %v2970 = vmul.f32 %v2242, %v506
        %v2971 = vmul.f32 %v2249, %v507
        %v2972 = vmul.f32 %v2256, %v508
        %v2973 = vmul.f32 %v2263, %v509
        %v2974 = vmul.f32 %v2270, %v510
        %v2975 = vmul.f32 %v2277, %v511
        %v2976 = vmul.f32 %v2284, %v512
        %v2977 = vmul.f32 %v2291, %v513
        %v2978 = vmul.f32 %v2298, %v514
        %v2979 = vmul.f32 %v2305, %v515
        %v2980 = vmul.f32 %v2312, %v516
        %v2981 = vmul.f32 %v2319, %v517
        %v2982 = vmul.f32 %v2326, %v518
        %v2983 = vmul.f32 %v2333, %v519
        %v2984 = vmul.f32 %v2340, %v520
        %v2985 = vmul.f32 %v2347, %v521
        %v2986 = vmul.f32 %v2354, %v522
        %v2987 = vmul.f32 %v2361, %v523
        %v2988 = vmul.f32 %v2368, %v524
        %v2989 = vmul.f32 %v2375, %v525
        %v2990 = vmul.f32 %v2382, %v526
        %v2991 = vmul.f32 %v2389, %v527
        %v2992 = vmul.f32 %v2396, %v528
        %v2993 = vmul.f32 %v2403, %v529
        %v2994 = vmul.f32 %v2410, %v530
        %v2995 = vmul.f32 %v2417, %v531
        %v2996 = vmul.f32 %v2424, %v532
        %v2997 = vmul.f32 %v2431, %v533
        %v2998 = vmul.f32 %v2438, %v534
        %v2999 = vmul.f32 %v2445, %v535
        %v3000 = vmul.f32 %v2452, %v536
        %v3001 = vmul.f32 %v2459, %v537
        %v3002 = vmul.f32 %v2466, %v538
        %v3003 = vmul.f32 %v2473, %v539
        %v3004 = vmul.f32 %v2480, %v540
        %v3005 = vmul.f32 %v2487, %v541
        %v3006 = vmul.f32 %v2494, %v542
        %v3007 = vmul.f32 %v2501, %v543
        %v3008 = vmul.f32 %v2508, %v544
        %v3009 = vmul.f32 %v2515, %v545
        %v3010 = vmul.f32 %v2522, %v546
        %v3011 = vmul.f32 %v2529, %v547
        %v3012 = vmul.f32 %v2536, %v548
        %v3013 = vmul.f32 %v2543, %v549
        %v3014 = vmul.f32 %v2550, %v550
        %v3015 = vmul.f32 %v2557, %v551
        %v3016 = vmul.f32 %v2564, %v552
        %v3017 = vmul.f32 %v2571, %v553
        %v3018 = vmul.f32 %v2578, %v554
        %v3019 = vmul.f32 %v2585, %v555
        %v3020 = vmul.f32 %v2592, %v556
        %v3021 = vmul.f32 %v2599, %v557
        %v3022 = vmul.f32 %v2606, %v558
        %v3023 = vmul.f32 %v2613, %v559
        %v3024 = vmul.f32 %v2620, %v560
        %v3025 = vmul.f32 %v2627, %v561
        %v3026 = vmul.f32 %v2634, %v562
        %v3027 = vmul.f32 %v2641, %v563
        %v3028 = vmul.f32 %v2648, %v564
        %v3029 = vmul.f32 %v2655, %v565
        %v3030 = vmul.f32 %v2662, %v566
        %v3031 = vmul.f32 %v2669, %v567
        %v3032 = vmul.f32 %v2676, %v568
        %v3033 = vmul.f32 %v2683, %v569
        %v3034 = vmul.f32 %v2690, %v570
        %v3035 = vmul.f32 %v2697, %v571
        %v3036 = vmul.f32 %v2704, %v572
        %v3037 = vmul.f32 %v2711, %v573
        %v3038 = vmul.f32 %v2718, %v574
        %v3039 = vmul.f32 %v2725, %v575
        %v3040 = vmul.f32 %v2732, %v576
        %vm3041 = vcmask 629760
        %v3042 = vsel %vm3041, %v2733, 0.0
        %v3043 = vrot.slane %v3042, 4
        %v3044 = vadd.f32 %v3042, %v3043
        %v3045 = vrot.slane %v3044, 2
        %v3046 = vadd.f32 %v3044, %v3045
        %v3047 = vrot.slane %v3046, 1
        %v3048 = vadd.f32 %v3046, %v3047
        %v3049 = vsel %vm3041, %v2734, 0.0
        %v3050 = vrot.slane %v3049, 4
        %v3051 = vadd.f32 %v3049, %v3050
        %v3052 = vrot.slane %v3051, 2
        %v3053 = vadd.f32 %v3051, %v3052
        %v3054 = vrot.slane %v3053, 1
        %v3055 = vadd.f32 %v3053, %v3054
        %v3056 = vsel %vm3041, %v2735, 0.0
        %v3057 = vrot.slane %v3056, 4
        %v3058 = vadd.f32 %v3056, %v3057
        %v3059 = vrot.slane %v3058, 2
        %v3060 = vadd.f32 %v3058, %v3059
        %v3061 = vrot.slane %v3060, 1
        %v3062 = vadd.f32 %v3060, %v3061
        %v3063 = vsel %vm3041, %v2736, 0.0
        %v3064 = vrot.slane %v3063, 4
        %v3065 = vadd.f32 %v3063, %v3064
        %v3066 = vrot.slane %v3065, 2
        %v3067 = vadd.f32 %v3065, %v3066
        %v3068 = vrot.slane %v3067, 1
        %v3069 = vadd.f32 %v3067, %v3068
        %v3070 = vsel %vm3041, %v2737, 0.0
        %v3071 = vrot.slane %v3070, 4
        %v3072 = vadd.f32 %v3070, %v3071
        %v3073 = vrot.slane %v3072, 2
        %v3074 = vadd.f32 %v3072, %v3073
        %v3075 = vrot.slane %v3074, 1
        %v3076 = vadd.f32 %v3074, %v3075
        %v3077 = vsel %vm3041, %v2738, 0.0
        %v3078 = vrot.slane %v3077, 4
        %v3079 = vadd.f32 %v3077, %v3078
        %v3080 = vrot.slane %v3079, 2
        %v3081 = vadd.f32 %v3079, %v3080
        %v3082 = vrot.slane %v3081, 1
        %v3083 = vadd.f32 %v3081, %v3082
        %v3084 = vsel %vm3041, %v2739, 0.0
        %v3085 = vrot.slane %v3084, 4
        %v3086 = vadd.f32 %v3084, %v3085
        %v3087 = vrot.slane %v3086, 2
        %v3088 = vadd.f32 %v3086, %v3087
        %v3089 = vrot.slane %v3088, 1
        %v3090 = vadd.f32 %v3088, %v3089
        %v3091 = vsel %vm3041, %v2740, 0.0
        %v3092 = vrot.slane %v3091, 4
        %v3093 = vadd.f32 %v3091, %v3092
        %v3094 = vrot.slane %v3093, 2
        %v3095 = vadd.f32 %v3093, %v3094
        %v3096 = vrot.slane %v3095, 1
        %v3097 = vadd.f32 %v3095, %v3096
        %v3098 = vsel %vm3041, %v2741, 0.0
        %v3099 = vrot.slane %v3098, 4
        %v3100 = vadd.f32 %v3098, %v3099
        %v3101 = vrot.slane %v3100, 2
        %v3102 = vadd.f32 %v3100, %v3101
        %v3103 = vrot.slane %v3102, 1
        %v3104 = vadd.f32 %v3102, %v3103
        %v3105 = vsel %vm3041, %v2742, 0.0
        %v3106 = vrot.slane %v3105, 4
        %v3107 = vadd.f32 %v3105, %v3106
        %v3108 = vrot.slane %v3107, 2
        %v3109 = vadd.f32 %v3107, %v3108
        %v3110 = vrot.slane %v3109, 1
        %v3111 = vadd.f32 %v3109, %v3110
        %v3112 = vsel %vm3041, %v2743, 0.0
        %v3113 = vrot.slane %v3112, 4
        %v3114 = vadd.f32 %v3112, %v3113
        %v3115 = vrot.slane %v3114, 2
        %v3116 = vadd.f32 %v3114, %v3115
        %v3117 = vrot.slane %v3116, 1
        %v3118 = vadd.f32 %v3116, %v3117
        %v3119 = vsel %vm3041, %v2744, 0.0
        %v3120 = vrot.slane %v3119, 4
        %v3121 = vadd.f32 %v3119, %v3120
        %v3122 = vrot.slane %v3121, 2
        %v3123 = vadd.f32 %v3121, %v3122
        %v3124 = vrot.slane %v3123, 1
        %v3125 = vadd.f32 %v3123, %v3124
        %v3126 = vsel %vm3041, %v2745, 0.0
        %v3127 = vrot.slane %v3126, 4
        %v3128 = vadd.f32 %v3126, %v3127
        %v3129 = vrot.slane %v3128, 2
        %v3130 = vadd.f32 %v3128, %v3129
        %v3131 = vrot.slane %v3130, 1
        %v3132 = vadd.f32 %v3130, %v3131
        %v3133 = vsel %vm3041, %v2746, 0.0
        %v3134 = vrot.slane %v3133, 4
        %v3135 = vadd.f32 %v3133, %v3134
        %v3136 = vrot.slane %v3135, 2
        %v3137 = vadd.f32 %v3135, %v3136
        %v3138 = vrot.slane %v3137, 1
        %v3139 = vadd.f32 %v3137, %v3138
        %v3140 = vsel %vm3041, %v2747, 0.0
        %v3141 = vrot.slane %v3140, 4
        %v3142 = vadd.f32 %v3140, %v3141
        %v3143 = vrot.slane %v3142, 2
        %v3144 = vadd.f32 %v3142, %v3143
        %v3145 = vrot.slane %v3144, 1
        %v3146 = vadd.f32 %v3144, %v3145
        %v3147 = vsel %vm3041, %v2748, 0.0
        %v3148 = vrot.slane %v3147, 4
        %v3149 = vadd.f32 %v3147, %v3148
        %v3150 = vrot.slane %v3149, 2
        %v3151 = vadd.f32 %v3149, %v3150
        %v3152 = vrot.slane %v3151, 1
        %v3153 = vadd.f32 %v3151, %v3152
        %v3154 = vsel %vm3041, %v2749, 0.0
        %v3155 = vrot.slane %v3154, 4
        %v3156 = vadd.f32 %v3154, %v3155
        %v3157 = vrot.slane %v3156, 2
        %v3158 = vadd.f32 %v3156, %v3157
        %v3159 = vrot.slane %v3158, 1
        %v3160 = vadd.f32 %v3158, %v3159
        %v3161 = vsel %vm3041, %v2750, 0.0
        %v3162 = vrot.slane %v3161, 4
        %v3163 = vadd.f32 %v3161, %v3162
        %v3164 = vrot.slane %v3163, 2
        %v3165 = vadd.f32 %v3163, %v3164
        %v3166 = vrot.slane %v3165, 1
        %v3167 = vadd.f32 %v3165, %v3166
        %v3168 = vsel %vm3041, %v2751, 0.0
        %v3169 = vrot.slane %v3168, 4
        %v3170 = vadd.f32 %v3168, %v3169
        %v3171 = vrot.slane %v3170, 2
        %v3172 = vadd.f32 %v3170, %v3171
        %v3173 = vrot.slane %v3172, 1
        %v3174 = vadd.f32 %v3172, %v3173
        %v3175 = vsel %vm3041, %v2752, 0.0
        %v3176 = vrot.slane %v3175, 4
        %v3177 = vadd.f32 %v3175, %v3176
        %v3178 = vrot.slane %v3177, 2
        %v3179 = vadd.f32 %v3177, %v3178
        %v3180 = vrot.slane %v3179, 1
        %v3181 = vadd.f32 %v3179, %v3180
        %v3182 = vsel %vm3041, %v2753, 0.0
        %v3183 = vrot.slane %v3182, 4
        %v3184 = vadd.f32 %v3182, %v3183
        %v3185 = vrot.slane %v3184, 2
        %v3186 = vadd.f32 %v3184, %v3185
        %v3187 = vrot.slane %v3186, 1
        %v3188 = vadd.f32 %v3186, %v3187
        %v3189 = vsel %vm3041, %v2754, 0.0
        %v3190 = vrot.slane %v3189, 4
        %v3191 = vadd.f32 %v3189, %v3190
        %v3192 = vrot.slane %v3191, 2
        %v3193 = vadd.f32 %v3191, %v3192
        %v3194 = vrot.slane %v3193, 1
        %v3195 = vadd.f32 %v3193, %v3194
        %v3196 = vsel %vm3041, %v2755, 0.0
        %v3197 = vrot.slane %v3196, 4
        %v3198 = vadd.f32 %v3196, %v3197
        %v3199 = vrot.slane %v3198, 2
        %v3200 = vadd.f32 %v3198, %v3199
        %v3201 = vrot.slane %v3200, 1
        %v3202 = vadd.f32 %v3200, %v3201
        %v3203 = vsel %vm3041, %v2756, 0.0
        %v3204 = vrot.slane %v3203, 4
        %v3205 = vadd.f32 %v3203, %v3204
        %v3206 = vrot.slane %v3205, 2
        %v3207 = vadd.f32 %v3205, %v3206
        %v3208 = vrot.slane %v3207, 1
        %v3209 = vadd.f32 %v3207, %v3208
        %v3210 = vsel %vm3041, %v2757, 0.0
        %v3211 = vrot.slane %v3210, 4
        %v3212 = vadd.f32 %v3210, %v3211
        %v3213 = vrot.slane %v3212, 2
        %v3214 = vadd.f32 %v3212, %v3213
        %v3215 = vrot.slane %v3214, 1
        %v3216 = vadd.f32 %v3214, %v3215
        %v3217 = vsel %vm3041, %v2758, 0.0
        %v3218 = vrot.slane %v3217, 4
        %v3219 = vadd.f32 %v3217, %v3218
        %v3220 = vrot.slane %v3219, 2
        %v3221 = vadd.f32 %v3219, %v3220
        %v3222 = vrot.slane %v3221, 1
        %v3223 = vadd.f32 %v3221, %v3222
        %v3224 = vsel %vm3041, %v2759, 0.0
        %v3225 = vrot.slane %v3224, 4
        %v3226 = vadd.f32 %v3224, %v3225
        %v3227 = vrot.slane %v3226, 2
        %v3228 = vadd.f32 %v3226, %v3227
        %v3229 = vrot.slane %v3228, 1
        %v3230 = vadd.f32 %v3228, %v3229
        %v3231 = vsel %vm3041, %v2760, 0.0
        %v3232 = vrot.slane %v3231, 4
        %v3233 = vadd.f32 %v3231, %v3232
        %v3234 = vrot.slane %v3233, 2
        %v3235 = vadd.f32 %v3233, %v3234
        %v3236 = vrot.slane %v3235, 1
        %v3237 = vadd.f32 %v3235, %v3236
        %v3238 = vsel %vm3041, %v2761, 0.0
        %v3239 = vrot.slane %v3238, 4
        %v3240 = vadd.f32 %v3238, %v3239
        %v3241 = vrot.slane %v3240, 2
        %v3242 = vadd.f32 %v3240, %v3241
        %v3243 = vrot.slane %v3242, 1
        %v3244 = vadd.f32 %v3242, %v3243
        %v3245 = vsel %vm3041, %v2762, 0.0
        %v3246 = vrot.slane %v3245, 4
        %v3247 = vadd.f32 %v3245, %v3246
        %v3248 = vrot.slane %v3247, 2
        %v3249 = vadd.f32 %v3247, %v3248
        %v3250 = vrot.slane %v3249, 1
        %v3251 = vadd.f32 %v3249, %v3250
        %v3252 = vsel %vm3041, %v2763, 0.0
        %v3253 = vrot.slane %v3252, 4
        %v3254 = vadd.f32 %v3252, %v3253
        %v3255 = vrot.slane %v3254, 2
        %v3256 = vadd.f32 %v3254, %v3255
        %v3257 = vrot.slane %v3256, 1
        %v3258 = vadd.f32 %v3256, %v3257
        %v3259 = vsel %vm3041, %v2764, 0.0
        %v3260 = vrot.slane %v3259, 4
        %v3261 = vadd.f32 %v3259, %v3260
        %v3262 = vrot.slane %v3261, 2
        %v3263 = vadd.f32 %v3261, %v3262
        %v3264 = vrot.slane %v3263, 1
        %v3265 = vadd.f32 %v3263, %v3264
        %v3266 = vsel %vm3041, %v2765, 0.0
        %v3267 = vrot.slane %v3266, 4
        %v3268 = vadd.f32 %v3266, %v3267
        %v3269 = vrot.slane %v3268, 2
        %v3270 = vadd.f32 %v3268, %v3269
        %v3271 = vrot.slane %v3270, 1
        %v3272 = vadd.f32 %v3270, %v3271
        %v3273 = vsel %vm3041, %v2766, 0.0
        %v3274 = vrot.slane %v3273, 4
        %v3275 = vadd.f32 %v3273, %v3274
        %v3276 = vrot.slane %v3275, 2
        %v3277 = vadd.f32 %v3275, %v3276
        %v3278 = vrot.slane %v3277, 1
        %v3279 = vadd.f32 %v3277, %v3278
        %v3280 = vsel %vm3041, %v2767, 0.0
        %v3281 = vrot.slane %v3280, 4
        %v3282 = vadd.f32 %v3280, %v3281
        %v3283 = vrot.slane %v3282, 2
        %v3284 = vadd.f32 %v3282, %v3283
        %v3285 = vrot.slane %v3284, 1
        %v3286 = vadd.f32 %v3284, %v3285
        %v3287 = vsel %vm3041, %v2768, 0.0
        %v3288 = vrot.slane %v3287, 4
        %v3289 = vadd.f32 %v3287, %v3288
        %v3290 = vrot.slane %v3289, 2
        %v3291 = vadd.f32 %v3289, %v3290
        %v3292 = vrot.slane %v3291, 1
        %v3293 = vadd.f32 %v3291, %v3292
        %v3294 = vsel %vm3041, %v2769, 0.0
        %v3295 = vrot.slane %v3294, 4
        %v3296 = vadd.f32 %v3294, %v3295
        %v3297 = vrot.slane %v3296, 2
        %v3298 = vadd.f32 %v3296, %v3297
        %v3299 = vrot.slane %v3298, 1
        %v3300 = vadd.f32 %v3298, %v3299
        %v3301 = vsel %vm3041, %v2770, 0.0
        %v3302 = vrot.slane %v3301, 4
        %v3303 = vadd.f32 %v3301, %v3302
        %v3304 = vrot.slane %v3303, 2
        %v3305 = vadd.f32 %v3303, %v3304
        %v3306 = vrot.slane %v3305, 1
        %v3307 = vadd.f32 %v3305, %v3306
        %v3308 = vsel %vm3041, %v2771, 0.0
        %v3309 = vrot.slane %v3308, 4
        %v3310 = vadd.f32 %v3308, %v3309
        %v3311 = vrot.slane %v3310, 2
        %v3312 = vadd.f32 %v3310, %v3311
        %v3313 = vrot.slane %v3312, 1
        %v3314 = vadd.f32 %v3312, %v3313
        %v3315 = vsel %vm3041, %v2772, 0.0
        %v3316 = vrot.slane %v3315, 4
        %v3317 = vadd.f32 %v3315, %v3316
        %v3318 = vrot.slane %v3317, 2
        %v3319 = vadd.f32 %v3317, %v3318
        %v3320 = vrot.slane %v3319, 1
        %v3321 = vadd.f32 %v3319, %v3320
        %v3322 = vsel %vm3041, %v2773, 0.0
        %v3323 = vrot.slane %v3322, 4
        %v3324 = vadd.f32 %v3322, %v3323
        %v3325 = vrot.slane %v3324, 2
        %v3326 = vadd.f32 %v3324, %v3325
        %v3327 = vrot.slane %v3326, 1
        %v3328 = vadd.f32 %v3326, %v3327
        %v3329 = vsel %vm3041, %v2774, 0.0
        %v3330 = vrot.slane %v3329, 4
        %v3331 = vadd.f32 %v3329, %v3330
        %v3332 = vrot.slane %v3331, 2
        %v3333 = vadd.f32 %v3331, %v3332
        %v3334 = vrot.slane %v3333, 1
        %v3335 = vadd.f32 %v3333, %v3334
        %v3336 = vsel %vm3041, %v2775, 0.0
        %v3337 = vrot.slane %v3336, 4
        %v3338 = vadd.f32 %v3336, %v3337
        %v3339 = vrot.slane %v3338, 2
        %v3340 = vadd.f32 %v3338, %v3339
        %v3341 = vrot.slane %v3340, 1
        %v3342 = vadd.f32 %v3340, %v3341
        %v3343 = vsel %vm3041, %v2776, 0.0
        %v3344 = vrot.slane %v3343, 4
        %v3345 = vadd.f32 %v3343, %v3344
        %v3346 = vrot.slane %v3345, 2
        %v3347 = vadd.f32 %v3345, %v3346
        %v3348 = vrot.slane %v3347, 1
        %v3349 = vadd.f32 %v3347, %v3348
        %v3350 = vsel %vm3041, %v2777, 0.0
        %v3351 = vrot.slane %v3350, 4
        %v3352 = vadd.f32 %v3350, %v3351
        %v3353 = vrot.slane %v3352, 2
        %v3354 = vadd.f32 %v3352, %v3353
        %v3355 = vrot.slane %v3354, 1
        %v3356 = vadd.f32 %v3354, %v3355
        %v3357 = vsel %vm3041, %v2778, 0.0
        %v3358 = vrot.slane %v3357, 4
        %v3359 = vadd.f32 %v3357, %v3358
        %v3360 = vrot.slane %v3359, 2
        %v3361 = vadd.f32 %v3359, %v3360
        %v3362 = vrot.slane %v3361, 1
        %v3363 = vadd.f32 %v3361, %v3362
        %v3364 = vsel %vm3041, %v2779, 0.0
        %v3365 = vrot.slane %v3364, 4
        %v3366 = vadd.f32 %v3364, %v3365
        %v3367 = vrot.slane %v3366, 2
        %v3368 = vadd.f32 %v3366, %v3367
        %v3369 = vrot.slane %v3368, 1
        %v3370 = vadd.f32 %v3368, %v3369
        %v3371 = vsel %vm3041, %v2780, 0.0
        %v3372 = vrot.slane %v3371, 4
        %v3373 = vadd.f32 %v3371, %v3372
        %v3374 = vrot.slane %v3373, 2
        %v3375 = vadd.f32 %v3373, %v3374
        %v3376 = vrot.slane %v3375, 1
        %v3377 = vadd.f32 %v3375, %v3376
        %v3378 = vsel %vm3041, %v2781, 0.0
        %v3379 = vrot.slane %v3378, 4
        %v3380 = vadd.f32 %v3378, %v3379
        %v3381 = vrot.slane %v3380, 2
        %v3382 = vadd.f32 %v3380, %v3381
        %v3383 = vrot.slane %v3382, 1
        %v3384 = vadd.f32 %v3382, %v3383
        %v3385 = vsel %vm3041, %v2782, 0.0
        %v3386 = vrot.slane %v3385, 4
        %v3387 = vadd.f32 %v3385, %v3386
        %v3388 = vrot.slane %v3387, 2
        %v3389 = vadd.f32 %v3387, %v3388
        %v3390 = vrot.slane %v3389, 1
        %v3391 = vadd.f32 %v3389, %v3390
        %v3392 = vsel %vm3041, %v2783, 0.0
        %v3393 = vrot.slane %v3392, 4
        %v3394 = vadd.f32 %v3392, %v3393
        %v3395 = vrot.slane %v3394, 2
        %v3396 = vadd.f32 %v3394, %v3395
        %v3397 = vrot.slane %v3396, 1
        %v3398 = vadd.f32 %v3396, %v3397
        %v3399 = vsel %vm3041, %v2784, 0.0
        %v3400 = vrot.slane %v3399, 4
        %v3401 = vadd.f32 %v3399, %v3400
        %v3402 = vrot.slane %v3401, 2
        %v3403 = vadd.f32 %v3401, %v3402
        %v3404 = vrot.slane %v3403, 1
        %v3405 = vadd.f32 %v3403, %v3404
        %v3406 = vsel %vm3041, %v2785, 0.0
        %v3407 = vrot.slane %v3406, 4
        %v3408 = vadd.f32 %v3406, %v3407
        %v3409 = vrot.slane %v3408, 2
        %v3410 = vadd.f32 %v3408, %v3409
        %v3411 = vrot.slane %v3410, 1
        %v3412 = vadd.f32 %v3410, %v3411
        %v3413 = vsel %vm3041, %v2786, 0.0
        %v3414 = vrot.slane %v3413, 4
        %v3415 = vadd.f32 %v3413, %v3414
        %v3416 = vrot.slane %v3415, 2
        %v3417 = vadd.f32 %v3415, %v3416
        %v3418 = vrot.slane %v3417, 1
        %v3419 = vadd.f32 %v3417, %v3418
        %v3420 = vsel %vm3041, %v2787, 0.0
        %v3421 = vrot.slane %v3420, 4
        %v3422 = vadd.f32 %v3420, %v3421
        %v3423 = vrot.slane %v3422, 2
        %v3424 = vadd.f32 %v3422, %v3423
        %v3425 = vrot.slane %v3424, 1
        %v3426 = vadd.f32 %v3424, %v3425
        %v3427 = vsel %vm3041, %v2788, 0.0
        %v3428 = vrot.slane %v3427, 4
        %v3429 = vadd.f32 %v3427, %v3428
        %v3430 = vrot.slane %v3429, 2
        %v3431 = vadd.f32 %v3429, %v3430
        %v3432 = vrot.slane %v3431, 1
        %v3433 = vadd.f32 %v3431, %v3432
        %v3434 = vsel %vm3041, %v2789, 0.0
        %v3435 = vrot.slane %v3434, 4
        %v3436 = vadd.f32 %v3434, %v3435
        %v3437 = vrot.slane %v3436, 2
        %v3438 = vadd.f32 %v3436, %v3437
        %v3439 = vrot.slane %v3438, 1
        %v3440 = vadd.f32 %v3438, %v3439
        %v3441 = vsel %vm3041, %v2790, 0.0
        %v3442 = vrot.slane %v3441, 4
        %v3443 = vadd.f32 %v3441, %v3442
        %v3444 = vrot.slane %v3443, 2
        %v3445 = vadd.f32 %v3443, %v3444
        %v3446 = vrot.slane %v3445, 1
        %v3447 = vadd.f32 %v3445, %v3446
        %v3448 = vsel %vm3041, %v2791, 0.0
        %v3449 = vrot.slane %v3448, 4
        %v3450 = vadd.f32 %v3448, %v3449
        %v3451 = vrot.slane %v3450, 2
        %v3452 = vadd.f32 %v3450, %v3451
        %v3453 = vrot.slane %v3452, 1
        %v3454 = vadd.f32 %v3452, %v3453
        %v3455 = vsel %vm3041, %v2792, 0.0
        %v3456 = vrot.slane %v3455, 4
        %v3457 = vadd.f32 %v3455, %v3456
        %v3458 = vrot.slane %v3457, 2
        %v3459 = vadd.f32 %v3457, %v3458
        %v3460 = vrot.slane %v3459, 1
        %v3461 = vadd.f32 %v3459, %v3460
        %v3462 = vsel %vm3041, %v2793, 0.0
        %v3463 = vrot.slane %v3462, 4
        %v3464 = vadd.f32 %v3462, %v3463
        %v3465 = vrot.slane %v3464, 2
        %v3466 = vadd.f32 %v3464, %v3465
        %v3467 = vrot.slane %v3466, 1
        %v3468 = vadd.f32 %v3466, %v3467
        %v3469 = vsel %vm3041, %v2794, 0.0
        %v3470 = vrot.slane %v3469, 4
        %v3471 = vadd.f32 %v3469, %v3470
        %v3472 = vrot.slane %v3471, 2
        %v3473 = vadd.f32 %v3471, %v3472
        %v3474 = vrot.slane %v3473, 1
        %v3475 = vadd.f32 %v3473, %v3474
        %v3476 = vsel %vm3041, %v2795, 0.0
        %v3477 = vrot.slane %v3476, 4
        %v3478 = vadd.f32 %v3476, %v3477
        %v3479 = vrot.slane %v3478, 2
        %v3480 = vadd.f32 %v3478, %v3479
        %v3481 = vrot.slane %v3480, 1
        %v3482 = vadd.f32 %v3480, %v3481
        %v3483 = vsel %vm3041, %v2796, 0.0
        %v3484 = vrot.slane %v3483, 4
        %v3485 = vadd.f32 %v3483, %v3484
        %v3486 = vrot.slane %v3485, 2
        %v3487 = vadd.f32 %v3485, %v3486
        %v3488 = vrot.slane %v3487, 1
        %v3489 = vadd.f32 %v3487, %v3488
        %v3490 = vsel %vm3041, %v2797, 0.0
        %v3491 = vrot.slane %v3490, 4
        %v3492 = vadd.f32 %v3490, %v3491
        %v3493 = vrot.slane %v3492, 2
        %v3494 = vadd.f32 %v3492, %v3493
        %v3495 = vrot.slane %v3494, 1
        %v3496 = vadd.f32 %v3494, %v3495
        %v3497 = vsel %vm3041, %v2798, 0.0
        %v3498 = vrot.slane %v3497, 4
        %v3499 = vadd.f32 %v3497, %v3498
        %v3500 = vrot.slane %v3499, 2
        %v3501 = vadd.f32 %v3499, %v3500
        %v3502 = vrot.slane %v3501, 1
        %v3503 = vadd.f32 %v3501, %v3502
        %v3504 = vsel %vm3041, %v2799, 0.0
        %v3505 = vrot.slane %v3504, 4
        %v3506 = vadd.f32 %v3504, %v3505
        %v3507 = vrot.slane %v3506, 2
        %v3508 = vadd.f32 %v3506, %v3507
        %v3509 = vrot.slane %v3508, 1
        %v3510 = vadd.f32 %v3508, %v3509
        %v3511 = vsel %vm3041, %v2800, 0.0
        %v3512 = vrot.slane %v3511, 4
        %v3513 = vadd.f32 %v3511, %v3512
        %v3514 = vrot.slane %v3513, 2
        %v3515 = vadd.f32 %v3513, %v3514
        %v3516 = vrot.slane %v3515, 1
        %v3517 = vadd.f32 %v3515, %v3516
        %v3518 = vsel %vm3041, %v2801, 0.0
        %v3519 = vrot.slane %v3518, 4
        %v3520 = vadd.f32 %v3518, %v3519
        %v3521 = vrot.slane %v3520, 2
        %v3522 = vadd.f32 %v3520, %v3521
        %v3523 = vrot.slane %v3522, 1
        %v3524 = vadd.f32 %v3522, %v3523
        %v3525 = vsel %vm3041, %v2802, 0.0
        %v3526 = vrot.slane %v3525, 4
        %v3527 = vadd.f32 %v3525, %v3526
        %v3528 = vrot.slane %v3527, 2
        %v3529 = vadd.f32 %v3527, %v3528
        %v3530 = vrot.slane %v3529, 1
        %v3531 = vadd.f32 %v3529, %v3530
        %v3532 = vsel %vm3041, %v2803, 0.0
        %v3533 = vrot.slane %v3532, 4
        %v3534 = vadd.f32 %v3532, %v3533
        %v3535 = vrot.slane %v3534, 2
        %v3536 = vadd.f32 %v3534, %v3535
        %v3537 = vrot.slane %v3536, 1
        %v3538 = vadd.f32 %v3536, %v3537
        %v3539 = vsel %vm3041, %v2804, 0.0
        %v3540 = vrot.slane %v3539, 4
        %v3541 = vadd.f32 %v3539, %v3540
        %v3542 = vrot.slane %v3541, 2
        %v3543 = vadd.f32 %v3541, %v3542
        %v3544 = vrot.slane %v3543, 1
        %v3545 = vadd.f32 %v3543, %v3544
        %v3546 = vsel %vm3041, %v2805, 0.0
        %v3547 = vrot.slane %v3546, 4
        %v3548 = vadd.f32 %v3546, %v3547
        %v3549 = vrot.slane %v3548, 2
        %v3550 = vadd.f32 %v3548, %v3549
        %v3551 = vrot.slane %v3550, 1
        %v3552 = vadd.f32 %v3550, %v3551
        %v3553 = vsel %vm3041, %v2806, 0.0
        %v3554 = vrot.slane %v3553, 4
        %v3555 = vadd.f32 %v3553, %v3554
        %v3556 = vrot.slane %v3555, 2
        %v3557 = vadd.f32 %v3555, %v3556
        %v3558 = vrot.slane %v3557, 1
        %v3559 = vadd.f32 %v3557, %v3558
        %v3560 = vsel %vm3041, %v2807, 0.0
        %v3561 = vrot.slane %v3560, 4
        %v3562 = vadd.f32 %v3560, %v3561
        %v3563 = vrot.slane %v3562, 2
        %v3564 = vadd.f32 %v3562, %v3563
        %v3565 = vrot.slane %v3564, 1
        %v3566 = vadd.f32 %v3564, %v3565
        %v3567 = vsel %vm3041, %v2808, 0.0
        %v3568 = vrot.slane %v3567, 4
        %v3569 = vadd.f32 %v3567, %v3568
        %v3570 = vrot.slane %v3569, 2
        %v3571 = vadd.f32 %v3569, %v3570
        %v3572 = vrot.slane %v3571, 1
        %v3573 = vadd.f32 %v3571, %v3572
        %v3574 = vsel %vm3041, %v2809, 0.0
        %v3575 = vrot.slane %v3574, 4
        %v3576 = vadd.f32 %v3574, %v3575
        %v3577 = vrot.slane %v3576, 2
        %v3578 = vadd.f32 %v3576, %v3577
        %v3579 = vrot.slane %v3578, 1
        %v3580 = vadd.f32 %v3578, %v3579
        %v3581 = vsel %vm3041, %v2810, 0.0
        %v3582 = vrot.slane %v3581, 4
        %v3583 = vadd.f32 %v3581, %v3582
        %v3584 = vrot.slane %v3583, 2
        %v3585 = vadd.f32 %v3583, %v3584
        %v3586 = vrot.slane %v3585, 1
        %v3587 = vadd.f32 %v3585, %v3586
        %v3588 = vsel %vm3041, %v2811, 0.0
        %v3589 = vrot.slane %v3588, 4
        %v3590 = vadd.f32 %v3588, %v3589
        %v3591 = vrot.slane %v3590, 2
        %v3592 = vadd.f32 %v3590, %v3591
        %v3593 = vrot.slane %v3592, 1
        %v3594 = vadd.f32 %v3592, %v3593
        %v3595 = vsel %vm3041, %v2812, 0.0
        %v3596 = vrot.slane %v3595, 4
        %v3597 = vadd.f32 %v3595, %v3596
        %v3598 = vrot.slane %v3597, 2
        %v3599 = vadd.f32 %v3597, %v3598
        %v3600 = vrot.slane %v3599, 1
        %v3601 = vadd.f32 %v3599, %v3600
        %v3602 = vsel %vm3041, %v2813, 0.0
        %v3603 = vrot.slane %v3602, 4
        %v3604 = vadd.f32 %v3602, %v3603
        %v3605 = vrot.slane %v3604, 2
        %v3606 = vadd.f32 %v3604, %v3605
        %v3607 = vrot.slane %v3606, 1
        %v3608 = vadd.f32 %v3606, %v3607
        %v3609 = vsel %vm3041, %v2814, 0.0
        %v3610 = vrot.slane %v3609, 4
        %v3611 = vadd.f32 %v3609, %v3610
        %v3612 = vrot.slane %v3611, 2
        %v3613 = vadd.f32 %v3611, %v3612
        %v3614 = vrot.slane %v3613, 1
        %v3615 = vadd.f32 %v3613, %v3614
        %v3616 = vsel %vm3041, %v2815, 0.0
        %v3617 = vrot.slane %v3616, 4
        %v3618 = vadd.f32 %v3616, %v3617
        %v3619 = vrot.slane %v3618, 2
        %v3620 = vadd.f32 %v3618, %v3619
        %v3621 = vrot.slane %v3620, 1
        %v3622 = vadd.f32 %v3620, %v3621
        %v3623 = vsel %vm3041, %v2816, 0.0
        %v3624 = vrot.slane %v3623, 4
        %v3625 = vadd.f32 %v3623, %v3624
        %v3626 = vrot.slane %v3625, 2
        %v3627 = vadd.f32 %v3625, %v3626
        %v3628 = vrot.slane %v3627, 1
        %v3629 = vadd.f32 %v3627, %v3628
        %v3630 = vsel %vm3041, %v2817, 0.0
        %v3631 = vrot.slane %v3630, 4
        %v3632 = vadd.f32 %v3630, %v3631
        %v3633 = vrot.slane %v3632, 2
        %v3634 = vadd.f32 %v3632, %v3633
        %v3635 = vrot.slane %v3634, 1
        %v3636 = vadd.f32 %v3634, %v3635
        %v3637 = vsel %vm3041, %v2818, 0.0
        %v3638 = vrot.slane %v3637, 4
        %v3639 = vadd.f32 %v3637, %v3638
        %v3640 = vrot.slane %v3639, 2
        %v3641 = vadd.f32 %v3639, %v3640
        %v3642 = vrot.slane %v3641, 1
        %v3643 = vadd.f32 %v3641, %v3642
        %v3644 = vsel %vm3041, %v2819, 0.0
        %v3645 = vrot.slane %v3644, 4
        %v3646 = vadd.f32 %v3644, %v3645
        %v3647 = vrot.slane %v3646, 2
        %v3648 = vadd.f32 %v3646, %v3647
        %v3649 = vrot.slane %v3648, 1
        %v3650 = vadd.f32 %v3648, %v3649
        %v3651 = vsel %vm3041, %v2820, 0.0
        %v3652 = vrot.slane %v3651, 4
        %v3653 = vadd.f32 %v3651, %v3652
        %v3654 = vrot.slane %v3653, 2
        %v3655 = vadd.f32 %v3653, %v3654
        %v3656 = vrot.slane %v3655, 1
        %v3657 = vadd.f32 %v3655, %v3656
        %v3658 = vsel %vm3041, %v2821, 0.0
        %v3659 = vrot.slane %v3658, 4
        %v3660 = vadd.f32 %v3658, %v3659
        %v3661 = vrot.slane %v3660, 2
        %v3662 = vadd.f32 %v3660, %v3661
        %v3663 = vrot.slane %v3662, 1
        %v3664 = vadd.f32 %v3662, %v3663
        %v3665 = vsel %vm3041, %v2822, 0.0
        %v3666 = vrot.slane %v3665, 4
        %v3667 = vadd.f32 %v3665, %v3666
        %v3668 = vrot.slane %v3667, 2
        %v3669 = vadd.f32 %v3667, %v3668
        %v3670 = vrot.slane %v3669, 1
        %v3671 = vadd.f32 %v3669, %v3670
        %v3672 = vsel %vm3041, %v2823, 0.0
        %v3673 = vrot.slane %v3672, 4
        %v3674 = vadd.f32 %v3672, %v3673
        %v3675 = vrot.slane %v3674, 2
        %v3676 = vadd.f32 %v3674, %v3675
        %v3677 = vrot.slane %v3676, 1
        %v3678 = vadd.f32 %v3676, %v3677
        %v3679 = vsel %vm3041, %v2824, 0.0
        %v3680 = vrot.slane %v3679, 4
        %v3681 = vadd.f32 %v3679, %v3680
        %v3682 = vrot.slane %v3681, 2
        %v3683 = vadd.f32 %v3681, %v3682
        %v3684 = vrot.slane %v3683, 1
        %v3685 = vadd.f32 %v3683, %v3684
        %v3686 = vsel %vm3041, %v2825, 0.0
        %v3687 = vrot.slane %v3686, 4
        %v3688 = vadd.f32 %v3686, %v3687
        %v3689 = vrot.slane %v3688, 2
        %v3690 = vadd.f32 %v3688, %v3689
        %v3691 = vrot.slane %v3690, 1
        %v3692 = vadd.f32 %v3690, %v3691
        %v3693 = vsel %vm3041, %v2826, 0.0
        %v3694 = vrot.slane %v3693, 4
        %v3695 = vadd.f32 %v3693, %v3694
        %v3696 = vrot.slane %v3695, 2
        %v3697 = vadd.f32 %v3695, %v3696
        %v3698 = vrot.slane %v3697, 1
        %v3699 = vadd.f32 %v3697, %v3698
        %v3700 = vsel %vm3041, %v2827, 0.0
        %v3701 = vrot.slane %v3700, 4
        %v3702 = vadd.f32 %v3700, %v3701
        %v3703 = vrot.slane %v3702, 2
        %v3704 = vadd.f32 %v3702, %v3703
        %v3705 = vrot.slane %v3704, 1
        %v3706 = vadd.f32 %v3704, %v3705
        %v3707 = vsel %vm3041, %v2828, 0.0
        %v3708 = vrot.slane %v3707, 4
        %v3709 = vadd.f32 %v3707, %v3708
        %v3710 = vrot.slane %v3709, 2
        %v3711 = vadd.f32 %v3709, %v3710
        %v3712 = vrot.slane %v3711, 1
        %v3713 = vadd.f32 %v3711, %v3712
        %v3714 = vsel %vm3041, %v2829, 0.0
        %v3715 = vrot.slane %v3714, 4
        %v3716 = vadd.f32 %v3714, %v3715
        %v3717 = vrot.slane %v3716, 2
        %v3718 = vadd.f32 %v3716, %v3717
        %v3719 = vrot.slane %v3718, 1
        %v3720 = vadd.f32 %v3718, %v3719
        %v3721 = vsel %vm3041, %v2830, 0.0
        %v3722 = vrot.slane %v3721, 4
        %v3723 = vadd.f32 %v3721, %v3722
        %v3724 = vrot.slane %v3723, 2
        %v3725 = vadd.f32 %v3723, %v3724
        %v3726 = vrot.slane %v3725, 1
        %v3727 = vadd.f32 %v3725, %v3726
        %v3728 = vsel %vm3041, %v2831, 0.0
        %v3729 = vrot.slane %v3728, 4
        %v3730 = vadd.f32 %v3728, %v3729
        %v3731 = vrot.slane %v3730, 2
        %v3732 = vadd.f32 %v3730, %v3731
        %v3733 = vrot.slane %v3732, 1
        %v3734 = vadd.f32 %v3732, %v3733
        %v3735 = vsel %vm3041, %v2832, 0.0
        %v3736 = vrot.slane %v3735, 4
        %v3737 = vadd.f32 %v3735, %v3736
        %v3738 = vrot.slane %v3737, 2
        %v3739 = vadd.f32 %v3737, %v3738
        %v3740 = vrot.slane %v3739, 1
        %v3741 = vadd.f32 %v3739, %v3740
        %v3742 = vsel %vm3041, %v2833, 0.0
        %v3743 = vrot.slane %v3742, 4
        %v3744 = vadd.f32 %v3742, %v3743
        %v3745 = vrot.slane %v3744, 2
        %v3746 = vadd.f32 %v3744, %v3745
        %v3747 = vrot.slane %v3746, 1
        %v3748 = vadd.f32 %v3746, %v3747
        %v3749 = vsel %vm3041, %v2834, 0.0
        %v3750 = vrot.slane %v3749, 4
        %v3751 = vadd.f32 %v3749, %v3750
        %v3752 = vrot.slane %v3751, 2
        %v3753 = vadd.f32 %v3751, %v3752
        %v3754 = vrot.slane %v3753, 1
        %v3755 = vadd.f32 %v3753, %v3754
        %v3756 = vsel %vm3041, %v2835, 0.0
        %v3757 = vrot.slane %v3756, 4
        %v3758 = vadd.f32 %v3756, %v3757
        %v3759 = vrot.slane %v3758, 2
        %v3760 = vadd.f32 %v3758, %v3759
        %v3761 = vrot.slane %v3760, 1
        %v3762 = vadd.f32 %v3760, %v3761
        %v3763 = vsel %vm3041, %v2836, 0.0
        %v3764 = vrot.slane %v3763, 4
        %v3765 = vadd.f32 %v3763, %v3764
        %v3766 = vrot.slane %v3765, 2
        %v3767 = vadd.f32 %v3765, %v3766
        %v3768 = vrot.slane %v3767, 1
        %v3769 = vadd.f32 %v3767, %v3768
        %v3770 = vsel %vm3041, %v2837, 0.0
        %v3771 = vrot.slane %v3770, 4
        %v3772 = vadd.f32 %v3770, %v3771
        %v3773 = vrot.slane %v3772, 2
        %v3774 = vadd.f32 %v3772, %v3773
        %v3775 = vrot.slane %v3774, 1
        %v3776 = vadd.f32 %v3774, %v3775
        %v3777 = vsel %vm3041, %v2838, 0.0
        %v3778 = vrot.slane %v3777, 4
        %v3779 = vadd.f32 %v3777, %v3778
        %v3780 = vrot.slane %v3779, 2
        %v3781 = vadd.f32 %v3779, %v3780
        %v3782 = vrot.slane %v3781, 1
        %v3783 = vadd.f32 %v3781, %v3782
        %v3784 = vsel %vm3041, %v2839, 0.0
        %v3785 = vrot.slane %v3784, 4
        %v3786 = vadd.f32 %v3784, %v3785
        %v3787 = vrot.slane %v3786, 2
        %v3788 = vadd.f32 %v3786, %v3787
        %v3789 = vrot.slane %v3788, 1
        %v3790 = vadd.f32 %v3788, %v3789
        %v3791 = vsel %vm3041, %v2840, 0.0
        %v3792 = vrot.slane %v3791, 4
        %v3793 = vadd.f32 %v3791, %v3792
        %v3794 = vrot.slane %v3793, 2
        %v3795 = vadd.f32 %v3793, %v3794
        %v3796 = vrot.slane %v3795, 1
        %v3797 = vadd.f32 %v3795, %v3796
        %v3798 = vsel %vm3041, %v2841, 0.0
        %v3799 = vrot.slane %v3798, 4
        %v3800 = vadd.f32 %v3798, %v3799
        %v3801 = vrot.slane %v3800, 2
        %v3802 = vadd.f32 %v3800, %v3801
        %v3803 = vrot.slane %v3802, 1
        %v3804 = vadd.f32 %v3802, %v3803
        %v3805 = vsel %vm3041, %v2842, 0.0
        %v3806 = vrot.slane %v3805, 4
        %v3807 = vadd.f32 %v3805, %v3806
        %v3808 = vrot.slane %v3807, 2
        %v3809 = vadd.f32 %v3807, %v3808
        %v3810 = vrot.slane %v3809, 1
        %v3811 = vadd.f32 %v3809, %v3810
        %v3812 = vsel %vm3041, %v2843, 0.0
        %v3813 = vrot.slane %v3812, 4
        %v3814 = vadd.f32 %v3812, %v3813
        %v3815 = vrot.slane %v3814, 2
        %v3816 = vadd.f32 %v3814, %v3815
        %v3817 = vrot.slane %v3816, 1
        %v3818 = vadd.f32 %v3816, %v3817
        %v3819 = vsel %vm3041, %v2844, 0.0
        %v3820 = vrot.slane %v3819, 4
        %v3821 = vadd.f32 %v3819, %v3820
        %v3822 = vrot.slane %v3821, 2
        %v3823 = vadd.f32 %v3821, %v3822
        %v3824 = vrot.slane %v3823, 1
        %v3825 = vadd.f32 %v3823, %v3824
        %v3826 = vsel %vm3041, %v2845, 0.0
        %v3827 = vrot.slane %v3826, 4
        %v3828 = vadd.f32 %v3826, %v3827
        %v3829 = vrot.slane %v3828, 2
        %v3830 = vadd.f32 %v3828, %v3829
        %v3831 = vrot.slane %v3830, 1
        %v3832 = vadd.f32 %v3830, %v3831
        %v3833 = vsel %vm3041, %v2846, 0.0
        %v3834 = vrot.slane %v3833, 4
        %v3835 = vadd.f32 %v3833, %v3834
        %v3836 = vrot.slane %v3835, 2
        %v3837 = vadd.f32 %v3835, %v3836
        %v3838 = vrot.slane %v3837, 1
        %v3839 = vadd.f32 %v3837, %v3838
        %v3840 = vsel %vm3041, %v2847, 0.0
        %v3841 = vrot.slane %v3840, 4
        %v3842 = vadd.f32 %v3840, %v3841
        %v3843 = vrot.slane %v3842, 2
        %v3844 = vadd.f32 %v3842, %v3843
        %v3845 = vrot.slane %v3844, 1
        %v3846 = vadd.f32 %v3844, %v3845
        %v3847 = vsel %vm3041, %v2848, 0.0
        %v3848 = vrot.slane %v3847, 4
        %v3849 = vadd.f32 %v3847, %v3848
        %v3850 = vrot.slane %v3849, 2
        %v3851 = vadd.f32 %v3849, %v3850
        %v3852 = vrot.slane %v3851, 1
        %v3853 = vadd.f32 %v3851, %v3852
        %v3854 = vsel %vm3041, %v2849, 0.0
        %v3855 = vrot.slane %v3854, 4
        %v3856 = vadd.f32 %v3854, %v3855
        %v3857 = vrot.slane %v3856, 2
        %v3858 = vadd.f32 %v3856, %v3857
        %v3859 = vrot.slane %v3858, 1
        %v3860 = vadd.f32 %v3858, %v3859
        %v3861 = vsel %vm3041, %v2850, 0.0
        %v3862 = vrot.slane %v3861, 4
        %v3863 = vadd.f32 %v3861, %v3862
        %v3864 = vrot.slane %v3863, 2
        %v3865 = vadd.f32 %v3863, %v3864
        %v3866 = vrot.slane %v3865, 1
        %v3867 = vadd.f32 %v3865, %v3866
        %v3868 = vsel %vm3041, %v2851, 0.0
        %v3869 = vrot.slane %v3868, 4
        %v3870 = vadd.f32 %v3868, %v3869
        %v3871 = vrot.slane %v3870, 2
        %v3872 = vadd.f32 %v3870, %v3871
        %v3873 = vrot.slane %v3872, 1
        %v3874 = vadd.f32 %v3872, %v3873
        %v3875 = vsel %vm3041, %v2852, 0.0
        %v3876 = vrot.slane %v3875, 4
        %v3877 = vadd.f32 %v3875, %v3876
        %v3878 = vrot.slane %v3877, 2
        %v3879 = vadd.f32 %v3877, %v3878
        %v3880 = vrot.slane %v3879, 1
        %v3881 = vadd.f32 %v3879, %v3880
        %v3882 = vsel %vm3041, %v2853, 0.0
        %v3883 = vrot.slane %v3882, 4
        %v3884 = vadd.f32 %v3882, %v3883
        %v3885 = vrot.slane %v3884, 2
        %v3886 = vadd.f32 %v3884, %v3885
        %v3887 = vrot.slane %v3886, 1
        %v3888 = vadd.f32 %v3886, %v3887
        %v3889 = vsel %vm3041, %v2854, 0.0
        %v3890 = vrot.slane %v3889, 4
        %v3891 = vadd.f32 %v3889, %v3890
        %v3892 = vrot.slane %v3891, 2
        %v3893 = vadd.f32 %v3891, %v3892
        %v3894 = vrot.slane %v3893, 1
        %v3895 = vadd.f32 %v3893, %v3894
        %v3896 = vsel %vm3041, %v2855, 0.0
        %v3897 = vrot.slane %v3896, 4
        %v3898 = vadd.f32 %v3896, %v3897
        %v3899 = vrot.slane %v3898, 2
        %v3900 = vadd.f32 %v3898, %v3899
        %v3901 = vrot.slane %v3900, 1
        %v3902 = vadd.f32 %v3900, %v3901
        %v3903 = vsel %vm3041, %v2856, 0.0
        %v3904 = vrot.slane %v3903, 4
        %v3905 = vadd.f32 %v3903, %v3904
        %v3906 = vrot.slane %v3905, 2
        %v3907 = vadd.f32 %v3905, %v3906
        %v3908 = vrot.slane %v3907, 1
        %v3909 = vadd.f32 %v3907, %v3908
        %v3910 = vsel %vm3041, %v2857, 0.0
        %v3911 = vrot.slane %v3910, 4
        %v3912 = vadd.f32 %v3910, %v3911
        %v3913 = vrot.slane %v3912, 2
        %v3914 = vadd.f32 %v3912, %v3913
        %v3915 = vrot.slane %v3914, 1
        %v3916 = vadd.f32 %v3914, %v3915
        %v3917 = vsel %vm3041, %v2858, 0.0
        %v3918 = vrot.slane %v3917, 4
        %v3919 = vadd.f32 %v3917, %v3918
        %v3920 = vrot.slane %v3919, 2
        %v3921 = vadd.f32 %v3919, %v3920
        %v3922 = vrot.slane %v3921, 1
        %v3923 = vadd.f32 %v3921, %v3922
        %v3924 = vsel %vm3041, %v2859, 0.0
        %v3925 = vrot.slane %v3924, 4
        %v3926 = vadd.f32 %v3924, %v3925
        %v3927 = vrot.slane %v3926, 2
        %v3928 = vadd.f32 %v3926, %v3927
        %v3929 = vrot.slane %v3928, 1
        %v3930 = vadd.f32 %v3928, %v3929
        %v3931 = vsel %vm3041, %v2860, 0.0
        %v3932 = vrot.slane %v3931, 4
        %v3933 = vadd.f32 %v3931, %v3932
        %v3934 = vrot.slane %v3933, 2
        %v3935 = vadd.f32 %v3933, %v3934
        %v3936 = vrot.slane %v3935, 1
        %v3937 = vadd.f32 %v3935, %v3936
        %v3938 = vsel %vm3041, %v2861, 0.0
        %v3939 = vrot.slane %v3938, 4
        %v3940 = vadd.f32 %v3938, %v3939
        %v3941 = vrot.slane %v3940, 2
        %v3942 = vadd.f32 %v3940, %v3941
        %v3943 = vrot.slane %v3942, 1
        %v3944 = vadd.f32 %v3942, %v3943
        %v3945 = vsel %vm3041, %v2862, 0.0
        %v3946 = vrot.slane %v3945, 4
        %v3947 = vadd.f32 %v3945, %v3946
        %v3948 = vrot.slane %v3947, 2
        %v3949 = vadd.f32 %v3947, %v3948
        %v3950 = vrot.slane %v3949, 1
        %v3951 = vadd.f32 %v3949, %v3950
        %v3952 = vsel %vm3041, %v2863, 0.0
        %v3953 = vrot.slane %v3952, 4
        %v3954 = vadd.f32 %v3952, %v3953
        %v3955 = vrot.slane %v3954, 2
        %v3956 = vadd.f32 %v3954, %v3955
        %v3957 = vrot.slane %v3956, 1
        %v3958 = vadd.f32 %v3956, %v3957
        %v3959 = vsel %vm3041, %v2864, 0.0
        %v3960 = vrot.slane %v3959, 4
        %v3961 = vadd.f32 %v3959, %v3960
        %v3962 = vrot.slane %v3961, 2
        %v3963 = vadd.f32 %v3961, %v3962
        %v3964 = vrot.slane %v3963, 1
        %v3965 = vadd.f32 %v3963, %v3964
        %v3966 = vsel %vm3041, %v2865, 0.0
        %v3967 = vrot.slane %v3966, 4
        %v3968 = vadd.f32 %v3966, %v3967
        %v3969 = vrot.slane %v3968, 2
        %v3970 = vadd.f32 %v3968, %v3969
        %v3971 = vrot.slane %v3970, 1
        %v3972 = vadd.f32 %v3970, %v3971
        %v3973 = vsel %vm3041, %v2866, 0.0
        %v3974 = vrot.slane %v3973, 4
        %v3975 = vadd.f32 %v3973, %v3974
        %v3976 = vrot.slane %v3975, 2
        %v3977 = vadd.f32 %v3975, %v3976
        %v3978 = vrot.slane %v3977, 1
        %v3979 = vadd.f32 %v3977, %v3978
        %v3980 = vsel %vm3041, %v2867, 0.0
        %v3981 = vrot.slane %v3980, 4
        %v3982 = vadd.f32 %v3980, %v3981
        %v3983 = vrot.slane %v3982, 2
        %v3984 = vadd.f32 %v3982, %v3983
        %v3985 = vrot.slane %v3984, 1
        %v3986 = vadd.f32 %v3984, %v3985
        %v3987 = vsel %vm3041, %v2868, 0.0
        %v3988 = vrot.slane %v3987, 4
        %v3989 = vadd.f32 %v3987, %v3988
        %v3990 = vrot.slane %v3989, 2
        %v3991 = vadd.f32 %v3989, %v3990
        %v3992 = vrot.slane %v3991, 1
        %v3993 = vadd.f32 %v3991, %v3992
        %v3994 = vsel %vm3041, %v2869, 0.0
        %v3995 = vrot.slane %v3994, 4
        %v3996 = vadd.f32 %v3994, %v3995
        %v3997 = vrot.slane %v3996, 2
        %v3998 = vadd.f32 %v3996, %v3997
        %v3999 = vrot.slane %v3998, 1
        %v4000 = vadd.f32 %v3998, %v3999
        %v4001 = vsel %vm3041, %v2870, 0.0
        %v4002 = vrot.slane %v4001, 4
        %v4003 = vadd.f32 %v4001, %v4002
        %v4004 = vrot.slane %v4003, 2
        %v4005 = vadd.f32 %v4003, %v4004
        %v4006 = vrot.slane %v4005, 1
        %v4007 = vadd.f32 %v4005, %v4006
        %v4008 = vsel %vm3041, %v2871, 0.0
        %v4009 = vrot.slane %v4008, 4
        %v4010 = vadd.f32 %v4008, %v4009
        %v4011 = vrot.slane %v4010, 2
        %v4012 = vadd.f32 %v4010, %v4011
        %v4013 = vrot.slane %v4012, 1
        %v4014 = vadd.f32 %v4012, %v4013
        %v4015 = vsel %vm3041, %v2872, 0.0
        %v4016 = vrot.slane %v4015, 4
        %v4017 = vadd.f32 %v4015, %v4016
        %v4018 = vrot.slane %v4017, 2
        %v4019 = vadd.f32 %v4017, %v4018
        %v4020 = vrot.slane %v4019, 1
        %v4021 = vadd.f32 %v4019, %v4020
        %v4022 = vsel %vm3041, %v2873, 0.0
        %v4023 = vrot.slane %v4022, 4
        %v4024 = vadd.f32 %v4022, %v4023
        %v4025 = vrot.slane %v4024, 2
        %v4026 = vadd.f32 %v4024, %v4025
        %v4027 = vrot.slane %v4026, 1
        %v4028 = vadd.f32 %v4026, %v4027
        %v4029 = vsel %vm3041, %v2874, 0.0
        %v4030 = vrot.slane %v4029, 4
        %v4031 = vadd.f32 %v4029, %v4030
        %v4032 = vrot.slane %v4031, 2
        %v4033 = vadd.f32 %v4031, %v4032
        %v4034 = vrot.slane %v4033, 1
        %v4035 = vadd.f32 %v4033, %v4034
        %v4036 = vsel %vm3041, %v2875, 0.0
        %v4037 = vrot.slane %v4036, 4
        %v4038 = vadd.f32 %v4036, %v4037
        %v4039 = vrot.slane %v4038, 2
        %v4040 = vadd.f32 %v4038, %v4039
        %v4041 = vrot.slane %v4040, 1
        %v4042 = vadd.f32 %v4040, %v4041
        %v4043 = vsel %vm3041, %v2876, 0.0
        %v4044 = vrot.slane %v4043, 4
        %v4045 = vadd.f32 %v4043, %v4044
        %v4046 = vrot.slane %v4045, 2
        %v4047 = vadd.f32 %v4045, %v4046
        %v4048 = vrot.slane %v4047, 1
        %v4049 = vadd.f32 %v4047, %v4048
        %v4050 = vsel %vm3041, %v2877, 0.0
        %v4051 = vrot.slane %v4050, 4
        %v4052 = vadd.f32 %v4050, %v4051
        %v4053 = vrot.slane %v4052, 2
        %v4054 = vadd.f32 %v4052, %v4053
        %v4055 = vrot.slane %v4054, 1
        %v4056 = vadd.f32 %v4054, %v4055
        %v4057 = vsel %vm3041, %v2878, 0.0
        %v4058 = vrot.slane %v4057, 4
        %v4059 = vadd.f32 %v4057, %v4058
        %v4060 = vrot.slane %v4059, 2
        %v4061 = vadd.f32 %v4059, %v4060
        %v4062 = vrot.slane %v4061, 1
        %v4063 = vadd.f32 %v4061, %v4062
        %v4064 = vsel %vm3041, %v2879, 0.0
        %v4065 = vrot.slane %v4064, 4
        %v4066 = vadd.f32 %v4064, %v4065
        %v4067 = vrot.slane %v4066, 2
        %v4068 = vadd.f32 %v4066, %v4067
        %v4069 = vrot.slane %v4068, 1
        %v4070 = vadd.f32 %v4068, %v4069
        %v4071 = vsel %vm3041, %v2880, 0.0
        %v4072 = vrot.slane %v4071, 4
        %v4073 = vadd.f32 %v4071, %v4072
        %v4074 = vrot.slane %v4073, 2
        %v4075 = vadd.f32 %v4073, %v4074
        %v4076 = vrot.slane %v4075, 1
        %v4077 = vadd.f32 %v4075, %v4076
        %v4078 = vsel %vm3041, %v2881, 0.0
        %v4079 = vrot.slane %v4078, 4
        %v4080 = vadd.f32 %v4078, %v4079
        %v4081 = vrot.slane %v4080, 2
        %v4082 = vadd.f32 %v4080, %v4081
        %v4083 = vrot.slane %v4082, 1
        %v4084 = vadd.f32 %v4082, %v4083
        %v4085 = vsel %vm3041, %v2882, 0.0
        %v4086 = vrot.slane %v4085, 4
        %v4087 = vadd.f32 %v4085, %v4086
        %v4088 = vrot.slane %v4087, 2
        %v4089 = vadd.f32 %v4087, %v4088
        %v4090 = vrot.slane %v4089, 1
        %v4091 = vadd.f32 %v4089, %v4090
        %v4092 = vsel %vm3041, %v2883, 0.0
        %v4093 = vrot.slane %v4092, 4
        %v4094 = vadd.f32 %v4092, %v4093
        %v4095 = vrot.slane %v4094, 2
        %v4096 = vadd.f32 %v4094, %v4095
        %v4097 = vrot.slane %v4096, 1
        %v4098 = vadd.f32 %v4096, %v4097
        %v4099 = vsel %vm3041, %v2884, 0.0
        %v4100 = vrot.slane %v4099, 4
        %v4101 = vadd.f32 %v4099, %v4100
        %v4102 = vrot.slane %v4101, 2
        %v4103 = vadd.f32 %v4101, %v4102
        %v4104 = vrot.slane %v4103, 1
        %v4105 = vadd.f32 %v4103, %v4104
        %v4106 = vsel %vm3041, %v2885, 0.0
        %v4107 = vrot.slane %v4106, 4
        %v4108 = vadd.f32 %v4106, %v4107
        %v4109 = vrot.slane %v4108, 2
        %v4110 = vadd.f32 %v4108, %v4109
        %v4111 = vrot.slane %v4110, 1
        %v4112 = vadd.f32 %v4110, %v4111
        %v4113 = vsel %vm3041, %v2886, 0.0
        %v4114 = vrot.slane %v4113, 4
        %v4115 = vadd.f32 %v4113, %v4114
        %v4116 = vrot.slane %v4115, 2
        %v4117 = vadd.f32 %v4115, %v4116
        %v4118 = vrot.slane %v4117, 1
        %v4119 = vadd.f32 %v4117, %v4118
        %v4120 = vsel %vm3041, %v2887, 0.0
        %v4121 = vrot.slane %v4120, 4
        %v4122 = vadd.f32 %v4120, %v4121
        %v4123 = vrot.slane %v4122, 2
        %v4124 = vadd.f32 %v4122, %v4123
        %v4125 = vrot.slane %v4124, 1
        %v4126 = vadd.f32 %v4124, %v4125
        %v4127 = vsel %vm3041, %v2888, 0.0
        %v4128 = vrot.slane %v4127, 4
        %v4129 = vadd.f32 %v4127, %v4128
        %v4130 = vrot.slane %v4129, 2
        %v4131 = vadd.f32 %v4129, %v4130
        %v4132 = vrot.slane %v4131, 1
        %v4133 = vadd.f32 %v4131, %v4132
        %v4134 = vsel %vm3041, %v2889, 0.0
        %v4135 = vrot.slane %v4134, 4
        %v4136 = vadd.f32 %v4134, %v4135
        %v4137 = vrot.slane %v4136, 2
        %v4138 = vadd.f32 %v4136, %v4137
        %v4139 = vrot.slane %v4138, 1
        %v4140 = vadd.f32 %v4138, %v4139
        %v4141 = vsel %vm3041, %v2890, 0.0
        %v4142 = vrot.slane %v4141, 4
        %v4143 = vadd.f32 %v4141, %v4142
        %v4144 = vrot.slane %v4143, 2
        %v4145 = vadd.f32 %v4143, %v4144
        %v4146 = vrot.slane %v4145, 1
        %v4147 = vadd.f32 %v4145, %v4146
        %v4148 = vsel %vm3041, %v2891, 0.0
        %v4149 = vrot.slane %v4148, 4
        %v4150 = vadd.f32 %v4148, %v4149
        %v4151 = vrot.slane %v4150, 2
        %v4152 = vadd.f32 %v4150, %v4151
        %v4153 = vrot.slane %v4152, 1
        %v4154 = vadd.f32 %v4152, %v4153
        %v4155 = vsel %vm3041, %v2892, 0.0
        %v4156 = vrot.slane %v4155, 4
        %v4157 = vadd.f32 %v4155, %v4156
        %v4158 = vrot.slane %v4157, 2
        %v4159 = vadd.f32 %v4157, %v4158
        %v4160 = vrot.slane %v4159, 1
        %v4161 = vadd.f32 %v4159, %v4160
        %v4162 = vsel %vm3041, %v2893, 0.0
        %v4163 = vrot.slane %v4162, 4
        %v4164 = vadd.f32 %v4162, %v4163
        %v4165 = vrot.slane %v4164, 2
        %v4166 = vadd.f32 %v4164, %v4165
        %v4167 = vrot.slane %v4166, 1
        %v4168 = vadd.f32 %v4166, %v4167
        %v4169 = vsel %vm3041, %v2894, 0.0
        %v4170 = vrot.slane %v4169, 4
        %v4171 = vadd.f32 %v4169, %v4170
        %v4172 = vrot.slane %v4171, 2
        %v4173 = vadd.f32 %v4171, %v4172
        %v4174 = vrot.slane %v4173, 1
        %v4175 = vadd.f32 %v4173, %v4174
        %v4176 = vsel %vm3041, %v2895, 0.0
        %v4177 = vrot.slane %v4176, 4
        %v4178 = vadd.f32 %v4176, %v4177
        %v4179 = vrot.slane %v4178, 2
        %v4180 = vadd.f32 %v4178, %v4179
        %v4181 = vrot.slane %v4180, 1
        %v4182 = vadd.f32 %v4180, %v4181
        %v4183 = vsel %vm3041, %v2896, 0.0
        %v4184 = vrot.slane %v4183, 4
        %v4185 = vadd.f32 %v4183, %v4184
        %v4186 = vrot.slane %v4185, 2
        %v4187 = vadd.f32 %v4185, %v4186
        %v4188 = vrot.slane %v4187, 1
        %v4189 = vadd.f32 %v4187, %v4188
        %v4190 = vsel %vm3041, %v2897, 0.0
        %v4191 = vrot.slane %v4190, 4
        %v4192 = vadd.f32 %v4190, %v4191
        %v4193 = vrot.slane %v4192, 2
        %v4194 = vadd.f32 %v4192, %v4193
        %v4195 = vrot.slane %v4194, 1
        %v4196 = vadd.f32 %v4194, %v4195
        %v4197 = vsel %vm3041, %v2898, 0.0
        %v4198 = vrot.slane %v4197, 4
        %v4199 = vadd.f32 %v4197, %v4198
        %v4200 = vrot.slane %v4199, 2
        %v4201 = vadd.f32 %v4199, %v4200
        %v4202 = vrot.slane %v4201, 1
        %v4203 = vadd.f32 %v4201, %v4202
        %v4204 = vsel %vm3041, %v2899, 0.0
        %v4205 = vrot.slane %v4204, 4
        %v4206 = vadd.f32 %v4204, %v4205
        %v4207 = vrot.slane %v4206, 2
        %v4208 = vadd.f32 %v4206, %v4207
        %v4209 = vrot.slane %v4208, 1
        %v4210 = vadd.f32 %v4208, %v4209
        %v4211 = vsel %vm3041, %v2900, 0.0
        %v4212 = vrot.slane %v4211, 4
        %v4213 = vadd.f32 %v4211, %v4212
        %v4214 = vrot.slane %v4213, 2
        %v4215 = vadd.f32 %v4213, %v4214
        %v4216 = vrot.slane %v4215, 1
        %v4217 = vadd.f32 %v4215, %v4216
        %v4218 = vsel %vm3041, %v2901, 0.0
        %v4219 = vrot.slane %v4218, 4
        %v4220 = vadd.f32 %v4218, %v4219
        %v4221 = vrot.slane %v4220, 2
        %v4222 = vadd.f32 %v4220, %v4221
        %v4223 = vrot.slane %v4222, 1
        %v4224 = vadd.f32 %v4222, %v4223
        %v4225 = vsel %vm3041, %v2902, 0.0
        %v4226 = vrot.slane %v4225, 4
        %v4227 = vadd.f32 %v4225, %v4226
        %v4228 = vrot.slane %v4227, 2
        %v4229 = vadd.f32 %v4227, %v4228
        %v4230 = vrot.slane %v4229, 1
        %v4231 = vadd.f32 %v4229, %v4230
        %v4232 = vsel %vm3041, %v2903, 0.0
        %v4233 = vrot.slane %v4232, 4
        %v4234 = vadd.f32 %v4232, %v4233
        %v4235 = vrot.slane %v4234, 2
        %v4236 = vadd.f32 %v4234, %v4235
        %v4237 = vrot.slane %v4236, 1
        %v4238 = vadd.f32 %v4236, %v4237
        %v4239 = vsel %vm3041, %v2904, 0.0
        %v4240 = vrot.slane %v4239, 4
        %v4241 = vadd.f32 %v4239, %v4240
        %v4242 = vrot.slane %v4241, 2
        %v4243 = vadd.f32 %v4241, %v4242
        %v4244 = vrot.slane %v4243, 1
        %v4245 = vadd.f32 %v4243, %v4244
        %v4246 = vsel %vm3041, %v2905, 0.0
        %v4247 = vrot.slane %v4246, 4
        %v4248 = vadd.f32 %v4246, %v4247
        %v4249 = vrot.slane %v4248, 2
        %v4250 = vadd.f32 %v4248, %v4249
        %v4251 = vrot.slane %v4250, 1
        %v4252 = vadd.f32 %v4250, %v4251
        %v4253 = vsel %vm3041, %v2906, 0.0
        %v4254 = vrot.slane %v4253, 4
        %v4255 = vadd.f32 %v4253, %v4254
        %v4256 = vrot.slane %v4255, 2
        %v4257 = vadd.f32 %v4255, %v4256
        %v4258 = vrot.slane %v4257, 1
        %v4259 = vadd.f32 %v4257, %v4258
        %v4260 = vsel %vm3041, %v2907, 0.0
        %v4261 = vrot.slane %v4260, 4
        %v4262 = vadd.f32 %v4260, %v4261
        %v4263 = vrot.slane %v4262, 2
        %v4264 = vadd.f32 %v4262, %v4263
        %v4265 = vrot.slane %v4264, 1
        %v4266 = vadd.f32 %v4264, %v4265
        %v4267 = vsel %vm3041, %v2908, 0.0
        %v4268 = vrot.slane %v4267, 4
        %v4269 = vadd.f32 %v4267, %v4268
        %v4270 = vrot.slane %v4269, 2
        %v4271 = vadd.f32 %v4269, %v4270
        %v4272 = vrot.slane %v4271, 1
        %v4273 = vadd.f32 %v4271, %v4272
        %v4274 = vsel %vm3041, %v2909, 0.0
        %v4275 = vrot.slane %v4274, 4
        %v4276 = vadd.f32 %v4274, %v4275
        %v4277 = vrot.slane %v4276, 2
        %v4278 = vadd.f32 %v4276, %v4277
        %v4279 = vrot.slane %v4278, 1
        %v4280 = vadd.f32 %v4278, %v4279
        %v4281 = vsel %vm3041, %v2910, 0.0
        %v4282 = vrot.slane %v4281, 4
        %v4283 = vadd.f32 %v4281, %v4282
        %v4284 = vrot.slane %v4283, 2
        %v4285 = vadd.f32 %v4283, %v4284
        %v4286 = vrot.slane %v4285, 1
        %v4287 = vadd.f32 %v4285, %v4286
        %v4288 = vsel %vm3041, %v2911, 0.0
        %v4289 = vrot.slane %v4288, 4
        %v4290 = vadd.f32 %v4288, %v4289
        %v4291 = vrot.slane %v4290, 2
        %v4292 = vadd.f32 %v4290, %v4291
        %v4293 = vrot.slane %v4292, 1
        %v4294 = vadd.f32 %v4292, %v4293
        %v4295 = vsel %vm3041, %v2912, 0.0
        %v4296 = vrot.slane %v4295, 4
        %v4297 = vadd.f32 %v4295, %v4296
        %v4298 = vrot.slane %v4297, 2
        %v4299 = vadd.f32 %v4297, %v4298
        %v4300 = vrot.slane %v4299, 1
        %v4301 = vadd.f32 %v4299, %v4300
        %v4302 = vsel %vm3041, %v2913, 0.0
        %v4303 = vrot.slane %v4302, 4
        %v4304 = vadd.f32 %v4302, %v4303
        %v4305 = vrot.slane %v4304, 2
        %v4306 = vadd.f32 %v4304, %v4305
        %v4307 = vrot.slane %v4306, 1
        %v4308 = vadd.f32 %v4306, %v4307
        %v4309 = vsel %vm3041, %v2914, 0.0
        %v4310 = vrot.slane %v4309, 4
        %v4311 = vadd.f32 %v4309, %v4310
        %v4312 = vrot.slane %v4311, 2
        %v4313 = vadd.f32 %v4311, %v4312
        %v4314 = vrot.slane %v4313, 1
        %v4315 = vadd.f32 %v4313, %v4314
        %v4316 = vsel %vm3041, %v2915, 0.0
        %v4317 = vrot.slane %v4316, 4
        %v4318 = vadd.f32 %v4316, %v4317
        %v4319 = vrot.slane %v4318, 2
        %v4320 = vadd.f32 %v4318, %v4319
        %v4321 = vrot.slane %v4320, 1
        %v4322 = vadd.f32 %v4320, %v4321
        %v4323 = vsel %vm3041, %v2916, 0.0
        %v4324 = vrot.slane %v4323, 4
        %v4325 = vadd.f32 %v4323, %v4324
        %v4326 = vrot.slane %v4325, 2
        %v4327 = vadd.f32 %v4325, %v4326
        %v4328 = vrot.slane %v4327, 1
        %v4329 = vadd.f32 %v4327, %v4328
        %v4330 = vsel %vm3041, %v2917, 0.0
        %v4331 = vrot.slane %v4330, 4
        %v4332 = vadd.f32 %v4330, %v4331
        %v4333 = vrot.slane %v4332, 2
        %v4334 = vadd.f32 %v4332, %v4333
        %v4335 = vrot.slane %v4334, 1
        %v4336 = vadd.f32 %v4334, %v4335
        %v4337 = vsel %vm3041, %v2918, 0.0
        %v4338 = vrot.slane %v4337, 4
        %v4339 = vadd.f32 %v4337, %v4338
        %v4340 = vrot.slane %v4339, 2
        %v4341 = vadd.f32 %v4339, %v4340
        %v4342 = vrot.slane %v4341, 1
        %v4343 = vadd.f32 %v4341, %v4342
        %v4344 = vsel %vm3041, %v2919, 0.0
        %v4345 = vrot.slane %v4344, 4
        %v4346 = vadd.f32 %v4344, %v4345
        %v4347 = vrot.slane %v4346, 2
        %v4348 = vadd.f32 %v4346, %v4347
        %v4349 = vrot.slane %v4348, 1
        %v4350 = vadd.f32 %v4348, %v4349
        %v4351 = vsel %vm3041, %v2920, 0.0
        %v4352 = vrot.slane %v4351, 4
        %v4353 = vadd.f32 %v4351, %v4352
        %v4354 = vrot.slane %v4353, 2
        %v4355 = vadd.f32 %v4353, %v4354
        %v4356 = vrot.slane %v4355, 1
        %v4357 = vadd.f32 %v4355, %v4356
        %v4358 = vsel %vm3041, %v2921, 0.0
        %v4359 = vrot.slane %v4358, 4
        %v4360 = vadd.f32 %v4358, %v4359
        %v4361 = vrot.slane %v4360, 2
        %v4362 = vadd.f32 %v4360, %v4361
        %v4363 = vrot.slane %v4362, 1
        %v4364 = vadd.f32 %v4362, %v4363
        %v4365 = vsel %vm3041, %v2922, 0.0
        %v4366 = vrot.slane %v4365, 4
        %v4367 = vadd.f32 %v4365, %v4366
        %v4368 = vrot.slane %v4367, 2
        %v4369 = vadd.f32 %v4367, %v4368
        %v4370 = vrot.slane %v4369, 1
        %v4371 = vadd.f32 %v4369, %v4370
        %v4372 = vsel %vm3041, %v2923, 0.0
        %v4373 = vrot.slane %v4372, 4
        %v4374 = vadd.f32 %v4372, %v4373
        %v4375 = vrot.slane %v4374, 2
        %v4376 = vadd.f32 %v4374, %v4375
        %v4377 = vrot.slane %v4376, 1
        %v4378 = vadd.f32 %v4376, %v4377
        %v4379 = vsel %vm3041, %v2924, 0.0
        %v4380 = vrot.slane %v4379, 4
        %v4381 = vadd.f32 %v4379, %v4380
        %v4382 = vrot.slane %v4381, 2
        %v4383 = vadd.f32 %v4381, %v4382
        %v4384 = vrot.slane %v4383, 1
        %v4385 = vadd.f32 %v4383, %v4384
        %v4386 = vsel %vm3041, %v2925, 0.0
        %v4387 = vrot.slane %v4386, 4
        %v4388 = vadd.f32 %v4386, %v4387
        %v4389 = vrot.slane %v4388, 2
        %v4390 = vadd.f32 %v4388, %v4389
        %v4391 = vrot.slane %v4390, 1
        %v4392 = vadd.f32 %v4390, %v4391
        %v4393 = vsel %vm3041, %v2926, 0.0
        %v4394 = vrot.slane %v4393, 4
        %v4395 = vadd.f32 %v4393, %v4394
        %v4396 = vrot.slane %v4395, 2
        %v4397 = vadd.f32 %v4395, %v4396
        %v4398 = vrot.slane %v4397, 1
        %v4399 = vadd.f32 %v4397, %v4398
        %v4400 = vsel %vm3041, %v2927, 0.0
        %v4401 = vrot.slane %v4400, 4
        %v4402 = vadd.f32 %v4400, %v4401
        %v4403 = vrot.slane %v4402, 2
        %v4404 = vadd.f32 %v4402, %v4403
        %v4405 = vrot.slane %v4404, 1
        %v4406 = vadd.f32 %v4404, %v4405
        %v4407 = vsel %vm3041, %v2928, 0.0
        %v4408 = vrot.slane %v4407, 4
        %v4409 = vadd.f32 %v4407, %v4408
        %v4410 = vrot.slane %v4409, 2
        %v4411 = vadd.f32 %v4409, %v4410
        %v4412 = vrot.slane %v4411, 1
        %v4413 = vadd.f32 %v4411, %v4412
        %v4414 = vsel %vm3041, %v2929, 0.0
        %v4415 = vrot.slane %v4414, 4
        %v4416 = vadd.f32 %v4414, %v4415
        %v4417 = vrot.slane %v4416, 2
        %v4418 = vadd.f32 %v4416, %v4417
        %v4419 = vrot.slane %v4418, 1
        %v4420 = vadd.f32 %v4418, %v4419
        %v4421 = vsel %vm3041, %v2930, 0.0
        %v4422 = vrot.slane %v4421, 4
        %v4423 = vadd.f32 %v4421, %v4422
        %v4424 = vrot.slane %v4423, 2
        %v4425 = vadd.f32 %v4423, %v4424
        %v4426 = vrot.slane %v4425, 1
        %v4427 = vadd.f32 %v4425, %v4426
        %v4428 = vsel %vm3041, %v2931, 0.0
        %v4429 = vrot.slane %v4428, 4
        %v4430 = vadd.f32 %v4428, %v4429
        %v4431 = vrot.slane %v4430, 2
        %v4432 = vadd.f32 %v4430, %v4431
        %v4433 = vrot.slane %v4432, 1
        %v4434 = vadd.f32 %v4432, %v4433
        %v4435 = vsel %vm3041, %v2932, 0.0
        %v4436 = vrot.slane %v4435, 4
        %v4437 = vadd.f32 %v4435, %v4436
        %v4438 = vrot.slane %v4437, 2
        %v4439 = vadd.f32 %v4437, %v4438
        %v4440 = vrot.slane %v4439, 1
        %v4441 = vadd.f32 %v4439, %v4440
        %v4442 = vsel %vm3041, %v2933, 0.0
        %v4443 = vrot.slane %v4442, 4
        %v4444 = vadd.f32 %v4442, %v4443
        %v4445 = vrot.slane %v4444, 2
        %v4446 = vadd.f32 %v4444, %v4445
        %v4447 = vrot.slane %v4446, 1
        %v4448 = vadd.f32 %v4446, %v4447
        %v4449 = vsel %vm3041, %v2934, 0.0
        %v4450 = vrot.slane %v4449, 4
        %v4451 = vadd.f32 %v4449, %v4450
        %v4452 = vrot.slane %v4451, 2
        %v4453 = vadd.f32 %v4451, %v4452
        %v4454 = vrot.slane %v4453, 1
        %v4455 = vadd.f32 %v4453, %v4454
        %v4456 = vsel %vm3041, %v2935, 0.0
        %v4457 = vrot.slane %v4456, 4
        %v4458 = vadd.f32 %v4456, %v4457
        %v4459 = vrot.slane %v4458, 2
        %v4460 = vadd.f32 %v4458, %v4459
        %v4461 = vrot.slane %v4460, 1
        %v4462 = vadd.f32 %v4460, %v4461
        %v4463 = vsel %vm3041, %v2936, 0.0
        %v4464 = vrot.slane %v4463, 4
        %v4465 = vadd.f32 %v4463, %v4464
        %v4466 = vrot.slane %v4465, 2
        %v4467 = vadd.f32 %v4465, %v4466
        %v4468 = vrot.slane %v4467, 1
        %v4469 = vadd.f32 %v4467, %v4468
        %v4470 = vsel %vm3041, %v2937, 0.0
        %v4471 = vrot.slane %v4470, 4
        %v4472 = vadd.f32 %v4470, %v4471
        %v4473 = vrot.slane %v4472, 2
        %v4474 = vadd.f32 %v4472, %v4473
        %v4475 = vrot.slane %v4474, 1
        %v4476 = vadd.f32 %v4474, %v4475
        %v4477 = vsel %vm3041, %v2938, 0.0
        %v4478 = vrot.slane %v4477, 4
        %v4479 = vadd.f32 %v4477, %v4478
        %v4480 = vrot.slane %v4479, 2
        %v4481 = vadd.f32 %v4479, %v4480
        %v4482 = vrot.slane %v4481, 1
        %v4483 = vadd.f32 %v4481, %v4482
        %v4484 = vsel %vm3041, %v2939, 0.0
        %v4485 = vrot.slane %v4484, 4
        %v4486 = vadd.f32 %v4484, %v4485
        %v4487 = vrot.slane %v4486, 2
        %v4488 = vadd.f32 %v4486, %v4487
        %v4489 = vrot.slane %v4488, 1
        %v4490 = vadd.f32 %v4488, %v4489
        %v4491 = vsel %vm3041, %v2940, 0.0
        %v4492 = vrot.slane %v4491, 4
        %v4493 = vadd.f32 %v4491, %v4492
        %v4494 = vrot.slane %v4493, 2
        %v4495 = vadd.f32 %v4493, %v4494
        %v4496 = vrot.slane %v4495, 1
        %v4497 = vadd.f32 %v4495, %v4496
        %v4498 = vsel %vm3041, %v2941, 0.0
        %v4499 = vrot.slane %v4498, 4
        %v4500 = vadd.f32 %v4498, %v4499
        %v4501 = vrot.slane %v4500, 2
        %v4502 = vadd.f32 %v4500, %v4501
        %v4503 = vrot.slane %v4502, 1
        %v4504 = vadd.f32 %v4502, %v4503
        %v4505 = vsel %vm3041, %v2942, 0.0
        %v4506 = vrot.slane %v4505, 4
        %v4507 = vadd.f32 %v4505, %v4506
        %v4508 = vrot.slane %v4507, 2
        %v4509 = vadd.f32 %v4507, %v4508
        %v4510 = vrot.slane %v4509, 1
        %v4511 = vadd.f32 %v4509, %v4510
        %v4512 = vsel %vm3041, %v2943, 0.0
        %v4513 = vrot.slane %v4512, 4
        %v4514 = vadd.f32 %v4512, %v4513
        %v4515 = vrot.slane %v4514, 2
        %v4516 = vadd.f32 %v4514, %v4515
        %v4517 = vrot.slane %v4516, 1
        %v4518 = vadd.f32 %v4516, %v4517
        %v4519 = vsel %vm3041, %v2944, 0.0
        %v4520 = vrot.slane %v4519, 4
        %v4521 = vadd.f32 %v4519, %v4520
        %v4522 = vrot.slane %v4521, 2
        %v4523 = vadd.f32 %v4521, %v4522
        %v4524 = vrot.slane %v4523, 1
        %v4525 = vadd.f32 %v4523, %v4524
        %v4526 = vsel %vm3041, %v2945, 0.0
        %v4527 = vrot.slane %v4526, 4
        %v4528 = vadd.f32 %v4526, %v4527
        %v4529 = vrot.slane %v4528, 2
        %v4530 = vadd.f32 %v4528, %v4529
        %v4531 = vrot.slane %v4530, 1
        %v4532 = vadd.f32 %v4530, %v4531
        %v4533 = vsel %vm3041, %v2946, 0.0
        %v4534 = vrot.slane %v4533, 4
        %v4535 = vadd.f32 %v4533, %v4534
        %v4536 = vrot.slane %v4535, 2
        %v4537 = vadd.f32 %v4535, %v4536
        %v4538 = vrot.slane %v4537, 1
        %v4539 = vadd.f32 %v4537, %v4538
        %v4540 = vsel %vm3041, %v2947, 0.0
        %v4541 = vrot.slane %v4540, 4
        %v4542 = vadd.f32 %v4540, %v4541
        %v4543 = vrot.slane %v4542, 2
        %v4544 = vadd.f32 %v4542, %v4543
        %v4545 = vrot.slane %v4544, 1
        %v4546 = vadd.f32 %v4544, %v4545
        %v4547 = vsel %vm3041, %v2948, 0.0
        %v4548 = vrot.slane %v4547, 4
        %v4549 = vadd.f32 %v4547, %v4548
        %v4550 = vrot.slane %v4549, 2
        %v4551 = vadd.f32 %v4549, %v4550
        %v4552 = vrot.slane %v4551, 1
        %v4553 = vadd.f32 %v4551, %v4552
        %v4554 = vsel %vm3041, %v2949, 0.0
        %v4555 = vrot.slane %v4554, 4
        %v4556 = vadd.f32 %v4554, %v4555
        %v4557 = vrot.slane %v4556, 2
        %v4558 = vadd.f32 %v4556, %v4557
        %v4559 = vrot.slane %v4558, 1
        %v4560 = vadd.f32 %v4558, %v4559
        %v4561 = vsel %vm3041, %v2950, 0.0
        %v4562 = vrot.slane %v4561, 4
        %v4563 = vadd.f32 %v4561, %v4562
        %v4564 = vrot.slane %v4563, 2
        %v4565 = vadd.f32 %v4563, %v4564
        %v4566 = vrot.slane %v4565, 1
        %v4567 = vadd.f32 %v4565, %v4566
        %v4568 = vsel %vm3041, %v2951, 0.0
        %v4569 = vrot.slane %v4568, 4
        %v4570 = vadd.f32 %v4568, %v4569
        %v4571 = vrot.slane %v4570, 2
        %v4572 = vadd.f32 %v4570, %v4571
        %v4573 = vrot.slane %v4572, 1
        %v4574 = vadd.f32 %v4572, %v4573
        %v4575 = vsel %vm3041, %v2952, 0.0
        %v4576 = vrot.slane %v4575, 4
        %v4577 = vadd.f32 %v4575, %v4576
        %v4578 = vrot.slane %v4577, 2
        %v4579 = vadd.f32 %v4577, %v4578
        %v4580 = vrot.slane %v4579, 1
        %v4581 = vadd.f32 %v4579, %v4580
        %v4582 = vsel %vm3041, %v2953, 0.0
        %v4583 = vrot.slane %v4582, 4
        %v4584 = vadd.f32 %v4582, %v4583
        %v4585 = vrot.slane %v4584, 2
        %v4586 = vadd.f32 %v4584, %v4585
        %v4587 = vrot.slane %v4586, 1
        %v4588 = vadd.f32 %v4586, %v4587
        %v4589 = vsel %vm3041, %v2954, 0.0
        %v4590 = vrot.slane %v4589, 4
        %v4591 = vadd.f32 %v4589, %v4590
        %v4592 = vrot.slane %v4591, 2
        %v4593 = vadd.f32 %v4591, %v4592
        %v4594 = vrot.slane %v4593, 1
        %v4595 = vadd.f32 %v4593, %v4594
        %v4596 = vsel %vm3041, %v2955, 0.0
        %v4597 = vrot.slane %v4596, 4
        %v4598 = vadd.f32 %v4596, %v4597
        %v4599 = vrot.slane %v4598, 2
        %v4600 = vadd.f32 %v4598, %v4599
        %v4601 = vrot.slane %v4600, 1
        %v4602 = vadd.f32 %v4600, %v4601
        %v4603 = vsel %vm3041, %v2956, 0.0
        %v4604 = vrot.slane %v4603, 4
        %v4605 = vadd.f32 %v4603, %v4604
        %v4606 = vrot.slane %v4605, 2
        %v4607 = vadd.f32 %v4605, %v4606
        %v4608 = vrot.slane %v4607, 1
        %v4609 = vadd.f32 %v4607, %v4608
        %v4610 = vsel %vm3041, %v2957, 0.0
        %v4611 = vrot.slane %v4610, 4
        %v4612 = vadd.f32 %v4610, %v4611
        %v4613 = vrot.slane %v4612, 2
        %v4614 = vadd.f32 %v4612, %v4613
        %v4615 = vrot.slane %v4614, 1
        %v4616 = vadd.f32 %v4614, %v4615
        %v4617 = vsel %vm3041, %v2958, 0.0
        %v4618 = vrot.slane %v4617, 4
        %v4619 = vadd.f32 %v4617, %v4618
        %v4620 = vrot.slane %v4619, 2
        %v4621 = vadd.f32 %v4619, %v4620
        %v4622 = vrot.slane %v4621, 1
        %v4623 = vadd.f32 %v4621, %v4622
        %v4624 = vsel %vm3041, %v2959, 0.0
        %v4625 = vrot.slane %v4624, 4
        %v4626 = vadd.f32 %v4624, %v4625
        %v4627 = vrot.slane %v4626, 2
        %v4628 = vadd.f32 %v4626, %v4627
        %v4629 = vrot.slane %v4628, 1
        %v4630 = vadd.f32 %v4628, %v4629
        %v4631 = vsel %vm3041, %v2960, 0.0
        %v4632 = vrot.slane %v4631, 4
        %v4633 = vadd.f32 %v4631, %v4632
        %v4634 = vrot.slane %v4633, 2
        %v4635 = vadd.f32 %v4633, %v4634
        %v4636 = vrot.slane %v4635, 1
        %v4637 = vadd.f32 %v4635, %v4636
        %v4638 = vsel %vm3041, %v2961, 0.0
        %v4639 = vrot.slane %v4638, 4
        %v4640 = vadd.f32 %v4638, %v4639
        %v4641 = vrot.slane %v4640, 2
        %v4642 = vadd.f32 %v4640, %v4641
        %v4643 = vrot.slane %v4642, 1
        %v4644 = vadd.f32 %v4642, %v4643
        %v4645 = vsel %vm3041, %v2962, 0.0
        %v4646 = vrot.slane %v4645, 4
        %v4647 = vadd.f32 %v4645, %v4646
        %v4648 = vrot.slane %v4647, 2
        %v4649 = vadd.f32 %v4647, %v4648
        %v4650 = vrot.slane %v4649, 1
        %v4651 = vadd.f32 %v4649, %v4650
        %v4652 = vsel %vm3041, %v2963, 0.0
        %v4653 = vrot.slane %v4652, 4
        %v4654 = vadd.f32 %v4652, %v4653
        %v4655 = vrot.slane %v4654, 2
        %v4656 = vadd.f32 %v4654, %v4655
        %v4657 = vrot.slane %v4656, 1
        %v4658 = vadd.f32 %v4656, %v4657
        %v4659 = vsel %vm3041, %v2964, 0.0
        %v4660 = vrot.slane %v4659, 4
        %v4661 = vadd.f32 %v4659, %v4660
        %v4662 = vrot.slane %v4661, 2
        %v4663 = vadd.f32 %v4661, %v4662
        %v4664 = vrot.slane %v4663, 1
        %v4665 = vadd.f32 %v4663, %v4664
        %v4666 = vsel %vm3041, %v2965, 0.0
        %v4667 = vrot.slane %v4666, 4
        %v4668 = vadd.f32 %v4666, %v4667
        %v4669 = vrot.slane %v4668, 2
        %v4670 = vadd.f32 %v4668, %v4669
        %v4671 = vrot.slane %v4670, 1
        %v4672 = vadd.f32 %v4670, %v4671
        %v4673 = vsel %vm3041, %v2966, 0.0
        %v4674 = vrot.slane %v4673, 4
        %v4675 = vadd.f32 %v4673, %v4674
        %v4676 = vrot.slane %v4675, 2
        %v4677 = vadd.f32 %v4675, %v4676
        %v4678 = vrot.slane %v4677, 1
        %v4679 = vadd.f32 %v4677, %v4678
        %v4680 = vsel %vm3041, %v2967, 0.0
        %v4681 = vrot.slane %v4680, 4
        %v4682 = vadd.f32 %v4680, %v4681
        %v4683 = vrot.slane %v4682, 2
        %v4684 = vadd.f32 %v4682, %v4683
        %v4685 = vrot.slane %v4684, 1
        %v4686 = vadd.f32 %v4684, %v4685
        %v4687 = vsel %vm3041, %v2968, 0.0
        %v4688 = vrot.slane %v4687, 4
        %v4689 = vadd.f32 %v4687, %v4688
        %v4690 = vrot.slane %v4689, 2
        %v4691 = vadd.f32 %v4689, %v4690
        %v4692 = vrot.slane %v4691, 1
        %v4693 = vadd.f32 %v4691, %v4692
        %v4694 = vsel %vm3041, %v2969, 0.0
        %v4695 = vrot.slane %v4694, 4
        %v4696 = vadd.f32 %v4694, %v4695
        %v4697 = vrot.slane %v4696, 2
        %v4698 = vadd.f32 %v4696, %v4697
        %v4699 = vrot.slane %v4698, 1
        %v4700 = vadd.f32 %v4698, %v4699
        %v4701 = vsel %vm3041, %v2970, 0.0
        %v4702 = vrot.slane %v4701, 4
        %v4703 = vadd.f32 %v4701, %v4702
        %v4704 = vrot.slane %v4703, 2
        %v4705 = vadd.f32 %v4703, %v4704
        %v4706 = vrot.slane %v4705, 1
        %v4707 = vadd.f32 %v4705, %v4706
        %v4708 = vsel %vm3041, %v2971, 0.0
        %v4709 = vrot.slane %v4708, 4
        %v4710 = vadd.f32 %v4708, %v4709
        %v4711 = vrot.slane %v4710, 2
        %v4712 = vadd.f32 %v4710, %v4711
        %v4713 = vrot.slane %v4712, 1
        %v4714 = vadd.f32 %v4712, %v4713
        %v4715 = vsel %vm3041, %v2972, 0.0
        %v4716 = vrot.slane %v4715, 4
        %v4717 = vadd.f32 %v4715, %v4716
        %v4718 = vrot.slane %v4717, 2
        %v4719 = vadd.f32 %v4717, %v4718
        %v4720 = vrot.slane %v4719, 1
        %v4721 = vadd.f32 %v4719, %v4720
        %v4722 = vsel %vm3041, %v2973, 0.0
        %v4723 = vrot.slane %v4722, 4
        %v4724 = vadd.f32 %v4722, %v4723
        %v4725 = vrot.slane %v4724, 2
        %v4726 = vadd.f32 %v4724, %v4725
        %v4727 = vrot.slane %v4726, 1
        %v4728 = vadd.f32 %v4726, %v4727
        %v4729 = vsel %vm3041, %v2974, 0.0
        %v4730 = vrot.slane %v4729, 4
        %v4731 = vadd.f32 %v4729, %v4730
        %v4732 = vrot.slane %v4731, 2
        %v4733 = vadd.f32 %v4731, %v4732
        %v4734 = vrot.slane %v4733, 1
        %v4735 = vadd.f32 %v4733, %v4734
        %v4736 = vsel %vm3041, %v2975, 0.0
        %v4737 = vrot.slane %v4736, 4
        %v4738 = vadd.f32 %v4736, %v4737
        %v4739 = vrot.slane %v4738, 2
        %v4740 = vadd.f32 %v4738, %v4739
        %v4741 = vrot.slane %v4740, 1
        %v4742 = vadd.f32 %v4740, %v4741
        %v4743 = vsel %vm3041, %v2976, 0.0
        %v4744 = vrot.slane %v4743, 4
        %v4745 = vadd.f32 %v4743, %v4744
        %v4746 = vrot.slane %v4745, 2
        %v4747 = vadd.f32 %v4745, %v4746
        %v4748 = vrot.slane %v4747, 1
        %v4749 = vadd.f32 %v4747, %v4748
        %v4750 = vsel %vm3041, %v2977, 0.0
        %v4751 = vrot.slane %v4750, 4
        %v4752 = vadd.f32 %v4750, %v4751
        %v4753 = vrot.slane %v4752, 2
        %v4754 = vadd.f32 %v4752, %v4753
        %v4755 = vrot.slane %v4754, 1
        %v4756 = vadd.f32 %v4754, %v4755
        %v4757 = vsel %vm3041, %v2978, 0.0
        %v4758 = vrot.slane %v4757, 4
        %v4759 = vadd.f32 %v4757, %v4758
        %v4760 = vrot.slane %v4759, 2
        %v4761 = vadd.f32 %v4759, %v4760
        %v4762 = vrot.slane %v4761, 1
        %v4763 = vadd.f32 %v4761, %v4762
        %v4764 = vsel %vm3041, %v2979, 0.0
        %v4765 = vrot.slane %v4764, 4
        %v4766 = vadd.f32 %v4764, %v4765
        %v4767 = vrot.slane %v4766, 2
        %v4768 = vadd.f32 %v4766, %v4767
        %v4769 = vrot.slane %v4768, 1
        %v4770 = vadd.f32 %v4768, %v4769
        %v4771 = vsel %vm3041, %v2980, 0.0
        %v4772 = vrot.slane %v4771, 4
        %v4773 = vadd.f32 %v4771, %v4772
        %v4774 = vrot.slane %v4773, 2
        %v4775 = vadd.f32 %v4773, %v4774
        %v4776 = vrot.slane %v4775, 1
        %v4777 = vadd.f32 %v4775, %v4776
        %v4778 = vsel %vm3041, %v2981, 0.0
        %v4779 = vrot.slane %v4778, 4
        %v4780 = vadd.f32 %v4778, %v4779
        %v4781 = vrot.slane %v4780, 2
        %v4782 = vadd.f32 %v4780, %v4781
        %v4783 = vrot.slane %v4782, 1
        %v4784 = vadd.f32 %v4782, %v4783
        %v4785 = vsel %vm3041, %v2982, 0.0
        %v4786 = vrot.slane %v4785, 4
        %v4787 = vadd.f32 %v4785, %v4786
        %v4788 = vrot.slane %v4787, 2
        %v4789 = vadd.f32 %v4787, %v4788
        %v4790 = vrot.slane %v4789, 1
        %v4791 = vadd.f32 %v4789, %v4790
        %v4792 = vsel %vm3041, %v2983, 0.0
        %v4793 = vrot.slane %v4792, 4
        %v4794 = vadd.f32 %v4792, %v4793
        %v4795 = vrot.slane %v4794, 2
        %v4796 = vadd.f32 %v4794, %v4795
        %v4797 = vrot.slane %v4796, 1
        %v4798 = vadd.f32 %v4796, %v4797
        %v4799 = vsel %vm3041, %v2984, 0.0
        %v4800 = vrot.slane %v4799, 4
        %v4801 = vadd.f32 %v4799, %v4800
        %v4802 = vrot.slane %v4801, 2
        %v4803 = vadd.f32 %v4801, %v4802
        %v4804 = vrot.slane %v4803, 1
        %v4805 = vadd.f32 %v4803, %v4804
        %v4806 = vsel %vm3041, %v2985, 0.0
        %v4807 = vrot.slane %v4806, 4
        %v4808 = vadd.f32 %v4806, %v4807
        %v4809 = vrot.slane %v4808, 2
        %v4810 = vadd.f32 %v4808, %v4809
        %v4811 = vrot.slane %v4810, 1
        %v4812 = vadd.f32 %v4810, %v4811
        %v4813 = vsel %vm3041, %v2986, 0.0
        %v4814 = vrot.slane %v4813, 4
        %v4815 = vadd.f32 %v4813, %v4814
        %v4816 = vrot.slane %v4815, 2
        %v4817 = vadd.f32 %v4815, %v4816
        %v4818 = vrot.slane %v4817, 1
        %v4819 = vadd.f32 %v4817, %v4818
        %v4820 = vsel %vm3041, %v2987, 0.0
        %v4821 = vrot.slane %v4820, 4
        %v4822 = vadd.f32 %v4820, %v4821
        %v4823 = vrot.slane %v4822, 2
        %v4824 = vadd.f32 %v4822, %v4823
        %v4825 = vrot.slane %v4824, 1
        %v4826 = vadd.f32 %v4824, %v4825
        %v4827 = vsel %vm3041, %v2988, 0.0
        %v4828 = vrot.slane %v4827, 4
        %v4829 = vadd.f32 %v4827, %v4828
        %v4830 = vrot.slane %v4829, 2
        %v4831 = vadd.f32 %v4829, %v4830
        %v4832 = vrot.slane %v4831, 1
        %v4833 = vadd.f32 %v4831, %v4832
        %v4834 = vsel %vm3041, %v2989, 0.0
        %v4835 = vrot.slane %v4834, 4
        %v4836 = vadd.f32 %v4834, %v4835
        %v4837 = vrot.slane %v4836, 2
        %v4838 = vadd.f32 %v4836, %v4837
        %v4839 = vrot.slane %v4838, 1
        %v4840 = vadd.f32 %v4838, %v4839
        %v4841 = vsel %vm3041, %v2990, 0.0
        %v4842 = vrot.slane %v4841, 4
        %v4843 = vadd.f32 %v4841, %v4842
        %v4844 = vrot.slane %v4843, 2
        %v4845 = vadd.f32 %v4843, %v4844
        %v4846 = vrot.slane %v4845, 1
        %v4847 = vadd.f32 %v4845, %v4846
        %v4848 = vsel %vm3041, %v2991, 0.0
        %v4849 = vrot.slane %v4848, 4
        %v4850 = vadd.f32 %v4848, %v4849
        %v4851 = vrot.slane %v4850, 2
        %v4852 = vadd.f32 %v4850, %v4851
        %v4853 = vrot.slane %v4852, 1
        %v4854 = vadd.f32 %v4852, %v4853
        %v4855 = vsel %vm3041, %v2992, 0.0
        %v4856 = vrot.slane %v4855, 4
        %v4857 = vadd.f32 %v4855, %v4856
        %v4858 = vrot.slane %v4857, 2
        %v4859 = vadd.f32 %v4857, %v4858
        %v4860 = vrot.slane %v4859, 1
        %v4861 = vadd.f32 %v4859, %v4860
        %v4862 = vsel %vm3041, %v2993, 0.0
        %v4863 = vrot.slane %v4862, 4
        %v4864 = vadd.f32 %v4862, %v4863
        %v4865 = vrot.slane %v4864, 2
        %v4866 = vadd.f32 %v4864, %v4865
        %v4867 = vrot.slane %v4866, 1
        %v4868 = vadd.f32 %v4866, %v4867
        %v4869 = vsel %vm3041, %v2994, 0.0
        %v4870 = vrot.slane %v4869, 4
        %v4871 = vadd.f32 %v4869, %v4870
        %v4872 = vrot.slane %v4871, 2
        %v4873 = vadd.f32 %v4871, %v4872
        %v4874 = vrot.slane %v4873, 1
        %v4875 = vadd.f32 %v4873, %v4874
        %v4876 = vsel %vm3041, %v2995, 0.0
        %v4877 = vrot.slane %v4876, 4
        %v4878 = vadd.f32 %v4876, %v4877
        %v4879 = vrot.slane %v4878, 2
        %v4880 = vadd.f32 %v4878, %v4879
        %v4881 = vrot.slane %v4880, 1
        %v4882 = vadd.f32 %v4880, %v4881
        %v4883 = vsel %vm3041, %v2996, 0.0
        %v4884 = vrot.slane %v4883, 4
        %v4885 = vadd.f32 %v4883, %v4884
        %v4886 = vrot.slane %v4885, 2
        %v4887 = vadd.f32 %v4885, %v4886
        %v4888 = vrot.slane %v4887, 1
        %v4889 = vadd.f32 %v4887, %v4888
        %v4890 = vsel %vm3041, %v2997, 0.0
        %v4891 = vrot.slane %v4890, 4
        %v4892 = vadd.f32 %v4890, %v4891
        %v4893 = vrot.slane %v4892, 2
        %v4894 = vadd.f32 %v4892, %v4893
        %v4895 = vrot.slane %v4894, 1
        %v4896 = vadd.f32 %v4894, %v4895
        %v4897 = vsel %vm3041, %v2998, 0.0
        %v4898 = vrot.slane %v4897, 4
        %v4899 = vadd.f32 %v4897, %v4898
        %v4900 = vrot.slane %v4899, 2
        %v4901 = vadd.f32 %v4899, %v4900
        %v4902 = vrot.slane %v4901, 1
        %v4903 = vadd.f32 %v4901, %v4902
        %v4904 = vsel %vm3041, %v2999, 0.0
        %v4905 = vrot.slane %v4904, 4
        %v4906 = vadd.f32 %v4904, %v4905
        %v4907 = vrot.slane %v4906, 2
        %v4908 = vadd.f32 %v4906, %v4907
        %v4909 = vrot.slane %v4908, 1
        %v4910 = vadd.f32 %v4908, %v4909
        %v4911 = vsel %vm3041, %v3000, 0.0
        %v4912 = vrot.slane %v4911, 4
        %v4913 = vadd.f32 %v4911, %v4912
        %v4914 = vrot.slane %v4913, 2
        %v4915 = vadd.f32 %v4913, %v4914
        %v4916 = vrot.slane %v4915, 1
        %v4917 = vadd.f32 %v4915, %v4916
        %v4918 = vsel %vm3041, %v3001, 0.0
        %v4919 = vrot.slane %v4918, 4
        %v4920 = vadd.f32 %v4918, %v4919
        %v4921 = vrot.slane %v4920, 2
        %v4922 = vadd.f32 %v4920, %v4921
        %v4923 = vrot.slane %v4922, 1
        %v4924 = vadd.f32 %v4922, %v4923
        %v4925 = vsel %vm3041, %v3002, 0.0
        %v4926 = vrot.slane %v4925, 4
        %v4927 = vadd.f32 %v4925, %v4926
        %v4928 = vrot.slane %v4927, 2
        %v4929 = vadd.f32 %v4927, %v4928
        %v4930 = vrot.slane %v4929, 1
        %v4931 = vadd.f32 %v4929, %v4930
        %v4932 = vsel %vm3041, %v3003, 0.0
        %v4933 = vrot.slane %v4932, 4
        %v4934 = vadd.f32 %v4932, %v4933
        %v4935 = vrot.slane %v4934, 2
        %v4936 = vadd.f32 %v4934, %v4935
        %v4937 = vrot.slane %v4936, 1
        %v4938 = vadd.f32 %v4936, %v4937
        %v4939 = vsel %vm3041, %v3004, 0.0
        %v4940 = vrot.slane %v4939, 4
        %v4941 = vadd.f32 %v4939, %v4940
        %v4942 = vrot.slane %v4941, 2
        %v4943 = vadd.f32 %v4941, %v4942
        %v4944 = vrot.slane %v4943, 1
        %v4945 = vadd.f32 %v4943, %v4944
        %v4946 = vsel %vm3041, %v3005, 0.0
        %v4947 = vrot.slane %v4946, 4
        %v4948 = vadd.f32 %v4946, %v4947
        %v4949 = vrot.slane %v4948, 2
        %v4950 = vadd.f32 %v4948, %v4949
        %v4951 = vrot.slane %v4950, 1
        %v4952 = vadd.f32 %v4950, %v4951
        %v4953 = vsel %vm3041, %v3006, 0.0
        %v4954 = vrot.slane %v4953, 4
        %v4955 = vadd.f32 %v4953, %v4954
        %v4956 = vrot.slane %v4955, 2
        %v4957 = vadd.f32 %v4955, %v4956
        %v4958 = vrot.slane %v4957, 1
        %v4959 = vadd.f32 %v4957, %v4958
        %v4960 = vsel %vm3041, %v3007, 0.0
        %v4961 = vrot.slane %v4960, 4
        %v4962 = vadd.f32 %v4960, %v4961
        %v4963 = vrot.slane %v4962, 2
        %v4964 = vadd.f32 %v4962, %v4963
        %v4965 = vrot.slane %v4964, 1
        %v4966 = vadd.f32 %v4964, %v4965
        %v4967 = vsel %vm3041, %v3008, 0.0
        %v4968 = vrot.slane %v4967, 4
        %v4969 = vadd.f32 %v4967, %v4968
        %v4970 = vrot.slane %v4969, 2
        %v4971 = vadd.f32 %v4969, %v4970
        %v4972 = vrot.slane %v4971, 1
        %v4973 = vadd.f32 %v4971, %v4972
        %v4974 = vsel %vm3041, %v3009, 0.0
        %v4975 = vrot.slane %v4974, 4
        %v4976 = vadd.f32 %v4974, %v4975
        %v4977 = vrot.slane %v4976, 2
        %v4978 = vadd.f32 %v4976, %v4977
        %v4979 = vrot.slane %v4978, 1
        %v4980 = vadd.f32 %v4978, %v4979
        %v4981 = vsel %vm3041, %v3010, 0.0
        %v4982 = vrot.slane %v4981, 4
        %v4983 = vadd.f32 %v4981, %v4982
        %v4984 = vrot.slane %v4983, 2
        %v4985 = vadd.f32 %v4983, %v4984
        %v4986 = vrot.slane %v4985, 1
        %v4987 = vadd.f32 %v4985, %v4986
        %v4988 = vsel %vm3041, %v3011, 0.0
        %v4989 = vrot.slane %v4988, 4
        %v4990 = vadd.f32 %v4988, %v4989
        %v4991 = vrot.slane %v4990, 2
        %v4992 = vadd.f32 %v4990, %v4991
        %v4993 = vrot.slane %v4992, 1
        %v4994 = vadd.f32 %v4992, %v4993
        %v4995 = vsel %vm3041, %v3012, 0.0
        %v4996 = vrot.slane %v4995, 4
        %v4997 = vadd.f32 %v4995, %v4996
        %v4998 = vrot.slane %v4997, 2
        %v4999 = vadd.f32 %v4997, %v4998
        %v5000 = vrot.slane %v4999, 1
        %v5001 = vadd.f32 %v4999, %v5000
        %v5002 = vsel %vm3041, %v3013, 0.0
        %v5003 = vrot.slane %v5002, 4
        %v5004 = vadd.f32 %v5002, %v5003
        %v5005 = vrot.slane %v5004, 2
        %v5006 = vadd.f32 %v5004, %v5005
        %v5007 = vrot.slane %v5006, 1
        %v5008 = vadd.f32 %v5006, %v5007
        %v5009 = vsel %vm3041, %v3014, 0.0
        %v5010 = vrot.slane %v5009, 4
        %v5011 = vadd.f32 %v5009, %v5010
        %v5012 = vrot.slane %v5011, 2
        %v5013 = vadd.f32 %v5011, %v5012
        %v5014 = vrot.slane %v5013, 1
        %v5015 = vadd.f32 %v5013, %v5014
        %v5016 = vsel %vm3041, %v3015, 0.0
        %v5017 = vrot.slane %v5016, 4
        %v5018 = vadd.f32 %v5016, %v5017
        %v5019 = vrot.slane %v5018, 2
        %v5020 = vadd.f32 %v5018, %v5019
        %v5021 = vrot.slane %v5020, 1
        %v5022 = vadd.f32 %v5020, %v5021
        %v5023 = vsel %vm3041, %v3016, 0.0
        %v5024 = vrot.slane %v5023, 4
        %v5025 = vadd.f32 %v5023, %v5024
        %v5026 = vrot.slane %v5025, 2
        %v5027 = vadd.f32 %v5025, %v5026
        %v5028 = vrot.slane %v5027, 1
        %v5029 = vadd.f32 %v5027, %v5028
        %v5030 = vsel %vm3041, %v3017, 0.0
        %v5031 = vrot.slane %v5030, 4
        %v5032 = vadd.f32 %v5030, %v5031
        %v5033 = vrot.slane %v5032, 2
        %v5034 = vadd.f32 %v5032, %v5033
        %v5035 = vrot.slane %v5034, 1
        %v5036 = vadd.f32 %v5034, %v5035
        %v5037 = vsel %vm3041, %v3018, 0.0
        %v5038 = vrot.slane %v5037, 4
        %v5039 = vadd.f32 %v5037, %v5038
        %v5040 = vrot.slane %v5039, 2
        %v5041 = vadd.f32 %v5039, %v5040
        %v5042 = vrot.slane %v5041, 1
        %v5043 = vadd.f32 %v5041, %v5042
        %v5044 = vsel %vm3041, %v3019, 0.0
        %v5045 = vrot.slane %v5044, 4
        %v5046 = vadd.f32 %v5044, %v5045
        %v5047 = vrot.slane %v5046, 2
        %v5048 = vadd.f32 %v5046, %v5047
        %v5049 = vrot.slane %v5048, 1
        %v5050 = vadd.f32 %v5048, %v5049
        %v5051 = vsel %vm3041, %v3020, 0.0
        %v5052 = vrot.slane %v5051, 4
        %v5053 = vadd.f32 %v5051, %v5052
        %v5054 = vrot.slane %v5053, 2
        %v5055 = vadd.f32 %v5053, %v5054
        %v5056 = vrot.slane %v5055, 1
        %v5057 = vadd.f32 %v5055, %v5056
        %v5058 = vsel %vm3041, %v3021, 0.0
        %v5059 = vrot.slane %v5058, 4
        %v5060 = vadd.f32 %v5058, %v5059
        %v5061 = vrot.slane %v5060, 2
        %v5062 = vadd.f32 %v5060, %v5061
        %v5063 = vrot.slane %v5062, 1
        %v5064 = vadd.f32 %v5062, %v5063
        %v5065 = vsel %vm3041, %v3022, 0.0
        %v5066 = vrot.slane %v5065, 4
        %v5067 = vadd.f32 %v5065, %v5066
        %v5068 = vrot.slane %v5067, 2
        %v5069 = vadd.f32 %v5067, %v5068
        %v5070 = vrot.slane %v5069, 1
        %v5071 = vadd.f32 %v5069, %v5070
        %v5072 = vsel %vm3041, %v3023, 0.0
        %v5073 = vrot.slane %v5072, 4
        %v5074 = vadd.f32 %v5072, %v5073
        %v5075 = vrot.slane %v5074, 2
        %v5076 = vadd.f32 %v5074, %v5075
        %v5077 = vrot.slane %v5076, 1
        %v5078 = vadd.f32 %v5076, %v5077
        %v5079 = vsel %vm3041, %v3024, 0.0
        %v5080 = vrot.slane %v5079, 4
        %v5081 = vadd.f32 %v5079, %v5080
        %v5082 = vrot.slane %v5081, 2
        %v5083 = vadd.f32 %v5081, %v5082
        %v5084 = vrot.slane %v5083, 1
        %v5085 = vadd.f32 %v5083, %v5084
        %v5086 = vsel %vm3041, %v3025, 0.0
        %v5087 = vrot.slane %v5086, 4
        %v5088 = vadd.f32 %v5086, %v5087
        %v5089 = vrot.slane %v5088, 2
        %v5090 = vadd.f32 %v5088, %v5089
        %v5091 = vrot.slane %v5090, 1
        %v5092 = vadd.f32 %v5090, %v5091
        %v5093 = vsel %vm3041, %v3026, 0.0
        %v5094 = vrot.slane %v5093, 4
        %v5095 = vadd.f32 %v5093, %v5094
        %v5096 = vrot.slane %v5095, 2
        %v5097 = vadd.f32 %v5095, %v5096
        %v5098 = vrot.slane %v5097, 1
        %v5099 = vadd.f32 %v5097, %v5098
        %v5100 = vsel %vm3041, %v3027, 0.0
        %v5101 = vrot.slane %v5100, 4
        %v5102 = vadd.f32 %v5100, %v5101
        %v5103 = vrot.slane %v5102, 2
        %v5104 = vadd.f32 %v5102, %v5103
        %v5105 = vrot.slane %v5104, 1
        %v5106 = vadd.f32 %v5104, %v5105
        %v5107 = vsel %vm3041, %v3028, 0.0
        %v5108 = vrot.slane %v5107, 4
        %v5109 = vadd.f32 %v5107, %v5108
        %v5110 = vrot.slane %v5109, 2
        %v5111 = vadd.f32 %v5109, %v5110
        %v5112 = vrot.slane %v5111, 1
        %v5113 = vadd.f32 %v5111, %v5112
        %v5114 = vsel %vm3041, %v3029, 0.0
        %v5115 = vrot.slane %v5114, 4
        %v5116 = vadd.f32 %v5114, %v5115
        %v5117 = vrot.slane %v5116, 2
        %v5118 = vadd.f32 %v5116, %v5117
        %v5119 = vrot.slane %v5118, 1
        %v5120 = vadd.f32 %v5118, %v5119
        %v5121 = vsel %vm3041, %v3030, 0.0
        %v5122 = vrot.slane %v5121, 4
        %v5123 = vadd.f32 %v5121, %v5122
        %v5124 = vrot.slane %v5123, 2
        %v5125 = vadd.f32 %v5123, %v5124
        %v5126 = vrot.slane %v5125, 1
        %v5127 = vadd.f32 %v5125, %v5126
        %v5128 = vsel %vm3041, %v3031, 0.0
        %v5129 = vrot.slane %v5128, 4
        %v5130 = vadd.f32 %v5128, %v5129
        %v5131 = vrot.slane %v5130, 2
        %v5132 = vadd.f32 %v5130, %v5131
        %v5133 = vrot.slane %v5132, 1
        %v5134 = vadd.f32 %v5132, %v5133
        %v5135 = vsel %vm3041, %v3032, 0.0
        %v5136 = vrot.slane %v5135, 4
        %v5137 = vadd.f32 %v5135, %v5136
        %v5138 = vrot.slane %v5137, 2
        %v5139 = vadd.f32 %v5137, %v5138
        %v5140 = vrot.slane %v5139, 1
        %v5141 = vadd.f32 %v5139, %v5140
        %v5142 = vsel %vm3041, %v3033, 0.0
        %v5143 = vrot.slane %v5142, 4
        %v5144 = vadd.f32 %v5142, %v5143
        %v5145 = vrot.slane %v5144, 2
        %v5146 = vadd.f32 %v5144, %v5145
        %v5147 = vrot.slane %v5146, 1
        %v5148 = vadd.f32 %v5146, %v5147
        %v5149 = vsel %vm3041, %v3034, 0.0
        %v5150 = vrot.slane %v5149, 4
        %v5151 = vadd.f32 %v5149, %v5150
        %v5152 = vrot.slane %v5151, 2
        %v5153 = vadd.f32 %v5151, %v5152
        %v5154 = vrot.slane %v5153, 1
        %v5155 = vadd.f32 %v5153, %v5154
        %v5156 = vsel %vm3041, %v3035, 0.0
        %v5157 = vrot.slane %v5156, 4
        %v5158 = vadd.f32 %v5156, %v5157
        %v5159 = vrot.slane %v5158, 2
        %v5160 = vadd.f32 %v5158, %v5159
        %v5161 = vrot.slane %v5160, 1
        %v5162 = vadd.f32 %v5160, %v5161
        %v5163 = vsel %vm3041, %v3036, 0.0
        %v5164 = vrot.slane %v5163, 4
        %v5165 = vadd.f32 %v5163, %v5164
        %v5166 = vrot.slane %v5165, 2
        %v5167 = vadd.f32 %v5165, %v5166
        %v5168 = vrot.slane %v5167, 1
        %v5169 = vadd.f32 %v5167, %v5168
        %v5170 = vsel %vm3041, %v3037, 0.0
        %v5171 = vrot.slane %v5170, 4
        %v5172 = vadd.f32 %v5170, %v5171
        %v5173 = vrot.slane %v5172, 2
        %v5174 = vadd.f32 %v5172, %v5173
        %v5175 = vrot.slane %v5174, 1
        %v5176 = vadd.f32 %v5174, %v5175
        %v5177 = vsel %vm3041, %v3038, 0.0
        %v5178 = vrot.slane %v5177, 4
        %v5179 = vadd.f32 %v5177, %v5178
        %v5180 = vrot.slane %v5179, 2
        %v5181 = vadd.f32 %v5179, %v5180
        %v5182 = vrot.slane %v5181, 1
        %v5183 = vadd.f32 %v5181, %v5182
        %v5184 = vsel %vm3041, %v3039, 0.0
        %v5185 = vrot.slane %v5184, 4
        %v5186 = vadd.f32 %v5184, %v5185
        %v5187 = vrot.slane %v5186, 2
        %v5188 = vadd.f32 %v5186, %v5187
        %v5189 = vrot.slane %v5188, 1
        %v5190 = vadd.f32 %v5188, %v5189
        %v5191 = vsel %vm3041, %v3040, 0.0
        %v5192 = vrot.slane %v5191, 4
        %v5193 = vadd.f32 %v5191, %v5192
        %v5194 = vrot.slane %v5193, 2
        %v5195 = vadd.f32 %v5193, %v5194
        %v5196 = vrot.slane %v5195, 1
        %v5197 = vadd.f32 %v5195, %v5196
        %5198 = vrot.lane.b32.xlu0 %v352, 96
        %v5199 = vpop.permute.xlu0 %5198
        %5200 = vrot.lane.b32.xlu0 %v357, 96
        %v5201 = vpop.permute.xlu0 %5200
        %5202 = vrot.lane.b32.xlu0 %v362, 96
        %v5203 = vpop.permute.xlu0 %5202
        %5204 = vrot.lane.b32.xlu0 %v367, 96
        %v5205 = vpop.permute.xlu0 %5204
        %5206 = vrot.lane.b32.xlu0 %v372, 96
        %v5207 = vpop.permute.xlu0 %5206
        %5208 = vrot.lane.b32.xlu0 %v377, 96
        %v5209 = vpop.permute.xlu0 %5208
        %5210 = vrot.lane.b32.xlu0 %v382, 96
        %v5211 = vpop.permute.xlu0 %5210
        %5212 = vrot.lane.b32.xlu0 %v387, 96
        %v5213 = vpop.permute.xlu0 %5212
        %5214 = vrot.lane.b32.xlu0 %v392, 96
        %v5215 = vpop.permute.xlu0 %5214
        %5216 = vrot.lane.b32.xlu0 %v397, 96
        %v5217 = vpop.permute.xlu0 %5216
        %vm5295 = vcmask 1041409
        %v5296 = vsel %vm5295, %v3055, %v3048
        %vm5297 = vcmask 1042434
        %v5298 = vsel %vm5297, %v3062, %v5296
        %vm5299 = vcmask 1043459
        %v5300 = vsel %vm5299, %v3069, %v5298
        %vm5301 = vcmask 1044484
        %v5302 = vsel %vm5301, %v3076, %v5300
        %vm5303 = vcmask 1045509
        %v5304 = vsel %vm5303, %v3083, %v5302
        %vm5305 = vcmask 1046534
        %v5306 = vsel %vm5305, %v3090, %v5304
        %vm5307 = vcmask 1047559
        %v5308 = vsel %vm5307, %v3097, %v5306
        %v5309 = vsel %vm5295, %v3111, %v3104
        %v5310 = vsel %vm5297, %v3118, %v5309
        %v5311 = vsel %vm5299, %v3125, %v5310
        %v5312 = vsel %vm5301, %v3132, %v5311
        %v5313 = vsel %vm5303, %v3139, %v5312
        %v5314 = vsel %vm5305, %v3146, %v5313
        %v5315 = vsel %vm5307, %v3153, %v5314
        %v5316 = vsel %vm5295, %v3167, %v3160
        %v5317 = vsel %vm5297, %v3174, %v5316
        %v5318 = vsel %vm5299, %v3181, %v5317
        %v5319 = vsel %vm5301, %v3188, %v5318
        %v5320 = vsel %vm5303, %v3195, %v5319
        %v5321 = vsel %vm5305, %v3202, %v5320
        %v5322 = vsel %vm5307, %v3209, %v5321
        %v5323 = vsel %vm5295, %v3223, %v3216
        %v5324 = vsel %vm5297, %v3230, %v5323
        %v5325 = vsel %vm5299, %v3237, %v5324
        %v5326 = vsel %vm5301, %v3244, %v5325
        %v5327 = vsel %vm5303, %v3251, %v5326
        %v5328 = vsel %vm5305, %v3258, %v5327
        %v5329 = vsel %vm5307, %v3265, %v5328
        %v5330 = vsel %vm5295, %v3279, %v3272
        %v5331 = vsel %vm5297, %v3286, %v5330
        %v5332 = vsel %vm5299, %v3293, %v5331
        %v5333 = vsel %vm5301, %v3300, %v5332
        %v5334 = vsel %vm5303, %v3307, %v5333
        %v5335 = vsel %vm5305, %v3314, %v5334
        %v5336 = vsel %vm5307, %v3321, %v5335
        %v5337 = vsel %vm5295, %v3335, %v3328
        %v5338 = vsel %vm5297, %v3342, %v5337
        %v5339 = vsel %vm5299, %v3349, %v5338
        %v5340 = vsel %vm5301, %v3356, %v5339
        %v5341 = vsel %vm5303, %v3363, %v5340
        %v5342 = vsel %vm5305, %v3370, %v5341
        %v5343 = vsel %vm5307, %v3377, %v5342
        %v5344 = vsel %vm5295, %v3391, %v3384
        %v5345 = vsel %vm5297, %v3398, %v5344
        %v5346 = vsel %vm5299, %v3405, %v5345
        %v5347 = vsel %vm5301, %v3412, %v5346
        %v5348 = vsel %vm5303, %v3419, %v5347
        %v5349 = vsel %vm5305, %v3426, %v5348
        %v5350 = vsel %vm5307, %v3433, %v5349
        %v5351 = vsel %vm5295, %v3447, %v3440
        %v5352 = vsel %vm5297, %v3454, %v5351
        %v5353 = vsel %vm5299, %v3461, %v5352
        %v5354 = vsel %vm5301, %v3468, %v5353
        %v5355 = vsel %vm5303, %v3475, %v5354
        %v5356 = vsel %vm5305, %v3482, %v5355
        %v5357 = vsel %vm5307, %v3489, %v5356
        %v5358 = vsel %vm5295, %v3503, %v3496
        %v5359 = vsel %vm5297, %v3510, %v5358
        %v5360 = vsel %vm5299, %v3517, %v5359
        %v5361 = vsel %vm5301, %v3524, %v5360
        %v5362 = vsel %vm5303, %v3531, %v5361
        %v5363 = vsel %vm5305, %v3538, %v5362
        %v5364 = vsel %vm5307, %v3545, %v5363
        %v5365 = vsel %vm5295, %v3559, %v3552
        %v5366 = vsel %vm5297, %v3566, %v5365
        %v5367 = vsel %vm5299, %v3573, %v5366
        %v5368 = vsel %vm5301, %v3580, %v5367
        %vm5379 = vcmask 64512
        %v5380 = vsel %vm5379, %v352, 0
        %v5382 = vsel %vm5379, %v357, 0
        %v5384 = vsel %vm5379, %v362, 0
        %v5386 = vsel %vm5379, %v367, 0
        %v5388 = vsel %vm5379, %v372, 0
        %v5390 = vsel %vm5379, %v377, 0
        %v5392 = vsel %vm5379, %v382, 0
        %v5394 = vsel %vm5379, %v387, 0
        %v5396 = vsel %vm5379, %v392, 0
        %v5398 = vsel %vm5379, %v397, 0
        %v5400 = vsel %vm5379, %v5199, 0
        %v5402 = vsel %vm5379, %v5201, 0
        %v5404 = vsel %vm5379, %v5203, 0
        %v5406 = vsel %vm5379, %v5205, 0
        %v5408 = vsel %vm5379, %v5207, 0
        %v5410 = vsel %vm5379, %v5209, 0
        %v5412 = vsel %vm5379, %v5211, 0
        %v5414 = vsel %vm5379, %v5213, 0
        %v5416 = vsel %vm5379, %v5215, 0
        %v5418 = vsel %vm5379, %v5217, 0
        %5420 = vmatprep.subr.mxu0 0.0
        %5421 = vmatpush1.xpose.msra.mxu0 %v5400
        %5422 = vmatprep.subr.mxu0 0.0
        %5423 = vmatpush1.xpose.msra.mxu0 %v5402
        %5424 = vmatprep.subr.mxu0 0.0
        %5425 = vmatpush1.xpose.msra.mxu0 %v5404
        %5426 = vmatprep.subr.mxu0 0.0
        %5427 = vmatpush1.xpose.msra.mxu0 %v5406
        %5428 = vmatprep.subr.mxu0 0.0
        %5429 = vmatpush1.xpose.msra.mxu0 %v5408
        %5430 = vmatprep.subr.mxu0 0.0
        %5431 = vmatpush1.xpose.msra.mxu0 %v5410
        %5432 = vmatprep.subr.mxu0 0.0
        %5433 = vmatpush1.xpose.msra.mxu0 %v5412
        %5434 = vmatprep.subr.mxu0 0.0
        %5435 = vmatpush1.xpose.msra.mxu0 %v5414
        %5436 = vmatprep.subr.mxu0 0.0
        %5437 = vmatpush1.xpose.msra.mxu0 %v5416
        %5438 = vmatprep.subr.mxu0 0.0
        %5439 = vmatpush1.xpose.msra.mxu0 %v5418
        %5440 = vmatprep.subr.mxu0 0.0
        %5441 = vmatpush1.xpose.msra.mxu0 0.0
        %5442 = vmatprep.subr.mxu0 0.0
        %5443 = vmatpush1.xpose.msra.mxu0 0.0
        %5444 = vmatprep.subr.mxu0 0.0
        %5445 = vmatpush1.xpose.msra.mxu0 0.0
        %5446 = vmatprep.subr.mxu0 0.0
        %5447 = vmatpush1.xpose.msra.mxu0 0.0
        %5448 = vmatprep.subr.mxu0 0.0
        %5449 = vmatpush1.xpose.msra.mxu0 0.0
        %5450 = vmatprep.subr.mxu0 0.0
        %5451 = vmatpush1.xpose.msra.mxu0 0.0
        %5452 = vmatprep.subr.mxu0 0.0
        %5453 = vmatpush1.xpose.msra.mxu0 0.0
        %5454 = vmatprep.subr.mxu0 0.0
        %5455 = vmatpush1.xpose.msra.mxu0 0.0
        %5456 = vmatprep.subr.mxu0 0.0
        %5457 = vmatpush1.xpose.msra.mxu0 0.0
        %5458 = vmatprep.subr.mxu0 0.0
        %5459 = vmatpush1.xpose.msra.mxu0 0.0
        %5460 = vmatprep.subr.mxu0 0.0
        %5461 = vmatpush1.xpose.msra.mxu0 0.0
        %5462 = vmatprep.subr.mxu0 0.0
        %5463 = vmatpush1.xpose.msra.mxu0 0.0
        %5464 = vmatprep.subr.mxu0 0.0
        %5465 = vmatpush1.xpose.msra.mxu0 0.0
        %5466 = vmatprep.subr.mxu0 0.0
        %5467 = vmatpush1.xpose.msra.mxu0 0.0
        %5468 = vmatprep.subr.mxu0 0.0
        %5469 = vmatpush1.xpose.msra.mxu0 0.0
        %5470 = vmatprep.subr.mxu0 0.0
        %5471 = vmatpush1.xpose.msra.mxu0 0.0
        %5472 = vmatprep.subr.mxu0 0.0
        %5473 = vmatpush1.xpose.msra.mxu0 0.0
        %5474 = vmatprep.subr.mxu0 0.0
        %5475 = vmatpush1.xpose.msra.mxu0 0.0
        %5476 = vmatprep.subr.mxu0 0.0
        %5477 = vmatpush1.xpose.msra.mxu0 0.0
        %5478 = vmatprep.subr.mxu0 0.0
        %5479 = vmatpush1.xpose.msra.mxu0 0.0
        %5480 = vmatprep.subr.mxu0 0.0
        %5481 = vmatpush1.xpose.msra.mxu0 0.0
        %5482 = vmatprep.subr.mxu0 0.0
        %5483 = vmatpush1.xpose.msra.mxu0 0.0
        %5484 = vmatprep.mubr.f32.mxu0 0.0
        %5485 = vmatmul.mubr.f32.gmra.mrb[0].mxu0 %v5380
        %v5486 = vpop.f32.mrb[0].mxu0
        %v5487 = vadd.f32 %v5308, %v5486
        %v5488 = vpop.f32.mrb[0].mxu0
        %5489 = vmatprep.mubr.f32.mxu0 0.0
        %5490 = vmatmul.mubr.f32.gmra.mrb[0].mxu0 %v5382
        %v5491 = vpop.f32.mrb[0].mxu0
        %v5492 = vadd.f32 %v5315, %v5491
        %v5493 = vpop.f32.mrb[0].mxu0
        %5494 = vmatprep.mubr.f32.mxu0 0.0
        %5495 = vmatmul.mubr.f32.gmra.mrb[0].mxu0 %v5384
        %v5496 = vpop.f32.mrb[0].mxu0
        %v5497 = vadd.f32 %v5322, %v5496
        %v5498 = vpop.f32.mrb[0].mxu0
        %5499 = vmatprep.mubr.f32.mxu0 0.0
        %5500 = vmatmul.mubr.f32.gmra.mrb[0].mxu0 %v5386
        %v5501 = vpop.f32.mrb[0].mxu0
        %v5502 = vadd.f32 %v5329, %v5501
        %v5503 = vpop.f32.mrb[0].mxu0
        %5504 = vmatprep.mubr.f32.mxu0 0.0
        %5505 = vmatmul.mubr.f32.gmra.mrb[0].mxu0 %v5388
        %v5506 = vpop.f32.mrb[0].mxu0
        %v5507 = vadd.f32 %v5336, %v5506
        %v5508 = vpop.f32.mrb[0].mxu0
        %5509 = vmatprep.mubr.f32.mxu0 0.0
        %5510 = vmatmul.mubr.f32.gmra.mrb[0].mxu0 %v5390
        %v5511 = vpop.f32.mrb[0].mxu0
        %v5512 = vadd.f32 %v5343, %v5511
        %v5513 = vpop.f32.mrb[0].mxu0
        %5514 = vmatprep.mubr.f32.mxu0 0.0
        %5515 = vmatmul.mubr.f32.gmra.mrb[0].mxu0 %v5392
        %v5516 = vpop.f32.mrb[0].mxu0
        %v5517 = vadd.f32 %v5350, %v5516
        %v5518 = vpop.f32.mrb[0].mxu0
        %5519 = vmatprep.mubr.f32.mxu0 0.0
        %5520 = vmatmul.mubr.f32.gmra.mrb[0].mxu0 %v5394
        %v5521 = vpop.f32.mrb[0].mxu0
        %v5522 = vadd.f32 %v5357, %v5521
        %v5523 = vpop.f32.mrb[0].mxu0
        %5524 = vmatprep.mubr.f32.mxu0 0.0
        %5525 = vmatmul.mubr.f32.gmra.mrb[0].mxu0 %v5396
        %v5526 = vpop.f32.mrb[0].mxu0
        %v5527 = vadd.f32 %v5364, %v5526
        %v5528 = vpop.f32.mrb[0].mxu0
        %5529 = vmatprep.mubr.f32.mxu0 0.0
        %5530 = vmatmul.mubr.f32.gmra.mrb[0].mxu0 %v5398
        %v5531 = vpop.f32.mrb[0].mxu0
        %v5532 = vadd.f32 %v5368, %v5531
        %v5533 = vpop.f32.mrb[0].mxu0
        %5534 = vdwg.mxu0
        %5535 = vrot.lane.b32.xlu0 %v411, 96
        %v5536 = vpop.permute.xlu0 %5535
        %5537 = vrot.lane.b32.xlu0 %v413, 96
        %v5538 = vpop.permute.xlu0 %5537
        %5539 = vrot.lane.b32.xlu0 %v415, 96
        %v5540 = vpop.permute.xlu0 %5539
        %5541 = vrot.lane.b32.xlu0 %v417, 96
        %v5542 = vpop.permute.xlu0 %5541
        %5543 = vrot.lane.b32.xlu0 %v419, 96
        %v5544 = vpop.permute.xlu0 %5543
        %5545 = vrot.lane.b32.xlu0 %v421, 96
        %v5546 = vpop.permute.xlu0 %5545
        %5547 = vrot.lane.b32.xlu0 %v423, 96
        %v5548 = vpop.permute.xlu0 %5547
        %5549 = vrot.lane.b32.xlu0 %v425, 96
        %v5550 = vpop.permute.xlu0 %5549
        %5551 = vrot.lane.b32.xlu0 %v427, 96
        %v5552 = vpop.permute.xlu0 %5551
        %5553 = vrot.lane.b32.xlu0 %v429, 96
        %v5554 = vpop.permute.xlu0 %5553
        %v5632 = vsel %vm5295, %v3594, %v3587
        %v5633 = vsel %vm5297, %v3601, %v5632
        %v5634 = vsel %vm5299, %v3608, %v5633
        %v5635 = vsel %vm5301, %v3615, %v5634
        %v5636 = vsel %vm5303, %v3622, %v5635
        %v5637 = vsel %vm5305, %v3629, %v5636
        %v5638 = vsel %vm5307, %v3636, %v5637
        %v5639 = vsel %vm5295, %v3650, %v3643
        %v5640 = vsel %vm5297, %v3657, %v5639
        %v5641 = vsel %vm5299, %v3664, %v5640
        %v5642 = vsel %vm5301, %v3671, %v5641
        %v5643 = vsel %vm5303, %v3678, %v5642
        %v5644 = vsel %vm5305, %v3685, %v5643
        %v5645 = vsel %vm5307, %v3692, %v5644
        %v5646 = vsel %vm5295, %v3706, %v3699
        %v5647 = vsel %vm5297, %v3713, %v5646
        %v5648 = vsel %vm5299, %v3720, %v5647
        %v5649 = vsel %vm5301, %v3727, %v5648
        %v5650 = vsel %vm5303, %v3734, %v5649
        %v5651 = vsel %vm5305, %v3741, %v5650
        %v5652 = vsel %vm5307, %v3748, %v5651
        %v5653 = vsel %vm5295, %v3762, %v3755
        %v5654 = vsel %vm5297, %v3769, %v5653
        %v5655 = vsel %vm5299, %v3776, %v5654
        %v5656 = vsel %vm5301, %v3783, %v5655
        %v5657 = vsel %vm5303, %v3790, %v5656
        %v5658 = vsel %vm5305, %v3797, %v5657
        %v5659 = vsel %vm5307, %v3804, %v5658
        %v5660 = vsel %vm5295, %v3818, %v3811
        %v5661 = vsel %vm5297, %v3825, %v5660
        %v5662 = vsel %vm5299, %v3832, %v5661
        %v5663 = vsel %vm5301, %v3839, %v5662
        %v5664 = vsel %vm5303, %v3846, %v5663
        %v5665 = vsel %vm5305, %v3853, %v5664
        %v5666 = vsel %vm5307, %v3860, %v5665
        %v5667 = vsel %vm5295, %v3874, %v3867
        %v5668 = vsel %vm5297, %v3881, %v5667
        %v5669 = vsel %vm5299, %v3888, %v5668
        %v5670 = vsel %vm5301, %v3895, %v5669
        %v5671 = vsel %vm5303, %v3902, %v5670
        %v5672 = vsel %vm5305, %v3909, %v5671
        %v5673 = vsel %vm5307, %v3916, %v5672
        %v5674 = vsel %vm5295, %v3930, %v3923
        %v5675 = vsel %vm5297, %v3937, %v5674
        %v5676 = vsel %vm5299, %v3944, %v5675
        %v5677 = vsel %vm5301, %v3951, %v5676
        %v5678 = vsel %vm5303, %v3958, %v5677
        %v5679 = vsel %vm5305, %v3965, %v5678
        %v5680 = vsel %vm5307, %v3972, %v5679
        %v5681 = vsel %vm5295, %v3986, %v3979
        %v5682 = vsel %vm5297, %v3993, %v5681
        %v5683 = vsel %vm5299, %v4000, %v5682
        %v5684 = vsel %vm5301, %v4007, %v5683
        %v5685 = vsel %vm5303, %v4014, %v5684
        %v5686 = vsel %vm5305, %v4021, %v5685
        %v5687 = vsel %vm5307, %v4028, %v5686
        %v5688 = vsel %vm5295, %v4042, %v4035
        %v5689 = vsel %vm5297, %v4049, %v5688
        %v5690 = vsel %vm5299, %v4056, %v5689
        %v5691 = vsel %vm5301, %v4063, %v5690
        %v5692 = vsel %vm5303, %v4070, %v5691
        %v5693 = vsel %vm5305, %v4077, %v5692
        %v5694 = vsel %vm5307, %v4084, %v5693
        %v5695 = vsel %vm5295, %v4098, %v4091
        %v5696 = vsel %vm5297, %v4105, %v5695
        %v5697 = vsel %vm5299, %v4112, %v5696
        %v5698 = vsel %vm5301, %v4119, %v5697
        %v5709 = vsel %vm5379, %v411, 0
        %v5711 = vsel %vm5379, %v413, 0
        %v5713 = vsel %vm5379, %v415, 0
        %v5715 = vsel %vm5379, %v417, 0
        %v5717 = vsel %vm5379, %v419, 0
        %v5719 = vsel %vm5379, %v421, 0
        %v5721 = vsel %vm5379, %v423, 0
        %v5723 = vsel %vm5379, %v425, 0
        %v5725 = vsel %vm5379, %v427, 0
        %v5727 = vsel %vm5379, %v429, 0
        %v5729 = vsel %vm5379, %v5536, 0
        %v5731 = vsel %vm5379, %v5538, 0
        %v5733 = vsel %vm5379, %v5540, 0
        %v5735 = vsel %vm5379, %v5542, 0
        %v5737 = vsel %vm5379, %v5544, 0
        %v5739 = vsel %vm5379, %v5546, 0
        %v5741 = vsel %vm5379, %v5548, 0
        %v5743 = vsel %vm5379, %v5550, 0
        %v5745 = vsel %vm5379, %v5552, 0
        %v5747 = vsel %vm5379, %v5554, 0
        %5749 = vmatprep.subr.mxu0 0.0
        %5750 = vmatpush1.xpose.msra.mxu0 %v5729
        %5751 = vmatprep.subr.mxu0 0.0
        %5752 = vmatpush1.xpose.msra.mxu0 %v5731
        %5753 = vmatprep.subr.mxu0 0.0
        %5754 = vmatpush1.xpose.msra.mxu0 %v5733
        %5755 = vmatprep.subr.mxu0 0.0
        %5756 = vmatpush1.xpose.msra.mxu0 %v5735
        %5757 = vmatprep.subr.mxu0 0.0
        %5758 = vmatpush1.xpose.msra.mxu0 %v5737
        %5759 = vmatprep.subr.mxu0 0.0
        %5760 = vmatpush1.xpose.msra.mxu0 %v5739
        %5761 = vmatprep.subr.mxu0 0.0
        %5762 = vmatpush1.xpose.msra.mxu0 %v5741
        %5763 = vmatprep.subr.mxu0 0.0
        %5764 = vmatpush1.xpose.msra.mxu0 %v5743
        %5765 = vmatprep.subr.mxu0 0.0
        %5766 = vmatpush1.xpose.msra.mxu0 %v5745
        %5767 = vmatprep.subr.mxu0 0.0
        %5768 = vmatpush1.xpose.msra.mxu0 %v5747
        %5769 = vmatprep.subr.mxu0 0.0
        %5770 = vmatpush1.xpose.msra.mxu0 0.0
        %5771 = vmatprep.subr.mxu0 0.0
        %5772 = vmatpush1.xpose.msra.mxu0 0.0
        %5773 = vmatprep.subr.mxu0 0.0
        %5774 = vmatpush1.xpose.msra.mxu0 0.0
        %5775 = vmatprep.subr.mxu0 0.0
        %5776 = vmatpush1.xpose.msra.mxu0 0.0
        %5777 = vmatprep.subr.mxu0 0.0
        %5778 = vmatpush1.xpose.msra.mxu0 0.0
        %5779 = vmatprep.subr.mxu0 0.0
        %5780 = vmatpush1.xpose.msra.mxu0 0.0
        %5781 = vmatprep.subr.mxu0 0.0
        %5782 = vmatpush1.xpose.msra.mxu0 0.0
        %5783 = vmatprep.subr.mxu0 0.0
        %5784 = vmatpush1.xpose.msra.mxu0 0.0
        %5785 = vmatprep.subr.mxu0 0.0
        %5786 = vmatpush1.xpose.msra.mxu0 0.0
        %5787 = vmatprep.subr.mxu0 0.0
        %5788 = vmatpush1.xpose.msra.mxu0 0.0
        %5789 = vmatprep.subr.mxu0 0.0
        %5790 = vmatpush1.xpose.msra.mxu0 0.0
        %5791 = vmatprep.subr.mxu0 0.0
        %5792 = vmatpush1.xpose.msra.mxu0 0.0
        %5793 = vmatprep.subr.mxu0 0.0
        %5794 = vmatpush1.xpose.msra.mxu0 0.0
        %5795 = vmatprep.subr.mxu0 0.0
        %5796 = vmatpush1.xpose.msra.mxu0 0.0
        %5797 = vmatprep.subr.mxu0 0.0
        %5798 = vmatpush1.xpose.msra.mxu0 0.0
        %5799 = vmatprep.subr.mxu0 0.0
        %5800 = vmatpush1.xpose.msra.mxu0 0.0
        %5801 = vmatprep.subr.mxu0 0.0
        %5802 = vmatpush1.xpose.msra.mxu0 0.0
        %5803 = vmatprep.subr.mxu0 0.0
        %5804 = vmatpush1.xpose.msra.mxu0 0.0
        %5805 = vmatprep.subr.mxu0 0.0
        %5806 = vmatpush1.xpose.msra.mxu0 0.0
        %5807 = vmatprep.subr.mxu0 0.0
        %5808 = vmatpush1.xpose.msra.mxu0 0.0
        %5809 = vmatprep.subr.mxu0 0.0
        %5810 = vmatpush1.xpose.msra.mxu0 0.0
        %5811 = vmatprep.subr.mxu0 0.0
        %5812 = vmatpush1.xpose.msra.mxu0 0.0
        %5813 = vmatprep.mubr.f32.mxu0 0.0
        %5814 = vmatmul.mubr.f32.gmra.mrb[0].mxu0 %v5709
        %v5815 = vpop.f32.mrb[0].mxu0
        %v5816 = vadd.f32 %v5638, %v5815
        %v5817 = vpop.f32.mrb[0].mxu0
        %5818 = vmatprep.mubr.f32.mxu0 0.0
        %5819 = vmatmul.mubr.f32.gmra.mrb[0].mxu0 %v5711
        %v5820 = vpop.f32.mrb[0].mxu0
        %v5821 = vadd.f32 %v5645, %v5820
        %v5822 = vpop.f32.mrb[0].mxu0
        %5823 = vmatprep.mubr.f32.mxu0 0.0
        %5824 = vmatmul.mubr.f32.gmra.mrb[0].mxu0 %v5713
        %v5825 = vpop.f32.mrb[0].mxu0
        %v5826 = vadd.f32 %v5652, %v5825
        %v5827 = vpop.f32.mrb[0].mxu0
        %5828 = vmatprep.mubr.f32.mxu0 0.0
        %5829 = vmatmul.mubr.f32.gmra.mrb[0].mxu0 %v5715
        %v5830 = vpop.f32.mrb[0].mxu0
        %v5831 = vadd.f32 %v5659, %v5830
        %v5832 = vpop.f32.mrb[0].mxu0
        %5833 = vmatprep.mubr.f32.mxu0 0.0
        %5834 = vmatmul.mubr.f32.gmra.mrb[0].mxu0 %v5717
        %v5835 = vpop.f32.mrb[0].mxu0
        %v5836 = vadd.f32 %v5666, %v5835
        %v5837 = vpop.f32.mrb[0].mxu0
        %5838 = vmatprep.mubr.f32.mxu0 0.0
        %5839 = vmatmul.mubr.f32.gmra.mrb[0].mxu0 %v5719
        %v5840 = vpop.f32.mrb[0].mxu0
        %v5841 = vadd.f32 %v5673, %v5840
        %v5842 = vpop.f32.mrb[0].mxu0
        %5843 = vmatprep.mubr.f32.mxu0 0.0
        %5844 = vmatmul.mubr.f32.gmra.mrb[0].mxu0 %v5721
        %v5845 = vpop.f32.mrb[0].mxu0
        %v5846 = vadd.f32 %v5680, %v5845
        %v5847 = vpop.f32.mrb[0].mxu0
        %5848 = vmatprep.mubr.f32.mxu0 0.0
        %5849 = vmatmul.mubr.f32.gmra.mrb[0].mxu0 %v5723
        %v5850 = vpop.f32.mrb[0].mxu0
        %v5851 = vadd.f32 %v5687, %v5850
        %v5852 = vpop.f32.mrb[0].mxu0
        %5853 = vmatprep.mubr.f32.mxu0 0.0
        %5854 = vmatmul.mubr.f32.gmra.mrb[0].mxu0 %v5725
        %v5855 = vpop.f32.mrb[0].mxu0
        %v5856 = vadd.f32 %v5694, %v5855
        %v5857 = vpop.f32.mrb[0].mxu0
        %5858 = vmatprep.mubr.f32.mxu0 0.0
        %5859 = vmatmul.mubr.f32.gmra.mrb[0].mxu0 %v5727
        %v5860 = vpop.f32.mrb[0].mxu0
        %v5861 = vadd.f32 %v5698, %v5860
        %v5862 = vpop.f32.mrb[0].mxu0
        %5863 = vdwg.mxu0
        %5864 = vrot.lane.b32.xlu0 %v441, 96
        %v5865 = vpop.permute.xlu0 %5864
        %5866 = vrot.lane.b32.xlu0 %v443, 96
        %v5867 = vpop.permute.xlu0 %5866
        %5868 = vrot.lane.b32.xlu0 %v445, 96
        %v5869 = vpop.permute.xlu0 %5868
        %5870 = vrot.lane.b32.xlu0 %v447, 96
        %v5871 = vpop.permute.xlu0 %5870
        %5872 = vrot.lane.b32.xlu0 %v449, 96
        %v5873 = vpop.permute.xlu0 %5872
        %5874 = vrot.lane.b32.xlu0 %v451, 96
        %v5875 = vpop.permute.xlu0 %5874
        %5876 = vrot.lane.b32.xlu0 %v453, 96
        %v5877 = vpop.permute.xlu0 %5876
        %5878 = vrot.lane.b32.xlu0 %v455, 96
        %v5879 = vpop.permute.xlu0 %5878
        %5880 = vrot.lane.b32.xlu0 %v457, 96
        %v5881 = vpop.permute.xlu0 %5880
        %5882 = vrot.lane.b32.xlu0 %v459, 96
        %v5883 = vpop.permute.xlu0 %5882
        %v5961 = vsel %vm5295, %v4133, %v4126
        %v5962 = vsel %vm5297, %v4140, %v5961
        %v5963 = vsel %vm5299, %v4147, %v5962
        %v5964 = vsel %vm5301, %v4154, %v5963
        %v5965 = vsel %vm5303, %v4161, %v5964
        %v5966 = vsel %vm5305, %v4168, %v5965
        %v5967 = vsel %vm5307, %v4175, %v5966
        %v5968 = vsel %vm5295, %v4189, %v4182
        %v5969 = vsel %vm5297, %v4196, %v5968
        %v5970 = vsel %vm5299, %v4203, %v5969
        %v5971 = vsel %vm5301, %v4210, %v5970
        %v5972 = vsel %vm5303, %v4217, %v5971
        %v5973 = vsel %vm5305, %v4224, %v5972
        %v5974 = vsel %vm5307, %v4231, %v5973
        %v5975 = vsel %vm5295, %v4245, %v4238
        %v5976 = vsel %vm5297, %v4252, %v5975
        %v5977 = vsel %vm5299, %v4259, %v5976
        %v5978 = vsel %vm5301, %v4266, %v5977
        %v5979 = vsel %vm5303, %v4273, %v5978
        %v5980 = vsel %vm5305, %v4280, %v5979
        %v5981 = vsel %vm5307, %v4287, %v5980
        %v5982 = vsel %vm5295, %v4301, %v4294
        %v5983 = vsel %vm5297, %v4308, %v5982
        %v5984 = vsel %vm5299, %v4315, %v5983
        %v5985 = vsel %vm5301, %v4322, %v5984
        %v5986 = vsel %vm5303, %v4329, %v5985
        %v5987 = vsel %vm5305, %v4336, %v5986
        %v5988 = vsel %vm5307, %v4343, %v5987
        %v5989 = vsel %vm5295, %v4357, %v4350
        %v5990 = vsel %vm5297, %v4364, %v5989
        %v5991 = vsel %vm5299, %v4371, %v5990
        %v5992 = vsel %vm5301, %v4378, %v5991
        %v5993 = vsel %vm5303, %v4385, %v5992
        %v5994 = vsel %vm5305, %v4392, %v5993
        %v5995 = vsel %vm5307, %v4399, %v5994
        %v5996 = vsel %vm5295, %v4413, %v4406
        %v5997 = vsel %vm5297, %v4420, %v5996
        %v5998 = vsel %vm5299, %v4427, %v5997
        %v5999 = vsel %vm5301, %v4434, %v5998
        %v6000 = vsel %vm5303, %v4441, %v5999
        %v6001 = vsel %vm5305, %v4448, %v6000
        %v6002 = vsel %vm5307, %v4455, %v6001
        %v6003 = vsel %vm5295, %v4469, %v4462
        %v6004 = vsel %vm5297, %v4476, %v6003
        %v6005 = vsel %vm5299, %v4483, %v6004
        %v6006 = vsel %vm5301, %v4490, %v6005
        %v6007 = vsel %vm5303, %v4497, %v6006
        %v6008 = vsel %vm5305, %v4504, %v6007
        %v6009 = vsel %vm5307, %v4511, %v6008
        %v6010 = vsel %vm5295, %v4525, %v4518
        %v6011 = vsel %vm5297, %v4532, %v6010
        %v6012 = vsel %vm5299, %v4539, %v6011
        %v6013 = vsel %vm5301, %v4546, %v6012
        %v6014 = vsel %vm5303, %v4553, %v6013
        %v6015 = vsel %vm5305, %v4560, %v6014
        %v6016 = vsel %vm5307, %v4567, %v6015
        %v6017 = vsel %vm5295, %v4581, %v4574
        %v6018 = vsel %vm5297, %v4588, %v6017
        %v6019 = vsel %vm5299, %v4595, %v6018
        %v6020 = vsel %vm5301, %v4602, %v6019
        %v6021 = vsel %vm5303, %v4609, %v6020
        %v6022 = vsel %vm5305, %v4616, %v6021
        %v6023 = vsel %vm5307, %v4623, %v6022
        %v6024 = vsel %vm5295, %v4637, %v4630
        %v6025 = vsel %vm5297, %v4644, %v6024
        %v6026 = vsel %vm5299, %v4651, %v6025
        %v6027 = vsel %vm5301, %v4658, %v6026
        %v6038 = vsel %vm5379, %v441, 0
        %v6040 = vsel %vm5379, %v443, 0
        %v6042 = vsel %vm5379, %v445, 0
        %v6044 = vsel %vm5379, %v447, 0
        %v6046 = vsel %vm5379, %v449, 0
        %v6048 = vsel %vm5379, %v451, 0
        %v6050 = vsel %vm5379, %v453, 0
        %v6052 = vsel %vm5379, %v455, 0
        %v6054 = vsel %vm5379, %v457, 0
        %v6056 = vsel %vm5379, %v459, 0
        %v6058 = vsel %vm5379, %v5865, 0
        %v6060 = vsel %vm5379, %v5867, 0
        %v6062 = vsel %vm5379, %v5869, 0
        %v6064 = vsel %vm5379, %v5871, 0
        %v6066 = vsel %vm5379, %v5873, 0
        %v6068 = vsel %vm5379, %v5875, 0
        %v6070 = vsel %vm5379, %v5877, 0
        %v6072 = vsel %vm5379, %v5879, 0
        %v6074 = vsel %vm5379, %v5881, 0
        %v6076 = vsel %vm5379, %v5883, 0
        %6078 = vmatprep.subr.mxu0 0.0
        %6079 = vmatpush1.xpose.msra.mxu0 %v6058
        %6080 = vmatprep.subr.mxu0 0.0
        %6081 = vmatpush1.xpose.msra.mxu0 %v6060
        %6082 = vmatprep.subr.mxu0 0.0
        %6083 = vmatpush1.xpose.msra.mxu0 %v6062
        %6084 = vmatprep.subr.mxu0 0.0
        %6085 = vmatpush1.xpose.msra.mxu0 %v6064
        %6086 = vmatprep.subr.mxu0 0.0
        %6087 = vmatpush1.xpose.msra.mxu0 %v6066
        %6088 = vmatprep.subr.mxu0 0.0
        %6089 = vmatpush1.xpose.msra.mxu0 %v6068
        %6090 = vmatprep.subr.mxu0 0.0
        %6091 = vmatpush1.xpose.msra.mxu0 %v6070
        %6092 = vmatprep.subr.mxu0 0.0
        %6093 = vmatpush1.xpose.msra.mxu0 %v6072
        %6094 = vmatprep.subr.mxu0 0.0
        %6095 = vmatpush1.xpose.msra.mxu0 %v6074
        %6096 = vmatprep.subr.mxu0 0.0
        %6097 = vmatpush1.xpose.msra.mxu0 %v6076
        %6098 = vmatprep.subr.mxu0 0.0
        %6099 = vmatpush1.xpose.msra.mxu0 0.0
        %6100 = vmatprep.subr.mxu0 0.0
        %6101 = vmatpush1.xpose.msra.mxu0 0.0
        %6102 = vmatprep.subr.mxu0 0.0
        %6103 = vmatpush1.xpose.msra.mxu0 0.0
        %6104 = vmatprep.subr.mxu0 0.0
        %6105 = vmatpush1.xpose.msra.mxu0 0.0
        %6106 = vmatprep.subr.mxu0 0.0
        %6107 = vmatpush1.xpose.msra.mxu0 0.0
        %6108 = vmatprep.subr.mxu0 0.0
        %6109 = vmatpush1.xpose.msra.mxu0 0.0
        %6110 = vmatprep.subr.mxu0 0.0
        %6111 = vmatpush1.xpose.msra.mxu0 0.0
        %6112 = vmatprep.subr.mxu0 0.0
        %6113 = vmatpush1.xpose.msra.mxu0 0.0
        %6114 = vmatprep.subr.mxu0 0.0
        %6115 = vmatpush1.xpose.msra.mxu0 0.0
        %6116 = vmatprep.subr.mxu0 0.0
        %6117 = vmatpush1.xpose.msra.mxu0 0.0
        %6118 = vmatprep.subr.mxu0 0.0
        %6119 = vmatpush1.xpose.msra.mxu0 0.0
        %6120 = vmatprep.subr.mxu0 0.0
        %6121 = vmatpush1.xpose.msra.mxu0 0.0
        %6122 = vmatprep.subr.mxu0 0.0
        %6123 = vmatpush1.xpose.msra.mxu0 0.0
        %6124 = vmatprep.subr.mxu0 0.0
        %6125 = vmatpush1.xpose.msra.mxu0 0.0
        %6126 = vmatprep.subr.mxu0 0.0
        %6127 = vmatpush1.xpose.msra.mxu0 0.0
        %6128 = vmatprep.subr.mxu0 0.0
        %6129 = vmatpush1.xpose.msra.mxu0 0.0
        %6130 = vmatprep.subr.mxu0 0.0
        %6131 = vmatpush1.xpose.msra.mxu0 0.0
        %6132 = vmatprep.subr.mxu0 0.0
        %6133 = vmatpush1.xpose.msra.mxu0 0.0
        %6134 = vmatprep.subr.mxu0 0.0
        %6135 = vmatpush1.xpose.msra.mxu0 0.0
        %6136 = vmatprep.subr.mxu0 0.0
        %6137 = vmatpush1.xpose.msra.mxu0 0.0
        %6138 = vmatprep.subr.mxu0 0.0
        %6139 = vmatpush1.xpose.msra.mxu0 0.0
        %6140 = vmatprep.subr.mxu0 0.0
        %6141 = vmatpush1.xpose.msra.mxu0 0.0
        %6142 = vmatprep.mubr.f32.mxu0 0.0
        %6143 = vmatmul.mubr.f32.gmra.mrb[0].mxu0 %v6038
        %v6144 = vpop.f32.mrb[0].mxu0
        %v6145 = vadd.f32 %v5967, %v6144
        %v6146 = vpop.f32.mrb[0].mxu0
        %6147 = vmatprep.mubr.f32.mxu0 0.0
        %6148 = vmatmul.mubr.f32.gmra.mrb[0].mxu0 %v6040
        %v6149 = vpop.f32.mrb[0].mxu0
        %v6150 = vadd.f32 %v5974, %v6149
        %v6151 = vpop.f32.mrb[0].mxu0
        %6152 = vmatprep.mubr.f32.mxu0 0.0
        %6153 = vmatmul.mubr.f32.gmra.mrb[0].mxu0 %v6042
        %v6154 = vpop.f32.mrb[0].mxu0
        %v6155 = vadd.f32 %v5981, %v6154
        %v6156 = vpop.f32.mrb[0].mxu0
        %6157 = vmatprep.mubr.f32.mxu0 0.0
        %6158 = vmatmul.mubr.f32.gmra.mrb[0].mxu0 %v6044
        %v6159 = vpop.f32.mrb[0].mxu0
        %v6160 = vadd.f32 %v5988, %v6159
        %v6161 = vpop.f32.mrb[0].mxu0
        %6162 = vmatprep.mubr.f32.mxu0 0.0
        %6163 = vmatmul.mubr.f32.gmra.mrb[0].mxu0 %v6046
        %v6164 = vpop.f32.mrb[0].mxu0
        %v6165 = vadd.f32 %v5995, %v6164
        %v6166 = vpop.f32.mrb[0].mxu0
        %6167 = vmatprep.mubr.f32.mxu0 0.0
        %6168 = vmatmul.mubr.f32.gmra.mrb[0].mxu0 %v6048
        %v6169 = vpop.f32.mrb[0].mxu0
        %v6170 = vadd.f32 %v6002, %v6169
        %v6171 = vpop.f32.mrb[0].mxu0
        %6172 = vmatprep.mubr.f32.mxu0 0.0
        %6173 = vmatmul.mubr.f32.gmra.mrb[0].mxu0 %v6050
        %v6174 = vpop.f32.mrb[0].mxu0
        %v6175 = vadd.f32 %v6009, %v6174
        %v6176 = vpop.f32.mrb[0].mxu0
        %6177 = vmatprep.mubr.f32.mxu0 0.0
        %6178 = vmatmul.mubr.f32.gmra.mrb[0].mxu0 %v6052
        %v6179 = vpop.f32.mrb[0].mxu0
        %v6180 = vadd.f32 %v6016, %v6179
        %v6181 = vpop.f32.mrb[0].mxu0
        %6182 = vmatprep.mubr.f32.mxu0 0.0
        %6183 = vmatmul.mubr.f32.gmra.mrb[0].mxu0 %v6054
        %v6184 = vpop.f32.mrb[0].mxu0
        %v6185 = vadd.f32 %v6023, %v6184
        %v6186 = vpop.f32.mrb[0].mxu0
        %6187 = vmatprep.mubr.f32.mxu0 0.0
        %6188 = vmatmul.mubr.f32.gmra.mrb[0].mxu0 %v6056
        %v6189 = vpop.f32.mrb[0].mxu0
        %v6190 = vadd.f32 %v6027, %v6189
        %v6191 = vpop.f32.mrb[0].mxu0
        %6192 = vdwg.mxu0
        %6193 = vrot.lane.b32.xlu0 %v471, 96
        %v6194 = vpop.permute.xlu0 %6193
        %6195 = vrot.lane.b32.xlu0 %v473, 96
        %v6196 = vpop.permute.xlu0 %6195
        %6197 = vrot.lane.b32.xlu0 %v475, 96
        %v6198 = vpop.permute.xlu0 %6197
        %6199 = vrot.lane.b32.xlu0 %v477, 96
        %v6200 = vpop.permute.xlu0 %6199
        %6201 = vrot.lane.b32.xlu0 %v479, 96
        %v6202 = vpop.permute.xlu0 %6201
        %6203 = vrot.lane.b32.xlu0 %v481, 96
        %v6204 = vpop.permute.xlu0 %6203
        %6205 = vrot.lane.b32.xlu0 %v483, 96
        %v6206 = vpop.permute.xlu0 %6205
        %6207 = vrot.lane.b32.xlu0 %v485, 96
        %v6208 = vpop.permute.xlu0 %6207
        %6209 = vrot.lane.b32.xlu0 %v487, 96
        %v6210 = vpop.permute.xlu0 %6209
        %6211 = vrot.lane.b32.xlu0 %v489, 96
        %v6212 = vpop.permute.xlu0 %6211
        %v6290 = vsel %vm5295, %v4672, %v4665
        %v6291 = vsel %vm5297, %v4679, %v6290
        %v6292 = vsel %vm5299, %v4686, %v6291
        %v6293 = vsel %vm5301, %v4693, %v6292
        %v6294 = vsel %vm5303, %v4700, %v6293
        %v6295 = vsel %vm5305, %v4707, %v6294
        %v6296 = vsel %vm5307, %v4714, %v6295
        %v6297 = vsel %vm5295, %v4728, %v4721
        %v6298 = vsel %vm5297, %v4735, %v6297
        %v6299 = vsel %vm5299, %v4742, %v6298
        %v6300 = vsel %vm5301, %v4749, %v6299
        %v6301 = vsel %vm5303, %v4756, %v6300
        %v6302 = vsel %vm5305, %v4763, %v6301
        %v6303 = vsel %vm5307, %v4770, %v6302
        %v6304 = vsel %vm5295, %v4784, %v4777
        %v6305 = vsel %vm5297, %v4791, %v6304
        %v6306 = vsel %vm5299, %v4798, %v6305
        %v6307 = vsel %vm5301, %v4805, %v6306
        %v6308 = vsel %vm5303, %v4812, %v6307
        %v6309 = vsel %vm5305, %v4819, %v6308
        %v6310 = vsel %vm5307, %v4826, %v6309
        %v6311 = vsel %vm5295, %v4840, %v4833
        %v6312 = vsel %vm5297, %v4847, %v6311
        %v6313 = vsel %vm5299, %v4854, %v6312
        %v6314 = vsel %vm5301, %v4861, %v6313
        %v6315 = vsel %vm5303, %v4868, %v6314
        %v6316 = vsel %vm5305, %v4875, %v6315
        %v6317 = vsel %vm5307, %v4882, %v6316
        %v6318 = vsel %vm5295, %v4896, %v4889
        %v6319 = vsel %vm5297, %v4903, %v6318
        %v6320 = vsel %vm5299, %v4910, %v6319
        %v6321 = vsel %vm5301, %v4917, %v6320
        %v6322 = vsel %vm5303, %v4924, %v6321
        %v6323 = vsel %vm5305, %v4931, %v6322
        %v6324 = vsel %vm5307, %v4938, %v6323
        %v6325 = vsel %vm5295, %v4952, %v4945
        %v6326 = vsel %vm5297, %v4959, %v6325
        %v6327 = vsel %vm5299, %v4966, %v6326
        %v6328 = vsel %vm5301, %v4973, %v6327
        %v6329 = vsel %vm5303, %v4980, %v6328
        %v6330 = vsel %vm5305, %v4987, %v6329
        %v6331 = vsel %vm5307, %v4994, %v6330
        %v6332 = vsel %vm5295, %v5008, %v5001
        %v6333 = vsel %vm5297, %v5015, %v6332
        %v6334 = vsel %vm5299, %v5022, %v6333
        %v6335 = vsel %vm5301, %v5029, %v6334
        %v6336 = vsel %vm5303, %v5036, %v6335
        %v6337 = vsel %vm5305, %v5043, %v6336
        %v6338 = vsel %vm5307, %v5050, %v6337
        %v6339 = vsel %vm5295, %v5064, %v5057
        %v6340 = vsel %vm5297, %v5071, %v6339
        %v6341 = vsel %vm5299, %v5078, %v6340
        %v6342 = vsel %vm5301, %v5085, %v6341
        %v6343 = vsel %vm5303, %v5092, %v6342
        %v6344 = vsel %vm5305, %v5099, %v6343
        %v6345 = vsel %vm5307, %v5106, %v6344
        %v6346 = vsel %vm5295, %v5120, %v5113
        %v6347 = vsel %vm5297, %v5127, %v6346
        %v6348 = vsel %vm5299, %v5134, %v6347
        %v6349 = vsel %vm5301, %v5141, %v6348
        %v6350 = vsel %vm5303, %v5148, %v6349
        %v6351 = vsel %vm5305, %v5155, %v6350
        %v6352 = vsel %vm5307, %v5162, %v6351
        %v6353 = vsel %vm5295, %v5176, %v5169
        %v6354 = vsel %vm5297, %v5183, %v6353
        %v6355 = vsel %vm5299, %v5190, %v6354
        %v6356 = vsel %vm5301, %v5197, %v6355
        %v6367 = vsel %vm5379, %v471, 0
        %v6369 = vsel %vm5379, %v473, 0
        %v6371 = vsel %vm5379, %v475, 0
        %v6373 = vsel %vm5379, %v477, 0
        %v6375 = vsel %vm5379, %v479, 0
        %v6377 = vsel %vm5379, %v481, 0
        %v6379 = vsel %vm5379, %v483, 0
        %v6381 = vsel %vm5379, %v485, 0
        %v6383 = vsel %vm5379, %v487, 0
        %v6385 = vsel %vm5379, %v489, 0
        %v6387 = vsel %vm5379, %v6194, 0
        %v6389 = vsel %vm5379, %v6196, 0
        %v6391 = vsel %vm5379, %v6198, 0
        %v6393 = vsel %vm5379, %v6200, 0
        %v6395 = vsel %vm5379, %v6202, 0
        %v6397 = vsel %vm5379, %v6204, 0
        %v6399 = vsel %vm5379, %v6206, 0
        %v6401 = vsel %vm5379, %v6208, 0
        %v6403 = vsel %vm5379, %v6210, 0
        %v6405 = vsel %vm5379, %v6212, 0
        %6407 = vmatprep.subr.mxu0 0.0
        %6408 = vmatpush1.xpose.msra.mxu0 %v6387
        %6409 = vmatprep.subr.mxu0 0.0
        %6410 = vmatpush1.xpose.msra.mxu0 %v6389
        %6411 = vmatprep.subr.mxu0 0.0
        %6412 = vmatpush1.xpose.msra.mxu0 %v6391
        %6413 = vmatprep.subr.mxu0 0.0
        %6414 = vmatpush1.xpose.msra.mxu0 %v6393
        %6415 = vmatprep.subr.mxu0 0.0
        %6416 = vmatpush1.xpose.msra.mxu0 %v6395
        %6417 = vmatprep.subr.mxu0 0.0
        %6418 = vmatpush1.xpose.msra.mxu0 %v6397
        %6419 = vmatprep.subr.mxu0 0.0
        %6420 = vmatpush1.xpose.msra.mxu0 %v6399
        %6421 = vmatprep.subr.mxu0 0.0
        %6422 = vmatpush1.xpose.msra.mxu0 %v6401
        %6423 = vmatprep.subr.mxu0 0.0
        %6424 = vmatpush1.xpose.msra.mxu0 %v6403
        %6425 = vmatprep.subr.mxu0 0.0
        %6426 = vmatpush1.xpose.msra.mxu0 %v6405
        %6427 = vmatprep.subr.mxu0 0.0
        %6428 = vmatpush1.xpose.msra.mxu0 0.0
        %6429 = vmatprep.subr.mxu0 0.0
        %6430 = vmatpush1.xpose.msra.mxu0 0.0
        %6431 = vmatprep.subr.mxu0 0.0
        %6432 = vmatpush1.xpose.msra.mxu0 0.0
        %6433 = vmatprep.subr.mxu0 0.0
        %6434 = vmatpush1.xpose.msra.mxu0 0.0
        %6435 = vmatprep.subr.mxu0 0.0
        %6436 = vmatpush1.xpose.msra.mxu0 0.0
        %6437 = vmatprep.subr.mxu0 0.0
        %6438 = vmatpush1.xpose.msra.mxu0 0.0
        %6439 = vmatprep.subr.mxu0 0.0
        %6440 = vmatpush1.xpose.msra.mxu0 0.0
        %6441 = vmatprep.subr.mxu0 0.0
        %6442 = vmatpush1.xpose.msra.mxu0 0.0
        %6443 = vmatprep.subr.mxu0 0.0
        %6444 = vmatpush1.xpose.msra.mxu0 0.0
        %6445 = vmatprep.subr.mxu0 0.0
        %6446 = vmatpush1.xpose.msra.mxu0 0.0
        %6447 = vmatprep.subr.mxu0 0.0
        %6448 = vmatpush1.xpose.msra.mxu0 0.0
        %6449 = vmatprep.subr.mxu0 0.0
        %6450 = vmatpush1.xpose.msra.mxu0 0.0
        %6451 = vmatprep.subr.mxu0 0.0
        %6452 = vmatpush1.xpose.msra.mxu0 0.0
        %6453 = vmatprep.subr.mxu0 0.0
        %6454 = vmatpush1.xpose.msra.mxu0 0.0
        %6455 = vmatprep.subr.mxu0 0.0
        %6456 = vmatpush1.xpose.msra.mxu0 0.0
        %6457 = vmatprep.subr.mxu0 0.0
        %6458 = vmatpush1.xpose.msra.mxu0 0.0
        %6459 = vmatprep.subr.mxu0 0.0
        %6460 = vmatpush1.xpose.msra.mxu0 0.0
        %6461 = vmatprep.subr.mxu0 0.0
        %6462 = vmatpush1.xpose.msra.mxu0 0.0
        %6463 = vmatprep.subr.mxu0 0.0
        %6464 = vmatpush1.xpose.msra.mxu0 0.0
        %6465 = vmatprep.subr.mxu0 0.0
        %6466 = vmatpush1.xpose.msra.mxu0 0.0
        %6467 = vmatprep.subr.mxu0 0.0
        %6468 = vmatpush1.xpose.msra.mxu0 0.0
        %6469 = vmatprep.subr.mxu0 0.0
        %6470 = vmatpush1.xpose.msra.mxu0 0.0
        %6471 = vmatprep.mubr.f32.mxu0 0.0
        %6472 = vmatmul.mubr.f32.gmra.mrb[0].mxu0 %v6367
        %v6473 = vpop.f32.mrb[0].mxu0
        %v6474 = vadd.f32 %v6296, %v6473
        %v6475 = vpop.f32.mrb[0].mxu0
        %6476 = vmatprep.mubr.f32.mxu0 0.0
        %6477 = vmatmul.mubr.f32.gmra.mrb[0].mxu0 %v6369
        %v6478 = vpop.f32.mrb[0].mxu0
        %v6479 = vadd.f32 %v6303, %v6478
        %v6480 = vpop.f32.mrb[0].mxu0
        %6481 = vmatprep.mubr.f32.mxu0 0.0
        %6482 = vmatmul.mubr.f32.gmra.mrb[0].mxu0 %v6371
        %v6483 = vpop.f32.mrb[0].mxu0
        %v6484 = vadd.f32 %v6310, %v6483
        %v6485 = vpop.f32.mrb[0].mxu0
        %6486 = vmatprep.mubr.f32.mxu0 0.0
        %6487 = vmatmul.mubr.f32.gmra.mrb[0].mxu0 %v6373
        %v6488 = vpop.f32.mrb[0].mxu0
        %v6489 = vadd.f32 %v6317, %v6488
        %v6490 = vpop.f32.mrb[0].mxu0
        %6491 = vmatprep.mubr.f32.mxu0 0.0
        %6492 = vmatmul.mubr.f32.gmra.mrb[0].mxu0 %v6375
        %v6493 = vpop.f32.mrb[0].mxu0
        %v6494 = vadd.f32 %v6324, %v6493
        %v6495 = vpop.f32.mrb[0].mxu0
        %6496 = vmatprep.mubr.f32.mxu0 0.0
        %6497 = vmatmul.mubr.f32.gmra.mrb[0].mxu0 %v6377
        %v6498 = vpop.f32.mrb[0].mxu0
        %v6499 = vadd.f32 %v6331, %v6498
        %v6500 = vpop.f32.mrb[0].mxu0
        %6501 = vmatprep.mubr.f32.mxu0 0.0
        %6502 = vmatmul.mubr.f32.gmra.mrb[0].mxu0 %v6379
        %v6503 = vpop.f32.mrb[0].mxu0
        %v6504 = vadd.f32 %v6338, %v6503
        %v6505 = vpop.f32.mrb[0].mxu0
        %6506 = vmatprep.mubr.f32.mxu0 0.0
        %6507 = vmatmul.mubr.f32.gmra.mrb[0].mxu0 %v6381
        %v6508 = vpop.f32.mrb[0].mxu0
        %v6509 = vadd.f32 %v6345, %v6508
        %v6510 = vpop.f32.mrb[0].mxu0
        %6511 = vmatprep.mubr.f32.mxu0 0.0
        %6512 = vmatmul.mubr.f32.gmra.mrb[0].mxu0 %v6383
        %v6513 = vpop.f32.mrb[0].mxu0
        %v6514 = vadd.f32 %v6352, %v6513
        %v6515 = vpop.f32.mrb[0].mxu0
        %6516 = vmatprep.mubr.f32.mxu0 0.0
        %6517 = vmatmul.mubr.f32.gmra.mrb[0].mxu0 %v6385
        %v6518 = vpop.f32.mrb[0].mxu0
        %v6519 = vadd.f32 %v6356, %v6518
        %v6520 = vpop.f32.mrb[0].mxu0
        %6521 = vdwg.mxu0
        %v6522 = vsel %vm3041, %v5487, -inf
        %6523 = vmax.xlane.f32.xlu0 %v6522
        %v6524 = vpop.xlane.xlu0 %6523
        %v6525 = vsel %vm3041, %v5492, -inf
        %6526 = vmax.xlane.f32.xlu0 %v6525
        %v6527 = vpop.xlane.xlu0 %6526
        %v6528 = vsel %vm3041, %v5497, -inf
        %6529 = vmax.xlane.f32.xlu0 %v6528
        %v6530 = vpop.xlane.xlu0 %6529
        %v6531 = vsel %vm3041, %v5502, -inf
        %6532 = vmax.xlane.f32.xlu0 %v6531
        %v6533 = vpop.xlane.xlu0 %6532
        %v6534 = vsel %vm3041, %v5507, -inf
        %6535 = vmax.xlane.f32.xlu0 %v6534
        %v6536 = vpop.xlane.xlu0 %6535
        %v6537 = vsel %vm3041, %v5512, -inf
        %6538 = vmax.xlane.f32.xlu0 %v6537
        %v6539 = vpop.xlane.xlu0 %6538
        %v6540 = vsel %vm3041, %v5517, -inf
        %6541 = vmax.xlane.f32.xlu0 %v6540
        %v6542 = vpop.xlane.xlu0 %6541
        %v6543 = vsel %vm3041, %v5522, -inf
        %6544 = vmax.xlane.f32.xlu0 %v6543
        %v6545 = vpop.xlane.xlu0 %6544
        %v6546 = vsel %vm3041, %v5527, -inf
        %6547 = vmax.xlane.f32.xlu0 %v6546
        %v6548 = vpop.xlane.xlu0 %6547
        %vm6549 = vcmask 626688
        %v6550 = vsel %vm6549, %v5532, -inf
        %6551 = vmax.xlane.f32.xlu0 %v6550
        %v6552 = vpop.xlane.xlu0 %6551
        %v6553 = vsel %vm3041, %v5816, -inf
        %6554 = vmax.xlane.f32.xlu0 %v6553
        %v6555 = vpop.xlane.xlu0 %6554
        %v6556 = vsel %vm3041, %v5821, -inf
        %6557 = vmax.xlane.f32.xlu0 %v6556
        %v6558 = vpop.xlane.xlu0 %6557
        %v6559 = vsel %vm3041, %v5826, -inf
        %6560 = vmax.xlane.f32.xlu0 %v6559
        %v6561 = vpop.xlane.xlu0 %6560
        %v6562 = vsel %vm3041, %v5831, -inf
        %6563 = vmax.xlane.f32.xlu0 %v6562
        %v6564 = vpop.xlane.xlu0 %6563
        %v6565 = vsel %vm3041, %v5836, -inf
        %6566 = vmax.xlane.f32.xlu0 %v6565
        %v6567 = vpop.xlane.xlu0 %6566
        %v6568 = vsel %vm3041, %v5841, -inf
        %6569 = vmax.xlane.f32.xlu0 %v6568
        %v6570 = vpop.xlane.xlu0 %6569
        %v6571 = vsel %vm3041, %v5846, -inf
        %6572 = vmax.xlane.f32.xlu0 %v6571
        %v6573 = vpop.xlane.xlu0 %6572
        %v6574 = vsel %vm3041, %v5851, -inf
        %6575 = vmax.xlane.f32.xlu0 %v6574
        %v6576 = vpop.xlane.xlu0 %6575
        %v6577 = vsel %vm3041, %v5856, -inf
        %6578 = vmax.xlane.f32.xlu0 %v6577
        %v6579 = vpop.xlane.xlu0 %6578
        %v6580 = vsel %vm6549, %v5861, -inf
        %6581 = vmax.xlane.f32.xlu0 %v6580
        %v6582 = vpop.xlane.xlu0 %6581
        %v6583 = vsel %vm3041, %v6145, -inf
        %6584 = vmax.xlane.f32.xlu0 %v6583
        %v6585 = vpop.xlane.xlu0 %6584
        %v6586 = vsel %vm3041, %v6150, -inf
        %6587 = vmax.xlane.f32.xlu0 %v6586
        %v6588 = vpop.xlane.xlu0 %6587
        %v6589 = vsel %vm3041, %v6155, -inf
        %6590 = vmax.xlane.f32.xlu0 %v6589
        %v6591 = vpop.xlane.xlu0 %6590
        %v6592 = vsel %vm3041, %v6160, -inf
        %6593 = vmax.xlane.f32.xlu0 %v6592
        %v6594 = vpop.xlane.xlu0 %6593
        %v6595 = vsel %vm3041, %v6165, -inf
        %6596 = vmax.xlane.f32.xlu0 %v6595
        %v6597 = vpop.xlane.xlu0 %6596
        %v6598 = vsel %vm3041, %v6170, -inf
        %6599 = vmax.xlane.f32.xlu0 %v6598
        %v6600 = vpop.xlane.xlu0 %6599
        %v6601 = vsel %vm3041, %v6175, -inf
        %6602 = vmax.xlane.f32.xlu0 %v6601
        %v6603 = vpop.xlane.xlu0 %6602
        %v6604 = vsel %vm3041, %v6180, -inf
        %6605 = vmax.xlane.f32.xlu0 %v6604
        %v6606 = vpop.xlane.xlu0 %6605
        %v6607 = vsel %vm3041, %v6185, -inf
        %6608 = vmax.xlane.f32.xlu0 %v6607
        %v6609 = vpop.xlane.xlu0 %6608
        %v6610 = vsel %vm6549, %v6190, -inf
        %6611 = vmax.xlane.f32.xlu0 %v6610
        %v6612 = vpop.xlane.xlu0 %6611
        %v6613 = vsel %vm3041, %v6474, -inf
        %6614 = vmax.xlane.f32.xlu0 %v6613
        %v6615 = vpop.xlane.xlu0 %6614
        %v6616 = vsel %vm3041, %v6479, -inf
        %6617 = vmax.xlane.f32.xlu0 %v6616
        %v6618 = vpop.xlane.xlu0 %6617
        %v6619 = vsel %vm3041, %v6484, -inf
        %6620 = vmax.xlane.f32.xlu0 %v6619
        %v6621 = vpop.xlane.xlu0 %6620
        %v6622 = vsel %vm3041, %v6489, -inf
        %6623 = vmax.xlane.f32.xlu0 %v6622
        %v6624 = vpop.xlane.xlu0 %6623
        %v6625 = vsel %vm3041, %v6494, -inf
        %6626 = vmax.xlane.f32.xlu0 %v6625
        %v6627 = vpop.xlane.xlu0 %6626
        %v6628 = vsel %vm3041, %v6499, -inf
        %6629 = vmax.xlane.f32.xlu0 %v6628
        %v6630 = vpop.xlane.xlu0 %6629
        %v6631 = vsel %vm3041, %v6504, -inf
        %6632 = vmax.xlane.f32.xlu0 %v6631
        %v6633 = vpop.xlane.xlu0 %6632
        %v6634 = vsel %vm3041, %v6509, -inf
        %6635 = vmax.xlane.f32.xlu0 %v6634
        %v6636 = vpop.xlane.xlu0 %6635
        %v6637 = vsel %vm3041, %v6514, -inf
        %6638 = vmax.xlane.f32.xlu0 %v6637
        %v6639 = vpop.xlane.xlu0 %6638
        %v6640 = vsel %vm6549, %v6519, -inf
        %6641 = vmax.xlane.f32.xlu0 %v6640
        %v6642 = vpop.xlane.xlu0 %6641
        %v6643 = vsub.f32 %v5487, %v6524
        %v6644 = vsub.f32 %v5492, %v6527
        %v6645 = vsub.f32 %v5497, %v6530
        %v6646 = vsub.f32 %v5502, %v6533
        %v6647 = vsub.f32 %v5507, %v6536
        %v6648 = vsub.f32 %v5512, %v6539
        %v6649 = vsub.f32 %v5517, %v6542
        %v6650 = vsub.f32 %v5522, %v6545
        %v6651 = vsub.f32 %v5527, %v6548
        %v6652 = vsub.f32 %v5532, %v6552
        %v6653 = vsub.f32 %v5816, %v6555
        %v6654 = vsub.f32 %v5821, %v6558
        %v6655 = vsub.f32 %v5826, %v6561
        %v6656 = vsub.f32 %v5831, %v6564
        %v6657 = vsub.f32 %v5836, %v6567
        %v6658 = vsub.f32 %v5841, %v6570
        %v6659 = vsub.f32 %v5846, %v6573
        %v6660 = vsub.f32 %v5851, %v6576
        %v6661 = vsub.f32 %v5856, %v6579
        %v6662 = vsub.f32 %v5861, %v6582
        %v6663 = vsub.f32 %v6145, %v6585
        %v6664 = vsub.f32 %v6150, %v6588
        %v6665 = vsub.f32 %v6155, %v6591
        %v6666 = vsub.f32 %v6160, %v6594
        %v6667 = vsub.f32 %v6165, %v6597
        %v6668 = vsub.f32 %v6170, %v6600
        %v6669 = vsub.f32 %v6175, %v6603
        %v6670 = vsub.f32 %v6180, %v6606
        %v6671 = vsub.f32 %v6185, %v6609
        %v6672 = vsub.f32 %v6190, %v6612
        %v6673 = vsub.f32 %v6474, %v6615
        %v6674 = vsub.f32 %v6479, %v6618
        %v6675 = vsub.f32 %v6484, %v6621
        %v6676 = vsub.f32 %v6489, %v6624
        %v6677 = vsub.f32 %v6494, %v6627
        %v6678 = vsub.f32 %v6499, %v6630
        %v6679 = vsub.f32 %v6504, %v6633
        %v6680 = vsub.f32 %v6509, %v6636
        %v6681 = vsub.f32 %v6514, %v6639
        %v6682 = vsub.f32 %v6519, %v6642
        %v6683 = vmul.f32 %v6643, 1.442695
        %v6684 = vpow.pop %v6683
        %v6685 = vmul.f32 %v6644, 1.442695
        %v6686 = vpow.pop %v6685
        %v6687 = vmul.f32 %v6645, 1.442695
        %v6688 = vpow.pop %v6687
        %v6689 = vmul.f32 %v6646, 1.442695
        %v6690 = vpow.pop %v6689
        %v6691 = vmul.f32 %v6647, 1.442695
        %v6692 = vpow.pop %v6691
        %v6693 = vmul.f32 %v6648, 1.442695
        %v6694 = vpow.pop %v6693
        %v6695 = vmul.f32 %v6649, 1.442695
        %v6696 = vpow.pop %v6695
        %v6697 = vmul.f32 %v6650, 1.442695
        %v6698 = vpow.pop %v6697
        %v6699 = vmul.f32 %v6651, 1.442695
        %v6700 = vpow.pop %v6699
        %v6701 = vmul.f32 %v6652, 1.442695
        %v6702 = vpow.pop %v6701
        %v6703 = vmul.f32 %v6653, 1.442695
        %v6704 = vpow.pop %v6703
        %v6705 = vmul.f32 %v6654, 1.442695
        %v6706 = vpow.pop %v6705
        %v6707 = vmul.f32 %v6655, 1.442695
        %v6708 = vpow.pop %v6707
        %v6709 = vmul.f32 %v6656, 1.442695
        %v6710 = vpow.pop %v6709
        %v6711 = vmul.f32 %v6657, 1.442695
        %v6712 = vpow.pop %v6711
        %v6713 = vmul.f32 %v6658, 1.442695
        %v6714 = vpow.pop %v6713
        %v6715 = vmul.f32 %v6659, 1.442695
        %v6716 = vpow.pop %v6715
        %v6717 = vmul.f32 %v6660, 1.442695
        %v6718 = vpow.pop %v6717
        %v6719 = vmul.f32 %v6661, 1.442695
        %v6720 = vpow.pop %v6719
        %v6721 = vmul.f32 %v6662, 1.442695
        %v6722 = vpow.pop %v6721
        %v6723 = vmul.f32 %v6663, 1.442695
        %v6724 = vpow.pop %v6723
        %v6725 = vmul.f32 %v6664, 1.442695
        %v6726 = vpow.pop %v6725
        %v6727 = vmul.f32 %v6665, 1.442695
        %v6728 = vpow.pop %v6727
        %v6729 = vmul.f32 %v6666, 1.442695
        %v6730 = vpow.pop %v6729
        %v6731 = vmul.f32 %v6667, 1.442695
        %v6732 = vpow.pop %v6731
        %v6733 = vmul.f32 %v6668, 1.442695
        %v6734 = vpow.pop %v6733
        %v6735 = vmul.f32 %v6669, 1.442695
        %v6736 = vpow.pop %v6735
        %v6737 = vmul.f32 %v6670, 1.442695
        %v6738 = vpow.pop %v6737
        %v6739 = vmul.f32 %v6671, 1.442695
        %v6740 = vpow.pop %v6739
        %v6741 = vmul.f32 %v6672, 1.442695
        %v6742 = vpow.pop %v6741
        %v6743 = vmul.f32 %v6673, 1.442695
        %v6744 = vpow.pop %v6743
        %v6745 = vmul.f32 %v6674, 1.442695
        %v6746 = vpow.pop %v6745
        %v6747 = vmul.f32 %v6675, 1.442695
        %v6748 = vpow.pop %v6747
        %v6749 = vmul.f32 %v6676, 1.442695
        %v6750 = vpow.pop %v6749
        %v6751 = vmul.f32 %v6677, 1.442695
        %v6752 = vpow.pop %v6751
        %v6753 = vmul.f32 %v6678, 1.442695
        %v6754 = vpow.pop %v6753
        %v6755 = vmul.f32 %v6679, 1.442695
        %v6756 = vpow.pop %v6755
        %v6757 = vmul.f32 %v6680, 1.442695
        %v6758 = vpow.pop %v6757
        %v6759 = vmul.f32 %v6681, 1.442695
        %v6760 = vpow.pop %v6759
        %v6761 = vmul.f32 %v6682, 1.442695
        %v6762 = vpow.pop %v6761
        %v6763 = vsel %vm3041, %v6684, 0.0
        %6764 = vadd.xlane.f32.xlu0 %v6763
        %v6765 = vpop.xlane.xlu0 %6764
        %v6766 = vsel %vm3041, %v6686, 0.0
        %6767 = vadd.xlane.f32.xlu0 %v6766
        %v6768 = vpop.xlane.xlu0 %6767
        %v6769 = vsel %vm3041, %v6688, 0.0
        %6770 = vadd.xlane.f32.xlu0 %v6769
        %v6771 = vpop.xlane.xlu0 %6770
        %v6772 = vsel %vm3041, %v6690, 0.0
        %6773 = vadd.xlane.f32.xlu0 %v6772
        %v6774 = vpop.xlane.xlu0 %6773
        %v6775 = vsel %vm3041, %v6692, 0.0
        %6776 = vadd.xlane.f32.xlu0 %v6775
        %v6777 = vpop.xlane.xlu0 %6776
        %v6778 = vsel %vm3041, %v6694, 0.0
        %6779 = vadd.xlane.f32.xlu0 %v6778
        %v6780 = vpop.xlane.xlu0 %6779
        %v6781 = vsel %vm3041, %v6696, 0.0
        %6782 = vadd.xlane.f32.xlu0 %v6781
        %v6783 = vpop.xlane.xlu0 %6782
        %v6784 = vsel %vm3041, %v6698, 0.0
        %6785 = vadd.xlane.f32.xlu0 %v6784
        %v6786 = vpop.xlane.xlu0 %6785
        %v6787 = vsel %vm3041, %v6700, 0.0
        %6788 = vadd.xlane.f32.xlu0 %v6787
        %v6789 = vpop.xlane.xlu0 %6788
        %v6790 = vsel %vm6549, %v6702, 0.0
        %6791 = vadd.xlane.f32.xlu0 %v6790
        %v6792 = vpop.xlane.xlu0 %6791
        %v6793 = vsel %vm3041, %v6704, 0.0
        %6794 = vadd.xlane.f32.xlu0 %v6793
        %v6795 = vpop.xlane.xlu0 %6794
        %v6796 = vsel %vm3041, %v6706, 0.0
        %6797 = vadd.xlane.f32.xlu0 %v6796
        %v6798 = vpop.xlane.xlu0 %6797
        %v6799 = vsel %vm3041, %v6708, 0.0
        %6800 = vadd.xlane.f32.xlu0 %v6799
        %v6801 = vpop.xlane.xlu0 %6800
        %v6802 = vsel %vm3041, %v6710, 0.0
        %6803 = vadd.xlane.f32.xlu0 %v6802
        %v6804 = vpop.xlane.xlu0 %6803
        %v6805 = vsel %vm3041, %v6712, 0.0
        %6806 = vadd.xlane.f32.xlu0 %v6805
        %v6807 = vpop.xlane.xlu0 %6806
        %v6808 = vsel %vm3041, %v6714, 0.0
        %6809 = vadd.xlane.f32.xlu0 %v6808
        %v6810 = vpop.xlane.xlu0 %6809
        %v6811 = vsel %vm3041, %v6716, 0.0
        %6812 = vadd.xlane.f32.xlu0 %v6811
        %v6813 = vpop.xlane.xlu0 %6812
        %v6814 = vsel %vm3041, %v6718, 0.0
        %6815 = vadd.xlane.f32.xlu0 %v6814
        %v6816 = vpop.xlane.xlu0 %6815
        %v6817 = vsel %vm3041, %v6720, 0.0
        %6818 = vadd.xlane.f32.xlu0 %v6817
        %v6819 = vpop.xlane.xlu0 %6818
        %v6820 = vsel %vm6549, %v6722, 0.0
        %6821 = vadd.xlane.f32.xlu0 %v6820
        %v6822 = vpop.xlane.xlu0 %6821
        %v6823 = vsel %vm3041, %v6724, 0.0
        %6824 = vadd.xlane.f32.xlu0 %v6823
        %v6825 = vpop.xlane.xlu0 %6824
        %v6826 = vsel %vm3041, %v6726, 0.0
        %6827 = vadd.xlane.f32.xlu0 %v6826
        %v6828 = vpop.xlane.xlu0 %6827
        %v6829 = vsel %vm3041, %v6728, 0.0
        %6830 = vadd.xlane.f32.xlu0 %v6829
        %v6831 = vpop.xlane.xlu0 %6830
        %v6832 = vsel %vm3041, %v6730, 0.0
        %6833 = vadd.xlane.f32.xlu0 %v6832
        %v6834 = vpop.xlane.xlu0 %6833
        %v6835 = vsel %vm3041, %v6732, 0.0
        %6836 = vadd.xlane.f32.xlu0 %v6835
        %v6837 = vpop.xlane.xlu0 %6836
        %v6838 = vsel %vm3041, %v6734, 0.0
        %6839 = vadd.xlane.f32.xlu0 %v6838
        %v6840 = vpop.xlane.xlu0 %6839
        %v6841 = vsel %vm3041, %v6736, 0.0
        %6842 = vadd.xlane.f32.xlu0 %v6841
        %v6843 = vpop.xlane.xlu0 %6842
        %v6844 = vsel %vm3041, %v6738, 0.0
        %6845 = vadd.xlane.f32.xlu0 %v6844
        %v6846 = vpop.xlane.xlu0 %6845
        %v6847 = vsel %vm3041, %v6740, 0.0
        %6848 = vadd.xlane.f32.xlu0 %v6847
        %v6849 = vpop.xlane.xlu0 %6848
        %v6850 = vsel %vm6549, %v6742, 0.0
        %6851 = vadd.xlane.f32.xlu0 %v6850
        %v6852 = vpop.xlane.xlu0 %6851
        %v6853 = vsel %vm3041, %v6744, 0.0
        %6854 = vadd.xlane.f32.xlu0 %v6853
        %v6855 = vpop.xlane.xlu0 %6854
        %v6856 = vsel %vm3041, %v6746, 0.0
        %6857 = vadd.xlane.f32.xlu0 %v6856
        %v6858 = vpop.xlane.xlu0 %6857
        %v6859 = vsel %vm3041, %v6748, 0.0
        %6860 = vadd.xlane.f32.xlu0 %v6859
        %v6861 = vpop.xlane.xlu0 %6860
        %v6862 = vsel %vm3041, %v6750, 0.0
        %6863 = vadd.xlane.f32.xlu0 %v6862
        %v6864 = vpop.xlane.xlu0 %6863
        %v6865 = vsel %vm3041, %v6752, 0.0
        %6866 = vadd.xlane.f32.xlu0 %v6865
        %v6867 = vpop.xlane.xlu0 %6866
        %v6868 = vsel %vm3041, %v6754, 0.0
        %6869 = vadd.xlane.f32.xlu0 %v6868
        %v6870 = vpop.xlane.xlu0 %6869
        %v6871 = vsel %vm3041, %v6756, 0.0
        %6872 = vadd.xlane.f32.xlu0 %v6871
        %v6873 = vpop.xlane.xlu0 %6872
        %v6874 = vsel %vm3041, %v6758, 0.0
        %6875 = vadd.xlane.f32.xlu0 %v6874
        %v6876 = vpop.xlane.xlu0 %6875
        %v6877 = vsel %vm3041, %v6760, 0.0
        %6878 = vadd.xlane.f32.xlu0 %v6877
        %v6879 = vpop.xlane.xlu0 %6878
        %v6880 = vsel %vm6549, %v6762, 0.0
        %6881 = vadd.xlane.f32.xlu0 %v6880
        %v6882 = vpop.xlane.xlu0 %6881
        %v6883 = vrcp.pop %v6765
        %v6884 = vrcp.pop %v6768
        %v6885 = vrcp.pop %v6771
        %v6886 = vrcp.pop %v6774
        %v6887 = vrcp.pop %v6777
        %v6888 = vrcp.pop %v6780
        %v6889 = vrcp.pop %v6783
        %v6890 = vrcp.pop %v6786
        %v6891 = vrcp.pop %v6789
        %v6892 = vrcp.pop %v6792
        %v6893 = vrcp.pop %v6795
        %v6894 = vrcp.pop %v6798
        %v6895 = vrcp.pop %v6801
        %v6896 = vrcp.pop %v6804
        %v6897 = vrcp.pop %v6807
        %v6898 = vrcp.pop %v6810
        %v6899 = vrcp.pop %v6813
        %v6900 = vrcp.pop %v6816
        %v6901 = vrcp.pop %v6819
        %v6902 = vrcp.pop %v6822
        %v6903 = vrcp.pop %v6825
        %v6904 = vrcp.pop %v6828
        %v6905 = vrcp.pop %v6831
        %v6906 = vrcp.pop %v6834
        %v6907 = vrcp.pop %v6837
        %v6908 = vrcp.pop %v6840
        %v6909 = vrcp.pop %v6843
        %v6910 = vrcp.pop %v6846
        %v6911 = vrcp.pop %v6849
        %v6912 = vrcp.pop %v6852
        %v6913 = vrcp.pop %v6855
        %v6914 = vrcp.pop %v6858
        %v6915 = vrcp.pop %v6861
        %v6916 = vrcp.pop %v6864
        %v6917 = vrcp.pop %v6867
        %v6918 = vrcp.pop %v6870
        %v6919 = vrcp.pop %v6873
        %v6920 = vrcp.pop %v6876
        %v6921 = vrcp.pop %v6879
        %v6922 = vrcp.pop %v6882
        %v6923 = vmul.f32 %v6684, %v6883
        %v6924 = vmul.f32 %v6686, %v6884
        %v6925 = vmul.f32 %v6688, %v6885
        %v6926 = vmul.f32 %v6690, %v6886
        %v6927 = vmul.f32 %v6692, %v6887
        %v6928 = vmul.f32 %v6694, %v6888
        %v6929 = vmul.f32 %v6696, %v6889
        %v6930 = vmul.f32 %v6698, %v6890
        %v6931 = vmul.f32 %v6700, %v6891
        %v6932 = vmul.f32 %v6702, %v6892
        %v6933 = vmul.f32 %v6704, %v6893
        %v6934 = vmul.f32 %v6706, %v6894
        %v6935 = vmul.f32 %v6708, %v6895
        %v6936 = vmul.f32 %v6710, %v6896
        %v6937 = vmul.f32 %v6712, %v6897
        %v6938 = vmul.f32 %v6714, %v6898
        %v6939 = vmul.f32 %v6716, %v6899
        %v6940 = vmul.f32 %v6718, %v6900
        %v6941 = vmul.f32 %v6720, %v6901
        %v6942 = vmul.f32 %v6722, %v6902
        %v6943 = vmul.f32 %v6724, %v6903
        %v6944 = vmul.f32 %v6726, %v6904
        %v6945 = vmul.f32 %v6728, %v6905
        %v6946 = vmul.f32 %v6730, %v6906
        %v6947 = vmul.f32 %v6732, %v6907
        %v6948 = vmul.f32 %v6734, %v6908
        %v6949 = vmul.f32 %v6736, %v6909
        %v6950 = vmul.f32 %v6738, %v6910
        %v6951 = vmul.f32 %v6740, %v6911
        %v6952 = vmul.f32 %v6742, %v6912
        %v6953 = vmul.f32 %v6744, %v6913
        %v6954 = vmul.f32 %v6746, %v6914
        %v6955 = vmul.f32 %v6748, %v6915
        %v6956 = vmul.f32 %v6750, %v6916
        %v6957 = vmul.f32 %v6752, %v6917
        %v6958 = vmul.f32 %v6754, %v6918
        %v6959 = vmul.f32 %v6756, %v6919
        %v6960 = vmul.f32 %v6758, %v6920
        %v6961 = vmul.f32 %v6760, %v6921
        %v6962 = vmul.f32 %v6762, %v6922
        %6963 = vrot.lane.b32.xlu0 %v352, 64
        %v6964 = vpop.permute.xlu0 %6963
        %6965 = vrot.lane.b32.xlu0 %v357, 64
        %v6966 = vpop.permute.xlu0 %6965
        %6967 = vrot.lane.b32.xlu0 %v362, 64
        %v6968 = vpop.permute.xlu0 %6967
        %6969 = vrot.lane.b32.xlu0 %v367, 64
        %v6970 = vpop.permute.xlu0 %6969
        %6971 = vrot.lane.b32.xlu0 %v372, 64
        %v6972 = vpop.permute.xlu0 %6971
        %6973 = vrot.lane.b32.xlu0 %v377, 64
        %v6974 = vpop.permute.xlu0 %6973
        %6975 = vrot.lane.b32.xlu0 %v382, 64
        %v6976 = vpop.permute.xlu0 %6975
        %6977 = vrot.lane.b32.xlu0 %v387, 64
        %v6978 = vpop.permute.xlu0 %6977
        %6979 = vrot.lane.b32.xlu0 %v392, 64
        %v6980 = vpop.permute.xlu0 %6979
        %6981 = vrot.lane.b32.xlu0 %v397, 64
        %v6982 = vpop.permute.xlu0 %6981
        %v6993 = vsel %vm3041, %v6923, 0
        %v6996 = vsel %vm3041, %v6924, 0
        %v6999 = vsel %vm3041, %v6925, 0
        %v7002 = vsel %vm3041, %v6926, 0
        %v7005 = vsel %vm3041, %v6927, 0
        %v7008 = vsel %vm3041, %v6928, 0
        %v7011 = vsel %vm3041, %v6929, 0
        %v7014 = vsel %vm3041, %v6930, 0
        %v7017 = vsel %vm3041, %v6931, 0
        %v7020 = vsel %vm3041, %v6932, 0
        %vm7022 = vcmask 1044480
        %v7023 = vsel %vm7022, %v6982, 0
        %7025 = vmatprep.subr.mxu0 0.0
        %7026 = vmatpush1.msra.mxu0 %v6964
        %7027 = vmatprep.subr.mxu0 0.0
        %7028 = vmatpush1.msra.mxu0 %v6966
        %7029 = vmatprep.subr.mxu0 0.0
        %7030 = vmatpush1.msra.mxu0 %v6968
        %7031 = vmatprep.subr.mxu0 0.0
        %7032 = vmatpush1.msra.mxu0 %v6970
        %7033 = vmatprep.subr.mxu0 0.0
        %7034 = vmatpush1.msra.mxu0 %v6972
        %7035 = vmatprep.subr.mxu0 0.0
        %7036 = vmatpush1.msra.mxu0 %v6974
        %7037 = vmatprep.subr.mxu0 0.0
        %7038 = vmatpush1.msra.mxu0 %v6976
        %7039 = vmatprep.subr.mxu0 0.0
        %7040 = vmatpush1.msra.mxu0 %v6978
        %7041 = vmatprep.subr.mxu0 0.0
        %7042 = vmatpush1.msra.mxu0 %v6980
        %7043 = vmatprep.subr.mxu0 0.0
        %7044 = vmatpush1.msra.mxu0 %v7023
        %7045 = vmatprep.subr.mxu0 0.0
        %7046 = vmatpush1.msra.mxu0 0.0
        %7047 = vmatprep.subr.mxu0 0.0
        %7048 = vmatpush1.msra.mxu0 0.0
        %7049 = vmatprep.subr.mxu0 0.0
        %7050 = vmatpush1.msra.mxu0 0.0
        %7051 = vmatprep.subr.mxu0 0.0
        %7052 = vmatpush1.msra.mxu0 0.0
        %7053 = vmatprep.subr.mxu0 0.0
        %7054 = vmatpush1.msra.mxu0 0.0
        %7055 = vmatprep.subr.mxu0 0.0
        %7056 = vmatpush1.msra.mxu0 0.0
        %7057 = vmatprep.subr.mxu0 0.0
        %7058 = vmatpush1.msra.mxu0 0.0
        %7059 = vmatprep.subr.mxu0 0.0
        %7060 = vmatpush1.msra.mxu0 0.0
        %7061 = vmatprep.subr.mxu0 0.0
        %7062 = vmatpush1.msra.mxu0 0.0
        %7063 = vmatprep.subr.mxu0 0.0
        %7064 = vmatpush1.msra.mxu0 0.0
        %7065 = vmatprep.subr.mxu0 0.0
        %7066 = vmatpush1.msra.mxu0 0.0
        %7067 = vmatprep.subr.mxu0 0.0
        %7068 = vmatpush1.msra.mxu0 0.0
        %7069 = vmatprep.subr.mxu0 0.0
        %7070 = vmatpush1.msra.mxu0 0.0
        %7071 = vmatprep.subr.mxu0 0.0
        %7072 = vmatpush1.msra.mxu0 0.0
        %7073 = vmatprep.subr.mxu0 0.0
        %7074 = vmatpush1.msra.mxu0 0.0
        %7075 = vmatprep.subr.mxu0 0.0
        %7076 = vmatpush1.msra.mxu0 0.0
        %7077 = vmatprep.subr.mxu0 0.0
        %7078 = vmatpush1.msra.mxu0 0.0
        %7079 = vmatprep.subr.mxu0 0.0
        %7080 = vmatpush1.msra.mxu0 0.0
        %7081 = vmatprep.subr.mxu0 0.0
        %7082 = vmatpush1.msra.mxu0 0.0
        %7083 = vmatprep.subr.mxu0 0.0
        %7084 = vmatpush1.msra.mxu0 0.0
        %7085 = vmatprep.subr.mxu0 0.0
        %7086 = vmatpush1.msra.mxu0 0.0
        %7087 = vmatprep.subr.mxu0 0.0
        %7088 = vmatpush1.msra.mxu0 0.0
        %7089 = vmatprep.mubr.f32.mxu0 0.0
        %7090 = vmatmul.mubr.f32.gmra.mrb[0].mxu0 %v6993
        %v7091 = vpop.f32.mrb[0].mxu0
        %v7092 = vadd.f32 0.0, %v7091
        %v7093 = vpop.f32.mrb[0].mxu0
        %7094 = vmatprep.mubr.f32.mxu0 0.0
        %7095 = vmatmul.mubr.f32.gmra.mrb[0].mxu0 %v6996
        %v7096 = vpop.f32.mrb[0].mxu0
        %v7097 = vadd.f32 0.0, %v7096
        %v7098 = vpop.f32.mrb[0].mxu0
        %7099 = vmatprep.mubr.f32.mxu0 0.0
        %7100 = vmatmul.mubr.f32.gmra.mrb[0].mxu0 %v6999
        %v7101 = vpop.f32.mrb[0].mxu0
        %v7102 = vadd.f32 0.0, %v7101
        %v7103 = vpop.f32.mrb[0].mxu0
        %7104 = vmatprep.mubr.f32.mxu0 0.0
        %7105 = vmatmul.mubr.f32.gmra.mrb[0].mxu0 %v7002
        %v7106 = vpop.f32.mrb[0].mxu0
        %v7107 = vadd.f32 0.0, %v7106
        %v7108 = vpop.f32.mrb[0].mxu0
        %7109 = vmatprep.mubr.f32.mxu0 0.0
        %7110 = vmatmul.mubr.f32.gmra.mrb[0].mxu0 %v7005
        %v7111 = vpop.f32.mrb[0].mxu0
        %v7112 = vadd.f32 0.0, %v7111
        %v7113 = vpop.f32.mrb[0].mxu0
        %7114 = vmatprep.mubr.f32.mxu0 0.0
        %7115 = vmatmul.mubr.f32.gmra.mrb[0].mxu0 %v7008
        %v7116 = vpop.f32.mrb[0].mxu0
        %v7117 = vadd.f32 0.0, %v7116
        %v7118 = vpop.f32.mrb[0].mxu0
        %7119 = vmatprep.mubr.f32.mxu0 0.0
        %7120 = vmatmul.mubr.f32.gmra.mrb[0].mxu0 %v7011
        %v7121 = vpop.f32.mrb[0].mxu0
        %v7122 = vadd.f32 0.0, %v7121
        %v7123 = vpop.f32.mrb[0].mxu0
        %7124 = vmatprep.mubr.f32.mxu0 0.0
        %7125 = vmatmul.mubr.f32.gmra.mrb[0].mxu0 %v7014
        %v7126 = vpop.f32.mrb[0].mxu0
        %v7127 = vadd.f32 0.0, %v7126
        %v7128 = vpop.f32.mrb[0].mxu0
        %7129 = vmatprep.mubr.f32.mxu0 0.0
        %7130 = vmatmul.mubr.f32.gmra.mrb[0].mxu0 %v7017
        %v7131 = vpop.f32.mrb[0].mxu0
        %v7132 = vadd.f32 0.0, %v7131
        %v7133 = vpop.f32.mrb[0].mxu0
        %7134 = vmatprep.mubr.f32.mxu0 0.0
        %7135 = vmatmul.mubr.f32.gmra.mrb[0].mxu0 %v7020
        %v7136 = vpop.f32.mrb[0].mxu0
        %v7137 = vadd.f32 0.0, %v7136
        %v7138 = vpop.f32.mrb[0].mxu0
        %7139 = vdwg.mxu0
        %7140 = vrot.lane.b32.xlu0 %v411, 64
        %v7141 = vpop.permute.xlu0 %7140
        %7142 = vrot.lane.b32.xlu0 %v413, 64
        %v7143 = vpop.permute.xlu0 %7142
        %7144 = vrot.lane.b32.xlu0 %v415, 64
        %v7145 = vpop.permute.xlu0 %7144
        %7146 = vrot.lane.b32.xlu0 %v417, 64
        %v7147 = vpop.permute.xlu0 %7146
        %7148 = vrot.lane.b32.xlu0 %v419, 64
        %v7149 = vpop.permute.xlu0 %7148
        %7150 = vrot.lane.b32.xlu0 %v421, 64
        %v7151 = vpop.permute.xlu0 %7150
        %7152 = vrot.lane.b32.xlu0 %v423, 64
        %v7153 = vpop.permute.xlu0 %7152
        %7154 = vrot.lane.b32.xlu0 %v425, 64
        %v7155 = vpop.permute.xlu0 %7154
        %7156 = vrot.lane.b32.xlu0 %v427, 64
        %v7157 = vpop.permute.xlu0 %7156
        %7158 = vrot.lane.b32.xlu0 %v429, 64
        %v7159 = vpop.permute.xlu0 %7158
        %v7170 = vsel %vm3041, %v6933, 0
        %v7173 = vsel %vm3041, %v6934, 0
        %v7176 = vsel %vm3041, %v6935, 0
        %v7179 = vsel %vm3041, %v6936, 0
        %v7182 = vsel %vm3041, %v6937, 0
        %v7185 = vsel %vm3041, %v6938, 0
        %v7188 = vsel %vm3041, %v6939, 0
        %v7191 = vsel %vm3041, %v6940, 0
        %v7194 = vsel %vm3041, %v6941, 0
        %v7197 = vsel %vm3041, %v6942, 0
        %v7199 = vsel %vm7022, %v7159, 0
        %7201 = vmatprep.subr.mxu0 0.0
        %7202 = vmatpush1.msra.mxu0 %v7141
        %7203 = vmatprep.subr.mxu0 0.0
        %7204 = vmatpush1.msra.mxu0 %v7143
        %7205 = vmatprep.subr.mxu0 0.0
        %7206 = vmatpush1.msra.mxu0 %v7145
        %7207 = vmatprep.subr.mxu0 0.0
        %7208 = vmatpush1.msra.mxu0 %v7147
        %7209 = vmatprep.subr.mxu0 0.0
        %7210 = vmatpush1.msra.mxu0 %v7149
        %7211 = vmatprep.subr.mxu0 0.0
        %7212 = vmatpush1.msra.mxu0 %v7151
        %7213 = vmatprep.subr.mxu0 0.0
        %7214 = vmatpush1.msra.mxu0 %v7153
        %7215 = vmatprep.subr.mxu0 0.0
        %7216 = vmatpush1.msra.mxu0 %v7155
        %7217 = vmatprep.subr.mxu0 0.0
        %7218 = vmatpush1.msra.mxu0 %v7157
        %7219 = vmatprep.subr.mxu0 0.0
        %7220 = vmatpush1.msra.mxu0 %v7199
        %7221 = vmatprep.subr.mxu0 0.0
        %7222 = vmatpush1.msra.mxu0 0.0
        %7223 = vmatprep.subr.mxu0 0.0
        %7224 = vmatpush1.msra.mxu0 0.0
        %7225 = vmatprep.subr.mxu0 0.0
        %7226 = vmatpush1.msra.mxu0 0.0
        %7227 = vmatprep.subr.mxu0 0.0
        %7228 = vmatpush1.msra.mxu0 0.0
        %7229 = vmatprep.subr.mxu0 0.0
        %7230 = vmatpush1.msra.mxu0 0.0
        %7231 = vmatprep.subr.mxu0 0.0
        %7232 = vmatpush1.msra.mxu0 0.0
        %7233 = vmatprep.subr.mxu0 0.0
        %7234 = vmatpush1.msra.mxu0 0.0
        %7235 = vmatprep.subr.mxu0 0.0
        %7236 = vmatpush1.msra.mxu0 0.0
        %7237 = vmatprep.subr.mxu0 0.0
        %7238 = vmatpush1.msra.mxu0 0.0
        %7239 = vmatprep.subr.mxu0 0.0
        %7240 = vmatpush1.msra.mxu0 0.0
        %7241 = vmatprep.subr.mxu0 0.0
        %7242 = vmatpush1.msra.mxu0 0.0
        %7243 = vmatprep.subr.mxu0 0.0
        %7244 = vmatpush1.msra.mxu0 0.0
        %7245 = vmatprep.subr.mxu0 0.0
        %7246 = vmatpush1.msra.mxu0 0.0
        %7247 = vmatprep.subr.mxu0 0.0
        %7248 = vmatpush1.msra.mxu0 0.0
        %7249 = vmatprep.subr.mxu0 0.0
        %7250 = vmatpush1.msra.mxu0 0.0
        %7251 = vmatprep.subr.mxu0 0.0
        %7252 = vmatpush1.msra.mxu0 0.0
        %7253 = vmatprep.subr.mxu0 0.0
        %7254 = vmatpush1.msra.mxu0 0.0
        %7255 = vmatprep.subr.mxu0 0.0
        %7256 = vmatpush1.msra.mxu0 0.0
        %7257 = vmatprep.subr.mxu0 0.0
        %7258 = vmatpush1.msra.mxu0 0.0
        %7259 = vmatprep.subr.mxu0 0.0
        %7260 = vmatpush1.msra.mxu0 0.0
        %7261 = vmatprep.subr.mxu0 0.0
        %7262 = vmatpush1.msra.mxu0 0.0
        %7263 = vmatprep.subr.mxu0 0.0
        %7264 = vmatpush1.msra.mxu0 0.0
        %7265 = vmatprep.mubr.f32.mxu0 0.0
        %7266 = vmatmul.mubr.f32.gmra.mrb[0].mxu0 %v7170
        %v7267 = vpop.f32.mrb[0].mxu0
        %v7268 = vadd.f32 0.0, %v7267
        %v7269 = vpop.f32.mrb[0].mxu0
        %7270 = vmatprep.mubr.f32.mxu0 0.0
        %7271 = vmatmul.mubr.f32.gmra.mrb[0].mxu0 %v7173
        %v7272 = vpop.f32.mrb[0].mxu0
        %v7273 = vadd.f32 0.0, %v7272
        %v7274 = vpop.f32.mrb[0].mxu0
        %7275 = vmatprep.mubr.f32.mxu0 0.0
        %7276 = vmatmul.mubr.f32.gmra.mrb[0].mxu0 %v7176
        %v7277 = vpop.f32.mrb[0].mxu0
        %v7278 = vadd.f32 0.0, %v7277
        %v7279 = vpop.f32.mrb[0].mxu0
        %7280 = vmatprep.mubr.f32.mxu0 0.0
        %7281 = vmatmul.mubr.f32.gmra.mrb[0].mxu0 %v7179
        %v7282 = vpop.f32.mrb[0].mxu0
        %v7283 = vadd.f32 0.0, %v7282
        %v7284 = vpop.f32.mrb[0].mxu0
        %7285 = vmatprep.mubr.f32.mxu0 0.0
        %7286 = vmatmul.mubr.f32.gmra.mrb[0].mxu0 %v7182
        %v7287 = vpop.f32.mrb[0].mxu0
        %v7288 = vadd.f32 0.0, %v7287
        %v7289 = vpop.f32.mrb[0].mxu0
        %7290 = vmatprep.mubr.f32.mxu0 0.0
        %7291 = vmatmul.mubr.f32.gmra.mrb[0].mxu0 %v7185
        %v7292 = vpop.f32.mrb[0].mxu0
        %v7293 = vadd.f32 0.0, %v7292
        %v7294 = vpop.f32.mrb[0].mxu0
        %7295 = vmatprep.mubr.f32.mxu0 0.0
        %7296 = vmatmul.mubr.f32.gmra.mrb[0].mxu0 %v7188
        %v7297 = vpop.f32.mrb[0].mxu0
        %v7298 = vadd.f32 0.0, %v7297
        %v7299 = vpop.f32.mrb[0].mxu0
        %7300 = vmatprep.mubr.f32.mxu0 0.0
        %7301 = vmatmul.mubr.f32.gmra.mrb[0].mxu0 %v7191
        %v7302 = vpop.f32.mrb[0].mxu0
        %v7303 = vadd.f32 0.0, %v7302
        %v7304 = vpop.f32.mrb[0].mxu0
        %7305 = vmatprep.mubr.f32.mxu0 0.0
        %7306 = vmatmul.mubr.f32.gmra.mrb[0].mxu0 %v7194
        %v7307 = vpop.f32.mrb[0].mxu0
        %v7308 = vadd.f32 0.0, %v7307
        %v7309 = vpop.f32.mrb[0].mxu0
        %7310 = vmatprep.mubr.f32.mxu0 0.0
        %7311 = vmatmul.mubr.f32.gmra.mrb[0].mxu0 %v7197
        %v7312 = vpop.f32.mrb[0].mxu0
        %v7313 = vadd.f32 0.0, %v7312
        %v7314 = vpop.f32.mrb[0].mxu0
        %7315 = vdwg.mxu0
        %7316 = vrot.lane.b32.xlu0 %v441, 64
        %v7317 = vpop.permute.xlu0 %7316
        %7318 = vrot.lane.b32.xlu0 %v443, 64
        %v7319 = vpop.permute.xlu0 %7318
        %7320 = vrot.lane.b32.xlu0 %v445, 64
        %v7321 = vpop.permute.xlu0 %7320
        %7322 = vrot.lane.b32.xlu0 %v447, 64
        %v7323 = vpop.permute.xlu0 %7322
        %7324 = vrot.lane.b32.xlu0 %v449, 64
        %v7325 = vpop.permute.xlu0 %7324
        %7326 = vrot.lane.b32.xlu0 %v451, 64
        %v7327 = vpop.permute.xlu0 %7326
        %7328 = vrot.lane.b32.xlu0 %v453, 64
        %v7329 = vpop.permute.xlu0 %7328
        %7330 = vrot.lane.b32.xlu0 %v455, 64
        %v7331 = vpop.permute.xlu0 %7330
        %7332 = vrot.lane.b32.xlu0 %v457, 64
        %v7333 = vpop.permute.xlu0 %7332
        %7334 = vrot.lane.b32.xlu0 %v459, 64
        %v7335 = vpop.permute.xlu0 %7334
        %v7346 = vsel %vm3041, %v6943, 0
        %v7349 = vsel %vm3041, %v6944, 0
        %v7352 = vsel %vm3041, %v6945, 0
        %v7355 = vsel %vm3041, %v6946, 0
        %v7358 = vsel %vm3041, %v6947, 0
        %v7361 = vsel %vm3041, %v6948, 0
        %v7364 = vsel %vm3041, %v6949, 0
        %v7367 = vsel %vm3041, %v6950, 0
        %v7370 = vsel %vm3041, %v6951, 0
        %v7373 = vsel %vm3041, %v6952, 0
        %v7375 = vsel %vm7022, %v7335, 0
        %7377 = vmatprep.subr.mxu0 0.0
        %7378 = vmatpush1.msra.mxu0 %v7317
        %7379 = vmatprep.subr.mxu0 0.0
        %7380 = vmatpush1.msra.mxu0 %v7319
        %7381 = vmatprep.subr.mxu0 0.0
        %7382 = vmatpush1.msra.mxu0 %v7321
        %7383 = vmatprep.subr.mxu0 0.0
        %7384 = vmatpush1.msra.mxu0 %v7323
        %7385 = vmatprep.subr.mxu0 0.0
        %7386 = vmatpush1.msra.mxu0 %v7325
        %7387 = vmatprep.subr.mxu0 0.0
        %7388 = vmatpush1.msra.mxu0 %v7327
        %7389 = vmatprep.subr.mxu0 0.0
        %7390 = vmatpush1.msra.mxu0 %v7329
        %7391 = vmatprep.subr.mxu0 0.0
        %7392 = vmatpush1.msra.mxu0 %v7331
        %7393 = vmatprep.subr.mxu0 0.0
        %7394 = vmatpush1.msra.mxu0 %v7333
        %7395 = vmatprep.subr.mxu0 0.0
        %7396 = vmatpush1.msra.mxu0 %v7375
        %7397 = vmatprep.subr.mxu0 0.0
        %7398 = vmatpush1.msra.mxu0 0.0
        %7399 = vmatprep.subr.mxu0 0.0
        %7400 = vmatpush1.msra.mxu0 0.0
        %7401 = vmatprep.subr.mxu0 0.0
        %7402 = vmatpush1.msra.mxu0 0.0
        %7403 = vmatprep.subr.mxu0 0.0
        %7404 = vmatpush1.msra.mxu0 0.0
        %7405 = vmatprep.subr.mxu0 0.0
        %7406 = vmatpush1.msra.mxu0 0.0
        %7407 = vmatprep.subr.mxu0 0.0
        %7408 = vmatpush1.msra.mxu0 0.0
        %7409 = vmatprep.subr.mxu0 0.0
        %7410 = vmatpush1.msra.mxu0 0.0
        %7411 = vmatprep.subr.mxu0 0.0
        %7412 = vmatpush1.msra.mxu0 0.0
        %7413 = vmatprep.subr.mxu0 0.0
        %7414 = vmatpush1.msra.mxu0 0.0
        %7415 = vmatprep.subr.mxu0 0.0
        %7416 = vmatpush1.msra.mxu0 0.0
        %7417 = vmatprep.subr.mxu0 0.0
        %7418 = vmatpush1.msra.mxu0 0.0
        %7419 = vmatprep.subr.mxu0 0.0
        %7420 = vmatpush1.msra.mxu0 0.0
        %7421 = vmatprep.subr.mxu0 0.0
        %7422 = vmatpush1.msra.mxu0 0.0
        %7423 = vmatprep.subr.mxu0 0.0
        %7424 = vmatpush1.msra.mxu0 0.0
        %7425 = vmatprep.subr.mxu0 0.0
        %7426 = vmatpush1.msra.mxu0 0.0
        %7427 = vmatprep.subr.mxu0 0.0
        %7428 = vmatpush1.msra.mxu0 0.0
        %7429 = vmatprep.subr.mxu0 0.0
        %7430 = vmatpush1.msra.mxu0 0.0
        %7431 = vmatprep.subr.mxu0 0.0
        %7432 = vmatpush1.msra.mxu0 0.0
        %7433 = vmatprep.subr.mxu0 0.0
        %7434 = vmatpush1.msra.mxu0 0.0
        %7435 = vmatprep.subr.mxu0 0.0
        %7436 = vmatpush1.msra.mxu0 0.0
        %7437 = vmatprep.subr.mxu0 0.0
        %7438 = vmatpush1.msra.mxu0 0.0
        %7439 = vmatprep.subr.mxu0 0.0
        %7440 = vmatpush1.msra.mxu0 0.0
        %7441 = vmatprep.mubr.f32.mxu0 0.0
        %7442 = vmatmul.mubr.f32.gmra.mrb[0].mxu0 %v7346
        %v7443 = vpop.f32.mrb[0].mxu0
        %v7444 = vadd.f32 0.0, %v7443
        %v7445 = vpop.f32.mrb[0].mxu0
        %7446 = vmatprep.mubr.f32.mxu0 0.0
        %7447 = vmatmul.mubr.f32.gmra.mrb[0].mxu0 %v7349
        %v7448 = vpop.f32.mrb[0].mxu0
        %v7449 = vadd.f32 0.0, %v7448
        %v7450 = vpop.f32.mrb[0].mxu0
        %7451 = vmatprep.mubr.f32.mxu0 0.0
        %7452 = vmatmul.mubr.f32.gmra.mrb[0].mxu0 %v7352
        %v7453 = vpop.f32.mrb[0].mxu0
        %v7454 = vadd.f32 0.0, %v7453
        %v7455 = vpop.f32.mrb[0].mxu0
        %7456 = vmatprep.mubr.f32.mxu0 0.0
        %7457 = vmatmul.mubr.f32.gmra.mrb[0].mxu0 %v7355
        %v7458 = vpop.f32.mrb[0].mxu0
        %v7459 = vadd.f32 0.0, %v7458
        %v7460 = vpop.f32.mrb[0].mxu0
        %7461 = vmatprep.mubr.f32.mxu0 0.0
        %7462 = vmatmul.mubr.f32.gmra.mrb[0].mxu0 %v7358
        %v7463 = vpop.f32.mrb[0].mxu0
        %v7464 = vadd.f32 0.0, %v7463
        %v7465 = vpop.f32.mrb[0].mxu0
        %7466 = vmatprep.mubr.f32.mxu0 0.0
        %7467 = vmatmul.mubr.f32.gmra.mrb[0].mxu0 %v7361
        %v7468 = vpop.f32.mrb[0].mxu0
        %v7469 = vadd.f32 0.0, %v7468
        %v7470 = vpop.f32.mrb[0].mxu0
        %7471 = vmatprep.mubr.f32.mxu0 0.0
        %7472 = vmatmul.mubr.f32.gmra.mrb[0].mxu0 %v7364
        %v7473 = vpop.f32.mrb[0].mxu0
        %v7474 = vadd.f32 0.0, %v7473
        %v7475 = vpop.f32.mrb[0].mxu0
        %7476 = vmatprep.mubr.f32.mxu0 0.0
        %7477 = vmatmul.mubr.f32.gmra.mrb[0].mxu0 %v7367
        %v7478 = vpop.f32.mrb[0].mxu0
        %v7479 = vadd.f32 0.0, %v7478
        %v7480 = vpop.f32.mrb[0].mxu0
        %7481 = vmatprep.mubr.f32.mxu0 0.0
        %7482 = vmatmul.mubr.f32.gmra.mrb[0].mxu0 %v7370
        %v7483 = vpop.f32.mrb[0].mxu0
        %v7484 = vadd.f32 0.0, %v7483
        %v7485 = vpop.f32.mrb[0].mxu0
        %7486 = vmatprep.mubr.f32.mxu0 0.0
        %7487 = vmatmul.mubr.f32.gmra.mrb[0].mxu0 %v7373
        %v7488 = vpop.f32.mrb[0].mxu0
        %v7489 = vadd.f32 0.0, %v7488
        %v7490 = vpop.f32.mrb[0].mxu0
        %7491 = vdwg.mxu0
        %7492 = vrot.lane.b32.xlu0 %v471, 64
        %v7493 = vpop.permute.xlu0 %7492
        %7494 = vrot.lane.b32.xlu0 %v473, 64
        %v7495 = vpop.permute.xlu0 %7494
        %7496 = vrot.lane.b32.xlu0 %v475, 64
        %v7497 = vpop.permute.xlu0 %7496
        %7498 = vrot.lane.b32.xlu0 %v477, 64
        %v7499 = vpop.permute.xlu0 %7498
        %7500 = vrot.lane.b32.xlu0 %v479, 64
        %v7501 = vpop.permute.xlu0 %7500
        %7502 = vrot.lane.b32.xlu0 %v481, 64
        %v7503 = vpop.permute.xlu0 %7502
        %7504 = vrot.lane.b32.xlu0 %v483, 64
        %v7505 = vpop.permute.xlu0 %7504
        %7506 = vrot.lane.b32.xlu0 %v485, 64
        %v7507 = vpop.permute.xlu0 %7506
        %7508 = vrot.lane.b32.xlu0 %v487, 64
        %v7509 = vpop.permute.xlu0 %7508
        %7510 = vrot.lane.b32.xlu0 %v489, 64
        %v7511 = vpop.permute.xlu0 %7510
        %v7522 = vsel %vm3041, %v6953, 0
        %v7525 = vsel %vm3041, %v6954, 0
        %v7528 = vsel %vm3041, %v6955, 0
        %v7531 = vsel %vm3041, %v6956, 0
        %v7534 = vsel %vm3041, %v6957, 0
        %v7537 = vsel %vm3041, %v6958, 0
        %v7540 = vsel %vm3041, %v6959, 0
        %v7543 = vsel %vm3041, %v6960, 0
        %v7546 = vsel %vm3041, %v6961, 0
        %v7549 = vsel %vm3041, %v6962, 0
        %v7551 = vsel %vm7022, %v7511, 0
        %7553 = vmatprep.subr.mxu0 0.0
        %7554 = vmatpush1.msra.mxu0 %v7493
        %7555 = vmatprep.subr.mxu0 0.0
        %7556 = vmatpush1.msra.mxu0 %v7495
        %7557 = vmatprep.subr.mxu0 0.0
        %7558 = vmatpush1.msra.mxu0 %v7497
        %7559 = vmatprep.subr.mxu0 0.0
        %7560 = vmatpush1.msra.mxu0 %v7499
        %7561 = vmatprep.subr.mxu0 0.0
        %7562 = vmatpush1.msra.mxu0 %v7501
        %7563 = vmatprep.subr.mxu0 0.0
        %7564 = vmatpush1.msra.mxu0 %v7503
        %7565 = vmatprep.subr.mxu0 0.0
        %7566 = vmatpush1.msra.mxu0 %v7505
        %7567 = vmatprep.subr.mxu0 0.0
        %7568 = vmatpush1.msra.mxu0 %v7507
        %7569 = vmatprep.subr.mxu0 0.0
        %7570 = vmatpush1.msra.mxu0 %v7509
        %7571 = vmatprep.subr.mxu0 0.0
        %7572 = vmatpush1.msra.mxu0 %v7551
        %7573 = vmatprep.subr.mxu0 0.0
        %7574 = vmatpush1.msra.mxu0 0.0
        %7575 = vmatprep.subr.mxu0 0.0
        %7576 = vmatpush1.msra.mxu0 0.0
        %7577 = vmatprep.subr.mxu0 0.0
        %7578 = vmatpush1.msra.mxu0 0.0
        %7579 = vmatprep.subr.mxu0 0.0
        %7580 = vmatpush1.msra.mxu0 0.0
        %7581 = vmatprep.subr.mxu0 0.0
        %7582 = vmatpush1.msra.mxu0 0.0
        %7583 = vmatprep.subr.mxu0 0.0
        %7584 = vmatpush1.msra.mxu0 0.0
        %7585 = vmatprep.subr.mxu0 0.0
        %7586 = vmatpush1.msra.mxu0 0.0
        %7587 = vmatprep.subr.mxu0 0.0
        %7588 = vmatpush1.msra.mxu0 0.0
        %7589 = vmatprep.subr.mxu0 0.0
        %7590 = vmatpush1.msra.mxu0 0.0
        %7591 = vmatprep.subr.mxu0 0.0
        %7592 = vmatpush1.msra.mxu0 0.0
        %7593 = vmatprep.subr.mxu0 0.0
        %7594 = vmatpush1.msra.mxu0 0.0
        %7595 = vmatprep.subr.mxu0 0.0
        %7596 = vmatpush1.msra.mxu0 0.0
        %7597 = vmatprep.subr.mxu0 0.0
        %7598 = vmatpush1.msra.mxu0 0.0
        %7599 = vmatprep.subr.mxu0 0.0
        %7600 = vmatpush1.msra.mxu0 0.0
        %7601 = vmatprep.subr.mxu0 0.0
        %7602 = vmatpush1.msra.mxu0 0.0
        %7603 = vmatprep.subr.mxu0 0.0
        %7604 = vmatpush1.msra.mxu0 0.0
        %7605 = vmatprep.subr.mxu0 0.0
        %7606 = vmatpush1.msra.mxu0 0.0
        %7607 = vmatprep.subr.mxu0 0.0
        %7608 = vmatpush1.msra.mxu0 0.0
        %7609 = vmatprep.subr.mxu0 0.0
        %7610 = vmatpush1.msra.mxu0 0.0
        %7611 = vmatprep.subr.mxu0 0.0
        %7612 = vmatpush1.msra.mxu0 0.0
        %7613 = vmatprep.subr.mxu0 0.0
        %7614 = vmatpush1.msra.mxu0 0.0
        %7615 = vmatprep.subr.mxu0 0.0
        %7616 = vmatpush1.msra.mxu0 0.0
        %7617 = vmatprep.mubr.f32.mxu0 0.0
        %7618 = vmatmul.mubr.f32.gmra.mrb[0].mxu0 %v7522
        %v7619 = vpop.f32.mrb[0].mxu0
        %v7620 = vadd.f32 0.0, %v7619
        %v7621 = vpop.f32.mrb[0].mxu0
        %7622 = vmatprep.mubr.f32.mxu0 0.0
        %7623 = vmatmul.mubr.f32.gmra.mrb[0].mxu0 %v7525
        %v7624 = vpop.f32.mrb[0].mxu0
        %v7625 = vadd.f32 0.0, %v7624
        %v7626 = vpop.f32.mrb[0].mxu0
        %7627 = vmatprep.mubr.f32.mxu0 0.0
        %7628 = vmatmul.mubr.f32.gmra.mrb[0].mxu0 %v7528
        %v7629 = vpop.f32.mrb[0].mxu0
        %v7630 = vadd.f32 0.0, %v7629
        %v7631 = vpop.f32.mrb[0].mxu0
        %7632 = vmatprep.mubr.f32.mxu0 0.0
        %7633 = vmatmul.mubr.f32.gmra.mrb[0].mxu0 %v7531
        %v7634 = vpop.f32.mrb[0].mxu0
        %v7635 = vadd.f32 0.0, %v7634
        %v7636 = vpop.f32.mrb[0].mxu0
        %7637 = vmatprep.mubr.f32.mxu0 0.0
        %7638 = vmatmul.mubr.f32.gmra.mrb[0].mxu0 %v7534
        %v7639 = vpop.f32.mrb[0].mxu0
        %v7640 = vadd.f32 0.0, %v7639
        %v7641 = vpop.f32.mrb[0].mxu0
        %7642 = vmatprep.mubr.f32.mxu0 0.0
        %7643 = vmatmul.mubr.f32.gmra.mrb[0].mxu0 %v7537
        %v7644 = vpop.f32.mrb[0].mxu0
        %v7645 = vadd.f32 0.0, %v7644
        %v7646 = vpop.f32.mrb[0].mxu0
        %7647 = vmatprep.mubr.f32.mxu0 0.0
        %7648 = vmatmul.mubr.f32.gmra.mrb[0].mxu0 %v7540
        %v7649 = vpop.f32.mrb[0].mxu0
        %v7650 = vadd.f32 0.0, %v7649
        %v7651 = vpop.f32.mrb[0].mxu0
        %7652 = vmatprep.mubr.f32.mxu0 0.0
        %7653 = vmatmul.mubr.f32.gmra.mrb[0].mxu0 %v7543
        %v7654 = vpop.f32.mrb[0].mxu0
        %v7655 = vadd.f32 0.0, %v7654
        %v7656 = vpop.f32.mrb[0].mxu0
        %7657 = vmatprep.mubr.f32.mxu0 0.0
        %7658 = vmatmul.mubr.f32.gmra.mrb[0].mxu0 %v7546
        %v7659 = vpop.f32.mrb[0].mxu0
        %v7660 = vadd.f32 0.0, %v7659
        %v7661 = vpop.f32.mrb[0].mxu0
        %7662 = vmatprep.mubr.f32.mxu0 0.0
        %7663 = vmatmul.mubr.f32.gmra.mrb[0].mxu0 %v7549
        %v7664 = vpop.f32.mrb[0].mxu0
        %v7665 = vadd.f32 0.0, %v7664
        %v7666 = vpop.f32.mrb[0].mxu0
        %7667 = vdwg.mxu0
        %7678 = vrot.lane.b32.xlu0 %v7268, 8
        %v7679 = vpop.permute.xlu0 %7678
        %7680 = vrot.lane.b32.xlu0 %v7273, 8
        %v7681 = vpop.permute.xlu0 %7680
        %7682 = vrot.lane.b32.xlu0 %v7278, 8
        %v7683 = vpop.permute.xlu0 %7682
        %7684 = vrot.lane.b32.xlu0 %v7283, 8
        %v7685 = vpop.permute.xlu0 %7684
        %7686 = vrot.lane.b32.xlu0 %v7288, 8
        %v7687 = vpop.permute.xlu0 %7686
        %7688 = vrot.lane.b32.xlu0 %v7293, 8
        %v7689 = vpop.permute.xlu0 %7688
        %7690 = vrot.lane.b32.xlu0 %v7298, 8
        %v7691 = vpop.permute.xlu0 %7690
        %7692 = vrot.lane.b32.xlu0 %v7303, 8
        %v7693 = vpop.permute.xlu0 %7692
        %7694 = vrot.lane.b32.xlu0 %v7308, 8
        %v7695 = vpop.permute.xlu0 %7694
        %7696 = vrot.lane.b32.xlu0 %v7313, 8
        %v7697 = vpop.permute.xlu0 %7696
        %7718 = vrot.lane.b32.xlu0 %v7444, 16
        %v7719 = vpop.permute.xlu0 %7718
        %7720 = vrot.lane.b32.xlu0 %v7449, 16
        %v7721 = vpop.permute.xlu0 %7720
        %7722 = vrot.lane.b32.xlu0 %v7454, 16
        %v7723 = vpop.permute.xlu0 %7722
        %7724 = vrot.lane.b32.xlu0 %v7459, 16
        %v7725 = vpop.permute.xlu0 %7724
        %7726 = vrot.lane.b32.xlu0 %v7464, 16
        %v7727 = vpop.permute.xlu0 %7726
        %7728 = vrot.lane.b32.xlu0 %v7469, 16
        %v7729 = vpop.permute.xlu0 %7728
        %7730 = vrot.lane.b32.xlu0 %v7474, 16
        %v7731 = vpop.permute.xlu0 %7730
        %7732 = vrot.lane.b32.xlu0 %v7479, 16
        %v7733 = vpop.permute.xlu0 %7732
        %7734 = vrot.lane.b32.xlu0 %v7484, 16
        %v7735 = vpop.permute.xlu0 %7734
        %7736 = vrot.lane.b32.xlu0 %v7489, 16
        %v7737 = vpop.permute.xlu0 %7736
        %7758 = vrot.lane.b32.xlu0 %v7620, 24
        %v7759 = vpop.permute.xlu0 %7758
        %7760 = vrot.lane.b32.xlu0 %v7625, 24
        %v7761 = vpop.permute.xlu0 %7760
        %7762 = vrot.lane.b32.xlu0 %v7630, 24
        %v7763 = vpop.permute.xlu0 %7762
        %7764 = vrot.lane.b32.xlu0 %v7635, 24
        %v7765 = vpop.permute.xlu0 %7764
        %7766 = vrot.lane.b32.xlu0 %v7640, 24
        %v7767 = vpop.permute.xlu0 %7766
        %7768 = vrot.lane.b32.xlu0 %v7645, 24
        %v7769 = vpop.permute.xlu0 %7768
        %7770 = vrot.lane.b32.xlu0 %v7650, 24
        %v7771 = vpop.permute.xlu0 %7770
        %7772 = vrot.lane.b32.xlu0 %v7655, 24
        %v7773 = vpop.permute.xlu0 %7772
        %7774 = vrot.lane.b32.xlu0 %v7660, 24
        %v7775 = vpop.permute.xlu0 %7774
        %7776 = vrot.lane.b32.xlu0 %v7665, 24
        %v7777 = vpop.permute.xlu0 %7776
        %v7788 = vsel %vm5379, %v7092, %v7679
        %v7789 = vsel %vm5379, %v7097, %v7681
        %v7790 = vsel %vm5379, %v7102, %v7683
        %v7791 = vsel %vm5379, %v7107, %v7685
        %v7792 = vsel %vm5379, %v7112, %v7687
        %v7793 = vsel %vm5379, %v7117, %v7689
        %v7794 = vsel %vm5379, %v7122, %v7691
        %v7795 = vsel %vm5379, %v7127, %v7693
        %v7796 = vsel %vm5379, %v7132, %v7695
        %v7797 = vsel %vm5379, %v7137, %v7697
        %vm7798 = vcmask 130048
        %v7799 = vsel %vm7798, %v7788, %v7719
        %v7800 = vsel %vm7798, %v7789, %v7721
        %v7801 = vsel %vm7798, %v7790, %v7723
        %v7802 = vsel %vm7798, %v7791, %v7725
        %v7803 = vsel %vm7798, %v7792, %v7727
        %v7804 = vsel %vm7798, %v7793, %v7729
        %v7805 = vsel %vm7798, %v7794, %v7731
        %v7806 = vsel %vm7798, %v7795, %v7733
        %v7807 = vsel %vm7798, %v7796, %v7735
        %v7808 = vsel %vm7798, %v7797, %v7737
        %vm7809 = vcmask 195584
        %v7810 = vsel %vm7809, %v7799, %v7759
        %v7811 = vsel %vm7809, %v7800, %v7761
        %v7812 = vsel %vm7809, %v7801, %v7763
        %v7813 = vsel %vm7809, %v7802, %v7765
        %v7814 = vsel %vm7809, %v7803, %v7767
        %v7815 = vsel %vm7809, %v7804, %v7769
        %v7816 = vsel %vm7809, %v7805, %v7771
        %v7817 = vsel %vm7809, %v7806, %v7773
        %v7818 = vsel %vm7809, %v7807, %v7775
        %v7819 = vsel %vm7809, %v7808, %v7777
        %v7820 = vadd.f32 %v7810, %v240
        %v7821 = vadd.f32 %v7811, %v241
        %v7822 = vadd.f32 %v7812, %v242
        %v7823 = vadd.f32 %v7813, %v243
        %v7824 = vadd.f32 %v7814, %v244
        %v7825 = vadd.f32 %v7815, %v245
        %v7826 = vadd.f32 %v7816, %v246
        %v7827 = vadd.f32 %v7817, %v247
        %v7828 = vadd.f32 %v7818, %v248
        %v7829 = vadd.f32 %v7819, %v249
        %v7830 = vld [vmem:[%s3] sm:$0xff]
        %v7831 = vld [vmem:[%s3 + $0x8] sm:$0xff]
        %v7832 = vld [vmem:[%s3 + $0x10] sm:$0xff]
        %v7833 = vld [vmem:[%s3 + $0x18] sm:$0xff]
        %v7834 = vld [vmem:[%s4] sm:$0x3]
        %v7835 = vlaneseq
        %v7836 = vshrl.u32 %v7835, 7
        %v7837 = vsub.s32 0, %v7836
        %v7838 = vrot.slane %v7834, %v7837
        %v7840 = vsel %vm254, %v7820, 0
        %v7843 = vsel %vm254, %v7821, 0
        %v7846 = vsel %vm254, %v7822, 0
        %v7849 = vsel %vm254, %v7823, 0
        %v7852 = vsel %vm254, %v7824, 0
        %v7855 = vsel %vm254, %v7825, 0
        %v7858 = vsel %vm254, %v7826, 0
        %v7861 = vsel %vm254, %v7827, 0
        %v7864 = vsel %vm254, %v7828, 0
        %v7867 = vsel %vm254, %v7829, 0
        %7869 = vmatprep.subr.mxu0 0.0
        %7870 = vmatpush1.msra.mxu0 %v7830
        %7871 = vmatprep.subr.mxu0 0.0
        %7872 = vmatpush1.msra.mxu0 %v7831
        %7873 = vmatprep.subr.mxu0 0.0
        %7874 = vmatpush1.msra.mxu0 %v7832
        %7875 = vmatprep.subr.mxu0 0.0
        %7876 = vmatpush1.msra.mxu0 %v7833
        %7877 = vmatprep.subr.mxu0 0.0
        %7878 = vmatpush1.msra.mxu0 0.0
        %7879 = vmatprep.subr.mxu0 0.0
        %7880 = vmatpush1.msra.mxu0 0.0
        %7881 = vmatprep.subr.mxu0 0.0
        %7882 = vmatpush1.msra.mxu0 0.0
        %7883 = vmatprep.subr.mxu0 0.0
        %7884 = vmatpush1.msra.mxu0 0.0
        %7885 = vmatprep.subr.mxu0 0.0
        %7886 = vmatpush1.msra.mxu0 0.0
        %7887 = vmatprep.subr.mxu0 0.0
        %7888 = vmatpush1.msra.mxu0 0.0
        %7889 = vmatprep.subr.mxu0 0.0
        %7890 = vmatpush1.msra.mxu0 0.0
        %7891 = vmatprep.subr.mxu0 0.0
        %7892 = vmatpush1.msra.mxu0 0.0
        %7893 = vmatprep.subr.mxu0 0.0
        %7894 = vmatpush1.msra.mxu0 0.0
        %7895 = vmatprep.subr.mxu0 0.0
        %7896 = vmatpush1.msra.mxu0 0.0
        %7897 = vmatprep.subr.mxu0 0.0
        %7898 = vmatpush1.msra.mxu0 0.0
        %7899 = vmatprep.subr.mxu0 0.0
        %7900 = vmatpush1.msra.mxu0 0.0
        %7901 = vmatprep.subr.mxu0 0.0
        %7902 = vmatpush1.msra.mxu0 0.0
        %7903 = vmatprep.subr.mxu0 0.0
        %7904 = vmatpush1.msra.mxu0 0.0
        %7905 = vmatprep.subr.mxu0 0.0
        %7906 = vmatpush1.msra.mxu0 0.0
        %7907 = vmatprep.subr.mxu0 0.0
        %7908 = vmatpush1.msra.mxu0 0.0
        %7909 = vmatprep.subr.mxu0 0.0
        %7910 = vmatpush1.msra.mxu0 0.0
        %7911 = vmatprep.subr.mxu0 0.0
        %7912 = vmatpush1.msra.mxu0 0.0
        %7913 = vmatprep.subr.mxu0 0.0
        %7914 = vmatpush1.msra.mxu0 0.0
        %7915 = vmatprep.subr.mxu0 0.0
        %7916 = vmatpush1.msra.mxu0 0.0
        %7917 = vmatprep.subr.mxu0 0.0
        %7918 = vmatpush1.msra.mxu0 0.0
        %7919 = vmatprep.subr.mxu0 0.0
        %7920 = vmatpush1.msra.mxu0 0.0
        %7921 = vmatprep.subr.mxu0 0.0
        %7922 = vmatpush1.msra.mxu0 0.0
        %7923 = vmatprep.subr.mxu0 0.0
        %7924 = vmatpush1.msra.mxu0 0.0
        %7925 = vmatprep.subr.mxu0 0.0
        %7926 = vmatpush1.msra.mxu0 0.0
        %7927 = vmatprep.subr.mxu0 0.0
        %7928 = vmatpush1.msra.mxu0 0.0
        %7929 = vmatprep.subr.mxu0 0.0
        %7930 = vmatpush1.msra.mxu0 0.0
        %7931 = vmatprep.subr.mxu0 0.0
        %7932 = vmatpush1.msra.mxu0 0.0
        %7933 = vmatprep.mubr.f32.mxu0 0.0
        %7934 = vmatmul.mubr.f32.gmra.mrb[0].mxu0 %v7840
        %v7935 = vpop.f32.mrb[0].mxu0
        %v7936 = vadd.f32 %v7838, %v7935
        %v7937 = vpop.f32.mrb[0].mxu0
        %7938 = vmatprep.mubr.f32.mxu0 0.0
        %7939 = vmatmul.mubr.f32.gmra.mrb[0].mxu0 %v7843
        %v7940 = vpop.f32.mrb[0].mxu0
        %v7941 = vadd.f32 %v7838, %v7940
        %v7942 = vpop.f32.mrb[0].mxu0
        %7943 = vmatprep.mubr.f32.mxu0 0.0
        %7944 = vmatmul.mubr.f32.gmra.mrb[0].mxu0 %v7846
        %v7945 = vpop.f32.mrb[0].mxu0
        %v7946 = vadd.f32 %v7838, %v7945
        %v7947 = vpop.f32.mrb[0].mxu0
        %7948 = vmatprep.mubr.f32.mxu0 0.0
        %7949 = vmatmul.mubr.f32.gmra.mrb[0].mxu0 %v7849
        %v7950 = vpop.f32.mrb[0].mxu0
        %v7951 = vadd.f32 %v7838, %v7950
        %v7952 = vpop.f32.mrb[0].mxu0
        %7953 = vmatprep.mubr.f32.mxu0 0.0
        %7954 = vmatmul.mubr.f32.gmra.mrb[0].mxu0 %v7852
        %v7955 = vpop.f32.mrb[0].mxu0
        %v7956 = vadd.f32 %v7838, %v7955
        %v7957 = vpop.f32.mrb[0].mxu0
        %7958 = vmatprep.mubr.f32.mxu0 0.0
        %7959 = vmatmul.mubr.f32.gmra.mrb[0].mxu0 %v7855
        %v7960 = vpop.f32.mrb[0].mxu0
        %v7961 = vadd.f32 %v7838, %v7960
        %v7962 = vpop.f32.mrb[0].mxu0
        %7963 = vmatprep.mubr.f32.mxu0 0.0
        %7964 = vmatmul.mubr.f32.gmra.mrb[0].mxu0 %v7858
        %v7965 = vpop.f32.mrb[0].mxu0
        %v7966 = vadd.f32 %v7838, %v7965
        %v7967 = vpop.f32.mrb[0].mxu0
        %7968 = vmatprep.mubr.f32.mxu0 0.0
        %7969 = vmatmul.mubr.f32.gmra.mrb[0].mxu0 %v7861
        %v7970 = vpop.f32.mrb[0].mxu0
        %v7971 = vadd.f32 %v7838, %v7970
        %v7972 = vpop.f32.mrb[0].mxu0
        %7973 = vmatprep.mubr.f32.mxu0 0.0
        %7974 = vmatmul.mubr.f32.gmra.mrb[0].mxu0 %v7864
        %v7975 = vpop.f32.mrb[0].mxu0
        %v7976 = vadd.f32 %v7838, %v7975
        %v7977 = vpop.f32.mrb[0].mxu0
        %7978 = vmatprep.mubr.f32.mxu0 0.0
        %7979 = vmatmul.mubr.f32.gmra.mrb[0].mxu0 %v7867
        %v7980 = vpop.f32.mrb[0].mxu0
        %v7981 = vadd.f32 %v7838, %v7980
        %v7982 = vpop.f32.mrb[0].mxu0
        %7983 = vdwg.mxu0
        %v7984 = vmax.f32 %v7936, 0.0
        %v7985 = vmax.f32 %v7941, 0.0
        %v7986 = vmax.f32 %v7946, 0.0
        %v7987 = vmax.f32 %v7951, 0.0
        %v7988 = vmax.f32 %v7956, 0.0
        %v7989 = vmax.f32 %v7961, 0.0
        %v7990 = vmax.f32 %v7966, 0.0
        %v7991 = vmax.f32 %v7971, 0.0
        %v7992 = vmax.f32 %v7976, 0.0
        %v7993 = vmax.f32 %v7981, 0.0
        %v7994 = vlaneseq
        %v7995 = vshrl.u32 %v7994, 7
        %v7996 = vsub.s32 1, %v7995
        %v7997 = vrot.slane %v7834, %v7996
        %8002 = vrot.lane.b32.xlu0 %v7830, 96
        %v8003 = vpop.permute.xlu0 %8002
        %8004 = vrot.lane.b32.xlu0 %v7831, 96
        %v8005 = vpop.permute.xlu0 %8004
        %8006 = vrot.lane.b32.xlu0 %v7832, 96
        %v8007 = vpop.permute.xlu0 %8006
        %8008 = vrot.lane.b32.xlu0 %v7833, 96
        %v8009 = vpop.permute.xlu0 %8008
        %v8015 = vsel %vm254, %v7984, 0
        %v8018 = vsel %vm254, %v7985, 0
        %v8021 = vsel %vm254, %v7986, 0
        %v8024 = vsel %vm254, %v7987, 0
        %v8027 = vsel %vm254, %v7988, 0
        %v8030 = vsel %vm254, %v7989, 0
        %v8033 = vsel %vm254, %v7990, 0
        %v8036 = vsel %vm254, %v7991, 0
        %v8039 = vsel %vm254, %v7992, 0
        %v8042 = vsel %vm254, %v7993, 0
        %8044 = vmatprep.subr.mxu0 0.0
        %8045 = vmatpush1.msra.mxu0 %v8003
        %8046 = vmatprep.subr.mxu0 0.0
        %8047 = vmatpush1.msra.mxu0 %v8005
        %8048 = vmatprep.subr.mxu0 0.0
        %8049 = vmatpush1.msra.mxu0 %v8007
        %8050 = vmatprep.subr.mxu0 0.0
        %8051 = vmatpush1.msra.mxu0 %v8009
        %8052 = vmatprep.subr.mxu0 0.0
        %8053 = vmatpush1.msra.mxu0 0.0
        %8054 = vmatprep.subr.mxu0 0.0
        %8055 = vmatpush1.msra.mxu0 0.0
        %8056 = vmatprep.subr.mxu0 0.0
        %8057 = vmatpush1.msra.mxu0 0.0
        %8058 = vmatprep.subr.mxu0 0.0
        %8059 = vmatpush1.msra.mxu0 0.0
        %8060 = vmatprep.subr.mxu0 0.0
        %8061 = vmatpush1.msra.mxu0 0.0
        %8062 = vmatprep.subr.mxu0 0.0
        %8063 = vmatpush1.msra.mxu0 0.0
        %8064 = vmatprep.subr.mxu0 0.0
        %8065 = vmatpush1.msra.mxu0 0.0
        %8066 = vmatprep.subr.mxu0 0.0
        %8067 = vmatpush1.msra.mxu0 0.0
        %8068 = vmatprep.subr.mxu0 0.0
        %8069 = vmatpush1.msra.mxu0 0.0
        %8070 = vmatprep.subr.mxu0 0.0
        %8071 = vmatpush1.msra.mxu0 0.0
        %8072 = vmatprep.subr.mxu0 0.0
        %8073 = vmatpush1.msra.mxu0 0.0
        %8074 = vmatprep.subr.mxu0 0.0
        %8075 = vmatpush1.msra.mxu0 0.0
        %8076 = vmatprep.subr.mxu0 0.0
        %8077 = vmatpush1.msra.mxu0 0.0
        %8078 = vmatprep.subr.mxu0 0.0
        %8079 = vmatpush1.msra.mxu0 0.0
        %8080 = vmatprep.subr.mxu0 0.0
        %8081 = vmatpush1.msra.mxu0 0.0
        %8082 = vmatprep.subr.mxu0 0.0
        %8083 = vmatpush1.msra.mxu0 0.0
        %8084 = vmatprep.subr.mxu0 0.0
        %8085 = vmatpush1.msra.mxu0 0.0
        %8086 = vmatprep.subr.mxu0 0.0
        %8087 = vmatpush1.msra.mxu0 0.0
        %8088 = vmatprep.subr.mxu0 0.0
        %8089 = vmatpush1.msra.mxu0 0.0
        %8090 = vmatprep.subr.mxu0 0.0
        %8091 = vmatpush1.msra.mxu0 0.0
        %8092 = vmatprep.subr.mxu0 0.0
        %8093 = vmatpush1.msra.mxu0 0.0
        %8094 = vmatprep.subr.mxu0 0.0
        %8095 = vmatpush1.msra.mxu0 0.0
        %8096 = vmatprep.subr.mxu0 0.0
        %8097 = vmatpush1.msra.mxu0 0.0
        %8098 = vmatprep.subr.mxu0 0.0
        %8099 = vmatpush1.msra.mxu0 0.0
        %8100 = vmatprep.subr.mxu0 0.0
        %8101 = vmatpush1.msra.mxu0 0.0
        %8102 = vmatprep.subr.mxu0 0.0
        %8103 = vmatpush1.msra.mxu0 0.0
        %8104 = vmatprep.subr.mxu0 0.0
        %8105 = vmatpush1.msra.mxu0 0.0
        %8106 = vmatprep.subr.mxu0 0.0
        %8107 = vmatpush1.msra.mxu0 0.0
        %8108 = vmatprep.mubr.f32.mxu0 0.0
        %8109 = vmatmul.mubr.f32.gmra.mrb[0].mxu0 %v8015
        %v8110 = vpop.f32.mrb[0].mxu0
        %v8111 = vadd.f32 %v7997, %v8110
        %v8112 = vpop.f32.mrb[0].mxu0
        %8113 = vmatprep.mubr.f32.mxu0 0.0
        %8114 = vmatmul.mubr.f32.gmra.mrb[0].mxu0 %v8018
        %v8115 = vpop.f32.mrb[0].mxu0
        %v8116 = vadd.f32 %v7997, %v8115
        %v8117 = vpop.f32.mrb[0].mxu0
        %8118 = vmatprep.mubr.f32.mxu0 0.0
        %8119 = vmatmul.mubr.f32.gmra.mrb[0].mxu0 %v8021
        %v8120 = vpop.f32.mrb[0].mxu0
        %v8121 = vadd.f32 %v7997, %v8120
        %v8122 = vpop.f32.mrb[0].mxu0
        %8123 = vmatprep.mubr.f32.mxu0 0.0
        %8124 = vmatmul.mubr.f32.gmra.mrb[0].mxu0 %v8024
        %v8125 = vpop.f32.mrb[0].mxu0
        %v8126 = vadd.f32 %v7997, %v8125
        %v8127 = vpop.f32.mrb[0].mxu0
        %8128 = vmatprep.mubr.f32.mxu0 0.0
        %8129 = vmatmul.mubr.f32.gmra.mrb[0].mxu0 %v8027
        %v8130 = vpop.f32.mrb[0].mxu0
        %v8131 = vadd.f32 %v7997, %v8130
        %v8132 = vpop.f32.mrb[0].mxu0
        %8133 = vmatprep.mubr.f32.mxu0 0.0
        %8134 = vmatmul.mubr.f32.gmra.mrb[0].mxu0 %v8030
        %v8135 = vpop.f32.mrb[0].mxu0
        %v8136 = vadd.f32 %v7997, %v8135
        %v8137 = vpop.f32.mrb[0].mxu0
        %8138 = vmatprep.mubr.f32.mxu0 0.0
        %8139 = vmatmul.mubr.f32.gmra.mrb[0].mxu0 %v8033
        %v8140 = vpop.f32.mrb[0].mxu0
        %v8141 = vadd.f32 %v7997, %v8140
        %v8142 = vpop.f32.mrb[0].mxu0
        %8143 = vmatprep.mubr.f32.mxu0 0.0
        %8144 = vmatmul.mubr.f32.gmra.mrb[0].mxu0 %v8036
        %v8145 = vpop.f32.mrb[0].mxu0
        %v8146 = vadd.f32 %v7997, %v8145
        %v8147 = vpop.f32.mrb[0].mxu0
        %8148 = vmatprep.mubr.f32.mxu0 0.0
        %8149 = vmatmul.mubr.f32.gmra.mrb[0].mxu0 %v8039
        %v8150 = vpop.f32.mrb[0].mxu0
        %v8151 = vadd.f32 %v7997, %v8150
        %v8152 = vpop.f32.mrb[0].mxu0
        %8153 = vmatprep.mubr.f32.mxu0 0.0
        %8154 = vmatmul.mubr.f32.gmra.mrb[0].mxu0 %v8042
        %v8155 = vpop.f32.mrb[0].mxu0
        %v8156 = vadd.f32 %v7997, %v8155
        %v8157 = vpop.f32.mrb[0].mxu0
        %8158 = vdwg.mxu0
        %v8159 = vadd.f32 %v8111, %v7820
        %v8160 = vadd.f32 %v8116, %v7821
        %v8161 = vadd.f32 %v8121, %v7822
        %v8162 = vadd.f32 %v8126, %v7823
        %v8163 = vadd.f32 %v8131, %v7824
        %v8164 = vadd.f32 %v8136, %v7825
        %v8165 = vadd.f32 %v8141, %v7826
        %v8166 = vadd.f32 %v8146, %v7827
        %v8167 = vadd.f32 %v8151, %v7828
        %v8168 = vadd.f32 %v8156, %v7829
        %8169 = vst.msk [vmem:[%s239] sm:$0xff] %vm254, %v8159
        %8170 = vst.msk [vmem:[%s239 + $0x8] sm:$0xff] %vm254, %v8160
        %8171 = vst.msk [vmem:[%s239 + $0x10] sm:$0xff] %vm254, %v8161
        %8172 = vst.msk [vmem:[%s239 + $0x18] sm:$0xff] %vm254, %v8162
        %8173 = vst.msk [vmem:[%s239 + $0x20] sm:$0xff] %vm254, %v8163
        %8174 = vst.msk [vmem:[%s239 + $0x28] sm:$0xff] %vm254, %v8164
        %8175 = vst.msk [vmem:[%s239 + $0x30] sm:$0xff] %vm254, %v8165
        %8176 = vst.msk [vmem:[%s239 + $0x38] sm:$0xff] %vm254, %v8166
        %8177 = vst.msk [vmem:[%s239 + $0x40] sm:$0xff] %vm254, %v8167
        %vm8178 = vcmask 258048
        %8179 = vst.msk [vmem:[%s239 + $0x48] sm:$0x1f] %vm8178, %v8168
        %p8180 = scmp.lt.s32.totalorder %s17, 1
        %s8181 = scalar_select %p8180, %s17, 1
        %s8182 = smul.addr %s8181, 10
        %s8183 = smul.addr %s8182, 8
        %s8184 = scalar_lea.vmem %s5, %s8183
        // Predicated region
        $region45: #{tpu_custom_call.1} parent=39 // pred_check
          %p8185 = pneg %p145
        $region46: #{tpu_custom_call.1} parent=39 // pred_check_branch
          %8187 = sbr.rel (%p8185) target = $region48
        $region47: #{tpu_custom_call.1} parent=39 // pred_region
          _
        $region48: #{tpu_custom_call.1} parent=39 // pred_fallthru
          _
      $region40: #{tpu_custom_call.1} parent=5 // pred_fallthru
        _
      %p8188 = scmp.le.s32.totalorder 2, %s12
      // Predicated region
      $region49: #{tpu_custom_call.1} parent=5 // pred_check
        %p8189 = pneg %p8188
      $region50: #{tpu_custom_call.1} parent=5 // pred_check_branch
        %8191 = sbr.rel (%p8189) target = $region52
      $region51: #{tpu_custom_call.1} parent=5 // pred_region
        %s8192 = ssub.s32 %s12, 2
        // Predicated region
        $region53: #{tpu_custom_call.1} parent=51 // pred_check
          %p8193 = pneg %p151
        $region54: #{tpu_custom_call.1} parent=51 // pred_check_branch
          %8195 = sbr.rel (%p8193) target = $region56
        $region55: #{tpu_custom_call.1} parent=51 // pred_region
          %p8196 = scmp.lt.s32.totalorder %s18, 1
          %s8197 = scalar_select %p8196, %s18, 1
          %s8198 = smul.addr %s8197, 10
          %s8199 = smul.addr %s8198, 8
          %s8200 = scalar_lea.vmem %s5, %s8199
        $region56: #{tpu_custom_call.1} parent=51 // pred_fallthru
          _
      $region52: #{tpu_custom_call.1} parent=5 // pred_fallthru
        _
    $region6: #{tpu_custom_call.1} parent=1 // loop_footer
      %s16 = sadd.s32 1, %s12
    $region7: #{tpu_custom_call.1} parent=1 // loop_footer_branch
      %11 = sbr.rel target = $region3
    $region8: #{tpu_custom_call.1} parent=1 // loop_exit
      _
    %8201 = vsyncpa [#allocation3], 1
    %s8202 = scalar_lea.sflag [#allocation3], 1
    %8203 = vsyncpa %s8202, 1

</llo_original>
